<compile_context>
chip_gen: v5e
topology: v5e:2x2
jax: 0.10.0
libtpu: 0.0.40
codegen_flags: <defaults>
</compile_context>

<pallas_src>
import functools

import jax
import jax.numpy as jnp
from jax import lax
from jax.experimental import pallas as pl
from jax.experimental.pallas import tpu as pltpu


# ----------------------------------------------------------------------------
# Helpers
# ----------------------------------------------------------------------------
def _const_spec(shape):
    """Full-array block with a constant index map (stays resident across the grid)."""
    nd = len(shape)
    return pl.BlockSpec(shape, lambda i, _nd=nd: (0,) * _nd)


def _pick_vmem_limit_bytes():
    """~56 MiB on v7x (64 MiB physical), 100 MiB on v5e/v6e (128 MiB physical)."""
    cap = 64 << 20
    try:
        cap = int(pltpu.get_tpu_info().vmem_capacity_bytes)
    except Exception:
        pass
    return int(min(max(cap - (8 << 20), 16 << 20), 100 << 20))


def _choose_tile_n(N, skill_num, T, E, scratch_budget_bytes=8 << 20):
    """Rows per block: multiple of 8 and of skill_num, divides N, bounded gate scratch."""
    max_rows = max(skill_num, scratch_budget_bytes // (T * 8 * E * 2))
    if N <= max_rows:
        return N
    n_batches = N // skill_num
    for nb in range(n_batches, 0, -1):
        if n_batches % nb:
            continue
        t = nb * skill_num
        if t <= max_rows and t % 8 == 0:
            return t
    return N  # fallback: single block


# ----------------------------------------------------------------------------
# Fused kernel: dual (amplifier -> LSTM) encoders + decoder MLP + log_softmax
# + LeakyReLU, for one TILE_N-row block.
# ----------------------------------------------------------------------------
def _chgh_fused_kernel(
        x_ref,                                             # (T, TN, 1) f32
        wamp_d_ref, bamp_d_ref, wamp_s_ref, bamp_s_ref,    # (1, E) f32
        wih_d_ref, b_d_ref, wih_s_ref, b_s_ref,            # (E,4E) bf16, (1,4E) f32
        whh_ref,                                           # (2E, 8E) bf16 block-diag
        emb_ref,                                           # (skill_num, E) bf16
        wm_ref, bm_ref,                                    # (2E, E) bf16, (1, E) f32
        w1_dds_ref, w1_e_ref, b1_ref,                      # (2E,E), (E,E) bf16, (1,E) f32
        w2_ref, b2_ref,                                    # (E, E) bf16, (1, E) f32
        w3_ref, b3_ref,                                    # (E, Pp) bf16, (1, Pp) f32
        out_ref,                                           # (TN, Pp) f32
        gates_scr):                                        # (T, TN, 8E) bf16 scratch
    T, TN, _ = x_ref.shape
    E = wamp_d_ref.shape[1]
    S = emb_ref.shape[0]

    # ---- hoisted input path: amplifier + ih projection for ALL T steps ------
    x = x_ref[...]                                         # scalar per (t, n)

    def amp(w_ref, b_ref):
        a = x * w_ref[...] + b_ref[...]                    # (T, TN, E)
        a = jnp.where(a >= 0, a, 0.01 * a)                 # leaky_relu(0.01)
        return a.astype(jnp.bfloat16).reshape(T * TN, E)

    a_d = amp(wamp_d_ref, bamp_d_ref)
    gx_d = jnp.dot(a_d, wih_d_ref[...],
                   preferred_element_type=jnp.float32) + b_d_ref[...]     # (T*TN, 4E)
    gates_scr[:, :, 0:4 * E] = gx_d.reshape(T, TN, 4 * E).astype(jnp.bfloat16)

    a_s = amp(wamp_s_ref, bamp_s_ref)
    gx_s = jnp.dot(a_s, wih_s_ref[...],
                   preferred_element_type=jnp.float32) + b_s_ref[...]
    gates_scr[:, :, 4 * E:8 * E] = gx_s.reshape(T, TN, 4 * E).astype(jnp.bfloat16)

    whh = whh_ref[...]                                     # block-diag [d | s]

    def lstm_half(g, c):
        i = jax.nn.sigmoid(g[:, 0:E])
        f = jax.nn.sigmoid(g[:, E:2 * E])
        gg = jnp.tanh(g[:, 2 * E:3 * E])
        o = jax.nn.sigmoid(g[:, 3 * E:4 * E])
        c_new = f * c + i * gg
        return o * jnp.tanh(c_new), c_new

    # ---- recurrence: one fused (TN,2E)@(2E,8E) matmul + gate math per step ---
    # TODO(synk): on v6e/v7x the gate nonlinearities could run in bf16 (2x EUP).
    def step(t, carry):
        h, c = carry                                       # (TN, 2E) f32 each
        g = gates_scr[t].astype(jnp.float32) + jnp.dot(
            h.astype(jnp.bfloat16), whh, preferred_element_type=jnp.float32)
        h_d, c_d = lstm_half(g[:, :4 * E], c[:, :E])
        h_s, c_s = lstm_half(g[:, 4 * E:], c[:, E:])
        return (jnp.concatenate([h_d, h_s], axis=-1),
                jnp.concatenate([c_d, c_s], axis=-1))

    z0 = jnp.zeros((TN, 2 * E), jnp.float32)
    h, _ = lax.fori_loop(0, T, step, (z0, z0), unroll=min(T, 8))

    # ---- decoder -------------------------------------------------------------
    h16 = h.astype(jnp.bfloat16)                           # [h_d | h_s] (TN, 2E)

    # desupply_merge(cat[d, s])
    d_s = jnp.dot(h16, wm_ref[...],
                  preferred_element_type=jnp.float32) + bm_ref[...]       # (TN, E)

    # skill embedding contribution: project skill_num rows once, tile to TN rows
    emb_proj = jnp.dot(emb_ref[...], w1_e_ref[...],
                       preferred_element_type=jnp.float32)                # (S, E)
    emb_term = jnp.tile(emb_proj, (TN // S, 1))                           # (TN, E)

    # demand_MLP: Linear(3E,E) -> ReLU -> Linear(E,E) -> ReLU -> Linear(E,P)
    dds = jnp.concatenate([h16[:, :E], d_s.astype(jnp.bfloat16)], axis=-1)  # (TN, 2E)
    h1 = (jnp.dot(dds, w1_dds_ref[...], preferred_element_type=jnp.float32)
          + emb_term + b1_ref[...])
    h1 = jnp.maximum(h1, 0.0)
    h2 = jnp.dot(h1.astype(jnp.bfloat16), w2_ref[...],
                 preferred_element_type=jnp.float32) + b2_ref[...]
    h2 = jnp.maximum(h2, 0.0)
    logits = jnp.dot(h2.astype(jnp.bfloat16), w3_ref[...],
                     preferred_element_type=jnp.float32) + b3_ref[...]    # (TN, Pp)

    # log_softmax (pad cols carry a -1e30 bias -> exp()==0) then LeakyReLU(0.01)
    m = jnp.max(logits, axis=-1, keepdims=True)
    z = logits - m
    lse = jnp.log(jnp.sum(jnp.exp(z), axis=-1, keepdims=True))
    logp = z - lse
    out_ref[...] = jnp.where(logp >= 0, logp, 0.01 * logp)


# ----------------------------------------------------------------------------
# Parameter init (deterministic, PyTorch-like uniform(-1/sqrt(fan_in), ...)).
# Weights stored pre-transposed so y = x @ W (+ b).
# ----------------------------------------------------------------------------
def init_params(key, skill_num, embed_dim, pred_len):
    E, P = embed_dim, pred_len
    ks = jax.random.split(key, 21)

    def u(k, shape, fan_in):
        b = 1.0 / float(fan_in) ** 0.5
        return jax.random.uniform(k, shape, jnp.float32, -b, b)

    p = {}
    # amplifiers: nn.Linear(1, E)
    p['wamp_d'], p['bamp_d'] = u(ks[0], (1, E), 1), u(ks[1], (1, E), 1)
    p['wamp_s'], p['bamp_s'] = u(ks[2], (1, E), 1), u(ks[3], (1, E), 1)
    # LSTMs: weight_ih (4E,E), weight_hh (4E,E) stored transposed; gate order i,f,g,o
    p['wih_d'], p['whh_d'] = u(ks[4], (E, 4 * E), E), u(ks[5], (E, 4 * E), E)
    p['bih_d'], p['bhh_d'] = u(ks[6], (1, 4 * E), E), u(ks[7], (1, 4 * E), E)
    p['wih_s'], p['whh_s'] = u(ks[8], (E, 4 * E), E), u(ks[9], (E, 4 * E), E)
    p['bih_s'], p['bhh_s'] = u(ks[10], (1, 4 * E), E), u(ks[11], (1, 4 * E), E)
    # nn.Embedding(skill_num, E) ~ N(0,1)
    p['skill_emb'] = jax.random.normal(ks[12], (skill_num, E), jnp.float32)
    # desupply_merge: Linear(2E, E)
    p['wm'], p['bm'] = u(ks[13], (2 * E, E), 2 * E), u(ks[14], (1, E), 2 * E)
    # demand_MLP: Linear(3E,E) -> ReLU -> Linear(E,E) -> ReLU -> Linear(E,P)
    p['w1'], p['b1'] = u(ks[15], (3 * E, E), 3 * E), u(ks[16], (1, E), 3 * E)
    p['w2'], p['b2'] = u(ks[17], (E, E), E), u(ks[18], (1, E), E)
    p['w3'], p['b3'] = u(ks[19], (E, P), E), u(ks[20], (1, P), E)
    return p


# ----------------------------------------------------------------------------
# Full forward (mirrors Model.forward, model='normal', hyperdecode=False).
# ----------------------------------------------------------------------------
def chgh_forward(x_enc, p, pred_len):
    bs, seq_len, skill_num = x_enc.shape
    N = bs * skill_num
    E = p['wamp_d'].shape[1]
    T = seq_len

    # x_enc.permute(0,2,1).reshape(-1, T): row n = (batch b, skill k), batch-major.
    # Time-major (T, N, 1) so the N-grid can block it with a simple index_map.
    x = jnp.transpose(x_enc, (0, 2, 1)).reshape(N, T).astype(jnp.float32)
    x_tm = jnp.transpose(x, (1, 0)).reshape(T, N, 1)
    # TODO(synk): a fully lane-compact (T, N) x layout needs an in-kernel
    # lane->sublane relayout; the blocked (T, TILE_N, 1) form keeps its VMEM
    # padding bounded per block instead.

    bf = lambda a: a.astype(jnp.bfloat16)

    # Folded LSTM biases; block-diag recurrent weight mapping [h_d|h_s]->[gates_d|gates_s]
    b_d = p['bih_d'] + p['bhh_d']
    b_s = p['bih_s'] + p['bhh_s']
    whh_cat = jnp.zeros((2 * E, 8 * E), jnp.float32)
    whh_cat = whh_cat.at[:E, :4 * E].set(p['whh_d']).at[E:, 4 * E:].set(p['whh_s'])

    # demand_MLP first layer input order is cat[d_x, emb, d_s]
    w1_dds = jnp.concatenate([p['w1'][:E], p['w1'][2 * E:]], axis=0)   # (2E, E)
    w1_e = p['w1'][E:2 * E]                                            # (E, E)

    # Lane-dense final projection: pad to a multiple of 128 output columns.
    P_pad = ((pred_len + 127) // 128) * 128
    w3p = jnp.zeros((E, P_pad), jnp.float32).at[:, :pred_len].set(p['w3'])
    b3p = jnp.full((1, P_pad), -1e30, jnp.float32).at[:, :pred_len].set(p['b3'])

    TILE_N = _choose_tile_n(N, skill_num, T, E)
    grid = (N // TILE_N,)

    weights = [p['wamp_d'], p['bamp_d'], p['wamp_s'], p['bamp_s'],
               bf(p['wih_d']), b_d, bf(p['wih_s']), b_s,
               bf(whh_cat),
               bf(p['skill_emb']),
               bf(p['wm']), p['bm'],
               bf(w1_dds), bf(w1_e), p['b1'],
               bf(p['w2']), p['b2'],
               bf(w3p), b3p]

    in_specs = ([pl.BlockSpec((T, TILE_N, 1), lambda i: (0, i, 0))]
                + [_const_spec(w.shape) for w in weights])
    out_spec = pl.BlockSpec((TILE_N, P_pad), lambda i: (i, 0))

    d_y = pl.pallas_call(
        _chgh_fused_kernel,
        out_shape=jax.ShapeDtypeStruct((N, P_pad), jnp.float32),
        grid_spec=pltpu.PrefetchScalarGridSpec(
            num_scalar_prefetch=0,
            grid=grid,
            in_specs=in_specs,
            out_specs=out_spec,
            scratch_shapes=[pltpu.VMEM((T, TILE_N, 8 * E), jnp.bfloat16)]),
        compiler_params=pltpu.CompilerParams(
            dimension_semantics=("parallel",),
            vmem_limit_bytes=_pick_vmem_limit_bytes()),
    )(x_tm, *weights)

    d_y = d_y[:, :pred_len]
    # reshape(bs, skill_num, pred_len).permute(0, 2, 1); LeakyReLU already applied
    # elementwise in-kernel (commutes with reshape/permute/slice).
    return d_y.reshape(bs, skill_num, pred_len).transpose(0, 2, 1)


if __name__ == "__main__":
    bs, seq_len, skill_num = 2, 8, 8         # configs.enc_in = 8
    embed_dim = 128                           # small stand-in for default 768
    pred_len = 8                              # configs.pred_len

    key = jax.random.PRNGKey(0)
    kx, kp = jax.random.split(key)
    x_enc = jax.random.normal(kx, (bs, seq_len, skill_num), jnp.float32)
    params = init_params(kp, skill_num, embed_dim, pred_len)

    fwd = jax.jit(functools.partial(chgh_forward, pred_len=pred_len))
    out = fwd(x_enc, params)
    jax.block_until_ready(out)
    assert out.shape == (bs, pred_len, skill_num), out.shape
    assert out.dtype == jnp.float32
    assert bool(jnp.isfinite(out).all())
    print("KERNEL_OK")
</pallas_src>

<mosaic_0001>
module attributes {stable_mosaic.version = 11 : i64} {
  func.func @_chgh_fused_kernel(%arg0: i32, %arg1: memref<8x16x1xf32, #tpu.memory_space<vmem>>, %arg2: memref<1x128xf32, #tpu.memory_space<vmem>>, %arg3: memref<1x128xf32, #tpu.memory_space<vmem>>, %arg4: memref<1x128xf32, #tpu.memory_space<vmem>>, %arg5: memref<1x128xf32, #tpu.memory_space<vmem>>, %arg6: memref<128x512xbf16, #tpu.memory_space<vmem>>, %arg7: memref<1x512xf32, #tpu.memory_space<vmem>>, %arg8: memref<128x512xbf16, #tpu.memory_space<vmem>>, %arg9: memref<1x512xf32, #tpu.memory_space<vmem>>, %arg10: memref<256x1024xbf16, #tpu.memory_space<vmem>>, %arg11: memref<8x128xbf16, #tpu.memory_space<vmem>>, %arg12: memref<256x128xbf16, #tpu.memory_space<vmem>>, %arg13: memref<1x128xf32, #tpu.memory_space<vmem>>, %arg14: memref<256x128xbf16, #tpu.memory_space<vmem>>, %arg15: memref<128x128xbf16, #tpu.memory_space<vmem>>, %arg16: memref<1x128xf32, #tpu.memory_space<vmem>>, %arg17: memref<128x128xbf16, #tpu.memory_space<vmem>>, %arg18: memref<1x128xf32, #tpu.memory_space<vmem>>, %arg19: memref<128x128xbf16, #tpu.memory_space<vmem>>, %arg20: memref<1x128xf32, #tpu.memory_space<vmem>>, %arg21: memref<16x128xf32, #tpu.memory_space<vmem>>, %arg22: memref<8x16x1024xbf16, #tpu.memory_space<vmem>>) attributes {dimension_semantics = [#tpu.dimension_semantics<parallel>], iteration_bounds = array<i64: 1>, scalar_prefetch = 0 : i64, scratch_operands = 1 : i64, tpu.core_type = #tpu.core_type<tc>, window_params = [{transform_indices = @transform_0, window_bounds = array<i64: 8, 16, 1>}, {pipeline_mode = #tpu.pipeline_mode<synchronous>, transform_indices = @transform_1, window_bounds = array<i64: 1, 128>}, {pipeline_mode = #tpu.pipeline_mode<synchronous>, transform_indices = @transform_2, window_bounds = array<i64: 1, 128>}, {pipeline_mode = #tpu.pipeline_mode<synchronous>, transform_indices = @transform_3, window_bounds = array<i64: 1, 128>}, {pipeline_mode = #tpu.pipeline_mode<synchronous>, transform_indices = @transform_4, window_bounds = array<i64: 1, 128>}, {pipeline_mode = #tpu.pipeline_mode<synchronous>, transform_indices = @transform_5, window_bounds = array<i64: 128, 512>}, {pipeline_mode = #tpu.pipeline_mode<synchronous>, transform_indices = @transform_6, window_bounds = array<i64: 1, 512>}, {pipeline_mode = #tpu.pipeline_mode<synchronous>, transform_indices = @transform_7, window_bounds = array<i64: 128, 512>}, {pipeline_mode = #tpu.pipeline_mode<synchronous>, transform_indices = @transform_8, window_bounds = array<i64: 1, 512>}, {pipeline_mode = #tpu.pipeline_mode<synchronous>, transform_indices = @transform_9, window_bounds = array<i64: 256, 1024>}, {pipeline_mode = #tpu.pipeline_mode<synchronous>, transform_indices = @transform_10, window_bounds = array<i64: 8, 128>}, {pipeline_mode = #tpu.pipeline_mode<synchronous>, transform_indices = @transform_11, window_bounds = array<i64: 256, 128>}, {pipeline_mode = #tpu.pipeline_mode<synchronous>, transform_indices = @transform_12, window_bounds = array<i64: 1, 128>}, {pipeline_mode = #tpu.pipeline_mode<synchronous>, transform_indices = @transform_13, window_bounds = array<i64: 256, 128>}, {pipeline_mode = #tpu.pipeline_mode<synchronous>, transform_indices = @transform_14, window_bounds = array<i64: 128, 128>}, {pipeline_mode = #tpu.pipeline_mode<synchronous>, transform_indices = @transform_15, window_bounds = array<i64: 1, 128>}, {pipeline_mode = #tpu.pipeline_mode<synchronous>, transform_indices = @transform_16, window_bounds = array<i64: 128, 128>}, {pipeline_mode = #tpu.pipeline_mode<synchronous>, transform_indices = @transform_17, window_bounds = array<i64: 1, 128>}, {pipeline_mode = #tpu.pipeline_mode<synchronous>, transform_indices = @transform_18, window_bounds = array<i64: 128, 128>}, {pipeline_mode = #tpu.pipeline_mode<synchronous>, transform_indices = @transform_19, window_bounds = array<i64: 1, 128>}, {transform_indices = @transform_20, window_bounds = array<i64: 16, 128>}]} {
    %c0 = arith.constant 0 : index
    %c0_0 = arith.constant 0 : index
    %c0_1 = arith.constant 0 : index
    %0 = vector.load %arg1[%c0, %c0_0, %c0_1] : memref<8x16x1xf32, #tpu.memory_space<vmem>>, vector<8x16x1xf32>
    %c0_2 = arith.constant 0 : index
    %c0_3 = arith.constant 0 : index
    %1 = vector.load %arg2[%c0_2, %c0_3] : memref<1x128xf32, #tpu.memory_space<vmem>>, vector<1x128xf32>
    %2 = vector.shape_cast %1 : vector<1x128xf32> to vector<1x1x128xf32>
    %3 = vector.broadcast %0 : vector<8x16x1xf32> to vector<8x16x128xf32>
    %4 = vector.broadcast %2 : vector<1x1x128xf32> to vector<8x16x128xf32>
    %5 = arith.mulf %3, %4 : vector<8x16x128xf32>
    %c0_4 = arith.constant 0 : index
    %c0_5 = arith.constant 0 : index
    %6 = vector.load %arg3[%c0_4, %c0_5] : memref<1x128xf32, #tpu.memory_space<vmem>>, vector<1x128xf32>
    %7 = vector.shape_cast %6 : vector<1x128xf32> to vector<1x1x128xf32>
    %8 = vector.broadcast %7 : vector<1x1x128xf32> to vector<8x16x128xf32>
    %9 = arith.addf %5, %8 : vector<8x16x128xf32>
    %cst = arith.constant 0.000000e+00 : f32
    %10 = vector.broadcast %cst : f32 to vector<8x16x128xf32>
    %11 = arith.cmpf oge, %9, %10 : vector<8x16x128xf32>
    %cst_6 = arith.constant 0.00999999977 : f32
    %12 = vector.broadcast %cst_6 : f32 to vector<8x16x128xf32>
    %13 = arith.mulf %12, %9 : vector<8x16x128xf32>
    %14 = arith.select %11, %9, %13 : vector<8x16x128xi1>, vector<8x16x128xf32>
    %15 = arith.truncf %14 : vector<8x16x128xf32> to vector<8x16x128xbf16>
    %16 = vector.shape_cast %15 : vector<8x16x128xbf16> to vector<128x128xbf16>
    %c0_7 = arith.constant 0 : index
    %c0_8 = arith.constant 0 : index
    %17 = vector.load %arg6[%c0_7, %c0_8] : memref<128x512xbf16, #tpu.memory_space<vmem>>, vector<128x512xbf16>
    %cst_9 = arith.constant dense<0.000000e+00> : vector<128x512xf32>
    %18 = tpu.matmul %16, %17, %cst_9 {dimension_numbers = #tpu.dot_dimension_numbers<[1], [0], [0], [1], [0, 0, 1, 1], [], []>} : vector<128x128xbf16>, vector<128x512xbf16>, vector<128x512xf32> -> vector<128x512xf32>
    %c0_10 = arith.constant 0 : index
    %c0_11 = arith.constant 0 : index
    %19 = vector.load %arg7[%c0_10, %c0_11] : memref<1x512xf32, #tpu.memory_space<vmem>>, vector<1x512xf32>
    %20 = vector.broadcast %19 : vector<1x512xf32> to vector<128x512xf32>
    %21 = arith.addf %18, %20 : vector<128x512xf32>
    %22 = vector.shape_cast %21 : vector<128x512xf32> to vector<8x16x512xf32>
    %23 = arith.truncf %22 : vector<8x16x512xf32> to vector<8x16x512xbf16>
    %c0_12 = arith.constant 0 : index
    %c0_13 = arith.constant 0 : index
    %c0_14 = arith.constant 0 : index
    %24 = vector.load %arg22[%c0_12, %c0_13, %c0_14] : memref<8x16x1024xbf16, #tpu.memory_space<vmem>>, vector<8x16x512xbf16>
    tpu.vector_store %arg22[%c0_12, %c0_13, %c0_14], %23 {strides = array<i32>} : memref<8x16x1024xbf16, #tpu.memory_space<vmem>>, vector<8x16x512xbf16>,
    %c0_15 = arith.constant 0 : index
    %c0_16 = arith.constant 0 : index
    %25 = vector.load %arg4[%c0_15, %c0_16] : memref<1x128xf32, #tpu.memory_space<vmem>>, vector<1x128xf32>
    %26 = vector.shape_cast %25 : vector<1x128xf32> to vector<1x1x128xf32>
    %27 = vector.broadcast %0 : vector<8x16x1xf32> to vector<8x16x128xf32>
    %28 = vector.broadcast %26 : vector<1x1x128xf32> to vector<8x16x128xf32>
    %29 = arith.mulf %27, %28 : vector<8x16x128xf32>
    %c0_17 = arith.constant 0 : index
    %c0_18 = arith.constant 0 : index
    %30 = vector.load %arg5[%c0_17, %c0_18] : memref<1x128xf32, #tpu.memory_space<vmem>>, vector<1x128xf32>
    %31 = vector.shape_cast %30 : vector<1x128xf32> to vector<1x1x128xf32>
    %32 = vector.broadcast %31 : vector<1x1x128xf32> to vector<8x16x128xf32>
    %33 = arith.addf %29, %32 : vector<8x16x128xf32>
    %cst_19 = arith.constant 0.000000e+00 : f32
    %34 = vector.broadcast %cst_19 : f32 to vector<8x16x128xf32>
    %35 = arith.cmpf oge, %33, %34 : vector<8x16x128xf32>
    %cst_20 = arith.constant 0.00999999977 : f32
    %36 = vector.broadcast %cst_20 : f32 to vector<8x16x128xf32>
    %37 = arith.mulf %36, %33 : vector<8x16x128xf32>
    %38 = arith.select %35, %33, %37 : vector<8x16x128xi1>, vector<8x16x128xf32>
    %39 = arith.truncf %38 : vector<8x16x128xf32> to vector<8x16x128xbf16>
    %40 = vector.shape_cast %39 : vector<8x16x128xbf16> to vector<128x128xbf16>
    %c0_21 = arith.constant 0 : index
    %c0_22 = arith.constant 0 : index
    %41 = vector.load %arg8[%c0_21, %c0_22] : memref<128x512xbf16, #tpu.memory_space<vmem>>, vector<128x512xbf16>
    %cst_23 = arith.constant dense<0.000000e+00> : vector<128x512xf32>
    %42 = tpu.matmul %40, %41, %cst_23 {dimension_numbers = #tpu.dot_dimension_numbers<[1], [0], [0], [1], [0, 0, 1, 1], [], []>} : vector<128x128xbf16>, vector<128x512xbf16>, vector<128x512xf32> -> vector<128x512xf32>
    %c0_24 = arith.constant 0 : index
    %c0_25 = arith.constant 0 : index
    %43 = vector.load %arg9[%c0_24, %c0_25] : memref<1x512xf32, #tpu.memory_space<vmem>>, vector<1x512xf32>
    %44 = vector.broadcast %43 : vector<1x512xf32> to vector<128x512xf32>
    %45 = arith.addf %42, %44 : vector<128x512xf32>
    %46 = vector.shape_cast %45 : vector<128x512xf32> to vector<8x16x512xf32>
    %47 = arith.truncf %46 : vector<8x16x512xf32> to vector<8x16x512xbf16>
    %c0_26 = arith.constant 0 : index
    %c0_27 = arith.constant 0 : index
    %c512 = arith.constant 512 : index
    %48 = vector.load %arg22[%c0_26, %c0_27, %c512] : memref<8x16x1024xbf16, #tpu.memory_space<vmem>>, vector<8x16x512xbf16>
    tpu.vector_store %arg22[%c0_26, %c0_27, %c512], %47 {strides = array<i32>} : memref<8x16x1024xbf16, #tpu.memory_space<vmem>>, vector<8x16x512xbf16>,
    %c0_28 = arith.constant 0 : index
    %c0_29 = arith.constant 0 : index
    %49 = vector.load %arg10[%c0_28, %c0_29] : memref<256x1024xbf16, #tpu.memory_space<vmem>>, vector<256x1024xbf16>
    %cst_30 = arith.constant 0.000000e+00 : f32
    %50 = vector.broadcast %cst_30 : f32 to vector<16x256xf32>
    %c0_i32 = arith.constant 0 : i32
    %51 = arith.index_cast %c0_i32 : i32 to index
    %c0_31 = arith.constant 0 : index
    %c0_32 = arith.constant 0 : index
    %52 = vector.load %arg22[%51, %c0_31, %c0_32] : memref<8x16x1024xbf16, #tpu.memory_space<vmem>>, vector<1x16x1024xbf16>
    %53 = vector.shape_cast %52 : vector<1x16x1024xbf16> to vector<16x1024xbf16>
    %54 = arith.extf %53 : vector<16x1024xbf16> to vector<16x1024xf32>
    %55 = arith.truncf %50 : vector<16x256xf32> to vector<16x256xbf16>
    %cst_33 = arith.constant dense<0.000000e+00> : vector<16x1024xf32>
    %56 = tpu.matmul %55, %49, %cst_33 {dimension_numbers = #tpu.dot_dimension_numbers<[1], [0], [0], [1], [0, 0, 1, 1], [], []>} : vector<16x256xbf16>, vector<256x1024xbf16>, vector<16x1024xf32> -> vector<16x1024xf32>
    %57 = arith.addf %54, %56 : vector<16x1024xf32>
    %58 = vector.extract_strided_slice %57 {offsets = [0, 0], sizes = [16, 512], strides = [1, 1]} : vector<16x1024xf32> to vector<16x512xf32>
    %59 = vector.extract_strided_slice %50 {offsets = [0, 0], sizes = [16, 128], strides = [1, 1]} : vector<16x256xf32> to vector<16x128xf32>
    %60 = vector.extract_strided_slice %58 {offsets = [0, 0], sizes = [16, 128], strides = [1, 1]} : vector<16x512xf32> to vector<16x128xf32>
    %61 = arith.negf %60 : vector<16x128xf32>
    %62 = math.exp %61 : vector<16x128xf32>
    %cst_34 = arith.constant 1.000000e+00 : f32
    %63 = vector.broadcast %cst_34 : f32 to vector<16x128xf32>
    %64 = arith.addf %63, %62 : vector<16x128xf32>
    %65 = arith.divf %63, %64 : vector<16x128xf32>
    %66 = vector.extract_strided_slice %58 {offsets = [0, 128], sizes = [16, 128], strides = [1, 1]} : vector<16x512xf32> to vector<16x128xf32>
    %67 = arith.negf %66 : vector<16x128xf32>
    %68 = math.exp %67 : vector<16x128xf32>
    %cst_35 = arith.constant 1.000000e+00 : f32
    %69 = vector.broadcast %cst_35 : f32 to vector<16x128xf32>
    %70 = arith.addf %69, %68 : vector<16x128xf32>
    %71 = arith.divf %69, %70 : vector<16x128xf32>
    %72 = vector.extract_strided_slice %58 {offsets = [0, 256], sizes = [16, 128], strides = [1, 1]} : vector<16x512xf32> to vector<16x128xf32>
    %73 = math.tanh %72 : vector<16x128xf32>
    %74 = vector.extract_strided_slice %58 {offsets = [0, 384], sizes = [16, 128], strides = [1, 1]} : vector<16x512xf32> to vector<16x128xf32>
    %75 = arith.negf %74 : vector<16x128xf32>
    %76 = math.exp %75 : vector<16x128xf32>
    %cst_36 = arith.constant 1.000000e+00 : f32
    %77 = vector.broadcast %cst_36 : f32 to vector<16x128xf32>
    %78 = arith.addf %77, %76 : vector<16x128xf32>
    %79 = arith.divf %77, %78 : vector<16x128xf32>
    %80 = arith.mulf %71, %59 : vector<16x128xf32>
    %81 = arith.mulf %65, %73 : vector<16x128xf32>
    %82 = arith.addf %80, %81 : vector<16x128xf32>
    %83 = math.tanh %82 : vector<16x128xf32>
    %84 = arith.mulf %79, %83 : vector<16x128xf32>
    %85 = vector.extract_strided_slice %57 {offsets = [0, 512], sizes = [16, 512], strides = [1, 1]} : vector<16x1024xf32> to vector<16x512xf32>
    %86 = vector.extract_strided_slice %50 {offsets = [0, 128], sizes = [16, 128], strides = [1, 1]} : vector<16x256xf32> to vector<16x128xf32>
    %87 = vector.extract_strided_slice %85 {offsets = [0, 0], sizes = [16, 128], strides = [1, 1]} : vector<16x512xf32> to vector<16x128xf32>
    %88 = arith.negf %87 : vector<16x128xf32>
    %89 = math.exp %88 : vector<16x128xf32>
    %cst_37 = arith.constant 1.000000e+00 : f32
    %90 = vector.broadcast %cst_37 : f32 to vector<16x128xf32>
    %91 = arith.addf %90, %89 : vector<16x128xf32>
    %92 = arith.divf %90, %91 : vector<16x128xf32>
    %93 = vector.extract_strided_slice %85 {offsets = [0, 128], sizes = [16, 128], strides = [1, 1]} : vector<16x512xf32> to vector<16x128xf32>
    %94 = arith.negf %93 : vector<16x128xf32>
    %95 = math.exp %94 : vector<16x128xf32>
    %cst_38 = arith.constant 1.000000e+00 : f32
    %96 = vector.broadcast %cst_38 : f32 to vector<16x128xf32>
    %97 = arith.addf %96, %95 : vector<16x128xf32>
    %98 = arith.divf %96, %97 : vector<16x128xf32>
    %99 = vector.extract_strided_slice %85 {offsets = [0, 256], sizes = [16, 128], strides = [1, 1]} : vector<16x512xf32> to vector<16x128xf32>
    %100 = math.tanh %99 : vector<16x128xf32>
    %101 = vector.extract_strided_slice %85 {offsets = [0, 384], sizes = [16, 128], strides = [1, 1]} : vector<16x512xf32> to vector<16x128xf32>
    %102 = arith.negf %101 : vector<16x128xf32>
    %103 = math.exp %102 : vector<16x128xf32>
    %cst_39 = arith.constant 1.000000e+00 : f32
    %104 = vector.broadcast %cst_39 : f32 to vector<16x128xf32>
    %105 = arith.addf %104, %103 : vector<16x128xf32>
    %106 = arith.divf %104, %105 : vector<16x128xf32>
    %107 = arith.mulf %98, %86 : vector<16x128xf32>
    %108 = arith.mulf %92, %100 : vector<16x128xf32>
    %109 = arith.addf %107, %108 : vector<16x128xf32>
    %110 = math.tanh %109 : vector<16x128xf32>
    %111 = arith.mulf %106, %110 : vector<16x128xf32>
    %112 = tpu.concatenate %84, %111 in 1 : vector<16x128xf32>, vector<16x128xf32> -> vector<16x256xf32>
    %113 = tpu.concatenate %82, %109 in 1 : vector<16x128xf32>, vector<16x128xf32> -> vector<16x256xf32>
    %c1_i32 = arith.constant 1 : i32
    %114 = arith.index_cast %c1_i32 : i32 to index
    %c0_40 = arith.constant 0 : index
    %c0_41 = arith.constant 0 : index
    %115 = vector.load %arg22[%114, %c0_40, %c0_41] : memref<8x16x1024xbf16, #tpu.memory_space<vmem>>, vector<1x16x1024xbf16>
    %116 = vector.shape_cast %115 : vector<1x16x1024xbf16> to vector<16x1024xbf16>
    %117 = arith.extf %116 : vector<16x1024xbf16> to vector<16x1024xf32>
    %118 = arith.truncf %112 : vector<16x256xf32> to vector<16x256xbf16>
    %cst_42 = arith.constant dense<0.000000e+00> : vector<16x1024xf32>
    %119 = tpu.matmul %118, %49, %cst_42 {dimension_numbers = #tpu.dot_dimension_numbers<[1], [0], [0], [1], [0, 0, 1, 1], [], []>} : vector<16x256xbf16>, vector<256x1024xbf16>, vector<16x1024xf32> -> vector<16x1024xf32>
    %120 = arith.addf %117, %119 : vector<16x1024xf32>
    %121 = vector.extract_strided_slice %120 {offsets = [0, 0], sizes = [16, 512], strides = [1, 1]} : vector<16x1024xf32> to vector<16x512xf32>
    %122 = vector.extract_strided_slice %113 {offsets = [0, 0], sizes = [16, 128], strides = [1, 1]} : vector<16x256xf32> to vector<16x128xf32>
    %123 = vector.extract_strided_slice %121 {offsets = [0, 0], sizes = [16, 128], strides = [1, 1]} : vector<16x512xf32> to vector<16x128xf32>
    %124 = arith.negf %123 : vector<16x128xf32>
    %125 = math.exp %124 : vector<16x128xf32>
    %cst_43 = arith.constant 1.000000e+00 : f32
    %126 = vector.broadcast %cst_43 : f32 to vector<16x128xf32>
    %127 = arith.addf %126, %125 : vector<16x128xf32>
    %128 = arith.divf %126, %127 : vector<16x128xf32>
    %129 = vector.extract_strided_slice %121 {offsets = [0, 128], sizes = [16, 128], strides = [1, 1]} : vector<16x512xf32> to vector<16x128xf32>
    %130 = arith.negf %129 : vector<16x128xf32>
    %131 = math.exp %130 : vector<16x128xf32>
    %cst_44 = arith.constant 1.000000e+00 : f32
    %132 = vector.broadcast %cst_44 : f32 to vector<16x128xf32>
    %133 = arith.addf %132, %131 : vector<16x128xf32>
    %134 = arith.divf %132, %133 : vector<16x128xf32>
    %135 = vector.extract_strided_slice %121 {offsets = [0, 256], sizes = [16, 128], strides = [1, 1]} : vector<16x512xf32> to vector<16x128xf32>
    %136 = math.tanh %135 : vector<16x128xf32>
    %137 = vector.extract_strided_slice %121 {offsets = [0, 384], sizes = [16, 128], strides = [1, 1]} : vector<16x512xf32> to vector<16x128xf32>
    %138 = arith.negf %137 : vector<16x128xf32>
    %139 = math.exp %138 : vector<16x128xf32>
    %cst_45 = arith.constant 1.000000e+00 : f32
    %140 = vector.broadcast %cst_45 : f32 to vector<16x128xf32>
    %141 = arith.addf %140, %139 : vector<16x128xf32>
    %142 = arith.divf %140, %141 : vector<16x128xf32>
    %143 = arith.mulf %134, %122 : vector<16x128xf32>
    %144 = arith.mulf %128, %136 : vector<16x128xf32>
    %145 = arith.addf %143, %144 : vector<16x128xf32>
    %146 = math.tanh %145 : vector<16x128xf32>
    %147 = arith.mulf %142, %146 : vector<16x128xf32>
    %148 = vector.extract_strided_slice %120 {offsets = [0, 512], sizes = [16, 512], strides = [1, 1]} : vector<16x1024xf32> to vector<16x512xf32>
    %149 = vector.extract_strided_slice %113 {offsets = [0, 128], sizes = [16, 128], strides = [1, 1]} : vector<16x256xf32> to vector<16x128xf32>
    %150 = vector.extract_strided_slice %148 {offsets = [0, 0], sizes = [16, 128], strides = [1, 1]} : vector<16x512xf32> to vector<16x128xf32>
    %151 = arith.negf %150 : vector<16x128xf32>
    %152 = math.exp %151 : vector<16x128xf32>
    %cst_46 = arith.constant 1.000000e+00 : f32
    %153 = vector.broadcast %cst_46 : f32 to vector<16x128xf32>
    %154 = arith.addf %153, %152 : vector<16x128xf32>
    %155 = arith.divf %153, %154 : vector<16x128xf32>
    %156 = vector.extract_strided_slice %148 {offsets = [0, 128], sizes = [16, 128], strides = [1, 1]} : vector<16x512xf32> to vector<16x128xf32>
    %157 = arith.negf %156 : vector<16x128xf32>
    %158 = math.exp %157 : vector<16x128xf32>
    %cst_47 = arith.constant 1.000000e+00 : f32
    %159 = vector.broadcast %cst_47 : f32 to vector<16x128xf32>
    %160 = arith.addf %159, %158 : vector<16x128xf32>
    %161 = arith.divf %159, %160 : vector<16x128xf32>
    %162 = vector.extract_strided_slice %148 {offsets = [0, 256], sizes = [16, 128], strides = [1, 1]} : vector<16x512xf32> to vector<16x128xf32>
    %163 = math.tanh %162 : vector<16x128xf32>
    %164 = vector.extract_strided_slice %148 {offsets = [0, 384], sizes = [16, 128], strides = [1, 1]} : vector<16x512xf32> to vector<16x128xf32>
    %165 = arith.negf %164 : vector<16x128xf32>
    %166 = math.exp %165 : vector<16x128xf32>
    %cst_48 = arith.constant 1.000000e+00 : f32
    %167 = vector.broadcast %cst_48 : f32 to vector<16x128xf32>
    %168 = arith.addf %167, %166 : vector<16x128xf32>
    %169 = arith.divf %167, %168 : vector<16x128xf32>
    %170 = arith.mulf %161, %149 : vector<16x128xf32>
    %171 = arith.mulf %155, %163 : vector<16x128xf32>
    %172 = arith.addf %170, %171 : vector<16x128xf32>
    %173 = math.tanh %172 : vector<16x128xf32>
    %174 = arith.mulf %169, %173 : vector<16x128xf32>
    %175 = tpu.concatenate %147, %174 in 1 : vector<16x128xf32>, vector<16x128xf32> -> vector<16x256xf32>
    %176 = tpu.concatenate %145, %172 in 1 : vector<16x128xf32>, vector<16x128xf32> -> vector<16x256xf32>
    %c2_i32 = arith.constant 2 : i32
    %177 = arith.index_cast %c2_i32 : i32 to index
    %c0_49 = arith.constant 0 : index
    %c0_50 = arith.constant 0 : index
    %178 = vector.load %arg22[%177, %c0_49, %c0_50] : memref<8x16x1024xbf16, #tpu.memory_space<vmem>>, vector<1x16x1024xbf16>
    %179 = vector.shape_cast %178 : vector<1x16x1024xbf16> to vector<16x1024xbf16>
    %180 = arith.extf %179 : vector<16x1024xbf16> to vector<16x1024xf32>
    %181 = arith.truncf %175 : vector<16x256xf32> to vector<16x256xbf16>
    %cst_51 = arith.constant dense<0.000000e+00> : vector<16x1024xf32>
    %182 = tpu.matmul %181, %49, %cst_51 {dimension_numbers = #tpu.dot_dimension_numbers<[1], [0], [0], [1], [0, 0, 1, 1], [], []>} : vector<16x256xbf16>, vector<256x1024xbf16>, vector<16x1024xf32> -> vector<16x1024xf32>
    %183 = arith.addf %180, %182 : vector<16x1024xf32>
    %184 = vector.extract_strided_slice %183 {offsets = [0, 0], sizes = [16, 512], strides = [1, 1]} : vector<16x1024xf32> to vector<16x512xf32>
    %185 = vector.extract_strided_slice %176 {offsets = [0, 0], sizes = [16, 128], strides = [1, 1]} : vector<16x256xf32> to vector<16x128xf32>
    %186 = vector.extract_strided_slice %184 {offsets = [0, 0], sizes = [16, 128], strides = [1, 1]} : vector<16x512xf32> to vector<16x128xf32>
    %187 = arith.negf %186 : vector<16x128xf32>
    %188 = math.exp %187 : vector<16x128xf32>
    %cst_52 = arith.constant 1.000000e+00 : f32
    %189 = vector.broadcast %cst_52 : f32 to vector<16x128xf32>
    %190 = arith.addf %189, %188 : vector<16x128xf32>
    %191 = arith.divf %189, %190 : vector<16x128xf32>
    %192 = vector.extract_strided_slice %184 {offsets = [0, 128], sizes = [16, 128], strides = [1, 1]} : vector<16x512xf32> to vector<16x128xf32>
    %193 = arith.negf %192 : vector<16x128xf32>
    %194 = math.exp %193 : vector<16x128xf32>
    %cst_53 = arith.constant 1.000000e+00 : f32
    %195 = vector.broadcast %cst_53 : f32 to vector<16x128xf32>
    %196 = arith.addf %195, %194 : vector<16x128xf32>
    %197 = arith.divf %195, %196 : vector<16x128xf32>
    %198 = vector.extract_strided_slice %184 {offsets = [0, 256], sizes = [16, 128], strides = [1, 1]} : vector<16x512xf32> to vector<16x128xf32>
    %199 = math.tanh %198 : vector<16x128xf32>
    %200 = vector.extract_strided_slice %184 {offsets = [0, 384], sizes = [16, 128], strides = [1, 1]} : vector<16x512xf32> to vector<16x128xf32>
    %201 = arith.negf %200 : vector<16x128xf32>
    %202 = math.exp %201 : vector<16x128xf32>
    %cst_54 = arith.constant 1.000000e+00 : f32
    %203 = vector.broadcast %cst_54 : f32 to vector<16x128xf32>
    %204 = arith.addf %203, %202 : vector<16x128xf32>
    %205 = arith.divf %203, %204 : vector<16x128xf32>
    %206 = arith.mulf %197, %185 : vector<16x128xf32>
    %207 = arith.mulf %191, %199 : vector<16x128xf32>
    %208 = arith.addf %206, %207 : vector<16x128xf32>
    %209 = math.tanh %208 : vector<16x128xf32>
    %210 = arith.mulf %205, %209 : vector<16x128xf32>
    %211 = vector.extract_strided_slice %183 {offsets = [0, 512], sizes = [16, 512], strides = [1, 1]} : vector<16x1024xf32> to vector<16x512xf32>
    %212 = vector.extract_strided_slice %176 {offsets = [0, 128], sizes = [16, 128], strides = [1, 1]} : vector<16x256xf32> to vector<16x128xf32>
    %213 = vector.extract_strided_slice %211 {offsets = [0, 0], sizes = [16, 128], strides = [1, 1]} : vector<16x512xf32> to vector<16x128xf32>
    %214 = arith.negf %213 : vector<16x128xf32>
    %215 = math.exp %214 : vector<16x128xf32>
    %cst_55 = arith.constant 1.000000e+00 : f32
    %216 = vector.broadcast %cst_55 : f32 to vector<16x128xf32>
    %217 = arith.addf %216, %215 : vector<16x128xf32>
    %218 = arith.divf %216, %217 : vector<16x128xf32>
    %219 = vector.extract_strided_slice %211 {offsets = [0, 128], sizes = [16, 128], strides = [1, 1]} : vector<16x512xf32> to vector<16x128xf32>
    %220 = arith.negf %219 : vector<16x128xf32>
    %221 = math.exp %220 : vector<16x128xf32>
    %cst_56 = arith.constant 1.000000e+00 : f32
    %222 = vector.broadcast %cst_56 : f32 to vector<16x128xf32>
    %223 = arith.addf %222, %221 : vector<16x128xf32>
    %224 = arith.divf %222, %223 : vector<16x128xf32>
    %225 = vector.extract_strided_slice %211 {offsets = [0, 256], sizes = [16, 128], strides = [1, 1]} : vector<16x512xf32> to vector<16x128xf32>
    %226 = math.tanh %225 : vector<16x128xf32>
    %227 = vector.extract_strided_slice %211 {offsets = [0, 384], sizes = [16, 128], strides = [1, 1]} : vector<16x512xf32> to vector<16x128xf32>
    %228 = arith.negf %227 : vector<16x128xf32>
    %229 = math.exp %228 : vector<16x128xf32>
    %cst_57 = arith.constant 1.000000e+00 : f32
    %230 = vector.broadcast %cst_57 : f32 to vector<16x128xf32>
    %231 = arith.addf %230, %229 : vector<16x128xf32>
    %232 = arith.divf %230, %231 : vector<16x128xf32>
    %233 = arith.mulf %224, %212 : vector<16x128xf32>
    %234 = arith.mulf %218, %226 : vector<16x128xf32>
    %235 = arith.addf %233, %234 : vector<16x128xf32>
    %236 = math.tanh %235 : vector<16x128xf32>
    %237 = arith.mulf %232, %236 : vector<16x128xf32>
    %238 = tpu.concatenate %210, %237 in 1 : vector<16x128xf32>, vector<16x128xf32> -> vector<16x256xf32>
    %239 = tpu.concatenate %208, %235 in 1 : vector<16x128xf32>, vector<16x128xf32> -> vector<16x256xf32>
    %c3_i32 = arith.constant 3 : i32
    %240 = arith.index_cast %c3_i32 : i32 to index
    %c0_58 = arith.constant 0 : index
    %c0_59 = arith.constant 0 : index
    %241 = vector.load %arg22[%240, %c0_58, %c0_59] : memref<8x16x1024xbf16, #tpu.memory_space<vmem>>, vector<1x16x1024xbf16>
    %242 = vector.shape_cast %241 : vector<1x16x1024xbf16> to vector<16x1024xbf16>
    %243 = arith.extf %242 : vector<16x1024xbf16> to vector<16x1024xf32>
    %244 = arith.truncf %238 : vector<16x256xf32> to vector<16x256xbf16>
    %cst_60 = arith.constant dense<0.000000e+00> : vector<16x1024xf32>
    %245 = tpu.matmul %244, %49, %cst_60 {dimension_numbers = #tpu.dot_dimension_numbers<[1], [0], [0], [1], [0, 0, 1, 1], [], []>} : vector<16x256xbf16>, vector<256x1024xbf16>, vector<16x1024xf32> -> vector<16x1024xf32>
    %246 = arith.addf %243, %245 : vector<16x1024xf32>
    %247 = vector.extract_strided_slice %246 {offsets = [0, 0], sizes = [16, 512], strides = [1, 1]} : vector<16x1024xf32> to vector<16x512xf32>
    %248 = vector.extract_strided_slice %239 {offsets = [0, 0], sizes = [16, 128], strides = [1, 1]} : vector<16x256xf32> to vector<16x128xf32>
    %249 = vector.extract_strided_slice %247 {offsets = [0, 0], sizes = [16, 128], strides = [1, 1]} : vector<16x512xf32> to vector<16x128xf32>
    %250 = arith.negf %249 : vector<16x128xf32>
    %251 = math.exp %250 : vector<16x128xf32>
    %cst_61 = arith.constant 1.000000e+00 : f32
    %252 = vector.broadcast %cst_61 : f32 to vector<16x128xf32>
    %253 = arith.addf %252, %251 : vector<16x128xf32>
    %254 = arith.divf %252, %253 : vector<16x128xf32>
    %255 = vector.extract_strided_slice %247 {offsets = [0, 128], sizes = [16, 128], strides = [1, 1]} : vector<16x512xf32> to vector<16x128xf32>
    %256 = arith.negf %255 : vector<16x128xf32>
    %257 = math.exp %256 : vector<16x128xf32>
    %cst_62 = arith.constant 1.000000e+00 : f32
    %258 = vector.broadcast %cst_62 : f32 to vector<16x128xf32>
    %259 = arith.addf %258, %257 : vector<16x128xf32>
    %260 = arith.divf %258, %259 : vector<16x128xf32>
    %261 = vector.extract_strided_slice %247 {offsets = [0, 256], sizes = [16, 128], strides = [1, 1]} : vector<16x512xf32> to vector<16x128xf32>
    %262 = math.tanh %261 : vector<16x128xf32>
    %263 = vector.extract_strided_slice %247 {offsets = [0, 384], sizes = [16, 128], strides = [1, 1]} : vector<16x512xf32> to vector<16x128xf32>
    %264 = arith.negf %263 : vector<16x128xf32>
    %265 = math.exp %264 : vector<16x128xf32>
    %cst_63 = arith.constant 1.000000e+00 : f32
    %266 = vector.broadcast %cst_63 : f32 to vector<16x128xf32>
    %267 = arith.addf %266, %265 : vector<16x128xf32>
    %268 = arith.divf %266, %267 : vector<16x128xf32>
    %269 = arith.mulf %260, %248 : vector<16x128xf32>
    %270 = arith.mulf %254, %262 : vector<16x128xf32>
    %271 = arith.addf %269, %270 : vector<16x128xf32>
    %272 = math.tanh %271 : vector<16x128xf32>
    %273 = arith.mulf %268, %272 : vector<16x128xf32>
    %274 = vector.extract_strided_slice %246 {offsets = [0, 512], sizes = [16, 512], strides = [1, 1]} : vector<16x1024xf32> to vector<16x512xf32>
    %275 = vector.extract_strided_slice %239 {offsets = [0, 128], sizes = [16, 128], strides = [1, 1]} : vector<16x256xf32> to vector<16x128xf32>
    %276 = vector.extract_strided_slice %274 {offsets = [0, 0], sizes = [16, 128], strides = [1, 1]} : vector<16x512xf32> to vector<16x128xf32>
    %277 = arith.negf %276 : vector<16x128xf32>
    %278 = math.exp %277 : vector<16x128xf32>
    %cst_64 = arith.constant 1.000000e+00 : f32
    %279 = vector.broadcast %cst_64 : f32 to vector<16x128xf32>
    %280 = arith.addf %279, %278 : vector<16x128xf32>
    %281 = arith.divf %279, %280 : vector<16x128xf32>
    %282 = vector.extract_strided_slice %274 {offsets = [0, 128], sizes = [16, 128], strides = [1, 1]} : vector<16x512xf32> to vector<16x128xf32>
    %283 = arith.negf %282 : vector<16x128xf32>
    %284 = math.exp %283 : vector<16x128xf32>
    %cst_65 = arith.constant 1.000000e+00 : f32
    %285 = vector.broadcast %cst_65 : f32 to vector<16x128xf32>
    %286 = arith.addf %285, %284 : vector<16x128xf32>
    %287 = arith.divf %285, %286 : vector<16x128xf32>
    %288 = vector.extract_strided_slice %274 {offsets = [0, 256], sizes = [16, 128], strides = [1, 1]} : vector<16x512xf32> to vector<16x128xf32>
    %289 = math.tanh %288 : vector<16x128xf32>
    %290 = vector.extract_strided_slice %274 {offsets = [0, 384], sizes = [16, 128], strides = [1, 1]} : vector<16x512xf32> to vector<16x128xf32>
    %291 = arith.negf %290 : vector<16x128xf32>
    %292 = math.exp %291 : vector<16x128xf32>
    %cst_66 = arith.constant 1.000000e+00 : f32
    %293 = vector.broadcast %cst_66 : f32 to vector<16x128xf32>
    %294 = arith.addf %293, %292 : vector<16x128xf32>
    %295 = arith.divf %293, %294 : vector<16x128xf32>
    %296 = arith.mulf %287, %275 : vector<16x128xf32>
    %297 = arith.mulf %281, %289 : vector<16x128xf32>
    %298 = arith.addf %296, %297 : vector<16x128xf32>
    %299 = math.tanh %298 : vector<16x128xf32>
    %300 = arith.mulf %295, %299 : vector<16x128xf32>
    %301 = tpu.concatenate %273, %300 in 1 : vector<16x128xf32>, vector<16x128xf32> -> vector<16x256xf32>
    %302 = tpu.concatenate %271, %298 in 1 : vector<16x128xf32>, vector<16x128xf32> -> vector<16x256xf32>
    %c4_i32 = arith.constant 4 : i32
    %303 = arith.index_cast %c4_i32 : i32 to index
    %c0_67 = arith.constant 0 : index
    %c0_68 = arith.constant 0 : index
    %304 = vector.load %arg22[%303, %c0_67, %c0_68] : memref<8x16x1024xbf16, #tpu.memory_space<vmem>>, vector<1x16x1024xbf16>
    %305 = vector.shape_cast %304 : vector<1x16x1024xbf16> to vector<16x1024xbf16>
    %306 = arith.extf %305 : vector<16x1024xbf16> to vector<16x1024xf32>
    %307 = arith.truncf %301 : vector<16x256xf32> to vector<16x256xbf16>
    %cst_69 = arith.constant dense<0.000000e+00> : vector<16x1024xf32>
    %308 = tpu.matmul %307, %49, %cst_69 {dimension_numbers = #tpu.dot_dimension_numbers<[1], [0], [0], [1], [0, 0, 1, 1], [], []>} : vector<16x256xbf16>, vector<256x1024xbf16>, vector<16x1024xf32> -> vector<16x1024xf32>
    %309 = arith.addf %306, %308 : vector<16x1024xf32>
    %310 = vector.extract_strided_slice %309 {offsets = [0, 0], sizes = [16, 512], strides = [1, 1]} : vector<16x1024xf32> to vector<16x512xf32>
    %311 = vector.extract_strided_slice %302 {offsets = [0, 0], sizes = [16, 128], strides = [1, 1]} : vector<16x256xf32> to vector<16x128xf32>
    %312 = vector.extract_strided_slice %310 {offsets = [0, 0], sizes = [16, 128], strides = [1, 1]} : vector<16x512xf32> to vector<16x128xf32>
    %313 = arith.negf %312 : vector<16x128xf32>
    %314 = math.exp %313 : vector<16x128xf32>
    %cst_70 = arith.constant 1.000000e+00 : f32
    %315 = vector.broadcast %cst_70 : f32 to vector<16x128xf32>
    %316 = arith.addf %315, %314 : vector<16x128xf32>
    %317 = arith.divf %315, %316 : vector<16x128xf32>
    %318 = vector.extract_strided_slice %310 {offsets = [0, 128], sizes = [16, 128], strides = [1, 1]} : vector<16x512xf32> to vector<16x128xf32>
    %319 = arith.negf %318 : vector<16x128xf32>
    %320 = math.exp %319 : vector<16x128xf32>
    %cst_71 = arith.constant 1.000000e+00 : f32
    %321 = vector.broadcast %cst_71 : f32 to vector<16x128xf32>
    %322 = arith.addf %321, %320 : vector<16x128xf32>
    %323 = arith.divf %321, %322 : vector<16x128xf32>
    %324 = vector.extract_strided_slice %310 {offsets = [0, 256], sizes = [16, 128], strides = [1, 1]} : vector<16x512xf32> to vector<16x128xf32>
    %325 = math.tanh %324 : vector<16x128xf32>
    %326 = vector.extract_strided_slice %310 {offsets = [0, 384], sizes = [16, 128], strides = [1, 1]} : vector<16x512xf32> to vector<16x128xf32>
    %327 = arith.negf %326 : vector<16x128xf32>
    %328 = math.exp %327 : vector<16x128xf32>
    %cst_72 = arith.constant 1.000000e+00 : f32
    %329 = vector.broadcast %cst_72 : f32 to vector<16x128xf32>
    %330 = arith.addf %329, %328 : vector<16x128xf32>
    %331 = arith.divf %329, %330 : vector<16x128xf32>
    %332 = arith.mulf %323, %311 : vector<16x128xf32>
    %333 = arith.mulf %317, %325 : vector<16x128xf32>
    %334 = arith.addf %332, %333 : vector<16x128xf32>
    %335 = math.tanh %334 : vector<16x128xf32>
    %336 = arith.mulf %331, %335 : vector<16x128xf32>
    %337 = vector.extract_strided_slice %309 {offsets = [0, 512], sizes = [16, 512], strides = [1, 1]} : vector<16x1024xf32> to vector<16x512xf32>
    %338 = vector.extract_strided_slice %302 {offsets = [0, 128], sizes = [16, 128], strides = [1, 1]} : vector<16x256xf32> to vector<16x128xf32>
    %339 = vector.extract_strided_slice %337 {offsets = [0, 0], sizes = [16, 128], strides = [1, 1]} : vector<16x512xf32> to vector<16x128xf32>
    %340 = arith.negf %339 : vector<16x128xf32>
    %341 = math.exp %340 : vector<16x128xf32>
    %cst_73 = arith.constant 1.000000e+00 : f32
    %342 = vector.broadcast %cst_73 : f32 to vector<16x128xf32>
    %343 = arith.addf %342, %341 : vector<16x128xf32>
    %344 = arith.divf %342, %343 : vector<16x128xf32>
    %345 = vector.extract_strided_slice %337 {offsets = [0, 128], sizes = [16, 128], strides = [1, 1]} : vector<16x512xf32> to vector<16x128xf32>
    %346 = arith.negf %345 : vector<16x128xf32>
    %347 = math.exp %346 : vector<16x128xf32>
    %cst_74 = arith.constant 1.000000e+00 : f32
    %348 = vector.broadcast %cst_74 : f32 to vector<16x128xf32>
    %349 = arith.addf %348, %347 : vector<16x128xf32>
    %350 = arith.divf %348, %349 : vector<16x128xf32>
    %351 = vector.extract_strided_slice %337 {offsets = [0, 256], sizes = [16, 128], strides = [1, 1]} : vector<16x512xf32> to vector<16x128xf32>
    %352 = math.tanh %351 : vector<16x128xf32>
    %353 = vector.extract_strided_slice %337 {offsets = [0, 384], sizes = [16, 128], strides = [1, 1]} : vector<16x512xf32> to vector<16x128xf32>
    %354 = arith.negf %353 : vector<16x128xf32>
    %355 = math.exp %354 : vector<16x128xf32>
    %cst_75 = arith.constant 1.000000e+00 : f32
    %356 = vector.broadcast %cst_75 : f32 to vector<16x128xf32>
    %357 = arith.addf %356, %355 : vector<16x128xf32>
    %358 = arith.divf %356, %357 : vector<16x128xf32>
    %359 = arith.mulf %350, %338 : vector<16x128xf32>
    %360 = arith.mulf %344, %352 : vector<16x128xf32>
    %361 = arith.addf %359, %360 : vector<16x128xf32>
    %362 = math.tanh %361 : vector<16x128xf32>
    %363 = arith.mulf %358, %362 : vector<16x128xf32>
    %364 = tpu.concatenate %336, %363 in 1 : vector<16x128xf32>, vector<16x128xf32> -> vector<16x256xf32>
    %365 = tpu.concatenate %334, %361 in 1 : vector<16x128xf32>, vector<16x128xf32> -> vector<16x256xf32>
    %c5_i32 = arith.constant 5 : i32
    %366 = arith.index_cast %c5_i32 : i32 to index
    %c0_76 = arith.constant 0 : index
    %c0_77 = arith.constant 0 : index
    %367 = vector.load %arg22[%366, %c0_76, %c0_77] : memref<8x16x1024xbf16, #tpu.memory_space<vmem>>, vector<1x16x1024xbf16>
    %368 = vector.shape_cast %367 : vector<1x16x1024xbf16> to vector<16x1024xbf16>
    %369 = arith.extf %368 : vector<16x1024xbf16> to vector<16x1024xf32>
    %370 = arith.truncf %364 : vector<16x256xf32> to vector<16x256xbf16>
    %cst_78 = arith.constant dense<0.000000e+00> : vector<16x1024xf32>
    %371 = tpu.matmul %370, %49, %cst_78 {dimension_numbers = #tpu.dot_dimension_numbers<[1], [0], [0], [1], [0, 0, 1, 1], [], []>} : vector<16x256xbf16>, vector<256x1024xbf16>, vector<16x1024xf32> -> vector<16x1024xf32>
    %372 = arith.addf %369, %371 : vector<16x1024xf32>
    %373 = vector.extract_strided_slice %372 {offsets = [0, 0], sizes = [16, 512], strides = [1, 1]} : vector<16x1024xf32> to vector<16x512xf32>
    %374 = vector.extract_strided_slice %365 {offsets = [0, 0], sizes = [16, 128], strides = [1, 1]} : vector<16x256xf32> to vector<16x128xf32>
    %375 = vector.extract_strided_slice %373 {offsets = [0, 0], sizes = [16, 128], strides = [1, 1]} : vector<16x512xf32> to vector<16x128xf32>
    %376 = arith.negf %375 : vector<16x128xf32>
    %377 = math.exp %376 : vector<16x128xf32>
    %cst_79 = arith.constant 1.000000e+00 : f32
    %378 = vector.broadcast %cst_79 : f32 to vector<16x128xf32>
    %379 = arith.addf %378, %377 : vector<16x128xf32>
    %380 = arith.divf %378, %379 : vector<16x128xf32>
    %381 = vector.extract_strided_slice %373 {offsets = [0, 128], sizes = [16, 128], strides = [1, 1]} : vector<16x512xf32> to vector<16x128xf32>
    %382 = arith.negf %381 : vector<16x128xf32>
    %383 = math.exp %382 : vector<16x128xf32>
    %cst_80 = arith.constant 1.000000e+00 : f32
    %384 = vector.broadcast %cst_80 : f32 to vector<16x128xf32>
    %385 = arith.addf %384, %383 : vector<16x128xf32>
    %386 = arith.divf %384, %385 : vector<16x128xf32>
    %387 = vector.extract_strided_slice %373 {offsets = [0, 256], sizes = [16, 128], strides = [1, 1]} : vector<16x512xf32> to vector<16x128xf32>
    %388 = math.tanh %387 : vector<16x128xf32>
    %389 = vector.extract_strided_slice %373 {offsets = [0, 384], sizes = [16, 128], strides = [1, 1]} : vector<16x512xf32> to vector<16x128xf32>
    %390 = arith.negf %389 : vector<16x128xf32>
    %391 = math.exp %390 : vector<16x128xf32>
    %cst_81 = arith.constant 1.000000e+00 : f32
    %392 = vector.broadcast %cst_81 : f32 to vector<16x128xf32>
    %393 = arith.addf %392, %391 : vector<16x128xf32>
    %394 = arith.divf %392, %393 : vector<16x128xf32>
    %395 = arith.mulf %386, %374 : vector<16x128xf32>
    %396 = arith.mulf %380, %388 : vector<16x128xf32>
    %397 = arith.addf %395, %396 : vector<16x128xf32>
    %398 = math.tanh %397 : vector<16x128xf32>
    %399 = arith.mulf %394, %398 : vector<16x128xf32>
    %400 = vector.extract_strided_slice %372 {offsets = [0, 512], sizes = [16, 512], strides = [1, 1]} : vector<16x1024xf32> to vector<16x512xf32>
    %401 = vector.extract_strided_slice %365 {offsets = [0, 128], sizes = [16, 128], strides = [1, 1]} : vector<16x256xf32> to vector<16x128xf32>
    %402 = vector.extract_strided_slice %400 {offsets = [0, 0], sizes = [16, 128], strides = [1, 1]} : vector<16x512xf32> to vector<16x128xf32>
    %403 = arith.negf %402 : vector<16x128xf32>
    %404 = math.exp %403 : vector<16x128xf32>
    %cst_82 = arith.constant 1.000000e+00 : f32
    %405 = vector.broadcast %cst_82 : f32 to vector<16x128xf32>
    %406 = arith.addf %405, %404 : vector<16x128xf32>
    %407 = arith.divf %405, %406 : vector<16x128xf32>
    %408 = vector.extract_strided_slice %400 {offsets = [0, 128], sizes = [16, 128], strides = [1, 1]} : vector<16x512xf32> to vector<16x128xf32>
    %409 = arith.negf %408 : vector<16x128xf32>
    %410 = math.exp %409 : vector<16x128xf32>
    %cst_83 = arith.constant 1.000000e+00 : f32
    %411 = vector.broadcast %cst_83 : f32 to vector<16x128xf32>
    %412 = arith.addf %411, %410 : vector<16x128xf32>
    %413 = arith.divf %411, %412 : vector<16x128xf32>
    %414 = vector.extract_strided_slice %400 {offsets = [0, 256], sizes = [16, 128], strides = [1, 1]} : vector<16x512xf32> to vector<16x128xf32>
    %415 = math.tanh %414 : vector<16x128xf32>
    %416 = vector.extract_strided_slice %400 {offsets = [0, 384], sizes = [16, 128], strides = [1, 1]} : vector<16x512xf32> to vector<16x128xf32>
    %417 = arith.negf %416 : vector<16x128xf32>
    %418 = math.exp %417 : vector<16x128xf32>
    %cst_84 = arith.constant 1.000000e+00 : f32
    %419 = vector.broadcast %cst_84 : f32 to vector<16x128xf32>
    %420 = arith.addf %419, %418 : vector<16x128xf32>
    %421 = arith.divf %419, %420 : vector<16x128xf32>
    %422 = arith.mulf %413, %401 : vector<16x128xf32>
    %423 = arith.mulf %407, %415 : vector<16x128xf32>
    %424 = arith.addf %422, %423 : vector<16x128xf32>
    %425 = math.tanh %424 : vector<16x128xf32>
    %426 = arith.mulf %421, %425 : vector<16x128xf32>
    %427 = tpu.concatenate %399, %426 in 1 : vector<16x128xf32>, vector<16x128xf32> -> vector<16x256xf32>
    %428 = tpu.concatenate %397, %424 in 1 : vector<16x128xf32>, vector<16x128xf32> -> vector<16x256xf32>
    %c6_i32 = arith.constant 6 : i32
    %429 = arith.index_cast %c6_i32 : i32 to index
    %c0_85 = arith.constant 0 : index
    %c0_86 = arith.constant 0 : index
    %430 = vector.load %arg22[%429, %c0_85, %c0_86] : memref<8x16x1024xbf16, #tpu.memory_space<vmem>>, vector<1x16x1024xbf16>
    %431 = vector.shape_cast %430 : vector<1x16x1024xbf16> to vector<16x1024xbf16>
    %432 = arith.extf %431 : vector<16x1024xbf16> to vector<16x1024xf32>
    %433 = arith.truncf %427 : vector<16x256xf32> to vector<16x256xbf16>
    %cst_87 = arith.constant dense<0.000000e+00> : vector<16x1024xf32>
    %434 = tpu.matmul %433, %49, %cst_87 {dimension_numbers = #tpu.dot_dimension_numbers<[1], [0], [0], [1], [0, 0, 1, 1], [], []>} : vector<16x256xbf16>, vector<256x1024xbf16>, vector<16x1024xf32> -> vector<16x1024xf32>
    %435 = arith.addf %432, %434 : vector<16x1024xf32>
    %436 = vector.extract_strided_slice %435 {offsets = [0, 0], sizes = [16, 512], strides = [1, 1]} : vector<16x1024xf32> to vector<16x512xf32>
    %437 = vector.extract_strided_slice %428 {offsets = [0, 0], sizes = [16, 128], strides = [1, 1]} : vector<16x256xf32> to vector<16x128xf32>
    %438 = vector.extract_strided_slice %436 {offsets = [0, 0], sizes = [16, 128], strides = [1, 1]} : vector<16x512xf32> to vector<16x128xf32>
    %439 = arith.negf %438 : vector<16x128xf32>
    %440 = math.exp %439 : vector<16x128xf32>
    %cst_88 = arith.constant 1.000000e+00 : f32
    %441 = vector.broadcast %cst_88 : f32 to vector<16x128xf32>
    %442 = arith.addf %441, %440 : vector<16x128xf32>
    %443 = arith.divf %441, %442 : vector<16x128xf32>
    %444 = vector.extract_strided_slice %436 {offsets = [0, 128], sizes = [16, 128], strides = [1, 1]} : vector<16x512xf32> to vector<16x128xf32>
    %445 = arith.negf %444 : vector<16x128xf32>
    %446 = math.exp %445 : vector<16x128xf32>
    %cst_89 = arith.constant 1.000000e+00 : f32
    %447 = vector.broadcast %cst_89 : f32 to vector<16x128xf32>
    %448 = arith.addf %447, %446 : vector<16x128xf32>
    %449 = arith.divf %447, %448 : vector<16x128xf32>
    %450 = vector.extract_strided_slice %436 {offsets = [0, 256], sizes = [16, 128], strides = [1, 1]} : vector<16x512xf32> to vector<16x128xf32>
    %451 = math.tanh %450 : vector<16x128xf32>
    %452 = vector.extract_strided_slice %436 {offsets = [0, 384], sizes = [16, 128], strides = [1, 1]} : vector<16x512xf32> to vector<16x128xf32>
    %453 = arith.negf %452 : vector<16x128xf32>
    %454 = math.exp %453 : vector<16x128xf32>
    %cst_90 = arith.constant 1.000000e+00 : f32
    %455 = vector.broadcast %cst_90 : f32 to vector<16x128xf32>
    %456 = arith.addf %455, %454 : vector<16x128xf32>
    %457 = arith.divf %455, %456 : vector<16x128xf32>
    %458 = arith.mulf %449, %437 : vector<16x128xf32>
    %459 = arith.mulf %443, %451 : vector<16x128xf32>
    %460 = arith.addf %458, %459 : vector<16x128xf32>
    %461 = math.tanh %460 : vector<16x128xf32>
    %462 = arith.mulf %457, %461 : vector<16x128xf32>
    %463 = vector.extract_strided_slice %435 {offsets = [0, 512], sizes = [16, 512], strides = [1, 1]} : vector<16x1024xf32> to vector<16x512xf32>
    %464 = vector.extract_strided_slice %428 {offsets = [0, 128], sizes = [16, 128], strides = [1, 1]} : vector<16x256xf32> to vector<16x128xf32>
    %465 = vector.extract_strided_slice %463 {offsets = [0, 0], sizes = [16, 128], strides = [1, 1]} : vector<16x512xf32> to vector<16x128xf32>
    %466 = arith.negf %465 : vector<16x128xf32>
    %467 = math.exp %466 : vector<16x128xf32>
    %cst_91 = arith.constant 1.000000e+00 : f32
    %468 = vector.broadcast %cst_91 : f32 to vector<16x128xf32>
    %469 = arith.addf %468, %467 : vector<16x128xf32>
    %470 = arith.divf %468, %469 : vector<16x128xf32>
    %471 = vector.extract_strided_slice %463 {offsets = [0, 128], sizes = [16, 128], strides = [1, 1]} : vector<16x512xf32> to vector<16x128xf32>
    %472 = arith.negf %471 : vector<16x128xf32>
    %473 = math.exp %472 : vector<16x128xf32>
    %cst_92 = arith.constant 1.000000e+00 : f32
    %474 = vector.broadcast %cst_92 : f32 to vector<16x128xf32>
    %475 = arith.addf %474, %473 : vector<16x128xf32>
    %476 = arith.divf %474, %475 : vector<16x128xf32>
    %477 = vector.extract_strided_slice %463 {offsets = [0, 256], sizes = [16, 128], strides = [1, 1]} : vector<16x512xf32> to vector<16x128xf32>
    %478 = math.tanh %477 : vector<16x128xf32>
    %479 = vector.extract_strided_slice %463 {offsets = [0, 384], sizes = [16, 128], strides = [1, 1]} : vector<16x512xf32> to vector<16x128xf32>
    %480 = arith.negf %479 : vector<16x128xf32>
    %481 = math.exp %480 : vector<16x128xf32>
    %cst_93 = arith.constant 1.000000e+00 : f32
    %482 = vector.broadcast %cst_93 : f32 to vector<16x128xf32>
    %483 = arith.addf %482, %481 : vector<16x128xf32>
    %484 = arith.divf %482, %483 : vector<16x128xf32>
    %485 = arith.mulf %476, %464 : vector<16x128xf32>
    %486 = arith.mulf %470, %478 : vector<16x128xf32>
    %487 = arith.addf %485, %486 : vector<16x128xf32>
    %488 = math.tanh %487 : vector<16x128xf32>
    %489 = arith.mulf %484, %488 : vector<16x128xf32>
    %490 = tpu.concatenate %462, %489 in 1 : vector<16x128xf32>, vector<16x128xf32> -> vector<16x256xf32>
    %491 = tpu.concatenate %460, %487 in 1 : vector<16x128xf32>, vector<16x128xf32> -> vector<16x256xf32>
    %c7_i32 = arith.constant 7 : i32
    %492 = arith.index_cast %c7_i32 : i32 to index
    %c0_94 = arith.constant 0 : index
    %c0_95 = arith.constant 0 : index
    %493 = vector.load %arg22[%492, %c0_94, %c0_95] : memref<8x16x1024xbf16, #tpu.memory_space<vmem>>, vector<1x16x1024xbf16>
    %494 = vector.shape_cast %493 : vector<1x16x1024xbf16> to vector<16x1024xbf16>
    %495 = arith.extf %494 : vector<16x1024xbf16> to vector<16x1024xf32>
    %496 = arith.truncf %490 : vector<16x256xf32> to vector<16x256xbf16>
    %cst_96 = arith.constant dense<0.000000e+00> : vector<16x1024xf32>
    %497 = tpu.matmul %496, %49, %cst_96 {dimension_numbers = #tpu.dot_dimension_numbers<[1], [0], [0], [1], [0, 0, 1, 1], [], []>} : vector<16x256xbf16>, vector<256x1024xbf16>, vector<16x1024xf32> -> vector<16x1024xf32>
    %498 = arith.addf %495, %497 : vector<16x1024xf32>
    %499 = vector.extract_strided_slice %498 {offsets = [0, 0], sizes = [16, 512], strides = [1, 1]} : vector<16x1024xf32> to vector<16x512xf32>
    %500 = vector.extract_strided_slice %491 {offsets = [0, 0], sizes = [16, 128], strides = [1, 1]} : vector<16x256xf32> to vector<16x128xf32>
    %501 = vector.extract_strided_slice %499 {offsets = [0, 0], sizes = [16, 128], strides = [1, 1]} : vector<16x512xf32> to vector<16x128xf32>
    %502 = arith.negf %501 : vector<16x128xf32>
    %503 = math.exp %502 : vector<16x128xf32>
    %cst_97 = arith.constant 1.000000e+00 : f32
    %504 = vector.broadcast %cst_97 : f32 to vector<16x128xf32>
    %505 = arith.addf %504, %503 : vector<16x128xf32>
    %506 = arith.divf %504, %505 : vector<16x128xf32>
    %507 = vector.extract_strided_slice %499 {offsets = [0, 128], sizes = [16, 128], strides = [1, 1]} : vector<16x512xf32> to vector<16x128xf32>
    %508 = arith.negf %507 : vector<16x128xf32>
    %509 = math.exp %508 : vector<16x128xf32>
    %cst_98 = arith.constant 1.000000e+00 : f32
    %510 = vector.broadcast %cst_98 : f32 to vector<16x128xf32>
    %511 = arith.addf %510, %509 : vector<16x128xf32>
    %512 = arith.divf %510, %511 : vector<16x128xf32>
    %513 = vector.extract_strided_slice %499 {offsets = [0, 256], sizes = [16, 128], strides = [1, 1]} : vector<16x512xf32> to vector<16x128xf32>
    %514 = math.tanh %513 : vector<16x128xf32>
    %515 = vector.extract_strided_slice %499 {offsets = [0, 384], sizes = [16, 128], strides = [1, 1]} : vector<16x512xf32> to vector<16x128xf32>
    %516 = arith.negf %515 : vector<16x128xf32>
    %517 = math.exp %516 : vector<16x128xf32>
    %cst_99 = arith.constant 1.000000e+00 : f32
    %518 = vector.broadcast %cst_99 : f32 to vector<16x128xf32>
    %519 = arith.addf %518, %517 : vector<16x128xf32>
    %520 = arith.divf %518, %519 : vector<16x128xf32>
    %521 = arith.mulf %512, %500 : vector<16x128xf32>
    %522 = arith.mulf %506, %514 : vector<16x128xf32>
    %523 = arith.addf %521, %522 : vector<16x128xf32>
    %524 = math.tanh %523 : vector<16x128xf32>
    %525 = arith.mulf %520, %524 : vector<16x128xf32>
    %526 = vector.extract_strided_slice %498 {offsets = [0, 512], sizes = [16, 512], strides = [1, 1]} : vector<16x1024xf32> to vector<16x512xf32>
    %527 = vector.extract_strided_slice %491 {offsets = [0, 128], sizes = [16, 128], strides = [1, 1]} : vector<16x256xf32> to vector<16x128xf32>
    %528 = vector.extract_strided_slice %526 {offsets = [0, 0], sizes = [16, 128], strides = [1, 1]} : vector<16x512xf32> to vector<16x128xf32>
    %529 = arith.negf %528 : vector<16x128xf32>
    %530 = math.exp %529 : vector<16x128xf32>
    %cst_100 = arith.constant 1.000000e+00 : f32
    %531 = vector.broadcast %cst_100 : f32 to vector<16x128xf32>
    %532 = arith.addf %531, %530 : vector<16x128xf32>
    %533 = arith.divf %531, %532 : vector<16x128xf32>
    %534 = vector.extract_strided_slice %526 {offsets = [0, 128], sizes = [16, 128], strides = [1, 1]} : vector<16x512xf32> to vector<16x128xf32>
    %535 = arith.negf %534 : vector<16x128xf32>
    %536 = math.exp %535 : vector<16x128xf32>
    %cst_101 = arith.constant 1.000000e+00 : f32
    %537 = vector.broadcast %cst_101 : f32 to vector<16x128xf32>
    %538 = arith.addf %537, %536 : vector<16x128xf32>
    %539 = arith.divf %537, %538 : vector<16x128xf32>
    %540 = vector.extract_strided_slice %526 {offsets = [0, 256], sizes = [16, 128], strides = [1, 1]} : vector<16x512xf32> to vector<16x128xf32>
    %541 = math.tanh %540 : vector<16x128xf32>
    %542 = vector.extract_strided_slice %526 {offsets = [0, 384], sizes = [16, 128], strides = [1, 1]} : vector<16x512xf32> to vector<16x128xf32>
    %543 = arith.negf %542 : vector<16x128xf32>
    %544 = math.exp %543 : vector<16x128xf32>
    %cst_102 = arith.constant 1.000000e+00 : f32
    %545 = vector.broadcast %cst_102 : f32 to vector<16x128xf32>
    %546 = arith.addf %545, %544 : vector<16x128xf32>
    %547 = arith.divf %545, %546 : vector<16x128xf32>
    %548 = arith.mulf %539, %527 : vector<16x128xf32>
    %549 = arith.mulf %533, %541 : vector<16x128xf32>
    %550 = arith.addf %548, %549 : vector<16x128xf32>
    %551 = math.tanh %550 : vector<16x128xf32>
    %552 = arith.mulf %547, %551 : vector<16x128xf32>
    %553 = tpu.concatenate %525, %552 in 1 : vector<16x128xf32>, vector<16x128xf32> -> vector<16x256xf32>
    %554 = tpu.concatenate %523, %550 in 1 : vector<16x128xf32>, vector<16x128xf32> -> vector<16x256xf32>
    %c8_i32 = arith.constant 8 : i32
    %555 = arith.truncf %553 : vector<16x256xf32> to vector<16x256xbf16>
    %c0_103 = arith.constant 0 : index
    %c0_104 = arith.constant 0 : index
    %556 = vector.load %arg12[%c0_103, %c0_104] : memref<256x128xbf16, #tpu.memory_space<vmem>>, vector<256x128xbf16>
    %cst_105 = arith.constant dense<0.000000e+00> : vector<16x128xf32>
    %557 = tpu.matmul %555, %556, %cst_105 {dimension_numbers = #tpu.dot_dimension_numbers<[1], [0], [0], [1], [0, 0, 1, 1], [], []>} : vector<16x256xbf16>, vector<256x128xbf16>, vector<16x128xf32> -> vector<16x128xf32>
    %c0_106 = arith.constant 0 : index
    %c0_107 = arith.constant 0 : index
    %558 = vector.load %arg13[%c0_106, %c0_107] : memref<1x128xf32, #tpu.memory_space<vmem>>, vector<1x128xf32>
    %559 = vector.broadcast %558 : vector<1x128xf32> to vector<16x128xf32>
    %560 = arith.addf %557, %559 : vector<16x128xf32>
    %c0_108 = arith.constant 0 : index
    %c0_109 = arith.constant 0 : index
    %561 = vector.load %arg11[%c0_108, %c0_109] : memref<8x128xbf16, #tpu.memory_space<vmem>>, vector<8x128xbf16>
    %c0_110 = arith.constant 0 : index
    %c0_111 = arith.constant 0 : index
    %562 = vector.load %arg15[%c0_110, %c0_111] : memref<128x128xbf16, #tpu.memory_space<vmem>>, vector<128x128xbf16>
    %cst_112 = arith.constant dense<0.000000e+00> : vector<8x128xf32>
    %563 = tpu.matmul %561, %562, %cst_112 {dimension_numbers = #tpu.dot_dimension_numbers<[1], [0], [0], [1], [0, 0, 1, 1], [], []>} : vector<8x128xbf16>, vector<128x128xbf16>, vector<8x128xf32> -> vector<8x128xf32>
    %564 = tpu.concatenate %563, %563 in 0 : vector<8x128xf32>, vector<8x128xf32> -> vector<16x128xf32>
    %565 = vector.extract_strided_slice %555 {offsets = [0, 0], sizes = [16, 128], strides = [1, 1]} : vector<16x256xbf16> to vector<16x128xbf16>
    %566 = arith.truncf %560 : vector<16x128xf32> to vector<16x128xbf16>
    %567 = tpu.concatenate %565, %566 in 1 : vector<16x128xbf16>, vector<16x128xbf16> -> vector<16x256xbf16>
    %c0_113 = arith.constant 0 : index
    %c0_114 = arith.constant 0 : index
    %568 = vector.load %arg14[%c0_113, %c0_114] : memref<256x128xbf16, #tpu.memory_space<vmem>>, vector<256x128xbf16>
    %cst_115 = arith.constant dense<0.000000e+00> : vector<16x128xf32>
    %569 = tpu.matmul %567, %568, %cst_115 {dimension_numbers = #tpu.dot_dimension_numbers<[1], [0], [0], [1], [0, 0, 1, 1], [], []>} : vector<16x256xbf16>, vector<256x128xbf16>, vector<16x128xf32> -> vector<16x128xf32>
    %570 = arith.addf %569, %564 : vector<16x128xf32>
    %c0_116 = arith.constant 0 : index
    %c0_117 = arith.constant 0 : index
    %571 = vector.load %arg16[%c0_116, %c0_117] : memref<1x128xf32, #tpu.memory_space<vmem>>, vector<1x128xf32>
    %572 = vector.broadcast %571 : vector<1x128xf32> to vector<16x128xf32>
    %573 = arith.addf %570, %572 : vector<16x128xf32>
    %cst_118 = arith.constant 0.000000e+00 : f32
    %574 = vector.broadcast %cst_118 : f32 to vector<16x128xf32>
    %575 = arith.maximumf %573, %574 : vector<16x128xf32>
    %576 = arith.truncf %575 : vector<16x128xf32> to vector<16x128xbf16>
    %c0_119 = arith.constant 0 : index
    %c0_120 = arith.constant 0 : index
    %577 = vector.load %arg17[%c0_119, %c0_120] : memref<128x128xbf16, #tpu.memory_space<vmem>>, vector<128x128xbf16>
    %cst_121 = arith.constant dense<0.000000e+00> : vector<16x128xf32>
    %578 = tpu.matmul %576, %577, %cst_121 {dimension_numbers = #tpu.dot_dimension_numbers<[1], [0], [0], [1], [0, 0, 1, 1], [], []>} : vector<16x128xbf16>, vector<128x128xbf16>, vector<16x128xf32> -> vector<16x128xf32>
    %c0_122 = arith.constant 0 : index
    %c0_123 = arith.constant 0 : index
    %579 = vector.load %arg18[%c0_122, %c0_123] : memref<1x128xf32, #tpu.memory_space<vmem>>, vector<1x128xf32>
    %580 = vector.broadcast %579 : vector<1x128xf32> to vector<16x128xf32>
    %581 = arith.addf %578, %580 : vector<16x128xf32>
    %cst_124 = arith.constant 0.000000e+00 : f32
    %582 = vector.broadcast %cst_124 : f32 to vector<16x128xf32>
    %583 = arith.maximumf %581, %582 : vector<16x128xf32>
    %584 = arith.truncf %583 : vector<16x128xf32> to vector<16x128xbf16>
    %c0_125 = arith.constant 0 : index
    %c0_126 = arith.constant 0 : index
    %585 = vector.load %arg19[%c0_125, %c0_126] : memref<128x128xbf16, #tpu.memory_space<vmem>>, vector<128x128xbf16>
    %cst_127 = arith.constant dense<0.000000e+00> : vector<16x128xf32>
    %586 = tpu.matmul %584, %585, %cst_127 {dimension_numbers = #tpu.dot_dimension_numbers<[1], [0], [0], [1], [0, 0, 1, 1], [], []>} : vector<16x128xbf16>, vector<128x128xbf16>, vector<16x128xf32> -> vector<16x128xf32>
    %c0_128 = arith.constant 0 : index
    %c0_129 = arith.constant 0 : index
    %587 = vector.load %arg20[%c0_128, %c0_129] : memref<1x128xf32, #tpu.memory_space<vmem>>, vector<1x128xf32>
    %588 = vector.broadcast %587 : vector<1x128xf32> to vector<16x128xf32>
    %589 = arith.addf %586, %588 : vector<16x128xf32>
    %cst_130 = arith.constant dense<0xFF800000> : vector<16xf32>
    %590 = vector.multi_reduction <maximumf>, %589, %cst_130 [1] : vector<16x128xf32> to vector<16xf32>
    %591 = vector.shape_cast %590 : vector<16xf32> to vector<16x1xf32>
    %592 = vector.broadcast %591 : vector<16x1xf32> to vector<16x128xf32>
    %593 = arith.subf %589, %592 : vector<16x128xf32>
    %594 = math.exp %593 : vector<16x128xf32>
    %cst_131 = arith.constant dense<0.000000e+00> : vector<16xf32>
    %595 = vector.multi_reduction <add>, %594, %cst_131 [1] : vector<16x128xf32> to vector<16xf32>
    %596 = vector.shape_cast %595 : vector<16xf32> to vector<16x1xf32>
    %597 = math.log %596 : vector<16x1xf32>
    %598 = vector.broadcast %597 : vector<16x1xf32> to vector<16x128xf32>
    %599 = arith.subf %593, %598 : vector<16x128xf32>
    %cst_132 = arith.constant 0.000000e+00 : f32
    %600 = vector.broadcast %cst_132 : f32 to vector<16x128xf32>
    %601 = arith.cmpf oge, %599, %600 : vector<16x128xf32>
    %cst_133 = arith.constant 0.00999999977 : f32
    %602 = vector.broadcast %cst_133 : f32 to vector<16x128xf32>
    %603 = arith.mulf %602, %599 : vector<16x128xf32>
    %604 = arith.select %601, %599, %603 : vector<16x128xi1>, vector<16x128xf32>
    %c0_134 = arith.constant 0 : index
    %c0_135 = arith.constant 0 : index
    %605 = vector.load %arg21[%c0_134, %c0_135] : memref<16x128xf32, #tpu.memory_space<vmem>>, vector<16x128xf32>
    tpu.vector_store %arg21[%c0_134, %c0_135], %604 {strides = array<i32>} : memref<16x128xf32, #tpu.memory_space<vmem>>, vector<16x128xf32>,
    return
  }
  func.func @transform_0(%arg0: i32) -> (i32, i32, i32) {
    %c0_i32 = arith.constant 0 : i32
    %c0_i32_0 = arith.constant 0 : i32
    %c0_i32_1 = arith.constant 0 : i32
    return %c0_i32, %arg0, %c0_i32_0 : i32, i32, i32
  }
  func.func @transform_1(%arg0: i32) -> (i32, i32) {
    %c0_i32 = arith.constant 0 : i32
    %c0_i32_0 = arith.constant 0 : i32
    %c0_i32_1 = arith.constant 0 : i32
    return %c0_i32, %c0_i32_0 : i32, i32
  }
  func.func @transform_2(%arg0: i32) -> (i32, i32) {
    %c0_i32 = arith.constant 0 : i32
    %c0_i32_0 = arith.constant 0 : i32
    %c0_i32_1 = arith.constant 0 : i32
    return %c0_i32, %c0_i32_0 : i32, i32
  }
  func.func @transform_3(%arg0: i32) -> (i32, i32) {
    %c0_i32 = arith.constant 0 : i32
    %c0_i32_0 = arith.constant 0 : i32
    %c0_i32_1 = arith.constant 0 : i32
    return %c0_i32, %c0_i32_0 : i32, i32
  }
  func.func @transform_4(%arg0: i32) -> (i32, i32) {
    %c0_i32 = arith.constant 0 : i32
    %c0_i32_0 = arith.constant 0 : i32
    %c0_i32_1 = arith.constant 0 : i32
    return %c0_i32, %c0_i32_0 : i32, i32
  }
  func.func @transform_5(%arg0: i32) -> (i32, i32) {
    %c0_i32 = arith.constant 0 : i32
    %c0_i32_0 = arith.constant 0 : i32
    %c0_i32_1 = arith.constant 0 : i32
    return %c0_i32, %c0_i32_0 : i32, i32
  }
  func.func @transform_6(%arg0: i32) -> (i32, i32) {
    %c0_i32 = arith.constant 0 : i32
    %c0_i32_0 = arith.constant 0 : i32
    %c0_i32_1 = arith.constant 0 : i32
    return %c0_i32, %c0_i32_0 : i32, i32
  }
  func.func @transform_7(%arg0: i32) -> (i32, i32) {
    %c0_i32 = arith.constant 0 : i32
    %c0_i32_0 = arith.constant 0 : i32
    %c0_i32_1 = arith.constant 0 : i32
    return %c0_i32, %c0_i32_0 : i32, i32
  }
  func.func @transform_8(%arg0: i32) -> (i32, i32) {
    %c0_i32 = arith.constant 0 : i32
    %c0_i32_0 = arith.constant 0 : i32
    %c0_i32_1 = arith.constant 0 : i32
    return %c0_i32, %c0_i32_0 : i32, i32
  }
  func.func @transform_9(%arg0: i32) -> (i32, i32) {
    %c0_i32 = arith.constant 0 : i32
    %c0_i32_0 = arith.constant 0 : i32
    %c0_i32_1 = arith.constant 0 : i32
    return %c0_i32, %c0_i32_0 : i32, i32
  }
  func.func @transform_10(%arg0: i32) -> (i32, i32) {
    %c0_i32 = arith.constant 0 : i32
    %c0_i32_0 = arith.constant 0 : i32
    %c0_i32_1 = arith.constant 0 : i32
    return %c0_i32, %c0_i32_0 : i32, i32
  }
  func.func @transform_11(%arg0: i32) -> (i32, i32) {
    %c0_i32 = arith.constant 0 : i32
    %c0_i32_0 = arith.constant 0 : i32
    %c0_i32_1 = arith.constant 0 : i32
    return %c0_i32, %c0_i32_0 : i32, i32
  }
  func.func @transform_12(%arg0: i32) -> (i32, i32) {
    %c0_i32 = arith.constant 0 : i32
    %c0_i32_0 = arith.constant 0 : i32
    %c0_i32_1 = arith.constant 0 : i32
    return %c0_i32, %c0_i32_0 : i32, i32
  }
  func.func @transform_13(%arg0: i32) -> (i32, i32) {
    %c0_i32 = arith.constant 0 : i32
    %c0_i32_0 = arith.constant 0 : i32
    %c0_i32_1 = arith.constant 0 : i32
    return %c0_i32, %c0_i32_0 : i32, i32
  }
  func.func @transform_14(%arg0: i32) -> (i32, i32) {
    %c0_i32 = arith.constant 0 : i32
    %c0_i32_0 = arith.constant 0 : i32
    %c0_i32_1 = arith.constant 0 : i32
    return %c0_i32, %c0_i32_0 : i32, i32
  }
  func.func @transform_15(%arg0: i32) -> (i32, i32) {
    %c0_i32 = arith.constant 0 : i32
    %c0_i32_0 = arith.constant 0 : i32
    %c0_i32_1 = arith.constant 0 : i32
    return %c0_i32, %c0_i32_0 : i32, i32
  }
  func.func @transform_16(%arg0: i32) -> (i32, i32) {
    %c0_i32 = arith.constant 0 : i32
    %c0_i32_0 = arith.constant 0 : i32
    %c0_i32_1 = arith.constant 0 : i32
    return %c0_i32, %c0_i32_0 : i32, i32
  }
  func.func @transform_17(%arg0: i32) -> (i32, i32) {
    %c0_i32 = arith.constant 0 : i32
    %c0_i32_0 = arith.constant 0 : i32
    %c0_i32_1 = arith.constant 0 : i32
    return %c0_i32, %c0_i32_0 : i32, i32
  }
  func.func @transform_18(%arg0: i32) -> (i32, i32) {
    %c0_i32 = arith.constant 0 : i32
    %c0_i32_0 = arith.constant 0 : i32
    %c0_i32_1 = arith.constant 0 : i32
    return %c0_i32, %c0_i32_0 : i32, i32
  }
  func.func @transform_19(%arg0: i32) -> (i32, i32) {
    %c0_i32 = arith.constant 0 : i32
    %c0_i32_0 = arith.constant 0 : i32
    %c0_i32_1 = arith.constant 0 : i32
    return %c0_i32, %c0_i32_0 : i32, i32
  }
  func.func @transform_20(%arg0: i32) -> (i32, i32) {
    %c0_i32 = arith.constant 0 : i32
    %c0_i32_0 = arith.constant 0 : i32
    return %arg0, %c0_i32 : i32, i32
  }
}

</mosaic_0001>

<llo_original>
// kernel: chgh_forward.1
$region0: #{chgh_forward.1}
  #allocation0 [shape = 'u32[]', space=smem, size = 0x4, offset = 0x4, fixed_abs, tag = 'smem constant byte address 0x4 - core index']
  #allocation1 [shape = 'u32[72,128]{1,0:T(1,128)}', space=vmem, size = 0x9000, scoped, tag = 'internal scratch']
  #allocation2 [shape = 'bf16[8,16,1024]{2,1,0:T(8,128)(2,1)}', space=vmem, size = 0x40000, scoped, tag = 'scratch operand']
  %s0 = inlined_call_operand.vmem [shape: f32[8,16,1], index: 0, kind: input, shape index: {}]
  %s1 = inlined_call_operand.vmem [shape: f32[1,128], index: 1, kind: input, shape index: {}]
  %s2 = inlined_call_operand.vmem [shape: f32[1,128], index: 2, kind: input, shape index: {}]
  %s3 = inlined_call_operand.vmem [shape: f32[1,128], index: 3, kind: input, shape index: {}]
  %s4 = inlined_call_operand.vmem [shape: f32[1,128], index: 4, kind: input, shape index: {}]
  %s5 = inlined_call_operand.vmem [shape: bf16[128,512], index: 5, kind: input, shape index: {}]
  %s6 = inlined_call_operand.vmem [shape: f32[1,512], index: 6, kind: input, shape index: {}]
  %s7 = inlined_call_operand.vmem [shape: bf16[128,512], index: 7, kind: input, shape index: {}]
  %s8 = inlined_call_operand.vmem [shape: f32[1,512], index: 8, kind: input, shape index: {}]
  %s9 = inlined_call_operand.vmem [shape: bf16[256,1024], index: 9, kind: input, shape index: {}]
  %s10 = inlined_call_operand.vmem [shape: bf16[8,128], index: 10, kind: input, shape index: {}]
  %s11 = inlined_call_operand.vmem [shape: bf16[256,128], index: 11, kind: input, shape index: {}]
  %s12 = inlined_call_operand.vmem [shape: f32[1,128], index: 12, kind: input, shape index: {}]
  %s13 = inlined_call_operand.vmem [shape: bf16[256,128], index: 13, kind: input, shape index: {}]
  %s14 = inlined_call_operand.vmem [shape: bf16[128,128], index: 14, kind: input, shape index: {}]
  %s15 = inlined_call_operand.vmem [shape: f32[1,128], index: 15, kind: input, shape index: {}]
  %s16 = inlined_call_operand.vmem [shape: bf16[128,128], index: 16, kind: input, shape index: {}]
  %s17 = inlined_call_operand.vmem [shape: f32[1,128], index: 17, kind: input, shape index: {}]
  %s18 = inlined_call_operand.vmem [shape: bf16[128,128], index: 18, kind: input, shape index: {}]
  %s19 = inlined_call_operand.vmem [shape: f32[1,128], index: 19, kind: input, shape index: {}]
  %s20 = inlined_call_operand.vmem [shape: f32[16,128], index: 20, kind: output, shape index: {}]
  %s21 = sld [smem:[#allocation0]]
  $region90: #{chgh_forward.1} parent=0
    _
  %s23 = ssub.s32 1, %s21
  %s24 = scalar_select 0, %s23, %s21
  // Predicated region
  $region2: #{chgh_forward.1} parent=0 // pred_check
    _
  $region3: #{chgh_forward.1} parent=0 // pred_check_branch
    %26 = sbr.rel (0) target = $region5
  $region4: #{chgh_forward.1} parent=0 // pred_region
    _
  $region5: #{chgh_forward.1} parent=0 // pred_fallthru
    _
  // Predicated region
  $region6: #{chgh_forward.1} parent=0 // pred_check
    _
  $region7: #{chgh_forward.1} parent=0 // pred_check_branch
    %28 = sbr.rel (0) target = $region9
  $region8: #{chgh_forward.1} parent=0 // pred_region
    _
  $region9: #{chgh_forward.1} parent=0 // pred_fallthru
    _
  // Predicated region
  $region10: #{chgh_forward.1} parent=0 // pred_check
    _
  $region11: #{chgh_forward.1} parent=0 // pred_check_branch
    %30 = sbr.rel (0) target = $region13
  $region12: #{chgh_forward.1} parent=0 // pred_region
    _
  $region13: #{chgh_forward.1} parent=0 // pred_fallthru
    _
  // Predicated region
  $region14: #{chgh_forward.1} parent=0 // pred_check
    _
  $region15: #{chgh_forward.1} parent=0 // pred_check_branch
    %32 = sbr.rel (0) target = $region17
  $region16: #{chgh_forward.1} parent=0 // pred_region
    _
  $region17: #{chgh_forward.1} parent=0 // pred_fallthru
    _
  // Predicated region
  $region18: #{chgh_forward.1} parent=0 // pred_check
    _
  $region19: #{chgh_forward.1} parent=0 // pred_check_branch
    %34 = sbr.rel (0) target = $region21
  $region20: #{chgh_forward.1} parent=0 // pred_region
    _
  $region21: #{chgh_forward.1} parent=0 // pred_fallthru
    _
  // Predicated region
  $region22: #{chgh_forward.1} parent=0 // pred_check
    _
  $region23: #{chgh_forward.1} parent=0 // pred_check_branch
    %36 = sbr.rel (0) target = $region25
  $region24: #{chgh_forward.1} parent=0 // pred_region
    _
  $region25: #{chgh_forward.1} parent=0 // pred_fallthru
    _
  // Predicated region
  $region26: #{chgh_forward.1} parent=0 // pred_check
    _
  $region27: #{chgh_forward.1} parent=0 // pred_check_branch
    %38 = sbr.rel (0) target = $region29
  $region28: #{chgh_forward.1} parent=0 // pred_region
    _
  $region29: #{chgh_forward.1} parent=0 // pred_fallthru
    _
  // Predicated region
  $region30: #{chgh_forward.1} parent=0 // pred_check
    _
  $region31: #{chgh_forward.1} parent=0 // pred_check_branch
    %40 = sbr.rel (0) target = $region33
  $region32: #{chgh_forward.1} parent=0 // pred_region
    _
  $region33: #{chgh_forward.1} parent=0 // pred_fallthru
    _
  // Predicated region
  $region34: #{chgh_forward.1} parent=0 // pred_check
    _
  $region35: #{chgh_forward.1} parent=0 // pred_check_branch
    %42 = sbr.rel (0) target = $region37
  $region36: #{chgh_forward.1} parent=0 // pred_region
    _
  $region37: #{chgh_forward.1} parent=0 // pred_fallthru
    _
  // Predicated region
  $region38: #{chgh_forward.1} parent=0 // pred_check
    _
  $region39: #{chgh_forward.1} parent=0 // pred_check_branch
    %44 = sbr.rel (0) target = $region41
  $region40: #{chgh_forward.1} parent=0 // pred_region
    _
  $region41: #{chgh_forward.1} parent=0 // pred_fallthru
    _
  // Predicated region
  $region42: #{chgh_forward.1} parent=0 // pred_check
    _
  $region43: #{chgh_forward.1} parent=0 // pred_check_branch
    %46 = sbr.rel (0) target = $region45
  $region44: #{chgh_forward.1} parent=0 // pred_region
    _
  $region45: #{chgh_forward.1} parent=0 // pred_fallthru
    _
  // Predicated region
  $region46: #{chgh_forward.1} parent=0 // pred_check
    _
  $region47: #{chgh_forward.1} parent=0 // pred_check_branch
    %48 = sbr.rel (0) target = $region49
  $region48: #{chgh_forward.1} parent=0 // pred_region
    _
  $region49: #{chgh_forward.1} parent=0 // pred_fallthru
    _
  // Predicated region
  $region50: #{chgh_forward.1} parent=0 // pred_check
    _
  $region51: #{chgh_forward.1} parent=0 // pred_check_branch
    %50 = sbr.rel (0) target = $region53
  $region52: #{chgh_forward.1} parent=0 // pred_region
    _
  $region53: #{chgh_forward.1} parent=0 // pred_fallthru
    _
  // Predicated region
  $region54: #{chgh_forward.1} parent=0 // pred_check
    _
  $region55: #{chgh_forward.1} parent=0 // pred_check_branch
    %52 = sbr.rel (0) target = $region57
  $region56: #{chgh_forward.1} parent=0 // pred_region
    _
  $region57: #{chgh_forward.1} parent=0 // pred_fallthru
    _
  // Predicated region
  $region58: #{chgh_forward.1} parent=0 // pred_check
    _
  $region59: #{chgh_forward.1} parent=0 // pred_check_branch
    %54 = sbr.rel (0) target = $region61
  $region60: #{chgh_forward.1} parent=0 // pred_region
    _
  $region61: #{chgh_forward.1} parent=0 // pred_fallthru
    _
  // Predicated region
  $region62: #{chgh_forward.1} parent=0 // pred_check
    _
  $region63: #{chgh_forward.1} parent=0 // pred_check_branch
    %56 = sbr.rel (0) target = $region65
  $region64: #{chgh_forward.1} parent=0 // pred_region
    _
  $region65: #{chgh_forward.1} parent=0 // pred_fallthru
    _
  // Predicated region
  $region66: #{chgh_forward.1} parent=0 // pred_check
    _
  $region67: #{chgh_forward.1} parent=0 // pred_check_branch
    %58 = sbr.rel (0) target = $region69
  $region68: #{chgh_forward.1} parent=0 // pred_region
    _
  $region69: #{chgh_forward.1} parent=0 // pred_fallthru
    _
  // Predicated region
  $region70: #{chgh_forward.1} parent=0 // pred_check
    _
  $region71: #{chgh_forward.1} parent=0 // pred_check_branch
    %60 = sbr.rel (0) target = $region73
  $region72: #{chgh_forward.1} parent=0 // pred_region
    _
  $region73: #{chgh_forward.1} parent=0 // pred_fallthru
    _
  // Predicated region
  $region74: #{chgh_forward.1} parent=0 // pred_check
    _
  $region75: #{chgh_forward.1} parent=0 // pred_check_branch
    %62 = sbr.rel (0) target = $region77
  $region76: #{chgh_forward.1} parent=0 // pred_region
    _
  $region77: #{chgh_forward.1} parent=0 // pred_fallthru
    _
  // Predicated region
  $region78: #{chgh_forward.1} parent=0 // pred_check
    _
  $region79: #{chgh_forward.1} parent=0 // pred_check_branch
    %64 = sbr.rel (0) target = $region81
  $region80: #{chgh_forward.1} parent=0 // pred_region
    _
  $region81: #{chgh_forward.1} parent=0 // pred_fallthru
    _
  %v66 = vld [vmem:[%s0] sm:$0xff]
  %v67 = vld [vmem:[%s0 + $0x8] sm:$0xff]
  %v68 = vld [vmem:[%s0 + $0x10] sm:$0xff]
  %v69 = vld [vmem:[%s0 + $0x18] sm:$0xff]
  %v70 = vld [vmem:[%s0 + $0x20] sm:$0xff]
  %v71 = vld [vmem:[%s0 + $0x28] sm:$0xff]
  %v72 = vld [vmem:[%s0 + $0x30] sm:$0xff]
  %v73 = vld [vmem:[%s0 + $0x38] sm:$0xff]
  %v74 = vld [vmem:[%s0 + $0x40] sm:$0xff]
  %v75 = vld [vmem:[%s0 + $0x48] sm:$0xff]
  %v76 = vld [vmem:[%s0 + $0x50] sm:$0xff]
  %v77 = vld [vmem:[%s0 + $0x58] sm:$0xff]
  %v78 = vld [vmem:[%s0 + $0x60] sm:$0xff]
  %v79 = vld [vmem:[%s0 + $0x68] sm:$0xff]
  %v80 = vld [vmem:[%s0 + $0x70] sm:$0xff]
  %v81 = vld [vmem:[%s0 + $0x78] sm:$0xff]
  %v82 = vld [vmem:[%s1] sm:$0x1]
  %84 = vset.pattern.permute.xlu0 0
  %85 = vperm.xlu0 %84, %v66
  %v86 = vpop.permute.xlu0 %85
  %89 = vset.pattern.permute.xlu0 0
  %90 = vperm.xlu0 %89, %v67
  %v91 = vpop.permute.xlu0 %90
  %94 = vset.pattern.permute.xlu0 0
  %95 = vperm.xlu0 %94, %v68
  %v96 = vpop.permute.xlu0 %95
  %99 = vset.pattern.permute.xlu0 0
  %100 = vperm.xlu0 %99, %v69
  %v101 = vpop.permute.xlu0 %100
  %104 = vset.pattern.permute.xlu0 0
  %105 = vperm.xlu0 %104, %v70
  %v106 = vpop.permute.xlu0 %105
  %109 = vset.pattern.permute.xlu0 0
  %110 = vperm.xlu0 %109, %v71
  %v111 = vpop.permute.xlu0 %110
  %114 = vset.pattern.permute.xlu0 0
  %115 = vperm.xlu0 %114, %v72
  %v116 = vpop.permute.xlu0 %115
  %119 = vset.pattern.permute.xlu0 0
  %120 = vperm.xlu0 %119, %v73
  %v121 = vpop.permute.xlu0 %120
  %124 = vset.pattern.permute.xlu0 0
  %125 = vperm.xlu0 %124, %v74
  %v126 = vpop.permute.xlu0 %125
  %129 = vset.pattern.permute.xlu0 0
  %130 = vperm.xlu0 %129, %v75
  %v131 = vpop.permute.xlu0 %130
  %134 = vset.pattern.permute.xlu0 0
  %135 = vperm.xlu0 %134, %v76
  %v136 = vpop.permute.xlu0 %135
  %139 = vset.pattern.permute.xlu0 0
  %140 = vperm.xlu0 %139, %v77
  %v141 = vpop.permute.xlu0 %140
  %144 = vset.pattern.permute.xlu0 0
  %145 = vperm.xlu0 %144, %v78
  %v146 = vpop.permute.xlu0 %145
  %149 = vset.pattern.permute.xlu0 0
  %150 = vperm.xlu0 %149, %v79
  %v151 = vpop.permute.xlu0 %150
  %154 = vset.pattern.permute.xlu0 0
  %155 = vperm.xlu0 %154, %v80
  %v156 = vpop.permute.xlu0 %155
  %159 = vset.pattern.permute.xlu0 0
  %160 = vperm.xlu0 %159, %v81
  %v161 = vpop.permute.xlu0 %160
  %v164 = vperm.slane %v82, 0
  %v166 = vmul.f32 %v86, %v164
  %v167 = vmul.f32 %v91, %v164
  %v168 = vmul.f32 %v96, %v164
  %v169 = vmul.f32 %v101, %v164
  %v170 = vmul.f32 %v106, %v164
  %v171 = vmul.f32 %v111, %v164
  %v172 = vmul.f32 %v116, %v164
  %v173 = vmul.f32 %v121, %v164
  %v174 = vmul.f32 %v126, %v164
  %v175 = vmul.f32 %v131, %v164
  %v176 = vmul.f32 %v136, %v164
  %v177 = vmul.f32 %v141, %v164
  %v178 = vmul.f32 %v146, %v164
  %v179 = vmul.f32 %v151, %v164
  %v180 = vmul.f32 %v156, %v164
  %v181 = vmul.f32 %v161, %v164
  %v182 = vld [vmem:[%s2] sm:$0x1]
  %v184 = vperm.slane %v182, 0
  %v186 = vadd.f32 %v166, %v184
  %v187 = vadd.f32 %v167, %v184
  %v188 = vadd.f32 %v168, %v184
  %v189 = vadd.f32 %v169, %v184
  %v190 = vadd.f32 %v170, %v184
  %v191 = vadd.f32 %v171, %v184
  %v192 = vadd.f32 %v172, %v184
  %v193 = vadd.f32 %v173, %v184
  %v194 = vadd.f32 %v174, %v184
  %v195 = vadd.f32 %v175, %v184
  %v196 = vadd.f32 %v176, %v184
  %v197 = vadd.f32 %v177, %v184
  %v198 = vadd.f32 %v178, %v184
  %v199 = vadd.f32 %v179, %v184
  %v200 = vadd.f32 %v180, %v184
  %v201 = vadd.f32 %v181, %v184
  %vm202 = vcmp.ge.f32.partialorder %v186, 0.0
  %vm203 = vcmp.ge.f32.partialorder %v187, 0.0
  %vm204 = vcmp.ge.f32.partialorder %v188, 0.0
  %vm205 = vcmp.ge.f32.partialorder %v189, 0.0
  %vm206 = vcmp.ge.f32.partialorder %v190, 0.0
  %vm207 = vcmp.ge.f32.partialorder %v191, 0.0
  %vm208 = vcmp.ge.f32.partialorder %v192, 0.0
  %vm209 = vcmp.ge.f32.partialorder %v193, 0.0
  %vm210 = vcmp.ge.f32.partialorder %v194, 0.0
  %vm211 = vcmp.ge.f32.partialorder %v195, 0.0
  %vm212 = vcmp.ge.f32.partialorder %v196, 0.0
  %vm213 = vcmp.ge.f32.partialorder %v197, 0.0
  %vm214 = vcmp.ge.f32.partialorder %v198, 0.0
  %vm215 = vcmp.ge.f32.partialorder %v199, 0.0
  %vm216 = vcmp.ge.f32.partialorder %v200, 0.0
  %vm217 = vcmp.ge.f32.partialorder %v201, 0.0
  %v218 = vmul.f32 %v186, 0.01
  %v219 = vmul.f32 %v187, 0.01
  %v220 = vmul.f32 %v188, 0.01
  %v221 = vmul.f32 %v189, 0.01
  %v222 = vmul.f32 %v190, 0.01
  %v223 = vmul.f32 %v191, 0.01
  %v224 = vmul.f32 %v192, 0.01
  %v225 = vmul.f32 %v193, 0.01
  %v226 = vmul.f32 %v194, 0.01
  %v227 = vmul.f32 %v195, 0.01
  %v228 = vmul.f32 %v196, 0.01
  %v229 = vmul.f32 %v197, 0.01
  %v230 = vmul.f32 %v198, 0.01
  %v231 = vmul.f32 %v199, 0.01
  %v232 = vmul.f32 %v200, 0.01
  %v233 = vmul.f32 %v201, 0.01
  %v234 = vsel %vm202, %v186, %v218
  %v235 = vsel %vm203, %v187, %v219
  %v236 = vsel %vm204, %v188, %v220
  %v237 = vsel %vm205, %v189, %v221
  %v238 = vsel %vm206, %v190, %v222
  %v239 = vsel %vm207, %v191, %v223
  %v240 = vsel %vm208, %v192, %v224
  %v241 = vsel %vm209, %v193, %v225
  %v242 = vsel %vm210, %v194, %v226
  %v243 = vsel %vm211, %v195, %v227
  %v244 = vsel %vm212, %v196, %v228
  %v245 = vsel %vm213, %v197, %v229
  %v246 = vsel %vm214, %v198, %v230
  %v247 = vsel %vm215, %v199, %v231
  %v248 = vsel %vm216, %v200, %v232
  %v249 = vsel %vm217, %v201, %v233
  %v250 = vpack.c.bf16 %v234, %v234
  %v251 = vpack.c.bf16 %v235, %v235
  %v252 = vpack.c.bf16 %v236, %v236
  %v253 = vpack.c.bf16 %v237, %v237
  %v254 = vpack.c.bf16 %v238, %v238
  %v255 = vpack.c.bf16 %v239, %v239
  %v256 = vpack.c.bf16 %v240, %v240
  %v257 = vpack.c.bf16 %v241, %v241
  %v258 = vpack.c.bf16 %v242, %v242
  %v259 = vpack.c.bf16 %v243, %v243
  %v260 = vpack.c.bf16 %v244, %v244
  %v261 = vpack.c.bf16 %v245, %v245
  %v262 = vpack.c.bf16 %v246, %v246
  %v263 = vpack.c.bf16 %v247, %v247
  %v264 = vpack.c.bf16 %v248, %v248
  %v265 = vpack.c.bf16 %v249, %v249
  %v266 = vld [vmem:[%s5] sm:$0xff]
  %v267 = vld [vmem:[%s5 + $0x8] sm:$0xff]
  %v268 = vld [vmem:[%s5 + $0x10] sm:$0xff]
  %v269 = vld [vmem:[%s5 + $0x18] sm:$0xff]
  %v270 = vld [vmem:[%s5 + $0x20] sm:$0xff]
  %v271 = vld [vmem:[%s5 + $0x28] sm:$0xff]
  %v272 = vld [vmem:[%s5 + $0x30] sm:$0xff]
  %v273 = vld [vmem:[%s5 + $0x38] sm:$0xff]
  %v274 = vld [vmem:[%s5 + $0x40] sm:$0xff]
  %v275 = vld [vmem:[%s5 + $0x48] sm:$0xff]
  %v276 = vld [vmem:[%s5 + $0x50] sm:$0xff]
  %v277 = vld [vmem:[%s5 + $0x58] sm:$0xff]
  %v278 = vld [vmem:[%s5 + $0x60] sm:$0xff]
  %v279 = vld [vmem:[%s5 + $0x68] sm:$0xff]
  %v280 = vld [vmem:[%s5 + $0x70] sm:$0xff]
  %v281 = vld [vmem:[%s5 + $0x78] sm:$0xff]
  %v282 = vld [vmem:[%s5 + $0x80] sm:$0xff]
  %v283 = vld [vmem:[%s5 + $0x88] sm:$0xff]
  %v284 = vld [vmem:[%s5 + $0x90] sm:$0xff]
  %v285 = vld [vmem:[%s5 + $0x98] sm:$0xff]
  %v286 = vld [vmem:[%s5 + $0xa0] sm:$0xff]
  %v287 = vld [vmem:[%s5 + $0xa8] sm:$0xff]
  %v288 = vld [vmem:[%s5 + $0xb0] sm:$0xff]
  %v289 = vld [vmem:[%s5 + $0xb8] sm:$0xff]
  %v290 = vld [vmem:[%s5 + $0xc0] sm:$0xff]
  %v291 = vld [vmem:[%s5 + $0xc8] sm:$0xff]
  %v292 = vld [vmem:[%s5 + $0xd0] sm:$0xff]
  %v293 = vld [vmem:[%s5 + $0xd8] sm:$0xff]
  %v294 = vld [vmem:[%s5 + $0xe0] sm:$0xff]
  %v295 = vld [vmem:[%s5 + $0xe8] sm:$0xff]
  %v296 = vld [vmem:[%s5 + $0xf0] sm:$0xff]
  %v297 = vld [vmem:[%s5 + $0xf8] sm:$0xff]
  %v298 = vld [vmem:[%s6] sm:$0xf]
  %v300 = vperm.slane %v298, 0
  %v301 = vperm.slane %v298, 1
  %v302 = vperm.slane %v298, 2
  %v303 = vperm.slane %v298, 3
  %v324 = vunpack.c.l.b16 %v250
  %v325 = vunpack.c.l.b16 %v251
  %v326 = vunpack.c.l.b16 %v252
  %v327 = vunpack.c.l.b16 %v253
  %v328 = vunpack.c.l.b16 %v254
  %v329 = vunpack.c.l.b16 %v255
  %v330 = vunpack.c.l.b16 %v256
  %v331 = vunpack.c.l.b16 %v257
  %v332 = vunpack.c.l.b16 %v258
  %v333 = vunpack.c.l.b16 %v259
  %v334 = vunpack.c.l.b16 %v260
  %v335 = vunpack.c.l.b16 %v261
  %v336 = vunpack.c.l.b16 %v262
  %v337 = vunpack.c.l.b16 %v263
  %v338 = vunpack.c.l.b16 %v264
  %v339 = vunpack.c.l.b16 %v265
  %v340 = vpack.c.b16 %v325, %v324
  %v341 = vpack.c.b16 %v327, %v326
  %v342 = vpack.c.b16 %v329, %v328
  %v343 = vpack.c.b16 %v331, %v330
  %v344 = vpack.c.b16 %v333, %v332
  %v345 = vpack.c.b16 %v335, %v334
  %v346 = vpack.c.b16 %v337, %v336
  %v347 = vpack.c.b16 %v339, %v338
  %v388 = vunpack.c.l.b16 %v266
  %v389 = vunpack.c.h.b16 %v266
  %v390 = vunpack.c.l.b16 %v267
  %v391 = vunpack.c.h.b16 %v267
  %v392 = vunpack.c.l.b16 %v268
  %v393 = vunpack.c.h.b16 %v268
  %v394 = vunpack.c.l.b16 %v269
  %v395 = vunpack.c.h.b16 %v269
  %v396 = vunpack.c.l.b16 %v270
  %v397 = vunpack.c.h.b16 %v270
  %v398 = vunpack.c.l.b16 %v271
  %v399 = vunpack.c.h.b16 %v271
  %v400 = vunpack.c.l.b16 %v272
  %v401 = vunpack.c.h.b16 %v272
  %v402 = vunpack.c.l.b16 %v273
  %v403 = vunpack.c.h.b16 %v273
  %v404 = vunpack.c.l.b16 %v274
  %v405 = vunpack.c.h.b16 %v274
  %v406 = vunpack.c.l.b16 %v275
  %v407 = vunpack.c.h.b16 %v275
  %v408 = vunpack.c.l.b16 %v276
  %v409 = vunpack.c.h.b16 %v276
  %v410 = vunpack.c.l.b16 %v277
  %v411 = vunpack.c.h.b16 %v277
  %v412 = vunpack.c.l.b16 %v278
  %v413 = vunpack.c.h.b16 %v278
  %v414 = vunpack.c.l.b16 %v279
  %v415 = vunpack.c.h.b16 %v279
  %v416 = vunpack.c.l.b16 %v280
  %v417 = vunpack.c.h.b16 %v280
  %v418 = vunpack.c.l.b16 %v281
  %v419 = vunpack.c.h.b16 %v281
  %v420 = vunpack.c.l.b16 %v282
  %v421 = vunpack.c.h.b16 %v282
  %v422 = vunpack.c.l.b16 %v283
  %v423 = vunpack.c.h.b16 %v283
  %v424 = vunpack.c.l.b16 %v284
  %v425 = vunpack.c.h.b16 %v284
  %v426 = vunpack.c.l.b16 %v285
  %v427 = vunpack.c.h.b16 %v285
  %v428 = vunpack.c.l.b16 %v286
  %v429 = vunpack.c.h.b16 %v286
  %v430 = vunpack.c.l.b16 %v287
  %v431 = vunpack.c.h.b16 %v287
  %v432 = vunpack.c.l.b16 %v288
  %v433 = vunpack.c.h.b16 %v288
  %v434 = vunpack.c.l.b16 %v289
  %v435 = vunpack.c.h.b16 %v289
  %v436 = vunpack.c.l.b16 %v290
  %v437 = vunpack.c.h.b16 %v290
  %v438 = vunpack.c.l.b16 %v291
  %v439 = vunpack.c.h.b16 %v291
  %v440 = vunpack.c.l.b16 %v292
  %v441 = vunpack.c.h.b16 %v292
  %v442 = vunpack.c.l.b16 %v293
  %v443 = vunpack.c.h.b16 %v293
  %v444 = vunpack.c.l.b16 %v294
  %v445 = vunpack.c.h.b16 %v294
  %v446 = vunpack.c.l.b16 %v295
  %v447 = vunpack.c.h.b16 %v295
  %v448 = vunpack.c.l.b16 %v296
  %v449 = vunpack.c.h.b16 %v296
  %v450 = vunpack.c.l.b16 %v297
  %v451 = vunpack.c.h.b16 %v297
  %v452 = vpack.c.b16 %v392, %v388
  %v453 = vpack.c.b16 %v393, %v389
  %v454 = vpack.c.b16 %v394, %v390
  %v455 = vpack.c.b16 %v395, %v391
  %v456 = vpack.c.b16 %v400, %v396
  %v457 = vpack.c.b16 %v401, %v397
  %v458 = vpack.c.b16 %v402, %v398
  %v459 = vpack.c.b16 %v403, %v399
  %v460 = vpack.c.b16 %v408, %v404
  %v461 = vpack.c.b16 %v409, %v405
  %v462 = vpack.c.b16 %v410, %v406
  %v463 = vpack.c.b16 %v411, %v407
  %v464 = vpack.c.b16 %v416, %v412
  %v465 = vpack.c.b16 %v417, %v413
  %v466 = vpack.c.b16 %v418, %v414
  %v467 = vpack.c.b16 %v419, %v415
  %v468 = vpack.c.b16 %v424, %v420
  %v469 = vpack.c.b16 %v425, %v421
  %v470 = vpack.c.b16 %v426, %v422
  %v471 = vpack.c.b16 %v427, %v423
  %v472 = vpack.c.b16 %v432, %v428
  %v473 = vpack.c.b16 %v433, %v429
  %v474 = vpack.c.b16 %v434, %v430
  %v475 = vpack.c.b16 %v435, %v431
  %v476 = vpack.c.b16 %v440, %v436
  %v477 = vpack.c.b16 %v441, %v437
  %v478 = vpack.c.b16 %v442, %v438
  %v479 = vpack.c.b16 %v443, %v439
  %v480 = vpack.c.b16 %v448, %v444
  %v481 = vpack.c.b16 %v449, %v445
  %v482 = vpack.c.b16 %v450, %v446
  %v483 = vpack.c.b16 %v451, %v447
  %516 = vmatpush.bf16.msra.mxu0 %v480
  %517 = vmatpush.bf16.msra.mxu0 %v476
  %518 = vmatpush.bf16.msra.mxu0 %v472
  %519 = vmatpush.bf16.msra.mxu0 %v468
  %520 = vmatpush.bf16.msra.mxu0 %v464
  %521 = vmatpush.bf16.msra.mxu0 %v460
  %522 = vmatpush.bf16.msra.mxu0 %v456
  %523 = vmatpush.bf16.msra.mxu0 %v452
  %524 = vmatmul.bf16.gmra.mxu0 %v340
  %v525 = vpop.f32.mrf.mxu0
  %v526 = vadd.f32 %v300, %v525
  %v527 = vpop.f32.mrf.mxu0
  %v528 = vadd.f32 %v300, %v527
  %529 = vmatmul.bf16.gmra.mxu0 %v341
  %v530 = vpop.f32.mrf.mxu0
  %v531 = vadd.f32 %v300, %v530
  %v532 = vpop.f32.mrf.mxu0
  %v533 = vadd.f32 %v300, %v532
  %534 = vmatmul.bf16.gmra.mxu0 %v342
  %v535 = vpop.f32.mrf.mxu0
  %v536 = vadd.f32 %v300, %v535
  %v537 = vpop.f32.mrf.mxu0
  %v538 = vadd.f32 %v300, %v537
  %539 = vmatmul.bf16.gmra.mxu0 %v343
  %v540 = vpop.f32.mrf.mxu0
  %v541 = vadd.f32 %v300, %v540
  %v542 = vpop.f32.mrf.mxu0
  %v543 = vadd.f32 %v300, %v542
  %544 = vmatmul.bf16.gmra.mxu0 %v344
  %v545 = vpop.f32.mrf.mxu0
  %v546 = vadd.f32 %v300, %v545
  %v547 = vpop.f32.mrf.mxu0
  %v548 = vadd.f32 %v300, %v547
  %549 = vmatmul.bf16.gmra.mxu0 %v345
  %v550 = vpop.f32.mrf.mxu0
  %v551 = vadd.f32 %v300, %v550
  %v552 = vpop.f32.mrf.mxu0
  %v553 = vadd.f32 %v300, %v552
  %554 = vmatmul.bf16.gmra.mxu0 %v346
  %v555 = vpop.f32.mrf.mxu0
  %v556 = vadd.f32 %v300, %v555
  %v557 = vpop.f32.mrf.mxu0
  %v558 = vadd.f32 %v300, %v557
  %559 = vmatmul.bf16.gmra.mxu0 %v347
  %v560 = vpop.f32.mrf.mxu0
  %v561 = vadd.f32 %v300, %v560
  %v562 = vpop.f32.mrf.mxu0
  %v563 = vadd.f32 %v300, %v562
  %564 = vdwg.mxu0
  %565 = vmatpush.bf16.msra.mxu0 %v481
  %566 = vmatpush.bf16.msra.mxu0 %v477
  %567 = vmatpush.bf16.msra.mxu0 %v473
  %568 = vmatpush.bf16.msra.mxu0 %v469
  %569 = vmatpush.bf16.msra.mxu0 %v465
  %570 = vmatpush.bf16.msra.mxu0 %v461
  %571 = vmatpush.bf16.msra.mxu0 %v457
  %572 = vmatpush.bf16.msra.mxu0 %v453
  %573 = vmatmul.bf16.gmra.mxu0 %v340
  %v574 = vpop.f32.mrf.mxu0
  %v575 = vadd.f32 %v301, %v574
  %v576 = vpop.f32.mrf.mxu0
  %v577 = vadd.f32 %v301, %v576
  %578 = vmatmul.bf16.gmra.mxu0 %v341
  %v579 = vpop.f32.mrf.mxu0
  %v580 = vadd.f32 %v301, %v579
  %v581 = vpop.f32.mrf.mxu0
  %v582 = vadd.f32 %v301, %v581
  %583 = vmatmul.bf16.gmra.mxu0 %v342
  %v584 = vpop.f32.mrf.mxu0
  %v585 = vadd.f32 %v301, %v584
  %v586 = vpop.f32.mrf.mxu0
  %v587 = vadd.f32 %v301, %v586
  %588 = vmatmul.bf16.gmra.mxu0 %v343
  %v589 = vpop.f32.mrf.mxu0
  %v590 = vadd.f32 %v301, %v589
  %v591 = vpop.f32.mrf.mxu0
  %v592 = vadd.f32 %v301, %v591
  %593 = vmatmul.bf16.gmra.mxu0 %v344
  %v594 = vpop.f32.mrf.mxu0
  %v595 = vadd.f32 %v301, %v594
  %v596 = vpop.f32.mrf.mxu0
  %v597 = vadd.f32 %v301, %v596
  %598 = vmatmul.bf16.gmra.mxu0 %v345
  %v599 = vpop.f32.mrf.mxu0
  %v600 = vadd.f32 %v301, %v599
  %v601 = vpop.f32.mrf.mxu0
  %v602 = vadd.f32 %v301, %v601
  %603 = vmatmul.bf16.gmra.mxu0 %v346
  %v604 = vpop.f32.mrf.mxu0
  %v605 = vadd.f32 %v301, %v604
  %v606 = vpop.f32.mrf.mxu0
  %v607 = vadd.f32 %v301, %v606
  %608 = vmatmul.bf16.gmra.mxu0 %v347
  %v609 = vpop.f32.mrf.mxu0
  %v610 = vadd.f32 %v301, %v609
  %v611 = vpop.f32.mrf.mxu0
  %v612 = vadd.f32 %v301, %v611
  %613 = vdwg.mxu0
  %614 = vmatpush.bf16.msra.mxu0 %v482
  %615 = vmatpush.bf16.msra.mxu0 %v478
  %616 = vmatpush.bf16.msra.mxu0 %v474
  %617 = vmatpush.bf16.msra.mxu0 %v470
  %618 = vmatpush.bf16.msra.mxu0 %v466
  %619 = vmatpush.bf16.msra.mxu0 %v462
  %620 = vmatpush.bf16.msra.mxu0 %v458
  %621 = vmatpush.bf16.msra.mxu0 %v454
  %622 = vmatmul.bf16.gmra.mxu0 %v340
  %v623 = vpop.f32.mrf.mxu0
  %v624 = vadd.f32 %v302, %v623
  %v625 = vpop.f32.mrf.mxu0
  %v626 = vadd.f32 %v302, %v625
  %627 = vmatmul.bf16.gmra.mxu0 %v341
  %v628 = vpop.f32.mrf.mxu0
  %v629 = vadd.f32 %v302, %v628
  %v630 = vpop.f32.mrf.mxu0
  %v631 = vadd.f32 %v302, %v630
  %632 = vmatmul.bf16.gmra.mxu0 %v342
  %v633 = vpop.f32.mrf.mxu0
  %v634 = vadd.f32 %v302, %v633
  %v635 = vpop.f32.mrf.mxu0
  %v636 = vadd.f32 %v302, %v635
  %637 = vmatmul.bf16.gmra.mxu0 %v343
  %v638 = vpop.f32.mrf.mxu0
  %v639 = vadd.f32 %v302, %v638
  %v640 = vpop.f32.mrf.mxu0
  %v641 = vadd.f32 %v302, %v640
  %642 = vmatmul.bf16.gmra.mxu0 %v344
  %v643 = vpop.f32.mrf.mxu0
  %v644 = vadd.f32 %v302, %v643
  %v645 = vpop.f32.mrf.mxu0
  %v646 = vadd.f32 %v302, %v645
  %647 = vmatmul.bf16.gmra.mxu0 %v345
  %v648 = vpop.f32.mrf.mxu0
  %v649 = vadd.f32 %v302, %v648
  %v650 = vpop.f32.mrf.mxu0
  %v651 = vadd.f32 %v302, %v650
  %652 = vmatmul.bf16.gmra.mxu0 %v346
  %v653 = vpop.f32.mrf.mxu0
  %v654 = vadd.f32 %v302, %v653
  %v655 = vpop.f32.mrf.mxu0
  %v656 = vadd.f32 %v302, %v655
  %657 = vmatmul.bf16.gmra.mxu0 %v347
  %v658 = vpop.f32.mrf.mxu0
  %v659 = vadd.f32 %v302, %v658
  %v660 = vpop.f32.mrf.mxu0
  %v661 = vadd.f32 %v302, %v660
  %662 = vdwg.mxu0
  %663 = vmatpush.bf16.msra.mxu0 %v483
  %664 = vmatpush.bf16.msra.mxu0 %v479
  %665 = vmatpush.bf16.msra.mxu0 %v475
  %666 = vmatpush.bf16.msra.mxu0 %v471
  %667 = vmatpush.bf16.msra.mxu0 %v467
  %668 = vmatpush.bf16.msra.mxu0 %v463
  %669 = vmatpush.bf16.msra.mxu0 %v459
  %670 = vmatpush.bf16.msra.mxu0 %v455
  %671 = vmatmul.bf16.gmra.mxu0 %v340
  %v672 = vpop.f32.mrf.mxu0
  %v673 = vadd.f32 %v303, %v672
  %v674 = vpop.f32.mrf.mxu0
  %v675 = vadd.f32 %v303, %v674
  %676 = vmatmul.bf16.gmra.mxu0 %v341
  %v677 = vpop.f32.mrf.mxu0
  %v678 = vadd.f32 %v303, %v677
  %v679 = vpop.f32.mrf.mxu0
  %v680 = vadd.f32 %v303, %v679
  %681 = vmatmul.bf16.gmra.mxu0 %v342
  %v682 = vpop.f32.mrf.mxu0
  %v683 = vadd.f32 %v303, %v682
  %v684 = vpop.f32.mrf.mxu0
  %v685 = vadd.f32 %v303, %v684
  %686 = vmatmul.bf16.gmra.mxu0 %v343
  %v687 = vpop.f32.mrf.mxu0
  %v688 = vadd.f32 %v303, %v687
  %v689 = vpop.f32.mrf.mxu0
  %v690 = vadd.f32 %v303, %v689
  %691 = vmatmul.bf16.gmra.mxu0 %v344
  %v692 = vpop.f32.mrf.mxu0
  %v693 = vadd.f32 %v303, %v692
  %v694 = vpop.f32.mrf.mxu0
  %v695 = vadd.f32 %v303, %v694
  %696 = vmatmul.bf16.gmra.mxu0 %v345
  %v697 = vpop.f32.mrf.mxu0
  %v698 = vadd.f32 %v303, %v697
  %v699 = vpop.f32.mrf.mxu0
  %v700 = vadd.f32 %v303, %v699
  %701 = vmatmul.bf16.gmra.mxu0 %v346
  %v702 = vpop.f32.mrf.mxu0
  %v703 = vadd.f32 %v303, %v702
  %v704 = vpop.f32.mrf.mxu0
  %v705 = vadd.f32 %v303, %v704
  %706 = vmatmul.bf16.gmra.mxu0 %v347
  %v707 = vpop.f32.mrf.mxu0
  %v708 = vadd.f32 %v303, %v707
  %v709 = vpop.f32.mrf.mxu0
  %v710 = vadd.f32 %v303, %v709
  %711 = vdwg.mxu0
  %v712 = vpack.c.bf16 %v575, %v526
  %v713 = vpack.c.bf16 %v673, %v624
  %v714 = vpack.c.bf16 %v577, %v528
  %v715 = vpack.c.bf16 %v675, %v626
  %v716 = vpack.c.bf16 %v580, %v531
  %v717 = vpack.c.bf16 %v678, %v629
  %v718 = vpack.c.bf16 %v582, %v533
  %v719 = vpack.c.bf16 %v680, %v631
  %v720 = vpack.c.bf16 %v585, %v536
  %v721 = vpack.c.bf16 %v683, %v634
  %v722 = vpack.c.bf16 %v587, %v538
  %v723 = vpack.c.bf16 %v685, %v636
  %v724 = vpack.c.bf16 %v590, %v541
  %v725 = vpack.c.bf16 %v688, %v639
  %v726 = vpack.c.bf16 %v592, %v543
  %v727 = vpack.c.bf16 %v690, %v641
  %v728 = vpack.c.bf16 %v595, %v546
  %v729 = vpack.c.bf16 %v693, %v644
  %v730 = vpack.c.bf16 %v597, %v548
  %v731 = vpack.c.bf16 %v695, %v646
  %v732 = vpack.c.bf16 %v600, %v551
  %v733 = vpack.c.bf16 %v698, %v649
  %v734 = vpack.c.bf16 %v602, %v553
  %v735 = vpack.c.bf16 %v700, %v651
  %v736 = vpack.c.bf16 %v605, %v556
  %v737 = vpack.c.bf16 %v703, %v654
  %v738 = vpack.c.bf16 %v607, %v558
  %v739 = vpack.c.bf16 %v705, %v656
  %v740 = vpack.c.bf16 %v610, %v561
  %v741 = vpack.c.bf16 %v708, %v659
  %v742 = vpack.c.bf16 %v612, %v563
  %v743 = vpack.c.bf16 %v710, %v661
  %744 = vst [vmem:[#allocation2] sm:$0xff] %v712
  %745 = vst [vmem:[#allocation2 + $0x8] sm:$0xff] %v713
  %746 = vst [vmem:[#allocation2 + $0x20] sm:$0xff] %v714
  %747 = vst [vmem:[#allocation2 + $0x28] sm:$0xff] %v715
  %748 = vst [vmem:[#allocation2 + $0x40] sm:$0xff] %v716
  %749 = vst [vmem:[#allocation2 + $0x48] sm:$0xff] %v717
  %750 = vst [vmem:[#allocation2 + $0x60] sm:$0xff] %v718
  %751 = vst [vmem:[#allocation2 + $0x68] sm:$0xff] %v719
  %752 = vst [vmem:[#allocation2 + $0x80] sm:$0xff] %v720
  %753 = vst [vmem:[#allocation2 + $0x88] sm:$0xff] %v721
  %754 = vst [vmem:[#allocation2 + $0xa0] sm:$0xff] %v722
  %755 = vst [vmem:[#allocation2 + $0xa8] sm:$0xff] %v723
  %756 = vst [vmem:[#allocation2 + $0xc0] sm:$0xff] %v724
  %757 = vst [vmem:[#allocation2 + $0xc8] sm:$0xff] %v725
  %758 = vst [vmem:[#allocation2 + $0xe0] sm:$0xff] %v726
  %759 = vst [vmem:[#allocation2 + $0xe8] sm:$0xff] %v727
  %760 = vst [vmem:[#allocation2 + $0x100] sm:$0xff] %v728
  %761 = vst [vmem:[#allocation2 + $0x108] sm:$0xff] %v729
  %762 = vst [vmem:[#allocation2 + $0x120] sm:$0xff] %v730
  %763 = vst [vmem:[#allocation2 + $0x128] sm:$0xff] %v731
  %764 = vst [vmem:[#allocation2 + $0x140] sm:$0xff] %v732
  %765 = vst [vmem:[#allocation2 + $0x148] sm:$0xff] %v733
  %766 = vst [vmem:[#allocation2 + $0x160] sm:$0xff] %v734
  %767 = vst [vmem:[#allocation2 + $0x168] sm:$0xff] %v735
  %768 = vst [vmem:[#allocation2 + $0x180] sm:$0xff] %v736
  %769 = vst [vmem:[#allocation2 + $0x188] sm:$0xff] %v737
  %770 = vst [vmem:[#allocation2 + $0x1a0] sm:$0xff] %v738
  %771 = vst [vmem:[#allocation2 + $0x1a8] sm:$0xff] %v739
  %772 = vst [vmem:[#allocation2 + $0x1c0] sm:$0xff] %v740
  %773 = vst [vmem:[#allocation2 + $0x1c8] sm:$0xff] %v741
  %774 = vst [vmem:[#allocation2 + $0x1e0] sm:$0xff] %v742
  %775 = vst [vmem:[#allocation2 + $0x1e8] sm:$0xff] %v743
  %v776 = vld [vmem:[%s3] sm:$0x1]
  %v778 = vperm.slane %v776, 0
  %v780 = vmul.f32 %v86, %v778
  %v781 = vmul.f32 %v91, %v778
  %v782 = vmul.f32 %v96, %v778
  %v783 = vmul.f32 %v101, %v778
  %v784 = vmul.f32 %v106, %v778
  %v785 = vmul.f32 %v111, %v778
  %v786 = vmul.f32 %v116, %v778
  %v787 = vmul.f32 %v121, %v778
  %v788 = vmul.f32 %v126, %v778
  %v789 = vmul.f32 %v131, %v778
  %v790 = vmul.f32 %v136, %v778
  %v791 = vmul.f32 %v141, %v778
  %v792 = vmul.f32 %v146, %v778
  %v793 = vmul.f32 %v151, %v778
  %v794 = vmul.f32 %v156, %v778
  %v795 = vmul.f32 %v161, %v778
  %v796 = vld [vmem:[%s4] sm:$0x1]
  %v798 = vperm.slane %v796, 0
  %v800 = vadd.f32 %v780, %v798
  %v801 = vadd.f32 %v781, %v798
  %v802 = vadd.f32 %v782, %v798
  %v803 = vadd.f32 %v783, %v798
  %v804 = vadd.f32 %v784, %v798
  %v805 = vadd.f32 %v785, %v798
  %v806 = vadd.f32 %v786, %v798
  %v807 = vadd.f32 %v787, %v798
  %v808 = vadd.f32 %v788, %v798
  %v809 = vadd.f32 %v789, %v798
  %v810 = vadd.f32 %v790, %v798
  %v811 = vadd.f32 %v791, %v798
  %v812 = vadd.f32 %v792, %v798
  %v813 = vadd.f32 %v793, %v798
  %v814 = vadd.f32 %v794, %v798
  %v815 = vadd.f32 %v795, %v798
  %vm816 = vcmp.ge.f32.partialorder %v800, 0.0
  %vm817 = vcmp.ge.f32.partialorder %v801, 0.0
  %vm818 = vcmp.ge.f32.partialorder %v802, 0.0
  %vm819 = vcmp.ge.f32.partialorder %v803, 0.0
  %vm820 = vcmp.ge.f32.partialorder %v804, 0.0
  %vm821 = vcmp.ge.f32.partialorder %v805, 0.0
  %vm822 = vcmp.ge.f32.partialorder %v806, 0.0
  %vm823 = vcmp.ge.f32.partialorder %v807, 0.0
  %vm824 = vcmp.ge.f32.partialorder %v808, 0.0
  %vm825 = vcmp.ge.f32.partialorder %v809, 0.0
  %vm826 = vcmp.ge.f32.partialorder %v810, 0.0
  %vm827 = vcmp.ge.f32.partialorder %v811, 0.0
  %vm828 = vcmp.ge.f32.partialorder %v812, 0.0
  %vm829 = vcmp.ge.f32.partialorder %v813, 0.0
  %vm830 = vcmp.ge.f32.partialorder %v814, 0.0
  %vm831 = vcmp.ge.f32.partialorder %v815, 0.0
  %v832 = vmul.f32 %v800, 0.01
  %v833 = vmul.f32 %v801, 0.01
  %v834 = vmul.f32 %v802, 0.01
  %v835 = vmul.f32 %v803, 0.01
  %v836 = vmul.f32 %v804, 0.01
  %v837 = vmul.f32 %v805, 0.01
  %v838 = vmul.f32 %v806, 0.01
  %v839 = vmul.f32 %v807, 0.01
  %v840 = vmul.f32 %v808, 0.01
  %v841 = vmul.f32 %v809, 0.01
  %v842 = vmul.f32 %v810, 0.01
  %v843 = vmul.f32 %v811, 0.01
  %v844 = vmul.f32 %v812, 0.01
  %v845 = vmul.f32 %v813, 0.01
  %v846 = vmul.f32 %v814, 0.01
  %v847 = vmul.f32 %v815, 0.01
  %v848 = vsel %vm816, %v800, %v832
  %v849 = vsel %vm817, %v801, %v833
  %v850 = vsel %vm818, %v802, %v834
  %v851 = vsel %vm819, %v803, %v835
  %v852 = vsel %vm820, %v804, %v836
  %v853 = vsel %vm821, %v805, %v837
  %v854 = vsel %vm822, %v806, %v838
  %v855 = vsel %vm823, %v807, %v839
  %v856 = vsel %vm824, %v808, %v840
  %v857 = vsel %vm825, %v809, %v841
  %v858 = vsel %vm826, %v810, %v842
  %v859 = vsel %vm827, %v811, %v843
  %v860 = vsel %vm828, %v812, %v844
  %v861 = vsel %vm829, %v813, %v845
  %v862 = vsel %vm830, %v814, %v846
  %v863 = vsel %vm831, %v815, %v847
  %v864 = vpack.c.bf16 %v848, %v848
  %v865 = vpack.c.bf16 %v849, %v849
  %v866 = vpack.c.bf16 %v850, %v850
  %v867 = vpack.c.bf16 %v851, %v851
  %v868 = vpack.c.bf16 %v852, %v852
  %v869 = vpack.c.bf16 %v853, %v853
  %v870 = vpack.c.bf16 %v854, %v854
  %v871 = vpack.c.bf16 %v855, %v855
  %v872 = vpack.c.bf16 %v856, %v856
  %v873 = vpack.c.bf16 %v857, %v857
  %v874 = vpack.c.bf16 %v858, %v858
  %v875 = vpack.c.bf16 %v859, %v859
  %v876 = vpack.c.bf16 %v860, %v860
  %v877 = vpack.c.bf16 %v861, %v861
  %v878 = vpack.c.bf16 %v862, %v862
  %v879 = vpack.c.bf16 %v863, %v863
  %v880 = vld [vmem:[%s7] sm:$0xff]
  %v881 = vld [vmem:[%s7 + $0x8] sm:$0xff]
  %v882 = vld [vmem:[%s7 + $0x10] sm:$0xff]
  %v883 = vld [vmem:[%s7 + $0x18] sm:$0xff]
  %v884 = vld [vmem:[%s7 + $0x20] sm:$0xff]
  %v885 = vld [vmem:[%s7 + $0x28] sm:$0xff]
  %v886 = vld [vmem:[%s7 + $0x30] sm:$0xff]
  %v887 = vld [vmem:[%s7 + $0x38] sm:$0xff]
  %v888 = vld [vmem:[%s7 + $0x40] sm:$0xff]
  %v889 = vld [vmem:[%s7 + $0x48] sm:$0xff]
  %v890 = vld [vmem:[%s7 + $0x50] sm:$0xff]
  %v891 = vld [vmem:[%s7 + $0x58] sm:$0xff]
  %v892 = vld [vmem:[%s7 + $0x60] sm:$0xff]
  %v893 = vld [vmem:[%s7 + $0x68] sm:$0xff]
  %v894 = vld [vmem:[%s7 + $0x70] sm:$0xff]
  %v895 = vld [vmem:[%s7 + $0x78] sm:$0xff]
  %v896 = vld [vmem:[%s7 + $0x80] sm:$0xff]
  %v897 = vld [vmem:[%s7 + $0x88] sm:$0xff]
  %v898 = vld [vmem:[%s7 + $0x90] sm:$0xff]
  %v899 = vld [vmem:[%s7 + $0x98] sm:$0xff]
  %v900 = vld [vmem:[%s7 + $0xa0] sm:$0xff]
  %v901 = vld [vmem:[%s7 + $0xa8] sm:$0xff]
  %v902 = vld [vmem:[%s7 + $0xb0] sm:$0xff]
  %v903 = vld [vmem:[%s7 + $0xb8] sm:$0xff]
  %v904 = vld [vmem:[%s7 + $0xc0] sm:$0xff]
  %v905 = vld [vmem:[%s7 + $0xc8] sm:$0xff]
  %v906 = vld [vmem:[%s7 + $0xd0] sm:$0xff]
  %v907 = vld [vmem:[%s7 + $0xd8] sm:$0xff]
  %v908 = vld [vmem:[%s7 + $0xe0] sm:$0xff]
  %v909 = vld [vmem:[%s7 + $0xe8] sm:$0xff]
  %v910 = vld [vmem:[%s7 + $0xf0] sm:$0xff]
  %v911 = vld [vmem:[%s7 + $0xf8] sm:$0xff]
  %v912 = vld [vmem:[%s8] sm:$0xf]
  %v914 = vperm.slane %v912, 0
  %v915 = vperm.slane %v912, 1
  %v916 = vperm.slane %v912, 2
  %v917 = vperm.slane %v912, 3
  %v938 = vunpack.c.l.b16 %v864
  %v939 = vunpack.c.l.b16 %v865
  %v940 = vunpack.c.l.b16 %v866
  %v941 = vunpack.c.l.b16 %v867
  %v942 = vunpack.c.l.b16 %v868
  %v943 = vunpack.c.l.b16 %v869
  %v944 = vunpack.c.l.b16 %v870
  %v945 = vunpack.c.l.b16 %v871
  %v946 = vunpack.c.l.b16 %v872
  %v947 = vunpack.c.l.b16 %v873
  %v948 = vunpack.c.l.b16 %v874
  %v949 = vunpack.c.l.b16 %v875
  %v950 = vunpack.c.l.b16 %v876
  %v951 = vunpack.c.l.b16 %v877
  %v952 = vunpack.c.l.b16 %v878
  %v953 = vunpack.c.l.b16 %v879
  %v954 = vpack.c.b16 %v939, %v938
  %v955 = vpack.c.b16 %v941, %v940
  %v956 = vpack.c.b16 %v943, %v942
  %v957 = vpack.c.b16 %v945, %v944
  %v958 = vpack.c.b16 %v947, %v946
  %v959 = vpack.c.b16 %v949, %v948
  %v960 = vpack.c.b16 %v951, %v950
  %v961 = vpack.c.b16 %v953, %v952
  %v1002 = vunpack.c.l.b16 %v880
  %v1003 = vunpack.c.h.b16 %v880
  %v1004 = vunpack.c.l.b16 %v881
  %v1005 = vunpack.c.h.b16 %v881
  %v1006 = vunpack.c.l.b16 %v882
  %v1007 = vunpack.c.h.b16 %v882
  %v1008 = vunpack.c.l.b16 %v883
  %v1009 = vunpack.c.h.b16 %v883
  %v1010 = vunpack.c.l.b16 %v884
  %v1011 = vunpack.c.h.b16 %v884
  %v1012 = vunpack.c.l.b16 %v885
  %v1013 = vunpack.c.h.b16 %v885
  %v1014 = vunpack.c.l.b16 %v886
  %v1015 = vunpack.c.h.b16 %v886
  %v1016 = vunpack.c.l.b16 %v887
  %v1017 = vunpack.c.h.b16 %v887
  %v1018 = vunpack.c.l.b16 %v888
  %v1019 = vunpack.c.h.b16 %v888
  %v1020 = vunpack.c.l.b16 %v889
  %v1021 = vunpack.c.h.b16 %v889
  %v1022 = vunpack.c.l.b16 %v890
  %v1023 = vunpack.c.h.b16 %v890
  %v1024 = vunpack.c.l.b16 %v891
  %v1025 = vunpack.c.h.b16 %v891
  %v1026 = vunpack.c.l.b16 %v892
  %v1027 = vunpack.c.h.b16 %v892
  %v1028 = vunpack.c.l.b16 %v893
  %v1029 = vunpack.c.h.b16 %v893
  %v1030 = vunpack.c.l.b16 %v894
  %v1031 = vunpack.c.h.b16 %v894
  %v1032 = vunpack.c.l.b16 %v895
  %v1033 = vunpack.c.h.b16 %v895
  %v1034 = vunpack.c.l.b16 %v896
  %v1035 = vunpack.c.h.b16 %v896
  %v1036 = vunpack.c.l.b16 %v897
  %v1037 = vunpack.c.h.b16 %v897
  %v1038 = vunpack.c.l.b16 %v898
  %v1039 = vunpack.c.h.b16 %v898
  %v1040 = vunpack.c.l.b16 %v899
  %v1041 = vunpack.c.h.b16 %v899
  %v1042 = vunpack.c.l.b16 %v900
  %v1043 = vunpack.c.h.b16 %v900
  %v1044 = vunpack.c.l.b16 %v901
  %v1045 = vunpack.c.h.b16 %v901
  %v1046 = vunpack.c.l.b16 %v902
  %v1047 = vunpack.c.h.b16 %v902
  %v1048 = vunpack.c.l.b16 %v903
  %v1049 = vunpack.c.h.b16 %v903
  %v1050 = vunpack.c.l.b16 %v904
  %v1051 = vunpack.c.h.b16 %v904
  %v1052 = vunpack.c.l.b16 %v905
  %v1053 = vunpack.c.h.b16 %v905
  %v1054 = vunpack.c.l.b16 %v906
  %v1055 = vunpack.c.h.b16 %v906
  %v1056 = vunpack.c.l.b16 %v907
  %v1057 = vunpack.c.h.b16 %v907
  %v1058 = vunpack.c.l.b16 %v908
  %v1059 = vunpack.c.h.b16 %v908
  %v1060 = vunpack.c.l.b16 %v909
  %v1061 = vunpack.c.h.b16 %v909
  %v1062 = vunpack.c.l.b16 %v910
  %v1063 = vunpack.c.h.b16 %v910
  %v1064 = vunpack.c.l.b16 %v911
  %v1065 = vunpack.c.h.b16 %v911
  %v1066 = vpack.c.b16 %v1006, %v1002
  %v1067 = vpack.c.b16 %v1007, %v1003
  %v1068 = vpack.c.b16 %v1008, %v1004
  %v1069 = vpack.c.b16 %v1009, %v1005
  %v1070 = vpack.c.b16 %v1014, %v1010
  %v1071 = vpack.c.b16 %v1015, %v1011
  %v1072 = vpack.c.b16 %v1016, %v1012
  %v1073 = vpack.c.b16 %v1017, %v1013
  %v1074 = vpack.c.b16 %v1022, %v1018
  %v1075 = vpack.c.b16 %v1023, %v1019
  %v1076 = vpack.c.b16 %v1024, %v1020
  %v1077 = vpack.c.b16 %v1025, %v1021
  %v1078 = vpack.c.b16 %v1030, %v1026
  %v1079 = vpack.c.b16 %v1031, %v1027
  %v1080 = vpack.c.b16 %v1032, %v1028
  %v1081 = vpack.c.b16 %v1033, %v1029
  %v1082 = vpack.c.b16 %v1038, %v1034
  %v1083 = vpack.c.b16 %v1039, %v1035
  %v1084 = vpack.c.b16 %v1040, %v1036
  %v1085 = vpack.c.b16 %v1041, %v1037
  %v1086 = vpack.c.b16 %v1046, %v1042
  %v1087 = vpack.c.b16 %v1047, %v1043
  %v1088 = vpack.c.b16 %v1048, %v1044
  %v1089 = vpack.c.b16 %v1049, %v1045
  %v1090 = vpack.c.b16 %v1054, %v1050
  %v1091 = vpack.c.b16 %v1055, %v1051
  %v1092 = vpack.c.b16 %v1056, %v1052
  %v1093 = vpack.c.b16 %v1057, %v1053
  %v1094 = vpack.c.b16 %v1062, %v1058
  %v1095 = vpack.c.b16 %v1063, %v1059
  %v1096 = vpack.c.b16 %v1064, %v1060
  %v1097 = vpack.c.b16 %v1065, %v1061
  %1130 = vmatpush.bf16.msra.mxu0 %v1094
  %1131 = vmatpush.bf16.msra.mxu0 %v1090
  %1132 = vmatpush.bf16.msra.mxu0 %v1086
  %1133 = vmatpush.bf16.msra.mxu0 %v1082
  %1134 = vmatpush.bf16.msra.mxu0 %v1078
  %1135 = vmatpush.bf16.msra.mxu0 %v1074
  %1136 = vmatpush.bf16.msra.mxu0 %v1070
  %1137 = vmatpush.bf16.msra.mxu0 %v1066
  %1138 = vmatmul.bf16.gmra.mxu0 %v954
  %v1139 = vpop.f32.mrf.mxu0
  %v1140 = vadd.f32 %v914, %v1139
  %v1141 = vpop.f32.mrf.mxu0
  %v1142 = vadd.f32 %v914, %v1141
  %1143 = vmatmul.bf16.gmra.mxu0 %v955
  %v1144 = vpop.f32.mrf.mxu0
  %v1145 = vadd.f32 %v914, %v1144
  %v1146 = vpop.f32.mrf.mxu0
  %v1147 = vadd.f32 %v914, %v1146
  %1148 = vmatmul.bf16.gmra.mxu0 %v956
  %v1149 = vpop.f32.mrf.mxu0
  %v1150 = vadd.f32 %v914, %v1149
  %v1151 = vpop.f32.mrf.mxu0
  %v1152 = vadd.f32 %v914, %v1151
  %1153 = vmatmul.bf16.gmra.mxu0 %v957
  %v1154 = vpop.f32.mrf.mxu0
  %v1155 = vadd.f32 %v914, %v1154
  %v1156 = vpop.f32.mrf.mxu0
  %v1157 = vadd.f32 %v914, %v1156
  %1158 = vmatmul.bf16.gmra.mxu0 %v958
  %v1159 = vpop.f32.mrf.mxu0
  %v1160 = vadd.f32 %v914, %v1159
  %v1161 = vpop.f32.mrf.mxu0
  %v1162 = vadd.f32 %v914, %v1161
  %1163 = vmatmul.bf16.gmra.mxu0 %v959
  %v1164 = vpop.f32.mrf.mxu0
  %v1165 = vadd.f32 %v914, %v1164
  %v1166 = vpop.f32.mrf.mxu0
  %v1167 = vadd.f32 %v914, %v1166
  %1168 = vmatmul.bf16.gmra.mxu0 %v960
  %v1169 = vpop.f32.mrf.mxu0
  %v1170 = vadd.f32 %v914, %v1169
  %v1171 = vpop.f32.mrf.mxu0
  %v1172 = vadd.f32 %v914, %v1171
  %1173 = vmatmul.bf16.gmra.mxu0 %v961
  %v1174 = vpop.f32.mrf.mxu0
  %v1175 = vadd.f32 %v914, %v1174
  %v1176 = vpop.f32.mrf.mxu0
  %v1177 = vadd.f32 %v914, %v1176
  %1178 = vdwg.mxu0
  %1179 = vmatpush.bf16.msra.mxu0 %v1095
  %1180 = vmatpush.bf16.msra.mxu0 %v1091
  %1181 = vmatpush.bf16.msra.mxu0 %v1087
  %1182 = vmatpush.bf16.msra.mxu0 %v1083
  %1183 = vmatpush.bf16.msra.mxu0 %v1079
  %1184 = vmatpush.bf16.msra.mxu0 %v1075
  %1185 = vmatpush.bf16.msra.mxu0 %v1071
  %1186 = vmatpush.bf16.msra.mxu0 %v1067
  %1187 = vmatmul.bf16.gmra.mxu0 %v954
  %v1188 = vpop.f32.mrf.mxu0
  %v1189 = vadd.f32 %v915, %v1188
  %v1190 = vpop.f32.mrf.mxu0
  %v1191 = vadd.f32 %v915, %v1190
  %1192 = vmatmul.bf16.gmra.mxu0 %v955
  %v1193 = vpop.f32.mrf.mxu0
  %v1194 = vadd.f32 %v915, %v1193
  %v1195 = vpop.f32.mrf.mxu0
  %v1196 = vadd.f32 %v915, %v1195
  %1197 = vmatmul.bf16.gmra.mxu0 %v956
  %v1198 = vpop.f32.mrf.mxu0
  %v1199 = vadd.f32 %v915, %v1198
  %v1200 = vpop.f32.mrf.mxu0
  %v1201 = vadd.f32 %v915, %v1200
  %1202 = vmatmul.bf16.gmra.mxu0 %v957
  %v1203 = vpop.f32.mrf.mxu0
  %v1204 = vadd.f32 %v915, %v1203
  %v1205 = vpop.f32.mrf.mxu0
  %v1206 = vadd.f32 %v915, %v1205
  %1207 = vmatmul.bf16.gmra.mxu0 %v958
  %v1208 = vpop.f32.mrf.mxu0
  %v1209 = vadd.f32 %v915, %v1208
  %v1210 = vpop.f32.mrf.mxu0
  %v1211 = vadd.f32 %v915, %v1210
  %1212 = vmatmul.bf16.gmra.mxu0 %v959
  %v1213 = vpop.f32.mrf.mxu0
  %v1214 = vadd.f32 %v915, %v1213
  %v1215 = vpop.f32.mrf.mxu0
  %v1216 = vadd.f32 %v915, %v1215
  %1217 = vmatmul.bf16.gmra.mxu0 %v960
  %v1218 = vpop.f32.mrf.mxu0
  %v1219 = vadd.f32 %v915, %v1218
  %v1220 = vpop.f32.mrf.mxu0
  %v1221 = vadd.f32 %v915, %v1220
  %1222 = vmatmul.bf16.gmra.mxu0 %v961
  %v1223 = vpop.f32.mrf.mxu0
  %v1224 = vadd.f32 %v915, %v1223
  %v1225 = vpop.f32.mrf.mxu0
  %v1226 = vadd.f32 %v915, %v1225
  %1227 = vdwg.mxu0
  %1228 = vmatpush.bf16.msra.mxu0 %v1096
  %1229 = vmatpush.bf16.msra.mxu0 %v1092
  %1230 = vmatpush.bf16.msra.mxu0 %v1088
  %1231 = vmatpush.bf16.msra.mxu0 %v1084
  %1232 = vmatpush.bf16.msra.mxu0 %v1080
  %1233 = vmatpush.bf16.msra.mxu0 %v1076
  %1234 = vmatpush.bf16.msra.mxu0 %v1072
  %1235 = vmatpush.bf16.msra.mxu0 %v1068
  %1236 = vmatmul.bf16.gmra.mxu0 %v954
  %v1237 = vpop.f32.mrf.mxu0
  %v1238 = vadd.f32 %v916, %v1237
  %v1239 = vpop.f32.mrf.mxu0
  %v1240 = vadd.f32 %v916, %v1239
  %1241 = vmatmul.bf16.gmra.mxu0 %v955
  %v1242 = vpop.f32.mrf.mxu0
  %v1243 = vadd.f32 %v916, %v1242
  %v1244 = vpop.f32.mrf.mxu0
  %v1245 = vadd.f32 %v916, %v1244
  %1246 = vmatmul.bf16.gmra.mxu0 %v956
  %v1247 = vpop.f32.mrf.mxu0
  %v1248 = vadd.f32 %v916, %v1247
  %v1249 = vpop.f32.mrf.mxu0
  %v1250 = vadd.f32 %v916, %v1249
  %1251 = vmatmul.bf16.gmra.mxu0 %v957
  %v1252 = vpop.f32.mrf.mxu0
  %v1253 = vadd.f32 %v916, %v1252
  %v1254 = vpop.f32.mrf.mxu0
  %v1255 = vadd.f32 %v916, %v1254
  %1256 = vmatmul.bf16.gmra.mxu0 %v958
  %v1257 = vpop.f32.mrf.mxu0
  %v1258 = vadd.f32 %v916, %v1257
  %v1259 = vpop.f32.mrf.mxu0
  %v1260 = vadd.f32 %v916, %v1259
  %1261 = vmatmul.bf16.gmra.mxu0 %v959
  %v1262 = vpop.f32.mrf.mxu0
  %v1263 = vadd.f32 %v916, %v1262
  %v1264 = vpop.f32.mrf.mxu0
  %v1265 = vadd.f32 %v916, %v1264
  %1266 = vmatmul.bf16.gmra.mxu0 %v960
  %v1267 = vpop.f32.mrf.mxu0
  %v1268 = vadd.f32 %v916, %v1267
  %v1269 = vpop.f32.mrf.mxu0
  %v1270 = vadd.f32 %v916, %v1269
  %1271 = vmatmul.bf16.gmra.mxu0 %v961
  %v1272 = vpop.f32.mrf.mxu0
  %v1273 = vadd.f32 %v916, %v1272
  %v1274 = vpop.f32.mrf.mxu0
  %v1275 = vadd.f32 %v916, %v1274
  %1276 = vdwg.mxu0
  %1277 = vmatpush.bf16.msra.mxu0 %v1097
  %1278 = vmatpush.bf16.msra.mxu0 %v1093
  %1279 = vmatpush.bf16.msra.mxu0 %v1089
  %1280 = vmatpush.bf16.msra.mxu0 %v1085
  %1281 = vmatpush.bf16.msra.mxu0 %v1081
  %1282 = vmatpush.bf16.msra.mxu0 %v1077
  %1283 = vmatpush.bf16.msra.mxu0 %v1073
  %1284 = vmatpush.bf16.msra.mxu0 %v1069
  %1285 = vmatmul.bf16.gmra.mxu0 %v954
  %v1286 = vpop.f32.mrf.mxu0
  %v1287 = vadd.f32 %v917, %v1286
  %v1288 = vpop.f32.mrf.mxu0
  %v1289 = vadd.f32 %v917, %v1288
  %1290 = vmatmul.bf16.gmra.mxu0 %v955
  %v1291 = vpop.f32.mrf.mxu0
  %v1292 = vadd.f32 %v917, %v1291
  %v1293 = vpop.f32.mrf.mxu0
  %v1294 = vadd.f32 %v917, %v1293
  %1295 = vmatmul.bf16.gmra.mxu0 %v956
  %v1296 = vpop.f32.mrf.mxu0
  %v1297 = vadd.f32 %v917, %v1296
  %v1298 = vpop.f32.mrf.mxu0
  %v1299 = vadd.f32 %v917, %v1298
  %1300 = vmatmul.bf16.gmra.mxu0 %v957
  %v1301 = vpop.f32.mrf.mxu0
  %v1302 = vadd.f32 %v917, %v1301
  %v1303 = vpop.f32.mrf.mxu0
  %v1304 = vadd.f32 %v917, %v1303
  %1305 = vmatmul.bf16.gmra.mxu0 %v958
  %v1306 = vpop.f32.mrf.mxu0
  %v1307 = vadd.f32 %v917, %v1306
  %v1308 = vpop.f32.mrf.mxu0
  %v1309 = vadd.f32 %v917, %v1308
  %1310 = vmatmul.bf16.gmra.mxu0 %v959
  %v1311 = vpop.f32.mrf.mxu0
  %v1312 = vadd.f32 %v917, %v1311
  %v1313 = vpop.f32.mrf.mxu0
  %v1314 = vadd.f32 %v917, %v1313
  %1315 = vmatmul.bf16.gmra.mxu0 %v960
  %v1316 = vpop.f32.mrf.mxu0
  %v1317 = vadd.f32 %v917, %v1316
  %v1318 = vpop.f32.mrf.mxu0
  %v1319 = vadd.f32 %v917, %v1318
  %1320 = vmatmul.bf16.gmra.mxu0 %v961
  %v1321 = vpop.f32.mrf.mxu0
  %v1322 = vadd.f32 %v917, %v1321
  %v1323 = vpop.f32.mrf.mxu0
  %v1324 = vadd.f32 %v917, %v1323
  %1325 = vdwg.mxu0
  %v1326 = vpack.c.bf16 %v1189, %v1140
  %v1327 = vpack.c.bf16 %v1287, %v1238
  %v1328 = vpack.c.bf16 %v1191, %v1142
  %v1329 = vpack.c.bf16 %v1289, %v1240
  %v1330 = vpack.c.bf16 %v1194, %v1145
  %v1331 = vpack.c.bf16 %v1292, %v1243
  %v1332 = vpack.c.bf16 %v1196, %v1147
  %v1333 = vpack.c.bf16 %v1294, %v1245
  %v1334 = vpack.c.bf16 %v1199, %v1150
  %v1335 = vpack.c.bf16 %v1297, %v1248
  %v1336 = vpack.c.bf16 %v1201, %v1152
  %v1337 = vpack.c.bf16 %v1299, %v1250
  %v1338 = vpack.c.bf16 %v1204, %v1155
  %v1339 = vpack.c.bf16 %v1302, %v1253
  %v1340 = vpack.c.bf16 %v1206, %v1157
  %v1341 = vpack.c.bf16 %v1304, %v1255
  %v1342 = vpack.c.bf16 %v1209, %v1160
  %v1343 = vpack.c.bf16 %v1307, %v1258
  %v1344 = vpack.c.bf16 %v1211, %v1162
  %v1345 = vpack.c.bf16 %v1309, %v1260
  %v1346 = vpack.c.bf16 %v1214, %v1165
  %v1347 = vpack.c.bf16 %v1312, %v1263
  %v1348 = vpack.c.bf16 %v1216, %v1167
  %v1349 = vpack.c.bf16 %v1314, %v1265
  %v1350 = vpack.c.bf16 %v1219, %v1170
  %v1351 = vpack.c.bf16 %v1317, %v1268
  %v1352 = vpack.c.bf16 %v1221, %v1172
  %v1353 = vpack.c.bf16 %v1319, %v1270
  %v1354 = vpack.c.bf16 %v1224, %v1175
  %v1355 = vpack.c.bf16 %v1322, %v1273
  %v1356 = vpack.c.bf16 %v1226, %v1177
  %v1357 = vpack.c.bf16 %v1324, %v1275
  %1358 = vst [vmem:[#allocation2 + $0x10] sm:$0xff] %v1326
  %1359 = vst [vmem:[#allocation2 + $0x18] sm:$0xff] %v1327
  %1360 = vst [vmem:[#allocation2 + $0x30] sm:$0xff] %v1328
  %1361 = vst [vmem:[#allocation2 + $0x38] sm:$0xff] %v1329
  %1362 = vst [vmem:[#allocation2 + $0x50] sm:$0xff] %v1330
  %1363 = vst [vmem:[#allocation2 + $0x58] sm:$0xff] %v1331
  %1364 = vst [vmem:[#allocation2 + $0x70] sm:$0xff] %v1332
  %1365 = vst [vmem:[#allocation2 + $0x78] sm:$0xff] %v1333
  %1366 = vst [vmem:[#allocation2 + $0x90] sm:$0xff] %v1334
  %1367 = vst [vmem:[#allocation2 + $0x98] sm:$0xff] %v1335
  %1368 = vst [vmem:[#allocation2 + $0xb0] sm:$0xff] %v1336
  %1369 = vst [vmem:[#allocation2 + $0xb8] sm:$0xff] %v1337
  %1370 = vst [vmem:[#allocation2 + $0xd0] sm:$0xff] %v1338
  %1371 = vst [vmem:[#allocation2 + $0xd8] sm:$0xff] %v1339
  %1372 = vst [vmem:[#allocation2 + $0xf0] sm:$0xff] %v1340
  %1373 = vst [vmem:[#allocation2 + $0xf8] sm:$0xff] %v1341
  %1374 = vst [vmem:[#allocation2 + $0x110] sm:$0xff] %v1342
  %1375 = vst [vmem:[#allocation2 + $0x118] sm:$0xff] %v1343
  %1376 = vst [vmem:[#allocation2 + $0x130] sm:$0xff] %v1344
  %1377 = vst [vmem:[#allocation2 + $0x138] sm:$0xff] %v1345
  %1378 = vst [vmem:[#allocation2 + $0x150] sm:$0xff] %v1346
  %1379 = vst [vmem:[#allocation2 + $0x158] sm:$0xff] %v1347
  %1380 = vst [vmem:[#allocation2 + $0x170] sm:$0xff] %v1348
  %1381 = vst [vmem:[#allocation2 + $0x178] sm:$0xff] %v1349
  %1382 = vst [vmem:[#allocation2 + $0x190] sm:$0xff] %v1350
  %1383 = vst [vmem:[#allocation2 + $0x198] sm:$0xff] %v1351
  %1384 = vst [vmem:[#allocation2 + $0x1b0] sm:$0xff] %v1352
  %1385 = vst [vmem:[#allocation2 + $0x1b8] sm:$0xff] %v1353
  %1386 = vst [vmem:[#allocation2 + $0x1d0] sm:$0xff] %v1354
  %1387 = vst [vmem:[#allocation2 + $0x1d8] sm:$0xff] %v1355
  %1388 = vst [vmem:[#allocation2 + $0x1f0] sm:$0xff] %v1356
  %1389 = vst [vmem:[#allocation2 + $0x1f8] sm:$0xff] %v1357
  %v1390 = vld [vmem:[%s9] sm:$0xff]
  %v1391 = vld [vmem:[%s9 + $0x8] sm:$0xff]
  %v1392 = vld [vmem:[%s9 + $0x10] sm:$0xff]
  %v1393 = vld [vmem:[%s9 + $0x18] sm:$0xff]
  %v1394 = vld [vmem:[%s9 + $0x20] sm:$0xff]
  %v1395 = vld [vmem:[%s9 + $0x28] sm:$0xff]
  %v1396 = vld [vmem:[%s9 + $0x30] sm:$0xff]
  %v1397 = vld [vmem:[%s9 + $0x38] sm:$0xff]
  %v1398 = vld [vmem:[%s9 + $0x40] sm:$0xff]
  %v1399 = vld [vmem:[%s9 + $0x48] sm:$0xff]
  %v1400 = vld [vmem:[%s9 + $0x50] sm:$0xff]
  %v1401 = vld [vmem:[%s9 + $0x58] sm:$0xff]
  %v1402 = vld [vmem:[%s9 + $0x60] sm:$0xff]
  %v1403 = vld [vmem:[%s9 + $0x68] sm:$0xff]
  %v1404 = vld [vmem:[%s9 + $0x70] sm:$0xff]
  %v1405 = vld [vmem:[%s9 + $0x78] sm:$0xff]
  %v1406 = vld [vmem:[%s9 + $0x80] sm:$0xff]
  %v1407 = vld [vmem:[%s9 + $0x88] sm:$0xff]
  %v1408 = vld [vmem:[%s9 + $0x90] sm:$0xff]
  %v1409 = vld [vmem:[%s9 + $0x98] sm:$0xff]
  %v1410 = vld [vmem:[%s9 + $0xa0] sm:$0xff]
  %v1411 = vld [vmem:[%s9 + $0xa8] sm:$0xff]
  %v1412 = vld [vmem:[%s9 + $0xb0] sm:$0xff]
  %v1413 = vld [vmem:[%s9 + $0xb8] sm:$0xff]
  %v1414 = vld [vmem:[%s9 + $0xc0] sm:$0xff]
  %v1415 = vld [vmem:[%s9 + $0xc8] sm:$0xff]
  %v1416 = vld [vmem:[%s9 + $0xd0] sm:$0xff]
  %v1417 = vld [vmem:[%s9 + $0xd8] sm:$0xff]
  %v1418 = vld [vmem:[%s9 + $0xe0] sm:$0xff]
  %v1419 = vld [vmem:[%s9 + $0xe8] sm:$0xff]
  %v1420 = vld [vmem:[%s9 + $0xf0] sm:$0xff]
  %v1421 = vld [vmem:[%s9 + $0xf8] sm:$0xff]
  %v1422 = vld [vmem:[%s9 + $0x100] sm:$0xff]
  %v1423 = vld [vmem:[%s9 + $0x108] sm:$0xff]
  %v1424 = vld [vmem:[%s9 + $0x110] sm:$0xff]
  %v1425 = vld [vmem:[%s9 + $0x118] sm:$0xff]
  %v1426 = vld [vmem:[%s9 + $0x120] sm:$0xff]
  %v1427 = vld [vmem:[%s9 + $0x128] sm:$0xff]
  %v1428 = vld [vmem:[%s9 + $0x130] sm:$0xff]
  %v1429 = vld [vmem:[%s9 + $0x138] sm:$0xff]
  %v1430 = vld [vmem:[%s9 + $0x140] sm:$0xff]
  %v1431 = vld [vmem:[%s9 + $0x148] sm:$0xff]
  %v1432 = vld [vmem:[%s9 + $0x150] sm:$0xff]
  %v1433 = vld [vmem:[%s9 + $0x158] sm:$0xff]
  %v1434 = vld [vmem:[%s9 + $0x160] sm:$0xff]
  %v1435 = vld [vmem:[%s9 + $0x168] sm:$0xff]
  %v1436 = vld [vmem:[%s9 + $0x170] sm:$0xff]
  %v1437 = vld [vmem:[%s9 + $0x178] sm:$0xff]
  %v1438 = vld [vmem:[%s9 + $0x180] sm:$0xff]
  %v1439 = vld [vmem:[%s9 + $0x188] sm:$0xff]
  %v1440 = vld [vmem:[%s9 + $0x190] sm:$0xff]
  %v1441 = vld [vmem:[%s9 + $0x198] sm:$0xff]
  %v1442 = vld [vmem:[%s9 + $0x1a0] sm:$0xff]
  %v1443 = vld [vmem:[%s9 + $0x1a8] sm:$0xff]
  %v1444 = vld [vmem:[%s9 + $0x1b0] sm:$0xff]
  %v1445 = vld [vmem:[%s9 + $0x1b8] sm:$0xff]
  %v1446 = vld [vmem:[%s9 + $0x1c0] sm:$0xff]
  %v1447 = vld [vmem:[%s9 + $0x1c8] sm:$0xff]
  %v1448 = vld [vmem:[%s9 + $0x1d0] sm:$0xff]
  %v1449 = vld [vmem:[%s9 + $0x1d8] sm:$0xff]
  %v1450 = vld [vmem:[%s9 + $0x1e0] sm:$0xff]
  %v1451 = vld [vmem:[%s9 + $0x1e8] sm:$0xff]
  %v1452 = vld [vmem:[%s9 + $0x1f0] sm:$0xff]
  %v1453 = vld [vmem:[%s9 + $0x1f8] sm:$0xff]
  %v1454 = vld [vmem:[%s9 + $0x200] sm:$0xff]
  %v1455 = vld [vmem:[%s9 + $0x208] sm:$0xff]
  %v1456 = vld [vmem:[%s9 + $0x210] sm:$0xff]
  %v1457 = vld [vmem:[%s9 + $0x218] sm:$0xff]
  %v1458 = vld [vmem:[%s9 + $0x220] sm:$0xff]
  %v1459 = vld [vmem:[%s9 + $0x228] sm:$0xff]
  %v1460 = vld [vmem:[%s9 + $0x230] sm:$0xff]
  %v1461 = vld [vmem:[%s9 + $0x238] sm:$0xff]
  %v1462 = vld [vmem:[%s9 + $0x240] sm:$0xff]
  %v1463 = vld [vmem:[%s9 + $0x248] sm:$0xff]
  %v1464 = vld [vmem:[%s9 + $0x250] sm:$0xff]
  %v1465 = vld [vmem:[%s9 + $0x258] sm:$0xff]
  %v1466 = vld [vmem:[%s9 + $0x260] sm:$0xff]
  %v1467 = vld [vmem:[%s9 + $0x268] sm:$0xff]
  %v1468 = vld [vmem:[%s9 + $0x270] sm:$0xff]
  %v1469 = vld [vmem:[%s9 + $0x278] sm:$0xff]
  %v1470 = vld [vmem:[%s9 + $0x280] sm:$0xff]
  %v1471 = vld [vmem:[%s9 + $0x288] sm:$0xff]
  %v1472 = vld [vmem:[%s9 + $0x290] sm:$0xff]
  %v1473 = vld [vmem:[%s9 + $0x298] sm:$0xff]
  %v1474 = vld [vmem:[%s9 + $0x2a0] sm:$0xff]
  %v1475 = vld [vmem:[%s9 + $0x2a8] sm:$0xff]
  %v1476 = vld [vmem:[%s9 + $0x2b0] sm:$0xff]
  %v1477 = vld [vmem:[%s9 + $0x2b8] sm:$0xff]
  %v1478 = vld [vmem:[%s9 + $0x2c0] sm:$0xff]
  %v1479 = vld [vmem:[%s9 + $0x2c8] sm:$0xff]
  %v1480 = vld [vmem:[%s9 + $0x2d0] sm:$0xff]
  %v1481 = vld [vmem:[%s9 + $0x2d8] sm:$0xff]
  %v1482 = vld [vmem:[%s9 + $0x2e0] sm:$0xff]
  %v1483 = vld [vmem:[%s9 + $0x2e8] sm:$0xff]
  %v1484 = vld [vmem:[%s9 + $0x2f0] sm:$0xff]
  %v1485 = vld [vmem:[%s9 + $0x2f8] sm:$0xff]
  %v1486 = vld [vmem:[%s9 + $0x300] sm:$0xff]
  %v1487 = vld [vmem:[%s9 + $0x308] sm:$0xff]
  %v1488 = vld [vmem:[%s9 + $0x310] sm:$0xff]
  %v1489 = vld [vmem:[%s9 + $0x318] sm:$0xff]
  %v1490 = vld [vmem:[%s9 + $0x320] sm:$0xff]
  %v1491 = vld [vmem:[%s9 + $0x328] sm:$0xff]
  %v1492 = vld [vmem:[%s9 + $0x330] sm:$0xff]
  %v1493 = vld [vmem:[%s9 + $0x338] sm:$0xff]
  %v1494 = vld [vmem:[%s9 + $0x340] sm:$0xff]
  %v1495 = vld [vmem:[%s9 + $0x348] sm:$0xff]
  %v1496 = vld [vmem:[%s9 + $0x350] sm:$0xff]
  %v1497 = vld [vmem:[%s9 + $0x358] sm:$0xff]
  %v1498 = vld [vmem:[%s9 + $0x360] sm:$0xff]
  %v1499 = vld [vmem:[%s9 + $0x368] sm:$0xff]
  %v1500 = vld [vmem:[%s9 + $0x370] sm:$0xff]
  %v1501 = vld [vmem:[%s9 + $0x378] sm:$0xff]
  %v1502 = vld [vmem:[%s9 + $0x380] sm:$0xff]
  %v1503 = vld [vmem:[%s9 + $0x388] sm:$0xff]
  %v1504 = vld [vmem:[%s9 + $0x390] sm:$0xff]
  %v1505 = vld [vmem:[%s9 + $0x398] sm:$0xff]
  %v1506 = vld [vmem:[%s9 + $0x3a0] sm:$0xff]
  %v1507 = vld [vmem:[%s9 + $0x3a8] sm:$0xff]
  %v1508 = vld [vmem:[%s9 + $0x3b0] sm:$0xff]
  %v1509 = vld [vmem:[%s9 + $0x3b8] sm:$0xff]
  %v1510 = vld [vmem:[%s9 + $0x3c0] sm:$0xff]
  %v1511 = vld [vmem:[%s9 + $0x3c8] sm:$0xff]
  %v1512 = vld [vmem:[%s9 + $0x3d0] sm:$0xff]
  %v1513 = vld [vmem:[%s9 + $0x3d8] sm:$0xff]
  %v1514 = vld [vmem:[%s9 + $0x3e0] sm:$0xff]
  %v1515 = vld [vmem:[%s9 + $0x3e8] sm:$0xff]
  %v1516 = vld [vmem:[%s9 + $0x3f0] sm:$0xff]
  %v1517 = vld [vmem:[%s9 + $0x3f8] sm:$0xff]
  %v1518 = vld [vmem:[#allocation2] sm:$0xff]
  %v1519 = vld [vmem:[#allocation2 + $0x8] sm:$0xff]
  %v1520 = vld [vmem:[#allocation2 + $0x10] sm:$0xff]
  %v1521 = vld [vmem:[#allocation2 + $0x18] sm:$0xff]
  %v1522 = vld [vmem:[#allocation2 + $0x20] sm:$0xff]
  %v1523 = vld [vmem:[#allocation2 + $0x28] sm:$0xff]
  %v1524 = vld [vmem:[#allocation2 + $0x30] sm:$0xff]
  %v1525 = vld [vmem:[#allocation2 + $0x38] sm:$0xff]
  %v1526 = vunpack.c.l.bf16 %v1518
  %v1527 = vunpack.c.h.bf16 %v1518
  %v1528 = vunpack.c.l.bf16 %v1519
  %v1529 = vunpack.c.h.bf16 %v1519
  %v1530 = vunpack.c.l.bf16 %v1520
  %v1531 = vunpack.c.h.bf16 %v1520
  %v1532 = vunpack.c.l.bf16 %v1521
  %v1533 = vunpack.c.h.bf16 %v1521
  %v1534 = vunpack.c.l.bf16 %v1522
  %v1535 = vunpack.c.h.bf16 %v1522
  %v1536 = vunpack.c.l.bf16 %v1523
  %v1537 = vunpack.c.h.bf16 %v1523
  %v1538 = vunpack.c.l.bf16 %v1524
  %v1539 = vunpack.c.h.bf16 %v1524
  %v1540 = vunpack.c.l.bf16 %v1525
  %v1541 = vunpack.c.h.bf16 %v1525
  %v1670 = vunpack.c.l.b16 %v1390
  %v1671 = vunpack.c.h.b16 %v1390
  %v1672 = vunpack.c.l.b16 %v1391
  %v1673 = vunpack.c.h.b16 %v1391
  %v1674 = vunpack.c.l.b16 %v1392
  %v1675 = vunpack.c.h.b16 %v1392
  %v1676 = vunpack.c.l.b16 %v1393
  %v1677 = vunpack.c.h.b16 %v1393
  %v1678 = vunpack.c.l.b16 %v1394
  %v1679 = vunpack.c.h.b16 %v1394
  %v1680 = vunpack.c.l.b16 %v1395
  %v1681 = vunpack.c.h.b16 %v1395
  %v1682 = vunpack.c.l.b16 %v1396
  %v1683 = vunpack.c.h.b16 %v1396
  %v1684 = vunpack.c.l.b16 %v1397
  %v1685 = vunpack.c.h.b16 %v1397
  %v1686 = vunpack.c.l.b16 %v1398
  %v1687 = vunpack.c.h.b16 %v1398
  %v1688 = vunpack.c.l.b16 %v1399
  %v1689 = vunpack.c.h.b16 %v1399
  %v1690 = vunpack.c.l.b16 %v1400
  %v1691 = vunpack.c.h.b16 %v1400
  %v1692 = vunpack.c.l.b16 %v1401
  %v1693 = vunpack.c.h.b16 %v1401
  %v1694 = vunpack.c.l.b16 %v1402
  %v1695 = vunpack.c.h.b16 %v1402
  %v1696 = vunpack.c.l.b16 %v1403
  %v1697 = vunpack.c.h.b16 %v1403
  %v1698 = vunpack.c.l.b16 %v1404
  %v1699 = vunpack.c.h.b16 %v1404
  %v1700 = vunpack.c.l.b16 %v1405
  %v1701 = vunpack.c.h.b16 %v1405
  %v1702 = vunpack.c.l.b16 %v1406
  %v1703 = vunpack.c.h.b16 %v1406
  %v1704 = vunpack.c.l.b16 %v1407
  %v1705 = vunpack.c.h.b16 %v1407
  %v1706 = vunpack.c.l.b16 %v1408
  %v1707 = vunpack.c.h.b16 %v1408
  %v1708 = vunpack.c.l.b16 %v1409
  %v1709 = vunpack.c.h.b16 %v1409
  %v1710 = vunpack.c.l.b16 %v1410
  %v1711 = vunpack.c.h.b16 %v1410
  %v1712 = vunpack.c.l.b16 %v1411
  %v1713 = vunpack.c.h.b16 %v1411
  %v1714 = vunpack.c.l.b16 %v1412
  %v1715 = vunpack.c.h.b16 %v1412
  %v1716 = vunpack.c.l.b16 %v1413
  %v1717 = vunpack.c.h.b16 %v1413
  %v1718 = vunpack.c.l.b16 %v1414
  %v1719 = vunpack.c.h.b16 %v1414
  %v1720 = vunpack.c.l.b16 %v1415
  %v1721 = vunpack.c.h.b16 %v1415
  %v1722 = vunpack.c.l.b16 %v1416
  %v1723 = vunpack.c.h.b16 %v1416
  %v1724 = vunpack.c.l.b16 %v1417
  %v1725 = vunpack.c.h.b16 %v1417
  %v1726 = vunpack.c.l.b16 %v1418
  %v1727 = vunpack.c.h.b16 %v1418
  %v1728 = vunpack.c.l.b16 %v1419
  %v1729 = vunpack.c.h.b16 %v1419
  %v1730 = vunpack.c.l.b16 %v1420
  %v1731 = vunpack.c.h.b16 %v1420
  %v1732 = vunpack.c.l.b16 %v1421
  %v1733 = vunpack.c.h.b16 %v1421
  %v1734 = vunpack.c.l.b16 %v1422
  %v1735 = vunpack.c.h.b16 %v1422
  %v1736 = vunpack.c.l.b16 %v1423
  %v1737 = vunpack.c.h.b16 %v1423
  %v1738 = vunpack.c.l.b16 %v1424
  %v1739 = vunpack.c.h.b16 %v1424
  %v1740 = vunpack.c.l.b16 %v1425
  %v1741 = vunpack.c.h.b16 %v1425
  %v1742 = vunpack.c.l.b16 %v1426
  %v1743 = vunpack.c.h.b16 %v1426
  %v1744 = vunpack.c.l.b16 %v1427
  %v1745 = vunpack.c.h.b16 %v1427
  %v1746 = vunpack.c.l.b16 %v1428
  %v1747 = vunpack.c.h.b16 %v1428
  %v1748 = vunpack.c.l.b16 %v1429
  %v1749 = vunpack.c.h.b16 %v1429
  %v1750 = vunpack.c.l.b16 %v1430
  %v1751 = vunpack.c.h.b16 %v1430
  %v1752 = vunpack.c.l.b16 %v1431
  %v1753 = vunpack.c.h.b16 %v1431
  %v1754 = vunpack.c.l.b16 %v1432
  %v1755 = vunpack.c.h.b16 %v1432
  %v1756 = vunpack.c.l.b16 %v1433
  %v1757 = vunpack.c.h.b16 %v1433
  %v1758 = vunpack.c.l.b16 %v1434
  %v1759 = vunpack.c.h.b16 %v1434
  %v1760 = vunpack.c.l.b16 %v1435
  %v1761 = vunpack.c.h.b16 %v1435
  %v1762 = vunpack.c.l.b16 %v1436
  %v1763 = vunpack.c.h.b16 %v1436
  %v1764 = vunpack.c.l.b16 %v1437
  %v1765 = vunpack.c.h.b16 %v1437
  %v1766 = vunpack.c.l.b16 %v1438
  %v1767 = vunpack.c.h.b16 %v1438
  %v1768 = vunpack.c.l.b16 %v1439
  %v1769 = vunpack.c.h.b16 %v1439
  %v1770 = vunpack.c.l.b16 %v1440
  %v1771 = vunpack.c.h.b16 %v1440
  %v1772 = vunpack.c.l.b16 %v1441
  %v1773 = vunpack.c.h.b16 %v1441
  %v1774 = vunpack.c.l.b16 %v1442
  %v1775 = vunpack.c.h.b16 %v1442
  %v1776 = vunpack.c.l.b16 %v1443
  %v1777 = vunpack.c.h.b16 %v1443
  %v1778 = vunpack.c.l.b16 %v1444
  %v1779 = vunpack.c.h.b16 %v1444
  %v1780 = vunpack.c.l.b16 %v1445
  %v1781 = vunpack.c.h.b16 %v1445
  %v1782 = vunpack.c.l.b16 %v1446
  %v1783 = vunpack.c.h.b16 %v1446
  %v1784 = vunpack.c.l.b16 %v1447
  %v1785 = vunpack.c.h.b16 %v1447
  %v1786 = vunpack.c.l.b16 %v1448
  %v1787 = vunpack.c.h.b16 %v1448
  %v1788 = vunpack.c.l.b16 %v1449
  %v1789 = vunpack.c.h.b16 %v1449
  %v1790 = vunpack.c.l.b16 %v1450
  %v1791 = vunpack.c.h.b16 %v1450
  %v1792 = vunpack.c.l.b16 %v1451
  %v1793 = vunpack.c.h.b16 %v1451
  %v1794 = vunpack.c.l.b16 %v1452
  %v1795 = vunpack.c.h.b16 %v1452
  %v1796 = vunpack.c.l.b16 %v1453
  %v1797 = vunpack.c.h.b16 %v1453
  %v1798 = vunpack.c.l.b16 %v1454
  %v1799 = vunpack.c.h.b16 %v1454
  %v1800 = vunpack.c.l.b16 %v1455
  %v1801 = vunpack.c.h.b16 %v1455
  %v1802 = vunpack.c.l.b16 %v1456
  %v1803 = vunpack.c.h.b16 %v1456
  %v1804 = vunpack.c.l.b16 %v1457
  %v1805 = vunpack.c.h.b16 %v1457
  %v1806 = vunpack.c.l.b16 %v1458
  %v1807 = vunpack.c.h.b16 %v1458
  %v1808 = vunpack.c.l.b16 %v1459
  %v1809 = vunpack.c.h.b16 %v1459
  %v1810 = vunpack.c.l.b16 %v1460
  %v1811 = vunpack.c.h.b16 %v1460
  %v1812 = vunpack.c.l.b16 %v1461
  %v1813 = vunpack.c.h.b16 %v1461
  %v1814 = vunpack.c.l.b16 %v1462
  %v1815 = vunpack.c.h.b16 %v1462
  %v1816 = vunpack.c.l.b16 %v1463
  %v1817 = vunpack.c.h.b16 %v1463
  %v1818 = vunpack.c.l.b16 %v1464
  %v1819 = vunpack.c.h.b16 %v1464
  %v1820 = vunpack.c.l.b16 %v1465
  %v1821 = vunpack.c.h.b16 %v1465
  %v1822 = vunpack.c.l.b16 %v1466
  %v1823 = vunpack.c.h.b16 %v1466
  %v1824 = vunpack.c.l.b16 %v1467
  %v1825 = vunpack.c.h.b16 %v1467
  %v1826 = vunpack.c.l.b16 %v1468
  %v1827 = vunpack.c.h.b16 %v1468
  %v1828 = vunpack.c.l.b16 %v1469
  %v1829 = vunpack.c.h.b16 %v1469
  %v1830 = vunpack.c.l.b16 %v1470
  %v1831 = vunpack.c.h.b16 %v1470
  %v1832 = vunpack.c.l.b16 %v1471
  %v1833 = vunpack.c.h.b16 %v1471
  %v1834 = vunpack.c.l.b16 %v1472
  %v1835 = vunpack.c.h.b16 %v1472
  %v1836 = vunpack.c.l.b16 %v1473
  %v1837 = vunpack.c.h.b16 %v1473
  %v1838 = vunpack.c.l.b16 %v1474
  %v1839 = vunpack.c.h.b16 %v1474
  %v1840 = vunpack.c.l.b16 %v1475
  %v1841 = vunpack.c.h.b16 %v1475
  %v1842 = vunpack.c.l.b16 %v1476
  %v1843 = vunpack.c.h.b16 %v1476
  %v1844 = vunpack.c.l.b16 %v1477
  %v1845 = vunpack.c.h.b16 %v1477
  %v1846 = vunpack.c.l.b16 %v1478
  %v1847 = vunpack.c.h.b16 %v1478
  %v1848 = vunpack.c.l.b16 %v1479
  %v1849 = vunpack.c.h.b16 %v1479
  %v1850 = vunpack.c.l.b16 %v1480
  %v1851 = vunpack.c.h.b16 %v1480
  %v1852 = vunpack.c.l.b16 %v1481
  %v1853 = vunpack.c.h.b16 %v1481
  %v1854 = vunpack.c.l.b16 %v1482
  %v1855 = vunpack.c.h.b16 %v1482
  %v1856 = vunpack.c.l.b16 %v1483
  %v1857 = vunpack.c.h.b16 %v1483
  %v1858 = vunpack.c.l.b16 %v1484
  %v1859 = vunpack.c.h.b16 %v1484
  %v1860 = vunpack.c.l.b16 %v1485
  %v1861 = vunpack.c.h.b16 %v1485
  %v1862 = vunpack.c.l.b16 %v1486
  %v1863 = vunpack.c.h.b16 %v1486
  %v1864 = vunpack.c.l.b16 %v1487
  %v1865 = vunpack.c.h.b16 %v1487
  %v1866 = vunpack.c.l.b16 %v1488
  %v1867 = vunpack.c.h.b16 %v1488
  %v1868 = vunpack.c.l.b16 %v1489
  %v1869 = vunpack.c.h.b16 %v1489
  %v1870 = vunpack.c.l.b16 %v1490
  %v1871 = vunpack.c.h.b16 %v1490
  %v1872 = vunpack.c.l.b16 %v1491
  %v1873 = vunpack.c.h.b16 %v1491
  %v1874 = vunpack.c.l.b16 %v1492
  %v1875 = vunpack.c.h.b16 %v1492
  %v1876 = vunpack.c.l.b16 %v1493
  %v1877 = vunpack.c.h.b16 %v1493
  %v1878 = vunpack.c.l.b16 %v1494
  %v1879 = vunpack.c.h.b16 %v1494
  %v1880 = vunpack.c.l.b16 %v1495
  %v1881 = vunpack.c.h.b16 %v1495
  %v1882 = vunpack.c.l.b16 %v1496
  %v1883 = vunpack.c.h.b16 %v1496
  %v1884 = vunpack.c.l.b16 %v1497
  %v1885 = vunpack.c.h.b16 %v1497
  %v1886 = vunpack.c.l.b16 %v1498
  %v1887 = vunpack.c.h.b16 %v1498
  %v1888 = vunpack.c.l.b16 %v1499
  %v1889 = vunpack.c.h.b16 %v1499
  %v1890 = vunpack.c.l.b16 %v1500
  %v1891 = vunpack.c.h.b16 %v1500
  %v1892 = vunpack.c.l.b16 %v1501
  %v1893 = vunpack.c.h.b16 %v1501
  %v1894 = vunpack.c.l.b16 %v1502
  %v1895 = vunpack.c.h.b16 %v1502
  %v1896 = vunpack.c.l.b16 %v1503
  %v1897 = vunpack.c.h.b16 %v1503
  %v1898 = vunpack.c.l.b16 %v1504
  %v1899 = vunpack.c.h.b16 %v1504
  %v1900 = vunpack.c.l.b16 %v1505
  %v1901 = vunpack.c.h.b16 %v1505
  %v1902 = vunpack.c.l.b16 %v1506
  %v1903 = vunpack.c.h.b16 %v1506
  %v1904 = vunpack.c.l.b16 %v1507
  %v1905 = vunpack.c.h.b16 %v1507
  %v1906 = vunpack.c.l.b16 %v1508
  %v1907 = vunpack.c.h.b16 %v1508
  %v1908 = vunpack.c.l.b16 %v1509
  %v1909 = vunpack.c.h.b16 %v1509
  %v1910 = vunpack.c.l.b16 %v1510
  %v1911 = vunpack.c.h.b16 %v1510
  %v1912 = vunpack.c.l.b16 %v1511
  %v1913 = vunpack.c.h.b16 %v1511
  %v1914 = vunpack.c.l.b16 %v1512
  %v1915 = vunpack.c.h.b16 %v1512
  %v1916 = vunpack.c.l.b16 %v1513
  %v1917 = vunpack.c.h.b16 %v1513
  %v1918 = vunpack.c.l.b16 %v1514
  %v1919 = vunpack.c.h.b16 %v1514
  %v1920 = vunpack.c.l.b16 %v1515
  %v1921 = vunpack.c.h.b16 %v1515
  %v1922 = vunpack.c.l.b16 %v1516
  %v1923 = vunpack.c.h.b16 %v1516
  %v1924 = vunpack.c.l.b16 %v1517
  %v1925 = vunpack.c.h.b16 %v1517
  %v1926 = vpack.c.b16 %v1678, %v1670
  %v1927 = vpack.c.b16 %v1679, %v1671
  %v1928 = vpack.c.b16 %v1680, %v1672
  %v1929 = vpack.c.b16 %v1681, %v1673
  %v1930 = vpack.c.b16 %v1682, %v1674
  %v1931 = vpack.c.b16 %v1683, %v1675
  %v1932 = vpack.c.b16 %v1684, %v1676
  %v1933 = vpack.c.b16 %v1685, %v1677
  %v1934 = vpack.c.b16 %v1694, %v1686
  %v1935 = vpack.c.b16 %v1695, %v1687
  %v1936 = vpack.c.b16 %v1696, %v1688
  %v1937 = vpack.c.b16 %v1697, %v1689
  %v1938 = vpack.c.b16 %v1698, %v1690
  %v1939 = vpack.c.b16 %v1699, %v1691
  %v1940 = vpack.c.b16 %v1700, %v1692
  %v1941 = vpack.c.b16 %v1701, %v1693
  %v1942 = vpack.c.b16 %v1710, %v1702
  %v1943 = vpack.c.b16 %v1711, %v1703
  %v1944 = vpack.c.b16 %v1712, %v1704
  %v1945 = vpack.c.b16 %v1713, %v1705
  %v1946 = vpack.c.b16 %v1714, %v1706
  %v1947 = vpack.c.b16 %v1715, %v1707
  %v1948 = vpack.c.b16 %v1716, %v1708
  %v1949 = vpack.c.b16 %v1717, %v1709
  %v1950 = vpack.c.b16 %v1726, %v1718
  %v1951 = vpack.c.b16 %v1727, %v1719
  %v1952 = vpack.c.b16 %v1728, %v1720
  %v1953 = vpack.c.b16 %v1729, %v1721
  %v1954 = vpack.c.b16 %v1730, %v1722
  %v1955 = vpack.c.b16 %v1731, %v1723
  %v1956 = vpack.c.b16 %v1732, %v1724
  %v1957 = vpack.c.b16 %v1733, %v1725
  %v1958 = vpack.c.b16 %v1742, %v1734
  %v1959 = vpack.c.b16 %v1743, %v1735
  %v1960 = vpack.c.b16 %v1744, %v1736
  %v1961 = vpack.c.b16 %v1745, %v1737
  %v1962 = vpack.c.b16 %v1746, %v1738
  %v1963 = vpack.c.b16 %v1747, %v1739
  %v1964 = vpack.c.b16 %v1748, %v1740
  %v1965 = vpack.c.b16 %v1749, %v1741
  %v1966 = vpack.c.b16 %v1758, %v1750
  %v1967 = vpack.c.b16 %v1759, %v1751
  %v1968 = vpack.c.b16 %v1760, %v1752
  %v1969 = vpack.c.b16 %v1761, %v1753
  %v1970 = vpack.c.b16 %v1762, %v1754
  %v1971 = vpack.c.b16 %v1763, %v1755
  %v1972 = vpack.c.b16 %v1764, %v1756
  %v1973 = vpack.c.b16 %v1765, %v1757
  %v1974 = vpack.c.b16 %v1774, %v1766
  %v1975 = vpack.c.b16 %v1775, %v1767
  %v1976 = vpack.c.b16 %v1776, %v1768
  %v1977 = vpack.c.b16 %v1777, %v1769
  %v1978 = vpack.c.b16 %v1778, %v1770
  %v1979 = vpack.c.b16 %v1779, %v1771
  %v1980 = vpack.c.b16 %v1780, %v1772
  %v1981 = vpack.c.b16 %v1781, %v1773
  %v1982 = vpack.c.b16 %v1790, %v1782
  %v1983 = vpack.c.b16 %v1791, %v1783
  %v1984 = vpack.c.b16 %v1792, %v1784
  %v1985 = vpack.c.b16 %v1793, %v1785
  %v1986 = vpack.c.b16 %v1794, %v1786
  %v1987 = vpack.c.b16 %v1795, %v1787
  %v1988 = vpack.c.b16 %v1796, %v1788
  %v1989 = vpack.c.b16 %v1797, %v1789
  %v1990 = vpack.c.b16 %v1806, %v1798
  %v1991 = vpack.c.b16 %v1807, %v1799
  %v1992 = vpack.c.b16 %v1808, %v1800
  %v1993 = vpack.c.b16 %v1809, %v1801
  %v1994 = vpack.c.b16 %v1810, %v1802
  %v1995 = vpack.c.b16 %v1811, %v1803
  %v1996 = vpack.c.b16 %v1812, %v1804
  %v1997 = vpack.c.b16 %v1813, %v1805
  %v1998 = vpack.c.b16 %v1822, %v1814
  %v1999 = vpack.c.b16 %v1823, %v1815
  %v2000 = vpack.c.b16 %v1824, %v1816
  %v2001 = vpack.c.b16 %v1825, %v1817
  %v2002 = vpack.c.b16 %v1826, %v1818
  %v2003 = vpack.c.b16 %v1827, %v1819
  %v2004 = vpack.c.b16 %v1828, %v1820
  %v2005 = vpack.c.b16 %v1829, %v1821
  %v2006 = vpack.c.b16 %v1838, %v1830
  %v2007 = vpack.c.b16 %v1839, %v1831
  %v2008 = vpack.c.b16 %v1840, %v1832
  %v2009 = vpack.c.b16 %v1841, %v1833
  %v2010 = vpack.c.b16 %v1842, %v1834
  %v2011 = vpack.c.b16 %v1843, %v1835
  %v2012 = vpack.c.b16 %v1844, %v1836
  %v2013 = vpack.c.b16 %v1845, %v1837
  %v2014 = vpack.c.b16 %v1854, %v1846
  %v2015 = vpack.c.b16 %v1855, %v1847
  %v2016 = vpack.c.b16 %v1856, %v1848
  %v2017 = vpack.c.b16 %v1857, %v1849
  %v2018 = vpack.c.b16 %v1858, %v1850
  %v2019 = vpack.c.b16 %v1859, %v1851
  %v2020 = vpack.c.b16 %v1860, %v1852
  %v2021 = vpack.c.b16 %v1861, %v1853
  %v2022 = vpack.c.b16 %v1870, %v1862
  %v2023 = vpack.c.b16 %v1871, %v1863
  %v2024 = vpack.c.b16 %v1872, %v1864
  %v2025 = vpack.c.b16 %v1873, %v1865
  %v2026 = vpack.c.b16 %v1874, %v1866
  %v2027 = vpack.c.b16 %v1875, %v1867
  %v2028 = vpack.c.b16 %v1876, %v1868
  %v2029 = vpack.c.b16 %v1877, %v1869
  %v2030 = vpack.c.b16 %v1886, %v1878
  %v2031 = vpack.c.b16 %v1887, %v1879
  %v2032 = vpack.c.b16 %v1888, %v1880
  %v2033 = vpack.c.b16 %v1889, %v1881
  %v2034 = vpack.c.b16 %v1890, %v1882
  %v2035 = vpack.c.b16 %v1891, %v1883
  %v2036 = vpack.c.b16 %v1892, %v1884
  %v2037 = vpack.c.b16 %v1893, %v1885
  %v2038 = vpack.c.b16 %v1902, %v1894
  %v2039 = vpack.c.b16 %v1903, %v1895
  %v2040 = vpack.c.b16 %v1904, %v1896
  %v2041 = vpack.c.b16 %v1905, %v1897
  %v2042 = vpack.c.b16 %v1906, %v1898
  %v2043 = vpack.c.b16 %v1907, %v1899
  %v2044 = vpack.c.b16 %v1908, %v1900
  %v2045 = vpack.c.b16 %v1909, %v1901
  %v2046 = vpack.c.b16 %v1918, %v1910
  %v2047 = vpack.c.b16 %v1919, %v1911
  %v2048 = vpack.c.b16 %v1920, %v1912
  %v2049 = vpack.c.b16 %v1921, %v1913
  %v2050 = vpack.c.b16 %v1922, %v1914
  %v2051 = vpack.c.b16 %v1923, %v1915
  %v2052 = vpack.c.b16 %v1924, %v1916
  %v2053 = vpack.c.b16 %v1925, %v1917
  %2182 = vmatpush.bf16.msra.mxu0 %v1982
  %2183 = vmatpush.bf16.msra.mxu0 %v1974
  %2184 = vmatpush.bf16.msra.mxu0 %v1966
  %2185 = vmatpush.bf16.msra.mxu0 %v1958
  %2186 = vmatpush.bf16.msra.mxu0 %v1950
  %2187 = vmatpush.bf16.msra.mxu0 %v1942
  %2188 = vmatpush.bf16.msra.mxu0 %v1934
  %2189 = vmatpush.bf16.msra.mxu0 %v1926
  %2190 = vmatmul.bf16.gmra.mxu0 0
  %v2191 = vpop.f32.mrf.mxu0
  %v2192 = vadd.f32 0.0, %v2191
  %v2193 = vpop.f32.mrf.mxu0
  %v2194 = vadd.f32 0.0, %v2193
  %2195 = vdwg.mxu0
  %2196 = vmatpush.bf16.msra.mxu0 %v2046
  %2197 = vmatpush.bf16.msra.mxu0 %v2038
  %2198 = vmatpush.bf16.msra.mxu0 %v2030
  %2199 = vmatpush.bf16.msra.mxu0 %v2022
  %2200 = vmatpush.bf16.msra.mxu0 %v2014
  %2201 = vmatpush.bf16.msra.mxu0 %v2006
  %2202 = vmatpush.bf16.msra.mxu0 %v1998
  %2203 = vmatpush.bf16.msra.mxu0 %v1990
  %2204 = vmatmul.bf16.gmra.mxu0 0
  %v2205 = vpop.f32.mrf.mxu0
  %v2206 = vadd.f32 %v2192, %v2205
  %v2207 = vpop.f32.mrf.mxu0
  %v2208 = vadd.f32 %v2194, %v2207
  %2209 = vdwg.mxu0
  %2210 = vmatpush.bf16.msra.mxu0 %v1983
  %2211 = vmatpush.bf16.msra.mxu0 %v1975
  %2212 = vmatpush.bf16.msra.mxu0 %v1967
  %2213 = vmatpush.bf16.msra.mxu0 %v1959
  %2214 = vmatpush.bf16.msra.mxu0 %v1951
  %2215 = vmatpush.bf16.msra.mxu0 %v1943
  %2216 = vmatpush.bf16.msra.mxu0 %v1935
  %2217 = vmatpush.bf16.msra.mxu0 %v1927
  %2218 = vmatmul.bf16.gmra.mxu0 0
  %v2219 = vpop.f32.mrf.mxu0
  %v2220 = vadd.f32 0.0, %v2219
  %v2221 = vpop.f32.mrf.mxu0
  %v2222 = vadd.f32 0.0, %v2221
  %2223 = vdwg.mxu0
  %2224 = vmatpush.bf16.msra.mxu0 %v2047
  %2225 = vmatpush.bf16.msra.mxu0 %v2039
  %2226 = vmatpush.bf16.msra.mxu0 %v2031
  %2227 = vmatpush.bf16.msra.mxu0 %v2023
  %2228 = vmatpush.bf16.msra.mxu0 %v2015
  %2229 = vmatpush.bf16.msra.mxu0 %v2007
  %2230 = vmatpush.bf16.msra.mxu0 %v1999
  %2231 = vmatpush.bf16.msra.mxu0 %v1991
  %2232 = vmatmul.bf16.gmra.mxu0 0
  %v2233 = vpop.f32.mrf.mxu0
  %v2234 = vadd.f32 %v2220, %v2233
  %v2235 = vpop.f32.mrf.mxu0
  %v2236 = vadd.f32 %v2222, %v2235
  %2237 = vdwg.mxu0
  %2238 = vmatpush.bf16.msra.mxu0 %v1984
  %2239 = vmatpush.bf16.msra.mxu0 %v1976
  %2240 = vmatpush.bf16.msra.mxu0 %v1968
  %2241 = vmatpush.bf16.msra.mxu0 %v1960
  %2242 = vmatpush.bf16.msra.mxu0 %v1952
  %2243 = vmatpush.bf16.msra.mxu0 %v1944
  %2244 = vmatpush.bf16.msra.mxu0 %v1936
  %2245 = vmatpush.bf16.msra.mxu0 %v1928
  %2246 = vmatmul.bf16.gmra.mxu0 0
  %v2247 = vpop.f32.mrf.mxu0
  %v2248 = vadd.f32 0.0, %v2247
  %v2249 = vpop.f32.mrf.mxu0
  %v2250 = vadd.f32 0.0, %v2249
  %2251 = vdwg.mxu0
  %2252 = vmatpush.bf16.msra.mxu0 %v2048
  %2253 = vmatpush.bf16.msra.mxu0 %v2040
  %2254 = vmatpush.bf16.msra.mxu0 %v2032
  %2255 = vmatpush.bf16.msra.mxu0 %v2024
  %2256 = vmatpush.bf16.msra.mxu0 %v2016
  %2257 = vmatpush.bf16.msra.mxu0 %v2008
  %2258 = vmatpush.bf16.msra.mxu0 %v2000
  %2259 = vmatpush.bf16.msra.mxu0 %v1992
  %2260 = vmatmul.bf16.gmra.mxu0 0
  %v2261 = vpop.f32.mrf.mxu0
  %v2262 = vadd.f32 %v2248, %v2261
  %v2263 = vpop.f32.mrf.mxu0
  %v2264 = vadd.f32 %v2250, %v2263
  %2265 = vdwg.mxu0
  %2266 = vmatpush.bf16.msra.mxu0 %v1985
  %2267 = vmatpush.bf16.msra.mxu0 %v1977
  %2268 = vmatpush.bf16.msra.mxu0 %v1969
  %2269 = vmatpush.bf16.msra.mxu0 %v1961
  %2270 = vmatpush.bf16.msra.mxu0 %v1953
  %2271 = vmatpush.bf16.msra.mxu0 %v1945
  %2272 = vmatpush.bf16.msra.mxu0 %v1937
  %2273 = vmatpush.bf16.msra.mxu0 %v1929
  %2274 = vmatmul.bf16.gmra.mxu0 0
  %v2275 = vpop.f32.mrf.mxu0
  %v2276 = vadd.f32 0.0, %v2275
  %v2277 = vpop.f32.mrf.mxu0
  %v2278 = vadd.f32 0.0, %v2277
  %2279 = vdwg.mxu0
  %2280 = vmatpush.bf16.msra.mxu0 %v2049
  %2281 = vmatpush.bf16.msra.mxu0 %v2041
  %2282 = vmatpush.bf16.msra.mxu0 %v2033
  %2283 = vmatpush.bf16.msra.mxu0 %v2025
  %2284 = vmatpush.bf16.msra.mxu0 %v2017
  %2285 = vmatpush.bf16.msra.mxu0 %v2009
  %2286 = vmatpush.bf16.msra.mxu0 %v2001
  %2287 = vmatpush.bf16.msra.mxu0 %v1993
  %2288 = vmatmul.bf16.gmra.mxu0 0
  %v2289 = vpop.f32.mrf.mxu0
  %v2290 = vadd.f32 %v2276, %v2289
  %v2291 = vpop.f32.mrf.mxu0
  %v2292 = vadd.f32 %v2278, %v2291
  %2293 = vdwg.mxu0
  %2294 = vmatpush.bf16.msra.mxu0 %v1986
  %2295 = vmatpush.bf16.msra.mxu0 %v1978
  %2296 = vmatpush.bf16.msra.mxu0 %v1970
  %2297 = vmatpush.bf16.msra.mxu0 %v1962
  %2298 = vmatpush.bf16.msra.mxu0 %v1954
  %2299 = vmatpush.bf16.msra.mxu0 %v1946
  %2300 = vmatpush.bf16.msra.mxu0 %v1938
  %2301 = vmatpush.bf16.msra.mxu0 %v1930
  %2302 = vmatmul.bf16.gmra.mxu0 0
  %v2303 = vpop.f32.mrf.mxu0
  %v2304 = vadd.f32 0.0, %v2303
  %v2305 = vpop.f32.mrf.mxu0
  %v2306 = vadd.f32 0.0, %v2305
  %2307 = vdwg.mxu0
  %2308 = vmatpush.bf16.msra.mxu0 %v2050
  %2309 = vmatpush.bf16.msra.mxu0 %v2042
  %2310 = vmatpush.bf16.msra.mxu0 %v2034
  %2311 = vmatpush.bf16.msra.mxu0 %v2026
  %2312 = vmatpush.bf16.msra.mxu0 %v2018
  %2313 = vmatpush.bf16.msra.mxu0 %v2010
  %2314 = vmatpush.bf16.msra.mxu0 %v2002
  %2315 = vmatpush.bf16.msra.mxu0 %v1994
  %2316 = vmatmul.bf16.gmra.mxu0 0
  %v2317 = vpop.f32.mrf.mxu0
  %v2318 = vadd.f32 %v2304, %v2317
  %v2319 = vpop.f32.mrf.mxu0
  %v2320 = vadd.f32 %v2306, %v2319
  %2321 = vdwg.mxu0
  %2322 = vmatpush.bf16.msra.mxu0 %v1987
  %2323 = vmatpush.bf16.msra.mxu0 %v1979
  %2324 = vmatpush.bf16.msra.mxu0 %v1971
  %2325 = vmatpush.bf16.msra.mxu0 %v1963
  %2326 = vmatpush.bf16.msra.mxu0 %v1955
  %2327 = vmatpush.bf16.msra.mxu0 %v1947
  %2328 = vmatpush.bf16.msra.mxu0 %v1939
  %2329 = vmatpush.bf16.msra.mxu0 %v1931
  %2330 = vmatmul.bf16.gmra.mxu0 0
  %v2331 = vpop.f32.mrf.mxu0
  %v2332 = vadd.f32 0.0, %v2331
  %v2333 = vpop.f32.mrf.mxu0
  %v2334 = vadd.f32 0.0, %v2333
  %2335 = vdwg.mxu0
  %2336 = vmatpush.bf16.msra.mxu0 %v2051
  %2337 = vmatpush.bf16.msra.mxu0 %v2043
  %2338 = vmatpush.bf16.msra.mxu0 %v2035
  %2339 = vmatpush.bf16.msra.mxu0 %v2027
  %2340 = vmatpush.bf16.msra.mxu0 %v2019
  %2341 = vmatpush.bf16.msra.mxu0 %v2011
  %2342 = vmatpush.bf16.msra.mxu0 %v2003
  %2343 = vmatpush.bf16.msra.mxu0 %v1995
  %2344 = vmatmul.bf16.gmra.mxu0 0
  %v2345 = vpop.f32.mrf.mxu0
  %v2346 = vadd.f32 %v2332, %v2345
  %v2347 = vpop.f32.mrf.mxu0
  %v2348 = vadd.f32 %v2334, %v2347
  %2349 = vdwg.mxu0
  %2350 = vmatpush.bf16.msra.mxu0 %v1988
  %2351 = vmatpush.bf16.msra.mxu0 %v1980
  %2352 = vmatpush.bf16.msra.mxu0 %v1972
  %2353 = vmatpush.bf16.msra.mxu0 %v1964
  %2354 = vmatpush.bf16.msra.mxu0 %v1956
  %2355 = vmatpush.bf16.msra.mxu0 %v1948
  %2356 = vmatpush.bf16.msra.mxu0 %v1940
  %2357 = vmatpush.bf16.msra.mxu0 %v1932
  %2358 = vmatmul.bf16.gmra.mxu0 0
  %v2359 = vpop.f32.mrf.mxu0
  %v2360 = vadd.f32 0.0, %v2359
  %v2361 = vpop.f32.mrf.mxu0
  %v2362 = vadd.f32 0.0, %v2361
  %2363 = vdwg.mxu0
  %2364 = vmatpush.bf16.msra.mxu0 %v2052
  %2365 = vmatpush.bf16.msra.mxu0 %v2044
  %2366 = vmatpush.bf16.msra.mxu0 %v2036
  %2367 = vmatpush.bf16.msra.mxu0 %v2028
  %2368 = vmatpush.bf16.msra.mxu0 %v2020
  %2369 = vmatpush.bf16.msra.mxu0 %v2012
  %2370 = vmatpush.bf16.msra.mxu0 %v2004
  %2371 = vmatpush.bf16.msra.mxu0 %v1996
  %2372 = vmatmul.bf16.gmra.mxu0 0
  %v2373 = vpop.f32.mrf.mxu0
  %v2374 = vadd.f32 %v2360, %v2373
  %v2375 = vpop.f32.mrf.mxu0
  %v2376 = vadd.f32 %v2362, %v2375
  %2377 = vdwg.mxu0
  %2378 = vmatpush.bf16.msra.mxu0 %v1989
  %2379 = vmatpush.bf16.msra.mxu0 %v1981
  %2380 = vmatpush.bf16.msra.mxu0 %v1973
  %2381 = vmatpush.bf16.msra.mxu0 %v1965
  %2382 = vmatpush.bf16.msra.mxu0 %v1957
  %2383 = vmatpush.bf16.msra.mxu0 %v1949
  %2384 = vmatpush.bf16.msra.mxu0 %v1941
  %2385 = vmatpush.bf16.msra.mxu0 %v1933
  %2386 = vmatmul.bf16.gmra.mxu0 0
  %v2387 = vpop.f32.mrf.mxu0
  %v2388 = vadd.f32 0.0, %v2387
  %v2389 = vpop.f32.mrf.mxu0
  %v2390 = vadd.f32 0.0, %v2389
  %2391 = vdwg.mxu0
  %2392 = vmatpush.bf16.msra.mxu0 %v2053
  %2393 = vmatpush.bf16.msra.mxu0 %v2045
  %2394 = vmatpush.bf16.msra.mxu0 %v2037
  %2395 = vmatpush.bf16.msra.mxu0 %v2029
  %2396 = vmatpush.bf16.msra.mxu0 %v2021
  %2397 = vmatpush.bf16.msra.mxu0 %v2013
  %2398 = vmatpush.bf16.msra.mxu0 %v2005
  %2399 = vmatpush.bf16.msra.mxu0 %v1997
  %2400 = vmatmul.bf16.gmra.mxu0 0
  %v2401 = vpop.f32.mrf.mxu0
  %v2402 = vadd.f32 %v2388, %v2401
  %v2403 = vpop.f32.mrf.mxu0
  %v2404 = vadd.f32 %v2390, %v2403
  %2405 = vdwg.mxu0
  %v2406 = vadd.f32 %v1526, %v2206
  %v2407 = vadd.f32 %v1527, %v2234
  %v2408 = vadd.f32 %v1528, %v2262
  %v2409 = vadd.f32 %v1529, %v2290
  %v2410 = vadd.f32 %v1530, %v2318
  %v2411 = vadd.f32 %v1531, %v2346
  %v2412 = vadd.f32 %v1532, %v2374
  %v2413 = vadd.f32 %v1533, %v2402
  %v2414 = vadd.f32 %v1534, %v2208
  %v2415 = vadd.f32 %v1535, %v2236
  %v2416 = vadd.f32 %v1536, %v2264
  %v2417 = vadd.f32 %v1537, %v2292
  %v2418 = vadd.f32 %v1538, %v2320
  %v2419 = vadd.f32 %v1539, %v2348
  %v2420 = vadd.f32 %v1540, %v2376
  %v2421 = vadd.f32 %v1541, %v2404
  %v2422 = vxor.u32 %v2406, 2147483648
  %v2423 = vxor.u32 %v2414, 2147483648
  %v2424 = vmul.f32 %v2422, 1.442695
  %v2425 = vpow.pop %v2424
  %v2426 = vmul.f32 %v2423, 1.442695
  %v2427 = vpow.pop %v2426
  %v2428 = vadd.f32 %v2425, 1.0
  %v2429 = vadd.f32 %v2427, 1.0
  %v2430 = vrcp.pop %v2428
  %v2431 = vmul.f32 %v2428, %v2430
  %v2432 = vsub.f32 1.0, %v2431
  %v2433 = vmul.f32 %v2430, %v2432
  %v2434 = vadd.f32 %v2430, %v2433
  %vm2435 = vweird.f32 %v2428
  %vm2436 = vweird.f32 %v2430
  %vm2437 = vmor %vm2435, %vm2436
  %v2438 = vsel %vm2437, %v2430, %v2434
  %v2439 = vand.u32 2147483647, %v2428
  %vm2440 = vcmp.eq.f32.partialorder %v2439, 8.507059e+37
  %v2441 = vand.u32 %v2428, 2147483648
  %v2442 = vor.u32 1.1754944e-38, %v2441
  %v2443 = vsel %vm2440, %v2442, %v2438
  %v2444 = vmul.f32 1.0, %v2443
  %v2445 = vrcp.pop %v2429
  %v2446 = vmul.f32 %v2429, %v2445
  %v2447 = vsub.f32 1.0, %v2446
  %v2448 = vmul.f32 %v2445, %v2447
  %v2449 = vadd.f32 %v2445, %v2448
  %vm2450 = vweird.f32 %v2429
  %vm2451 = vweird.f32 %v2445
  %vm2452 = vmor %vm2450, %vm2451
  %v2453 = vsel %vm2452, %v2445, %v2449
  %v2454 = vand.u32 2147483647, %v2429
  %vm2455 = vcmp.eq.f32.partialorder %v2454, 8.507059e+37
  %v2456 = vand.u32 %v2429, 2147483648
  %v2457 = vor.u32 1.1754944e-38, %v2456
  %v2458 = vsel %vm2455, %v2457, %v2453
  %v2459 = vmul.f32 1.0, %v2458
  %v2460 = vxor.u32 %v2407, 2147483648
  %v2461 = vxor.u32 %v2415, 2147483648
  %v2462 = vmul.f32 %v2460, 1.442695
  %v2463 = vpow.pop %v2462
  %v2464 = vmul.f32 %v2461, 1.442695
  %v2465 = vpow.pop %v2464
  %v2466 = vadd.f32 %v2463, 1.0
  %v2467 = vadd.f32 %v2465, 1.0
  %v2468 = vrcp.pop %v2466
  %v2469 = vmul.f32 %v2466, %v2468
  %v2470 = vsub.f32 1.0, %v2469
  %v2471 = vmul.f32 %v2468, %v2470
  %v2472 = vadd.f32 %v2468, %v2471
  %vm2473 = vweird.f32 %v2466
  %vm2474 = vweird.f32 %v2468
  %vm2475 = vmor %vm2473, %vm2474
  %v2476 = vsel %vm2475, %v2468, %v2472
  %v2477 = vand.u32 2147483647, %v2466
  %vm2478 = vcmp.eq.f32.partialorder %v2477, 8.507059e+37
  %v2479 = vand.u32 %v2466, 2147483648
  %v2480 = vor.u32 1.1754944e-38, %v2479
  %v2481 = vsel %vm2478, %v2480, %v2476
  %v2482 = vmul.f32 1.0, %v2481
  %v2483 = vrcp.pop %v2467
  %v2484 = vmul.f32 %v2467, %v2483
  %v2485 = vsub.f32 1.0, %v2484
  %v2486 = vmul.f32 %v2483, %v2485
  %v2487 = vadd.f32 %v2483, %v2486
  %vm2488 = vweird.f32 %v2467
  %vm2489 = vweird.f32 %v2483
  %vm2490 = vmor %vm2488, %vm2489
  %v2491 = vsel %vm2490, %v2483, %v2487
  %v2492 = vand.u32 2147483647, %v2467
  %vm2493 = vcmp.eq.f32.partialorder %v2492, 8.507059e+37
  %v2494 = vand.u32 %v2467, 2147483648
  %v2495 = vor.u32 1.1754944e-38, %v2494
  %v2496 = vsel %vm2493, %v2495, %v2491
  %v2497 = vmul.f32 1.0, %v2496
  %v2498 = vtanh.pop %v2408
  %v2499 = vtanh.pop %v2416
  %v2500 = vxor.u32 %v2409, 2147483648
  %v2501 = vxor.u32 %v2417, 2147483648
  %v2502 = vmul.f32 %v2500, 1.442695
  %v2503 = vpow.pop %v2502
  %v2504 = vmul.f32 %v2501, 1.442695
  %v2505 = vpow.pop %v2504
  %v2506 = vadd.f32 %v2503, 1.0
  %v2507 = vadd.f32 %v2505, 1.0
  %v2508 = vrcp.pop %v2506
  %v2509 = vmul.f32 %v2506, %v2508
  %v2510 = vsub.f32 1.0, %v2509
  %v2511 = vmul.f32 %v2508, %v2510
  %v2512 = vadd.f32 %v2508, %v2511
  %vm2513 = vweird.f32 %v2506
  %vm2514 = vweird.f32 %v2508
  %vm2515 = vmor %vm2513, %vm2514
  %v2516 = vsel %vm2515, %v2508, %v2512
  %v2517 = vand.u32 2147483647, %v2506
  %vm2518 = vcmp.eq.f32.partialorder %v2517, 8.507059e+37
  %v2519 = vand.u32 %v2506, 2147483648
  %v2520 = vor.u32 1.1754944e-38, %v2519
  %v2521 = vsel %vm2518, %v2520, %v2516
  %v2522 = vmul.f32 1.0, %v2521
  %v2523 = vrcp.pop %v2507
  %v2524 = vmul.f32 %v2507, %v2523
  %v2525 = vsub.f32 1.0, %v2524
  %v2526 = vmul.f32 %v2523, %v2525
  %v2527 = vadd.f32 %v2523, %v2526
  %vm2528 = vweird.f32 %v2507
  %vm2529 = vweird.f32 %v2523
  %vm2530 = vmor %vm2528, %vm2529
  %v2531 = vsel %vm2530, %v2523, %v2527
  %v2532 = vand.u32 2147483647, %v2507
  %vm2533 = vcmp.eq.f32.partialorder %v2532, 8.507059e+37
  %v2534 = vand.u32 %v2507, 2147483648
  %v2535 = vor.u32 1.1754944e-38, %v2534
  %v2536 = vsel %vm2533, %v2535, %v2531
  %v2537 = vmul.f32 1.0, %v2536
  %v2538 = vmul.f32 %v2482, 0.0
  %v2539 = vmul.f32 %v2497, 0.0
  %v2540 = vmul.f32 %v2444, %v2498
  %v2541 = vmul.f32 %v2459, %v2499
  %v2542 = vadd.f32 %v2538, %v2540
  %v2543 = vadd.f32 %v2539, %v2541
  %v2544 = vtanh.pop %v2542
  %v2545 = vtanh.pop %v2543
  %v2546 = vmul.f32 %v2522, %v2544
  %v2547 = vmul.f32 %v2537, %v2545
  %v2548 = vxor.u32 %v2410, 2147483648
  %v2549 = vxor.u32 %v2418, 2147483648
  %v2550 = vmul.f32 %v2548, 1.442695
  %v2551 = vpow.pop %v2550
  %v2552 = vmul.f32 %v2549, 1.442695
  %v2553 = vpow.pop %v2552
  %v2554 = vadd.f32 %v2551, 1.0
  %v2555 = vadd.f32 %v2553, 1.0
  %v2556 = vrcp.pop %v2554
  %v2557 = vmul.f32 %v2554, %v2556
  %v2558 = vsub.f32 1.0, %v2557
  %v2559 = vmul.f32 %v2556, %v2558
  %v2560 = vadd.f32 %v2556, %v2559
  %vm2561 = vweird.f32 %v2554
  %vm2562 = vweird.f32 %v2556
  %vm2563 = vmor %vm2561, %vm2562
  %v2564 = vsel %vm2563, %v2556, %v2560
  %v2565 = vand.u32 2147483647, %v2554
  %vm2566 = vcmp.eq.f32.partialorder %v2565, 8.507059e+37
  %v2567 = vand.u32 %v2554, 2147483648
  %v2568 = vor.u32 1.1754944e-38, %v2567
  %v2569 = vsel %vm2566, %v2568, %v2564
  %v2570 = vmul.f32 1.0, %v2569
  %v2571 = vrcp.pop %v2555
  %v2572 = vmul.f32 %v2555, %v2571
  %v2573 = vsub.f32 1.0, %v2572
  %v2574 = vmul.f32 %v2571, %v2573
  %v2575 = vadd.f32 %v2571, %v2574
  %vm2576 = vweird.f32 %v2555
  %vm2577 = vweird.f32 %v2571
  %vm2578 = vmor %vm2576, %vm2577
  %v2579 = vsel %vm2578, %v2571, %v2575
  %v2580 = vand.u32 2147483647, %v2555
  %vm2581 = vcmp.eq.f32.partialorder %v2580, 8.507059e+37
  %v2582 = vand.u32 %v2555, 2147483648
  %v2583 = vor.u32 1.1754944e-38, %v2582
  %v2584 = vsel %vm2581, %v2583, %v2579
  %v2585 = vmul.f32 1.0, %v2584
  %v2586 = vxor.u32 %v2411, 2147483648
  %v2587 = vxor.u32 %v2419, 2147483648
  %v2588 = vmul.f32 %v2586, 1.442695
  %v2589 = vpow.pop %v2588
  %v2590 = vmul.f32 %v2587, 1.442695
  %v2591 = vpow.pop %v2590
  %v2592 = vadd.f32 %v2589, 1.0
  %v2593 = vadd.f32 %v2591, 1.0
  %v2594 = vrcp.pop %v2592
  %v2595 = vmul.f32 %v2592, %v2594
  %v2596 = vsub.f32 1.0, %v2595
  %v2597 = vmul.f32 %v2594, %v2596
  %v2598 = vadd.f32 %v2594, %v2597
  %vm2599 = vweird.f32 %v2592
  %vm2600 = vweird.f32 %v2594
  %vm2601 = vmor %vm2599, %vm2600
  %v2602 = vsel %vm2601, %v2594, %v2598
  %v2603 = vand.u32 2147483647, %v2592
  %vm2604 = vcmp.eq.f32.partialorder %v2603, 8.507059e+37
  %v2605 = vand.u32 %v2592, 2147483648
  %v2606 = vor.u32 1.1754944e-38, %v2605
  %v2607 = vsel %vm2604, %v2606, %v2602
  %v2608 = vmul.f32 1.0, %v2607
  %v2609 = vrcp.pop %v2593
  %v2610 = vmul.f32 %v2593, %v2609
  %v2611 = vsub.f32 1.0, %v2610
  %v2612 = vmul.f32 %v2609, %v2611
  %v2613 = vadd.f32 %v2609, %v2612
  %vm2614 = vweird.f32 %v2593
  %vm2615 = vweird.f32 %v2609
  %vm2616 = vmor %vm2614, %vm2615
  %v2617 = vsel %vm2616, %v2609, %v2613
  %v2618 = vand.u32 2147483647, %v2593
  %vm2619 = vcmp.eq.f32.partialorder %v2618, 8.507059e+37
  %v2620 = vand.u32 %v2593, 2147483648
  %v2621 = vor.u32 1.1754944e-38, %v2620
  %v2622 = vsel %vm2619, %v2621, %v2617
  %v2623 = vmul.f32 1.0, %v2622
  %v2624 = vtanh.pop %v2412
  %v2625 = vtanh.pop %v2420
  %v2626 = vxor.u32 %v2413, 2147483648
  %v2627 = vxor.u32 %v2421, 2147483648
  %v2628 = vmul.f32 %v2626, 1.442695
  %v2629 = vpow.pop %v2628
  %v2630 = vmul.f32 %v2627, 1.442695
  %v2631 = vpow.pop %v2630
  %v2632 = vadd.f32 %v2629, 1.0
  %v2633 = vadd.f32 %v2631, 1.0
  %v2634 = vrcp.pop %v2632
  %v2635 = vmul.f32 %v2632, %v2634
  %v2636 = vsub.f32 1.0, %v2635
  %v2637 = vmul.f32 %v2634, %v2636
  %v2638 = vadd.f32 %v2634, %v2637
  %vm2639 = vweird.f32 %v2632
  %vm2640 = vweird.f32 %v2634
  %vm2641 = vmor %vm2639, %vm2640
  %v2642 = vsel %vm2641, %v2634, %v2638
  %v2643 = vand.u32 2147483647, %v2632
  %vm2644 = vcmp.eq.f32.partialorder %v2643, 8.507059e+37
  %v2645 = vand.u32 %v2632, 2147483648
  %v2646 = vor.u32 1.1754944e-38, %v2645
  %v2647 = vsel %vm2644, %v2646, %v2642
  %v2648 = vmul.f32 1.0, %v2647
  %v2649 = vrcp.pop %v2633
  %v2650 = vmul.f32 %v2633, %v2649
  %v2651 = vsub.f32 1.0, %v2650
  %v2652 = vmul.f32 %v2649, %v2651
  %v2653 = vadd.f32 %v2649, %v2652
  %vm2654 = vweird.f32 %v2633
  %vm2655 = vweird.f32 %v2649
  %vm2656 = vmor %vm2654, %vm2655
  %v2657 = vsel %vm2656, %v2649, %v2653
  %v2658 = vand.u32 2147483647, %v2633
  %vm2659 = vcmp.eq.f32.partialorder %v2658, 8.507059e+37
  %v2660 = vand.u32 %v2633, 2147483648
  %v2661 = vor.u32 1.1754944e-38, %v2660
  %v2662 = vsel %vm2659, %v2661, %v2657
  %v2663 = vmul.f32 1.0, %v2662
  %v2664 = vmul.f32 %v2608, 0.0
  %v2665 = vmul.f32 %v2623, 0.0
  %v2666 = vmul.f32 %v2570, %v2624
  %v2667 = vmul.f32 %v2585, %v2625
  %v2668 = vadd.f32 %v2664, %v2666
  %v2669 = vadd.f32 %v2665, %v2667
  %v2670 = vtanh.pop %v2668
  %v2671 = vtanh.pop %v2669
  %v2672 = vmul.f32 %v2648, %v2670
  %v2673 = vmul.f32 %v2663, %v2671
  %s2674 = scalar_lea.vmem [#allocation2], 64
  %v2675 = vld [vmem:[%s2674] sm:$0xff]
  %v2676 = vld [vmem:[%s2674 + $0x8] sm:$0xff]
  %v2677 = vld [vmem:[%s2674 + $0x10] sm:$0xff]
  %v2678 = vld [vmem:[%s2674 + $0x18] sm:$0xff]
  %v2679 = vld [vmem:[%s2674 + $0x20] sm:$0xff]
  %v2680 = vld [vmem:[%s2674 + $0x28] sm:$0xff]
  %v2681 = vld [vmem:[%s2674 + $0x30] sm:$0xff]
  %v2682 = vld [vmem:[%s2674 + $0x38] sm:$0xff]
  %v2683 = vunpack.c.l.bf16 %v2675
  %v2684 = vunpack.c.h.bf16 %v2675
  %v2685 = vunpack.c.l.bf16 %v2676
  %v2686 = vunpack.c.h.bf16 %v2676
  %v2687 = vunpack.c.l.bf16 %v2677
  %v2688 = vunpack.c.h.bf16 %v2677
  %v2689 = vunpack.c.l.bf16 %v2678
  %v2690 = vunpack.c.h.bf16 %v2678
  %v2691 = vunpack.c.l.bf16 %v2679
  %v2692 = vunpack.c.h.bf16 %v2679
  %v2693 = vunpack.c.l.bf16 %v2680
  %v2694 = vunpack.c.h.bf16 %v2680
  %v2695 = vunpack.c.l.bf16 %v2681
  %v2696 = vunpack.c.h.bf16 %v2681
  %v2697 = vunpack.c.l.bf16 %v2682
  %v2698 = vunpack.c.h.bf16 %v2682
  %v2699 = vpack.c.bf16 %v2547, %v2546
  %v2700 = vpack.c.bf16 %v2673, %v2672
  %2701 = vmatpush.bf16.msra.mxu0 %v1982
  %2702 = vmatpush.bf16.msra.mxu0 %v1974
  %2703 = vmatpush.bf16.msra.mxu0 %v1966
  %2704 = vmatpush.bf16.msra.mxu0 %v1958
  %2705 = vmatpush.bf16.msra.mxu0 %v1950
  %2706 = vmatpush.bf16.msra.mxu0 %v1942
  %2707 = vmatpush.bf16.msra.mxu0 %v1934
  %2708 = vmatpush.bf16.msra.mxu0 %v1926
  %2709 = vmatmul.bf16.gmra.mxu0 %v2699
  %v2710 = vpop.f32.mrf.mxu0
  %v2711 = vadd.f32 0.0, %v2710
  %v2712 = vpop.f32.mrf.mxu0
  %v2713 = vadd.f32 0.0, %v2712
  %2714 = vdwg.mxu0
  %2715 = vmatpush.bf16.msra.mxu0 %v2046
  %2716 = vmatpush.bf16.msra.mxu0 %v2038
  %2717 = vmatpush.bf16.msra.mxu0 %v2030
  %2718 = vmatpush.bf16.msra.mxu0 %v2022
  %2719 = vmatpush.bf16.msra.mxu0 %v2014
  %2720 = vmatpush.bf16.msra.mxu0 %v2006
  %2721 = vmatpush.bf16.msra.mxu0 %v1998
  %2722 = vmatpush.bf16.msra.mxu0 %v1990
  %2723 = vmatmul.bf16.gmra.mxu0 %v2700
  %v2724 = vpop.f32.mrf.mxu0
  %v2725 = vadd.f32 %v2711, %v2724
  %v2726 = vpop.f32.mrf.mxu0
  %v2727 = vadd.f32 %v2713, %v2726
  %2728 = vdwg.mxu0
  %2729 = vmatpush.bf16.msra.mxu0 %v1983
  %2730 = vmatpush.bf16.msra.mxu0 %v1975
  %2731 = vmatpush.bf16.msra.mxu0 %v1967
  %2732 = vmatpush.bf16.msra.mxu0 %v1959
  %2733 = vmatpush.bf16.msra.mxu0 %v1951
  %2734 = vmatpush.bf16.msra.mxu0 %v1943
  %2735 = vmatpush.bf16.msra.mxu0 %v1935
  %2736 = vmatpush.bf16.msra.mxu0 %v1927
  %2737 = vmatmul.bf16.gmra.mxu0 %v2699
  %v2738 = vpop.f32.mrf.mxu0
  %v2739 = vadd.f32 0.0, %v2738
  %v2740 = vpop.f32.mrf.mxu0
  %v2741 = vadd.f32 0.0, %v2740
  %2742 = vdwg.mxu0
  %2743 = vmatpush.bf16.msra.mxu0 %v2047
  %2744 = vmatpush.bf16.msra.mxu0 %v2039
  %2745 = vmatpush.bf16.msra.mxu0 %v2031
  %2746 = vmatpush.bf16.msra.mxu0 %v2023
  %2747 = vmatpush.bf16.msra.mxu0 %v2015
  %2748 = vmatpush.bf16.msra.mxu0 %v2007
  %2749 = vmatpush.bf16.msra.mxu0 %v1999
  %2750 = vmatpush.bf16.msra.mxu0 %v1991
  %2751 = vmatmul.bf16.gmra.mxu0 %v2700
  %v2752 = vpop.f32.mrf.mxu0
  %v2753 = vadd.f32 %v2739, %v2752
  %v2754 = vpop.f32.mrf.mxu0
  %v2755 = vadd.f32 %v2741, %v2754
  %2756 = vdwg.mxu0
  %2757 = vmatpush.bf16.msra.mxu0 %v1984
  %2758 = vmatpush.bf16.msra.mxu0 %v1976
  %2759 = vmatpush.bf16.msra.mxu0 %v1968
  %2760 = vmatpush.bf16.msra.mxu0 %v1960
  %2761 = vmatpush.bf16.msra.mxu0 %v1952
  %2762 = vmatpush.bf16.msra.mxu0 %v1944
  %2763 = vmatpush.bf16.msra.mxu0 %v1936
  %2764 = vmatpush.bf16.msra.mxu0 %v1928
  %2765 = vmatmul.bf16.gmra.mxu0 %v2699
  %v2766 = vpop.f32.mrf.mxu0
  %v2767 = vadd.f32 0.0, %v2766
  %v2768 = vpop.f32.mrf.mxu0
  %v2769 = vadd.f32 0.0, %v2768
  %2770 = vdwg.mxu0
  %2771 = vmatpush.bf16.msra.mxu0 %v2048
  %2772 = vmatpush.bf16.msra.mxu0 %v2040
  %2773 = vmatpush.bf16.msra.mxu0 %v2032
  %2774 = vmatpush.bf16.msra.mxu0 %v2024
  %2775 = vmatpush.bf16.msra.mxu0 %v2016
  %2776 = vmatpush.bf16.msra.mxu0 %v2008
  %2777 = vmatpush.bf16.msra.mxu0 %v2000
  %2778 = vmatpush.bf16.msra.mxu0 %v1992
  %2779 = vmatmul.bf16.gmra.mxu0 %v2700
  %v2780 = vpop.f32.mrf.mxu0
  %v2781 = vadd.f32 %v2767, %v2780
  %v2782 = vpop.f32.mrf.mxu0
  %v2783 = vadd.f32 %v2769, %v2782
  %2784 = vdwg.mxu0
  %2785 = vmatpush.bf16.msra.mxu0 %v1985
  %2786 = vmatpush.bf16.msra.mxu0 %v1977
  %2787 = vmatpush.bf16.msra.mxu0 %v1969
  %2788 = vmatpush.bf16.msra.mxu0 %v1961
  %2789 = vmatpush.bf16.msra.mxu0 %v1953
  %2790 = vmatpush.bf16.msra.mxu0 %v1945
  %2791 = vmatpush.bf16.msra.mxu0 %v1937
  %2792 = vmatpush.bf16.msra.mxu0 %v1929
  %2793 = vmatmul.bf16.gmra.mxu0 %v2699
  %v2794 = vpop.f32.mrf.mxu0
  %v2795 = vadd.f32 0.0, %v2794
  %v2796 = vpop.f32.mrf.mxu0
  %v2797 = vadd.f32 0.0, %v2796
  %2798 = vdwg.mxu0
  %2799 = vmatpush.bf16.msra.mxu0 %v2049
  %2800 = vmatpush.bf16.msra.mxu0 %v2041
  %2801 = vmatpush.bf16.msra.mxu0 %v2033
  %2802 = vmatpush.bf16.msra.mxu0 %v2025
  %2803 = vmatpush.bf16.msra.mxu0 %v2017
  %2804 = vmatpush.bf16.msra.mxu0 %v2009
  %2805 = vmatpush.bf16.msra.mxu0 %v2001
  %2806 = vmatpush.bf16.msra.mxu0 %v1993
  %2807 = vmatmul.bf16.gmra.mxu0 %v2700
  %v2808 = vpop.f32.mrf.mxu0
  %v2809 = vadd.f32 %v2795, %v2808
  %v2810 = vpop.f32.mrf.mxu0
  %v2811 = vadd.f32 %v2797, %v2810
  %2812 = vdwg.mxu0
  %2813 = vmatpush.bf16.msra.mxu0 %v1986
  %2814 = vmatpush.bf16.msra.mxu0 %v1978
  %2815 = vmatpush.bf16.msra.mxu0 %v1970
  %2816 = vmatpush.bf16.msra.mxu0 %v1962
  %2817 = vmatpush.bf16.msra.mxu0 %v1954
  %2818 = vmatpush.bf16.msra.mxu0 %v1946
  %2819 = vmatpush.bf16.msra.mxu0 %v1938
  %2820 = vmatpush.bf16.msra.mxu0 %v1930
  %2821 = vmatmul.bf16.gmra.mxu0 %v2699
  %v2822 = vpop.f32.mrf.mxu0
  %v2823 = vadd.f32 0.0, %v2822
  %v2824 = vpop.f32.mrf.mxu0
  %v2825 = vadd.f32 0.0, %v2824
  %2826 = vdwg.mxu0
  %2827 = vmatpush.bf16.msra.mxu0 %v2050
  %2828 = vmatpush.bf16.msra.mxu0 %v2042
  %2829 = vmatpush.bf16.msra.mxu0 %v2034
  %2830 = vmatpush.bf16.msra.mxu0 %v2026
  %2831 = vmatpush.bf16.msra.mxu0 %v2018
  %2832 = vmatpush.bf16.msra.mxu0 %v2010
  %2833 = vmatpush.bf16.msra.mxu0 %v2002
  %2834 = vmatpush.bf16.msra.mxu0 %v1994
  %2835 = vmatmul.bf16.gmra.mxu0 %v2700
  %v2836 = vpop.f32.mrf.mxu0
  %v2837 = vadd.f32 %v2823, %v2836
  %v2838 = vpop.f32.mrf.mxu0
  %v2839 = vadd.f32 %v2825, %v2838
  %2840 = vdwg.mxu0
  %2841 = vmatpush.bf16.msra.mxu0 %v1987
  %2842 = vmatpush.bf16.msra.mxu0 %v1979
  %2843 = vmatpush.bf16.msra.mxu0 %v1971
  %2844 = vmatpush.bf16.msra.mxu0 %v1963
  %2845 = vmatpush.bf16.msra.mxu0 %v1955
  %2846 = vmatpush.bf16.msra.mxu0 %v1947
  %2847 = vmatpush.bf16.msra.mxu0 %v1939
  %2848 = vmatpush.bf16.msra.mxu0 %v1931
  %2849 = vmatmul.bf16.gmra.mxu0 %v2699
  %v2850 = vpop.f32.mrf.mxu0
  %v2851 = vadd.f32 0.0, %v2850
  %v2852 = vpop.f32.mrf.mxu0
  %v2853 = vadd.f32 0.0, %v2852
  %2854 = vdwg.mxu0
  %2855 = vmatpush.bf16.msra.mxu0 %v2051
  %2856 = vmatpush.bf16.msra.mxu0 %v2043
  %2857 = vmatpush.bf16.msra.mxu0 %v2035
  %2858 = vmatpush.bf16.msra.mxu0 %v2027
  %2859 = vmatpush.bf16.msra.mxu0 %v2019
  %2860 = vmatpush.bf16.msra.mxu0 %v2011
  %2861 = vmatpush.bf16.msra.mxu0 %v2003
  %2862 = vmatpush.bf16.msra.mxu0 %v1995
  %2863 = vmatmul.bf16.gmra.mxu0 %v2700
  %v2864 = vpop.f32.mrf.mxu0
  %v2865 = vadd.f32 %v2851, %v2864
  %v2866 = vpop.f32.mrf.mxu0
  %v2867 = vadd.f32 %v2853, %v2866
  %2868 = vdwg.mxu0
  %2869 = vmatpush.bf16.msra.mxu0 %v1988
  %2870 = vmatpush.bf16.msra.mxu0 %v1980
  %2871 = vmatpush.bf16.msra.mxu0 %v1972
  %2872 = vmatpush.bf16.msra.mxu0 %v1964
  %2873 = vmatpush.bf16.msra.mxu0 %v1956
  %2874 = vmatpush.bf16.msra.mxu0 %v1948
  %2875 = vmatpush.bf16.msra.mxu0 %v1940
  %2876 = vmatpush.bf16.msra.mxu0 %v1932
  %2877 = vmatmul.bf16.gmra.mxu0 %v2699
  %v2878 = vpop.f32.mrf.mxu0
  %v2879 = vadd.f32 0.0, %v2878
  %v2880 = vpop.f32.mrf.mxu0
  %v2881 = vadd.f32 0.0, %v2880
  %2882 = vdwg.mxu0
  %2883 = vmatpush.bf16.msra.mxu0 %v2052
  %2884 = vmatpush.bf16.msra.mxu0 %v2044
  %2885 = vmatpush.bf16.msra.mxu0 %v2036
  %2886 = vmatpush.bf16.msra.mxu0 %v2028
  %2887 = vmatpush.bf16.msra.mxu0 %v2020
  %2888 = vmatpush.bf16.msra.mxu0 %v2012
  %2889 = vmatpush.bf16.msra.mxu0 %v2004
  %2890 = vmatpush.bf16.msra.mxu0 %v1996
  %2891 = vmatmul.bf16.gmra.mxu0 %v2700
  %v2892 = vpop.f32.mrf.mxu0
  %v2893 = vadd.f32 %v2879, %v2892
  %v2894 = vpop.f32.mrf.mxu0
  %v2895 = vadd.f32 %v2881, %v2894
  %2896 = vdwg.mxu0
  %2897 = vmatpush.bf16.msra.mxu0 %v1989
  %2898 = vmatpush.bf16.msra.mxu0 %v1981
  %2899 = vmatpush.bf16.msra.mxu0 %v1973
  %2900 = vmatpush.bf16.msra.mxu0 %v1965
  %2901 = vmatpush.bf16.msra.mxu0 %v1957
  %2902 = vmatpush.bf16.msra.mxu0 %v1949
  %2903 = vmatpush.bf16.msra.mxu0 %v1941
  %2904 = vmatpush.bf16.msra.mxu0 %v1933
  %2905 = vmatmul.bf16.gmra.mxu0 %v2699
  %v2906 = vpop.f32.mrf.mxu0
  %v2907 = vadd.f32 0.0, %v2906
  %v2908 = vpop.f32.mrf.mxu0
  %v2909 = vadd.f32 0.0, %v2908
  %2910 = vdwg.mxu0
  %2911 = vmatpush.bf16.msra.mxu0 %v2053
  %2912 = vmatpush.bf16.msra.mxu0 %v2045
  %2913 = vmatpush.bf16.msra.mxu0 %v2037
  %2914 = vmatpush.bf16.msra.mxu0 %v2029
  %2915 = vmatpush.bf16.msra.mxu0 %v2021
  %2916 = vmatpush.bf16.msra.mxu0 %v2013
  %2917 = vmatpush.bf16.msra.mxu0 %v2005
  %2918 = vmatpush.bf16.msra.mxu0 %v1997
  %2919 = vmatmul.bf16.gmra.mxu0 %v2700
  %v2920 = vpop.f32.mrf.mxu0
  %v2921 = vadd.f32 %v2907, %v2920
  %v2922 = vpop.f32.mrf.mxu0
  %v2923 = vadd.f32 %v2909, %v2922
  %2924 = vdwg.mxu0
  %v2925 = vadd.f32 %v2683, %v2725
  %v2926 = vadd.f32 %v2684, %v2753
  %v2927 = vadd.f32 %v2685, %v2781
  %v2928 = vadd.f32 %v2686, %v2809
  %v2929 = vadd.f32 %v2687, %v2837
  %v2930 = vadd.f32 %v2688, %v2865
  %v2931 = vadd.f32 %v2689, %v2893
  %v2932 = vadd.f32 %v2690, %v2921
  %v2933 = vadd.f32 %v2691, %v2727
  %v2934 = vadd.f32 %v2692, %v2755
  %v2935 = vadd.f32 %v2693, %v2783
  %v2936 = vadd.f32 %v2694, %v2811
  %v2937 = vadd.f32 %v2695, %v2839
  %v2938 = vadd.f32 %v2696, %v2867
  %v2939 = vadd.f32 %v2697, %v2895
  %v2940 = vadd.f32 %v2698, %v2923
  %v2941 = vxor.u32 %v2925, 2147483648
  %v2942 = vxor.u32 %v2933, 2147483648
  %v2943 = vmul.f32 %v2941, 1.442695
  %v2944 = vpow.pop %v2943
  %v2945 = vmul.f32 %v2942, 1.442695
  %v2946 = vpow.pop %v2945
  %v2947 = vadd.f32 %v2944, 1.0
  %v2948 = vadd.f32 %v2946, 1.0
  %v2949 = vrcp.pop %v2947
  %v2950 = vmul.f32 %v2947, %v2949
  %v2951 = vsub.f32 1.0, %v2950
  %v2952 = vmul.f32 %v2949, %v2951
  %v2953 = vadd.f32 %v2949, %v2952
  %vm2954 = vweird.f32 %v2947
  %vm2955 = vweird.f32 %v2949
  %vm2956 = vmor %vm2954, %vm2955
  %v2957 = vsel %vm2956, %v2949, %v2953
  %v2958 = vand.u32 2147483647, %v2947
  %vm2959 = vcmp.eq.f32.partialorder %v2958, 8.507059e+37
  %v2960 = vand.u32 %v2947, 2147483648
  %v2961 = vor.u32 1.1754944e-38, %v2960
  %v2962 = vsel %vm2959, %v2961, %v2957
  %v2963 = vmul.f32 1.0, %v2962
  %v2964 = vrcp.pop %v2948
  %v2965 = vmul.f32 %v2948, %v2964
  %v2966 = vsub.f32 1.0, %v2965
  %v2967 = vmul.f32 %v2964, %v2966
  %v2968 = vadd.f32 %v2964, %v2967
  %vm2969 = vweird.f32 %v2948
  %vm2970 = vweird.f32 %v2964
  %vm2971 = vmor %vm2969, %vm2970
  %v2972 = vsel %vm2971, %v2964, %v2968
  %v2973 = vand.u32 2147483647, %v2948
  %vm2974 = vcmp.eq.f32.partialorder %v2973, 8.507059e+37
  %v2975 = vand.u32 %v2948, 2147483648
  %v2976 = vor.u32 1.1754944e-38, %v2975
  %v2977 = vsel %vm2974, %v2976, %v2972
  %v2978 = vmul.f32 1.0, %v2977
  %v2979 = vxor.u32 %v2926, 2147483648
  %v2980 = vxor.u32 %v2934, 2147483648
  %v2981 = vmul.f32 %v2979, 1.442695
  %v2982 = vpow.pop %v2981
  %v2983 = vmul.f32 %v2980, 1.442695
  %v2984 = vpow.pop %v2983
  %v2985 = vadd.f32 %v2982, 1.0
  %v2986 = vadd.f32 %v2984, 1.0
  %v2987 = vrcp.pop %v2985
  %v2988 = vmul.f32 %v2985, %v2987
  %v2989 = vsub.f32 1.0, %v2988
  %v2990 = vmul.f32 %v2987, %v2989
  %v2991 = vadd.f32 %v2987, %v2990
  %vm2992 = vweird.f32 %v2985
  %vm2993 = vweird.f32 %v2987
  %vm2994 = vmor %vm2992, %vm2993
  %v2995 = vsel %vm2994, %v2987, %v2991
  %v2996 = vand.u32 2147483647, %v2985
  %vm2997 = vcmp.eq.f32.partialorder %v2996, 8.507059e+37
  %v2998 = vand.u32 %v2985, 2147483648
  %v2999 = vor.u32 1.1754944e-38, %v2998
  %v3000 = vsel %vm2997, %v2999, %v2995
  %v3001 = vmul.f32 1.0, %v3000
  %v3002 = vrcp.pop %v2986
  %v3003 = vmul.f32 %v2986, %v3002
  %v3004 = vsub.f32 1.0, %v3003
  %v3005 = vmul.f32 %v3002, %v3004
  %v3006 = vadd.f32 %v3002, %v3005
  %vm3007 = vweird.f32 %v2986
  %vm3008 = vweird.f32 %v3002
  %vm3009 = vmor %vm3007, %vm3008
  %v3010 = vsel %vm3009, %v3002, %v3006
  %v3011 = vand.u32 2147483647, %v2986
  %vm3012 = vcmp.eq.f32.partialorder %v3011, 8.507059e+37
  %v3013 = vand.u32 %v2986, 2147483648
  %v3014 = vor.u32 1.1754944e-38, %v3013
  %v3015 = vsel %vm3012, %v3014, %v3010
  %v3016 = vmul.f32 1.0, %v3015
  %v3017 = vtanh.pop %v2927
  %v3018 = vtanh.pop %v2935
  %v3019 = vxor.u32 %v2928, 2147483648
  %v3020 = vxor.u32 %v2936, 2147483648
  %v3021 = vmul.f32 %v3019, 1.442695
  %v3022 = vpow.pop %v3021
  %v3023 = vmul.f32 %v3020, 1.442695
  %v3024 = vpow.pop %v3023
  %v3025 = vadd.f32 %v3022, 1.0
  %v3026 = vadd.f32 %v3024, 1.0
  %v3027 = vrcp.pop %v3025
  %v3028 = vmul.f32 %v3025, %v3027
  %v3029 = vsub.f32 1.0, %v3028
  %v3030 = vmul.f32 %v3027, %v3029
  %v3031 = vadd.f32 %v3027, %v3030
  %vm3032 = vweird.f32 %v3025
  %vm3033 = vweird.f32 %v3027
  %vm3034 = vmor %vm3032, %vm3033
  %v3035 = vsel %vm3034, %v3027, %v3031
  %v3036 = vand.u32 2147483647, %v3025
  %vm3037 = vcmp.eq.f32.partialorder %v3036, 8.507059e+37
  %v3038 = vand.u32 %v3025, 2147483648
  %v3039 = vor.u32 1.1754944e-38, %v3038
  %v3040 = vsel %vm3037, %v3039, %v3035
  %v3041 = vmul.f32 1.0, %v3040
  %v3042 = vrcp.pop %v3026
  %v3043 = vmul.f32 %v3026, %v3042
  %v3044 = vsub.f32 1.0, %v3043
  %v3045 = vmul.f32 %v3042, %v3044
  %v3046 = vadd.f32 %v3042, %v3045
  %vm3047 = vweird.f32 %v3026
  %vm3048 = vweird.f32 %v3042
  %vm3049 = vmor %vm3047, %vm3048
  %v3050 = vsel %vm3049, %v3042, %v3046
  %v3051 = vand.u32 2147483647, %v3026
  %vm3052 = vcmp.eq.f32.partialorder %v3051, 8.507059e+37
  %v3053 = vand.u32 %v3026, 2147483648
  %v3054 = vor.u32 1.1754944e-38, %v3053
  %v3055 = vsel %vm3052, %v3054, %v3050
  %v3056 = vmul.f32 1.0, %v3055
  %v3057 = vmul.f32 %v3001, %v2542
  %v3058 = vmul.f32 %v3016, %v2543
  %v3059 = vmul.f32 %v2963, %v3017
  %v3060 = vmul.f32 %v2978, %v3018
  %v3061 = vadd.f32 %v3057, %v3059
  %v3062 = vadd.f32 %v3058, %v3060
  %v3063 = vtanh.pop %v3061
  %v3064 = vtanh.pop %v3062
  %v3065 = vmul.f32 %v3041, %v3063
  %v3066 = vmul.f32 %v3056, %v3064
  %v3067 = vxor.u32 %v2929, 2147483648
  %v3068 = vxor.u32 %v2937, 2147483648
  %v3069 = vmul.f32 %v3067, 1.442695
  %v3070 = vpow.pop %v3069
  %v3071 = vmul.f32 %v3068, 1.442695
  %v3072 = vpow.pop %v3071
  %v3073 = vadd.f32 %v3070, 1.0
  %v3074 = vadd.f32 %v3072, 1.0
  %v3075 = vrcp.pop %v3073
  %v3076 = vmul.f32 %v3073, %v3075
  %v3077 = vsub.f32 1.0, %v3076
  %v3078 = vmul.f32 %v3075, %v3077
  %v3079 = vadd.f32 %v3075, %v3078
  %vm3080 = vweird.f32 %v3073
  %vm3081 = vweird.f32 %v3075
  %vm3082 = vmor %vm3080, %vm3081
  %v3083 = vsel %vm3082, %v3075, %v3079
  %v3084 = vand.u32 2147483647, %v3073
  %vm3085 = vcmp.eq.f32.partialorder %v3084, 8.507059e+37
  %v3086 = vand.u32 %v3073, 2147483648
  %v3087 = vor.u32 1.1754944e-38, %v3086
  %v3088 = vsel %vm3085, %v3087, %v3083
  %v3089 = vmul.f32 1.0, %v3088
  %v3090 = vrcp.pop %v3074
  %v3091 = vmul.f32 %v3074, %v3090
  %v3092 = vsub.f32 1.0, %v3091
  %v3093 = vmul.f32 %v3090, %v3092
  %v3094 = vadd.f32 %v3090, %v3093
  %vm3095 = vweird.f32 %v3074
  %vm3096 = vweird.f32 %v3090
  %vm3097 = vmor %vm3095, %vm3096
  %v3098 = vsel %vm3097, %v3090, %v3094
  %v3099 = vand.u32 2147483647, %v3074
  %vm3100 = vcmp.eq.f32.partialorder %v3099, 8.507059e+37
  %v3101 = vand.u32 %v3074, 2147483648
  %v3102 = vor.u32 1.1754944e-38, %v3101
  %v3103 = vsel %vm3100, %v3102, %v3098
  %v3104 = vmul.f32 1.0, %v3103
  %v3105 = vxor.u32 %v2930, 2147483648
  %v3106 = vxor.u32 %v2938, 2147483648
  %v3107 = vmul.f32 %v3105, 1.442695
  %v3108 = vpow.pop %v3107
  %v3109 = vmul.f32 %v3106, 1.442695
  %v3110 = vpow.pop %v3109
  %v3111 = vadd.f32 %v3108, 1.0
  %v3112 = vadd.f32 %v3110, 1.0
  %v3113 = vrcp.pop %v3111
  %v3114 = vmul.f32 %v3111, %v3113
  %v3115 = vsub.f32 1.0, %v3114
  %v3116 = vmul.f32 %v3113, %v3115
  %v3117 = vadd.f32 %v3113, %v3116
  %vm3118 = vweird.f32 %v3111
  %vm3119 = vweird.f32 %v3113
  %vm3120 = vmor %vm3118, %vm3119
  %v3121 = vsel %vm3120, %v3113, %v3117
  %v3122 = vand.u32 2147483647, %v3111
  %vm3123 = vcmp.eq.f32.partialorder %v3122, 8.507059e+37
  %v3124 = vand.u32 %v3111, 2147483648
  %v3125 = vor.u32 1.1754944e-38, %v3124
  %v3126 = vsel %vm3123, %v3125, %v3121
  %v3127 = vmul.f32 1.0, %v3126
  %v3128 = vrcp.pop %v3112
  %v3129 = vmul.f32 %v3112, %v3128
  %v3130 = vsub.f32 1.0, %v3129
  %v3131 = vmul.f32 %v3128, %v3130
  %v3132 = vadd.f32 %v3128, %v3131
  %vm3133 = vweird.f32 %v3112
  %vm3134 = vweird.f32 %v3128
  %vm3135 = vmor %vm3133, %vm3134
  %v3136 = vsel %vm3135, %v3128, %v3132
  %v3137 = vand.u32 2147483647, %v3112
  %vm3138 = vcmp.eq.f32.partialorder %v3137, 8.507059e+37
  %v3139 = vand.u32 %v3112, 2147483648
  %v3140 = vor.u32 1.1754944e-38, %v3139
  %v3141 = vsel %vm3138, %v3140, %v3136
  %v3142 = vmul.f32 1.0, %v3141
  %v3143 = vtanh.pop %v2931
  %v3144 = vtanh.pop %v2939
  %v3145 = vxor.u32 %v2932, 2147483648
  %v3146 = vxor.u32 %v2940, 2147483648
  %v3147 = vmul.f32 %v3145, 1.442695
  %v3148 = vpow.pop %v3147
  %v3149 = vmul.f32 %v3146, 1.442695
  %v3150 = vpow.pop %v3149
  %v3151 = vadd.f32 %v3148, 1.0
  %v3152 = vadd.f32 %v3150, 1.0
  %v3153 = vrcp.pop %v3151
  %v3154 = vmul.f32 %v3151, %v3153
  %v3155 = vsub.f32 1.0, %v3154
  %v3156 = vmul.f32 %v3153, %v3155
  %v3157 = vadd.f32 %v3153, %v3156
  %vm3158 = vweird.f32 %v3151
  %vm3159 = vweird.f32 %v3153
  %vm3160 = vmor %vm3158, %vm3159
  %v3161 = vsel %vm3160, %v3153, %v3157
  %v3162 = vand.u32 2147483647, %v3151
  %vm3163 = vcmp.eq.f32.partialorder %v3162, 8.507059e+37
  %v3164 = vand.u32 %v3151, 2147483648
  %v3165 = vor.u32 1.1754944e-38, %v3164
  %v3166 = vsel %vm3163, %v3165, %v3161
  %v3167 = vmul.f32 1.0, %v3166
  %v3168 = vrcp.pop %v3152
  %v3169 = vmul.f32 %v3152, %v3168
  %v3170 = vsub.f32 1.0, %v3169
  %v3171 = vmul.f32 %v3168, %v3170
  %v3172 = vadd.f32 %v3168, %v3171
  %vm3173 = vweird.f32 %v3152
  %vm3174 = vweird.f32 %v3168
  %vm3175 = vmor %vm3173, %vm3174
  %v3176 = vsel %vm3175, %v3168, %v3172
  %v3177 = vand.u32 2147483647, %v3152
  %vm3178 = vcmp.eq.f32.partialorder %v3177, 8.507059e+37
  %v3179 = vand.u32 %v3152, 2147483648
  %v3180 = vor.u32 1.1754944e-38, %v3179
  %v3181 = vsel %vm3178, %v3180, %v3176
  %v3182 = vmul.f32 1.0, %v3181
  %v3183 = vmul.f32 %v3127, %v2668
  %v3184 = vmul.f32 %v3142, %v2669
  %v3185 = vmul.f32 %v3089, %v3143
  %v3186 = vmul.f32 %v3104, %v3144
  %v3187 = vadd.f32 %v3183, %v3185
  %v3188 = vadd.f32 %v3184, %v3186
  %v3189 = vtanh.pop %v3187
  %v3190 = vtanh.pop %v3188
  %v3191 = vmul.f32 %v3167, %v3189
  %v3192 = vmul.f32 %v3182, %v3190
  %s3193 = scalar_lea.vmem [#allocation2], 128
  %v3194 = vld [vmem:[%s3193] sm:$0xff]
  %v3195 = vld [vmem:[%s3193 + $0x8] sm:$0xff]
  %v3196 = vld [vmem:[%s3193 + $0x10] sm:$0xff]
  %v3197 = vld [vmem:[%s3193 + $0x18] sm:$0xff]
  %v3198 = vld [vmem:[%s3193 + $0x20] sm:$0xff]
  %v3199 = vld [vmem:[%s3193 + $0x28] sm:$0xff]
  %v3200 = vld [vmem:[%s3193 + $0x30] sm:$0xff]
  %v3201 = vld [vmem:[%s3193 + $0x38] sm:$0xff]
  %v3202 = vunpack.c.l.bf16 %v3194
  %v3203 = vunpack.c.h.bf16 %v3194
  %v3204 = vunpack.c.l.bf16 %v3195
  %v3205 = vunpack.c.h.bf16 %v3195
  %v3206 = vunpack.c.l.bf16 %v3196
  %v3207 = vunpack.c.h.bf16 %v3196
  %v3208 = vunpack.c.l.bf16 %v3197
  %v3209 = vunpack.c.h.bf16 %v3197
  %v3210 = vunpack.c.l.bf16 %v3198
  %v3211 = vunpack.c.h.bf16 %v3198
  %v3212 = vunpack.c.l.bf16 %v3199
  %v3213 = vunpack.c.h.bf16 %v3199
  %v3214 = vunpack.c.l.bf16 %v3200
  %v3215 = vunpack.c.h.bf16 %v3200
  %v3216 = vunpack.c.l.bf16 %v3201
  %v3217 = vunpack.c.h.bf16 %v3201
  %v3218 = vpack.c.bf16 %v3066, %v3065
  %v3219 = vpack.c.bf16 %v3192, %v3191
  %3220 = vmatpush.bf16.msra.mxu0 %v1982
  %3221 = vmatpush.bf16.msra.mxu0 %v1974
  %3222 = vmatpush.bf16.msra.mxu0 %v1966
  %3223 = vmatpush.bf16.msra.mxu0 %v1958
  %3224 = vmatpush.bf16.msra.mxu0 %v1950
  %3225 = vmatpush.bf16.msra.mxu0 %v1942
  %3226 = vmatpush.bf16.msra.mxu0 %v1934
  %3227 = vmatpush.bf16.msra.mxu0 %v1926
  %3228 = vmatmul.bf16.gmra.mxu0 %v3218
  %v3229 = vpop.f32.mrf.mxu0
  %v3230 = vadd.f32 0.0, %v3229
  %v3231 = vpop.f32.mrf.mxu0
  %v3232 = vadd.f32 0.0, %v3231
  %3233 = vdwg.mxu0
  %3234 = vmatpush.bf16.msra.mxu0 %v2046
  %3235 = vmatpush.bf16.msra.mxu0 %v2038
  %3236 = vmatpush.bf16.msra.mxu0 %v2030
  %3237 = vmatpush.bf16.msra.mxu0 %v2022
  %3238 = vmatpush.bf16.msra.mxu0 %v2014
  %3239 = vmatpush.bf16.msra.mxu0 %v2006
  %3240 = vmatpush.bf16.msra.mxu0 %v1998
  %3241 = vmatpush.bf16.msra.mxu0 %v1990
  %3242 = vmatmul.bf16.gmra.mxu0 %v3219
  %v3243 = vpop.f32.mrf.mxu0
  %v3244 = vadd.f32 %v3230, %v3243
  %v3245 = vpop.f32.mrf.mxu0
  %v3246 = vadd.f32 %v3232, %v3245
  %3247 = vdwg.mxu0
  %3248 = vmatpush.bf16.msra.mxu0 %v1983
  %3249 = vmatpush.bf16.msra.mxu0 %v1975
  %3250 = vmatpush.bf16.msra.mxu0 %v1967
  %3251 = vmatpush.bf16.msra.mxu0 %v1959
  %3252 = vmatpush.bf16.msra.mxu0 %v1951
  %3253 = vmatpush.bf16.msra.mxu0 %v1943
  %3254 = vmatpush.bf16.msra.mxu0 %v1935
  %3255 = vmatpush.bf16.msra.mxu0 %v1927
  %3256 = vmatmul.bf16.gmra.mxu0 %v3218
  %v3257 = vpop.f32.mrf.mxu0
  %v3258 = vadd.f32 0.0, %v3257
  %v3259 = vpop.f32.mrf.mxu0
  %v3260 = vadd.f32 0.0, %v3259
  %3261 = vdwg.mxu0
  %3262 = vmatpush.bf16.msra.mxu0 %v2047
  %3263 = vmatpush.bf16.msra.mxu0 %v2039
  %3264 = vmatpush.bf16.msra.mxu0 %v2031
  %3265 = vmatpush.bf16.msra.mxu0 %v2023
  %3266 = vmatpush.bf16.msra.mxu0 %v2015
  %3267 = vmatpush.bf16.msra.mxu0 %v2007
  %3268 = vmatpush.bf16.msra.mxu0 %v1999
  %3269 = vmatpush.bf16.msra.mxu0 %v1991
  %3270 = vmatmul.bf16.gmra.mxu0 %v3219
  %v3271 = vpop.f32.mrf.mxu0
  %v3272 = vadd.f32 %v3258, %v3271
  %v3273 = vpop.f32.mrf.mxu0
  %v3274 = vadd.f32 %v3260, %v3273
  %3275 = vdwg.mxu0
  %3276 = vmatpush.bf16.msra.mxu0 %v1984
  %3277 = vmatpush.bf16.msra.mxu0 %v1976
  %3278 = vmatpush.bf16.msra.mxu0 %v1968
  %3279 = vmatpush.bf16.msra.mxu0 %v1960
  %3280 = vmatpush.bf16.msra.mxu0 %v1952
  %3281 = vmatpush.bf16.msra.mxu0 %v1944
  %3282 = vmatpush.bf16.msra.mxu0 %v1936
  %3283 = vmatpush.bf16.msra.mxu0 %v1928
  %3284 = vmatmul.bf16.gmra.mxu0 %v3218
  %v3285 = vpop.f32.mrf.mxu0
  %v3286 = vadd.f32 0.0, %v3285
  %v3287 = vpop.f32.mrf.mxu0
  %v3288 = vadd.f32 0.0, %v3287
  %3289 = vdwg.mxu0
  %3290 = vmatpush.bf16.msra.mxu0 %v2048
  %3291 = vmatpush.bf16.msra.mxu0 %v2040
  %3292 = vmatpush.bf16.msra.mxu0 %v2032
  %3293 = vmatpush.bf16.msra.mxu0 %v2024
  %3294 = vmatpush.bf16.msra.mxu0 %v2016
  %3295 = vmatpush.bf16.msra.mxu0 %v2008
  %3296 = vmatpush.bf16.msra.mxu0 %v2000
  %3297 = vmatpush.bf16.msra.mxu0 %v1992
  %3298 = vmatmul.bf16.gmra.mxu0 %v3219
  %v3299 = vpop.f32.mrf.mxu0
  %v3300 = vadd.f32 %v3286, %v3299
  %v3301 = vpop.f32.mrf.mxu0
  %v3302 = vadd.f32 %v3288, %v3301
  %3303 = vdwg.mxu0
  %3304 = vmatpush.bf16.msra.mxu0 %v1985
  %3305 = vmatpush.bf16.msra.mxu0 %v1977
  %3306 = vmatpush.bf16.msra.mxu0 %v1969
  %3307 = vmatpush.bf16.msra.mxu0 %v1961
  %3308 = vmatpush.bf16.msra.mxu0 %v1953
  %3309 = vmatpush.bf16.msra.mxu0 %v1945
  %3310 = vmatpush.bf16.msra.mxu0 %v1937
  %3311 = vmatpush.bf16.msra.mxu0 %v1929
  %3312 = vmatmul.bf16.gmra.mxu0 %v3218
  %v3313 = vpop.f32.mrf.mxu0
  %v3314 = vadd.f32 0.0, %v3313
  %v3315 = vpop.f32.mrf.mxu0
  %v3316 = vadd.f32 0.0, %v3315
  %3317 = vdwg.mxu0
  %3318 = vmatpush.bf16.msra.mxu0 %v2049
  %3319 = vmatpush.bf16.msra.mxu0 %v2041
  %3320 = vmatpush.bf16.msra.mxu0 %v2033
  %3321 = vmatpush.bf16.msra.mxu0 %v2025
  %3322 = vmatpush.bf16.msra.mxu0 %v2017
  %3323 = vmatpush.bf16.msra.mxu0 %v2009
  %3324 = vmatpush.bf16.msra.mxu0 %v2001
  %3325 = vmatpush.bf16.msra.mxu0 %v1993
  %3326 = vmatmul.bf16.gmra.mxu0 %v3219
  %v3327 = vpop.f32.mrf.mxu0
  %v3328 = vadd.f32 %v3314, %v3327
  %v3329 = vpop.f32.mrf.mxu0
  %v3330 = vadd.f32 %v3316, %v3329
  %3331 = vdwg.mxu0
  %3332 = vmatpush.bf16.msra.mxu0 %v1986
  %3333 = vmatpush.bf16.msra.mxu0 %v1978
  %3334 = vmatpush.bf16.msra.mxu0 %v1970
  %3335 = vmatpush.bf16.msra.mxu0 %v1962
  %3336 = vmatpush.bf16.msra.mxu0 %v1954
  %3337 = vmatpush.bf16.msra.mxu0 %v1946
  %3338 = vmatpush.bf16.msra.mxu0 %v1938
  %3339 = vmatpush.bf16.msra.mxu0 %v1930
  %3340 = vmatmul.bf16.gmra.mxu0 %v3218
  %v3341 = vpop.f32.mrf.mxu0
  %v3342 = vadd.f32 0.0, %v3341
  %v3343 = vpop.f32.mrf.mxu0
  %v3344 = vadd.f32 0.0, %v3343
  %3345 = vdwg.mxu0
  %3346 = vmatpush.bf16.msra.mxu0 %v2050
  %3347 = vmatpush.bf16.msra.mxu0 %v2042
  %3348 = vmatpush.bf16.msra.mxu0 %v2034
  %3349 = vmatpush.bf16.msra.mxu0 %v2026
  %3350 = vmatpush.bf16.msra.mxu0 %v2018
  %3351 = vmatpush.bf16.msra.mxu0 %v2010
  %3352 = vmatpush.bf16.msra.mxu0 %v2002
  %3353 = vmatpush.bf16.msra.mxu0 %v1994
  %3354 = vmatmul.bf16.gmra.mxu0 %v3219
  %v3355 = vpop.f32.mrf.mxu0
  %v3356 = vadd.f32 %v3342, %v3355
  %v3357 = vpop.f32.mrf.mxu0
  %v3358 = vadd.f32 %v3344, %v3357
  %3359 = vdwg.mxu0
  %3360 = vmatpush.bf16.msra.mxu0 %v1987
  %3361 = vmatpush.bf16.msra.mxu0 %v1979
  %3362 = vmatpush.bf16.msra.mxu0 %v1971
  %3363 = vmatpush.bf16.msra.mxu0 %v1963
  %3364 = vmatpush.bf16.msra.mxu0 %v1955
  %3365 = vmatpush.bf16.msra.mxu0 %v1947
  %3366 = vmatpush.bf16.msra.mxu0 %v1939
  %3367 = vmatpush.bf16.msra.mxu0 %v1931
  %3368 = vmatmul.bf16.gmra.mxu0 %v3218
  %v3369 = vpop.f32.mrf.mxu0
  %v3370 = vadd.f32 0.0, %v3369
  %v3371 = vpop.f32.mrf.mxu0
  %v3372 = vadd.f32 0.0, %v3371
  %3373 = vdwg.mxu0
  %3374 = vmatpush.bf16.msra.mxu0 %v2051
  %3375 = vmatpush.bf16.msra.mxu0 %v2043
  %3376 = vmatpush.bf16.msra.mxu0 %v2035
  %3377 = vmatpush.bf16.msra.mxu0 %v2027
  %3378 = vmatpush.bf16.msra.mxu0 %v2019
  %3379 = vmatpush.bf16.msra.mxu0 %v2011
  %3380 = vmatpush.bf16.msra.mxu0 %v2003
  %3381 = vmatpush.bf16.msra.mxu0 %v1995
  %3382 = vmatmul.bf16.gmra.mxu0 %v3219
  %v3383 = vpop.f32.mrf.mxu0
  %v3384 = vadd.f32 %v3370, %v3383
  %v3385 = vpop.f32.mrf.mxu0
  %v3386 = vadd.f32 %v3372, %v3385
  %3387 = vdwg.mxu0
  %3388 = vmatpush.bf16.msra.mxu0 %v1988
  %3389 = vmatpush.bf16.msra.mxu0 %v1980
  %3390 = vmatpush.bf16.msra.mxu0 %v1972
  %3391 = vmatpush.bf16.msra.mxu0 %v1964
  %3392 = vmatpush.bf16.msra.mxu0 %v1956
  %3393 = vmatpush.bf16.msra.mxu0 %v1948
  %3394 = vmatpush.bf16.msra.mxu0 %v1940
  %3395 = vmatpush.bf16.msra.mxu0 %v1932
  %3396 = vmatmul.bf16.gmra.mxu0 %v3218
  %v3397 = vpop.f32.mrf.mxu0
  %v3398 = vadd.f32 0.0, %v3397
  %v3399 = vpop.f32.mrf.mxu0
  %v3400 = vadd.f32 0.0, %v3399
  %3401 = vdwg.mxu0
  %3402 = vmatpush.bf16.msra.mxu0 %v2052
  %3403 = vmatpush.bf16.msra.mxu0 %v2044
  %3404 = vmatpush.bf16.msra.mxu0 %v2036
  %3405 = vmatpush.bf16.msra.mxu0 %v2028
  %3406 = vmatpush.bf16.msra.mxu0 %v2020
  %3407 = vmatpush.bf16.msra.mxu0 %v2012
  %3408 = vmatpush.bf16.msra.mxu0 %v2004
  %3409 = vmatpush.bf16.msra.mxu0 %v1996
  %3410 = vmatmul.bf16.gmra.mxu0 %v3219
  %v3411 = vpop.f32.mrf.mxu0
  %v3412 = vadd.f32 %v3398, %v3411
  %v3413 = vpop.f32.mrf.mxu0
  %v3414 = vadd.f32 %v3400, %v3413
  %3415 = vdwg.mxu0
  %3416 = vmatpush.bf16.msra.mxu0 %v1989
  %3417 = vmatpush.bf16.msra.mxu0 %v1981
  %3418 = vmatpush.bf16.msra.mxu0 %v1973
  %3419 = vmatpush.bf16.msra.mxu0 %v1965
  %3420 = vmatpush.bf16.msra.mxu0 %v1957
  %3421 = vmatpush.bf16.msra.mxu0 %v1949
  %3422 = vmatpush.bf16.msra.mxu0 %v1941
  %3423 = vmatpush.bf16.msra.mxu0 %v1933
  %3424 = vmatmul.bf16.gmra.mxu0 %v3218
  %v3425 = vpop.f32.mrf.mxu0
  %v3426 = vadd.f32 0.0, %v3425
  %v3427 = vpop.f32.mrf.mxu0
  %v3428 = vadd.f32 0.0, %v3427
  %3429 = vdwg.mxu0
  %3430 = vmatpush.bf16.msra.mxu0 %v2053
  %3431 = vmatpush.bf16.msra.mxu0 %v2045
  %3432 = vmatpush.bf16.msra.mxu0 %v2037
  %3433 = vmatpush.bf16.msra.mxu0 %v2029
  %3434 = vmatpush.bf16.msra.mxu0 %v2021
  %3435 = vmatpush.bf16.msra.mxu0 %v2013
  %3436 = vmatpush.bf16.msra.mxu0 %v2005
  %3437 = vmatpush.bf16.msra.mxu0 %v1997
  %3438 = vmatmul.bf16.gmra.mxu0 %v3219
  %v3439 = vpop.f32.mrf.mxu0
  %v3440 = vadd.f32 %v3426, %v3439
  %v3441 = vpop.f32.mrf.mxu0
  %v3442 = vadd.f32 %v3428, %v3441
  %3443 = vdwg.mxu0
  %v3444 = vadd.f32 %v3202, %v3244
  %v3445 = vadd.f32 %v3203, %v3272
  %v3446 = vadd.f32 %v3204, %v3300
  %v3447 = vadd.f32 %v3205, %v3328
  %v3448 = vadd.f32 %v3206, %v3356
  %v3449 = vadd.f32 %v3207, %v3384
  %v3450 = vadd.f32 %v3208, %v3412
  %v3451 = vadd.f32 %v3209, %v3440
  %v3452 = vadd.f32 %v3210, %v3246
  %v3453 = vadd.f32 %v3211, %v3274
  %v3454 = vadd.f32 %v3212, %v3302
  %v3455 = vadd.f32 %v3213, %v3330
  %v3456 = vadd.f32 %v3214, %v3358
  %v3457 = vadd.f32 %v3215, %v3386
  %v3458 = vadd.f32 %v3216, %v3414
  %v3459 = vadd.f32 %v3217, %v3442
  %v3460 = vxor.u32 %v3444, 2147483648
  %v3461 = vxor.u32 %v3452, 2147483648
  %v3462 = vmul.f32 %v3460, 1.442695
  %v3463 = vpow.pop %v3462
  %v3464 = vmul.f32 %v3461, 1.442695
  %v3465 = vpow.pop %v3464
  %v3466 = vadd.f32 %v3463, 1.0
  %v3467 = vadd.f32 %v3465, 1.0
  %v3468 = vrcp.pop %v3466
  %v3469 = vmul.f32 %v3466, %v3468
  %v3470 = vsub.f32 1.0, %v3469
  %v3471 = vmul.f32 %v3468, %v3470
  %v3472 = vadd.f32 %v3468, %v3471
  %vm3473 = vweird.f32 %v3466
  %vm3474 = vweird.f32 %v3468
  %vm3475 = vmor %vm3473, %vm3474
  %v3476 = vsel %vm3475, %v3468, %v3472
  %v3477 = vand.u32 2147483647, %v3466
  %vm3478 = vcmp.eq.f32.partialorder %v3477, 8.507059e+37
  %v3479 = vand.u32 %v3466, 2147483648
  %v3480 = vor.u32 1.1754944e-38, %v3479
  %v3481 = vsel %vm3478, %v3480, %v3476
  %v3482 = vmul.f32 1.0, %v3481
  %v3483 = vrcp.pop %v3467
  %v3484 = vmul.f32 %v3467, %v3483
  %v3485 = vsub.f32 1.0, %v3484
  %v3486 = vmul.f32 %v3483, %v3485
  %v3487 = vadd.f32 %v3483, %v3486
  %vm3488 = vweird.f32 %v3467
  %vm3489 = vweird.f32 %v3483
  %vm3490 = vmor %vm3488, %vm3489
  %v3491 = vsel %vm3490, %v3483, %v3487
  %v3492 = vand.u32 2147483647, %v3467
  %vm3493 = vcmp.eq.f32.partialorder %v3492, 8.507059e+37
  %v3494 = vand.u32 %v3467, 2147483648
  %v3495 = vor.u32 1.1754944e-38, %v3494
  %v3496 = vsel %vm3493, %v3495, %v3491
  %v3497 = vmul.f32 1.0, %v3496
  %v3498 = vxor.u32 %v3445, 2147483648
  %v3499 = vxor.u32 %v3453, 2147483648
  %v3500 = vmul.f32 %v3498, 1.442695
  %v3501 = vpow.pop %v3500
  %v3502 = vmul.f32 %v3499, 1.442695
  %v3503 = vpow.pop %v3502
  %v3504 = vadd.f32 %v3501, 1.0
  %v3505 = vadd.f32 %v3503, 1.0
  %v3506 = vrcp.pop %v3504
  %v3507 = vmul.f32 %v3504, %v3506
  %v3508 = vsub.f32 1.0, %v3507
  %v3509 = vmul.f32 %v3506, %v3508
  %v3510 = vadd.f32 %v3506, %v3509
  %vm3511 = vweird.f32 %v3504
  %vm3512 = vweird.f32 %v3506
  %vm3513 = vmor %vm3511, %vm3512
  %v3514 = vsel %vm3513, %v3506, %v3510
  %v3515 = vand.u32 2147483647, %v3504
  %vm3516 = vcmp.eq.f32.partialorder %v3515, 8.507059e+37
  %v3517 = vand.u32 %v3504, 2147483648
  %v3518 = vor.u32 1.1754944e-38, %v3517
  %v3519 = vsel %vm3516, %v3518, %v3514
  %v3520 = vmul.f32 1.0, %v3519
  %v3521 = vrcp.pop %v3505
  %v3522 = vmul.f32 %v3505, %v3521
  %v3523 = vsub.f32 1.0, %v3522
  %v3524 = vmul.f32 %v3521, %v3523
  %v3525 = vadd.f32 %v3521, %v3524
  %vm3526 = vweird.f32 %v3505
  %vm3527 = vweird.f32 %v3521
  %vm3528 = vmor %vm3526, %vm3527
  %v3529 = vsel %vm3528, %v3521, %v3525
  %v3530 = vand.u32 2147483647, %v3505
  %vm3531 = vcmp.eq.f32.partialorder %v3530, 8.507059e+37
  %v3532 = vand.u32 %v3505, 2147483648
  %v3533 = vor.u32 1.1754944e-38, %v3532
  %v3534 = vsel %vm3531, %v3533, %v3529
  %v3535 = vmul.f32 1.0, %v3534
  %v3536 = vtanh.pop %v3446
  %v3537 = vtanh.pop %v3454
  %v3538 = vxor.u32 %v3447, 2147483648
  %v3539 = vxor.u32 %v3455, 2147483648
  %v3540 = vmul.f32 %v3538, 1.442695
  %v3541 = vpow.pop %v3540
  %v3542 = vmul.f32 %v3539, 1.442695
  %v3543 = vpow.pop %v3542
  %v3544 = vadd.f32 %v3541, 1.0
  %v3545 = vadd.f32 %v3543, 1.0
  %v3546 = vrcp.pop %v3544
  %v3547 = vmul.f32 %v3544, %v3546
  %v3548 = vsub.f32 1.0, %v3547
  %v3549 = vmul.f32 %v3546, %v3548
  %v3550 = vadd.f32 %v3546, %v3549
  %vm3551 = vweird.f32 %v3544
  %vm3552 = vweird.f32 %v3546
  %vm3553 = vmor %vm3551, %vm3552
  %v3554 = vsel %vm3553, %v3546, %v3550
  %v3555 = vand.u32 2147483647, %v3544
  %vm3556 = vcmp.eq.f32.partialorder %v3555, 8.507059e+37
  %v3557 = vand.u32 %v3544, 2147483648
  %v3558 = vor.u32 1.1754944e-38, %v3557
  %v3559 = vsel %vm3556, %v3558, %v3554
  %v3560 = vmul.f32 1.0, %v3559
  %v3561 = vrcp.pop %v3545
  %v3562 = vmul.f32 %v3545, %v3561
  %v3563 = vsub.f32 1.0, %v3562
  %v3564 = vmul.f32 %v3561, %v3563
  %v3565 = vadd.f32 %v3561, %v3564
  %vm3566 = vweird.f32 %v3545
  %vm3567 = vweird.f32 %v3561
  %vm3568 = vmor %vm3566, %vm3567
  %v3569 = vsel %vm3568, %v3561, %v3565
  %v3570 = vand.u32 2147483647, %v3545
  %vm3571 = vcmp.eq.f32.partialorder %v3570, 8.507059e+37
  %v3572 = vand.u32 %v3545, 2147483648
  %v3573 = vor.u32 1.1754944e-38, %v3572
  %v3574 = vsel %vm3571, %v3573, %v3569
  %v3575 = vmul.f32 1.0, %v3574
  %v3576 = vmul.f32 %v3520, %v3061
  %v3577 = vmul.f32 %v3535, %v3062
  %v3578 = vmul.f32 %v3482, %v3536
  %v3579 = vmul.f32 %v3497, %v3537
  %v3580 = vadd.f32 %v3576, %v3578
  %v3581 = vadd.f32 %v3577, %v3579
  %v3582 = vtanh.pop %v3580
  %v3583 = vtanh.pop %v3581
  %v3584 = vmul.f32 %v3560, %v3582
  %v3585 = vmul.f32 %v3575, %v3583
  %v3586 = vxor.u32 %v3448, 2147483648
  %v3587 = vxor.u32 %v3456, 2147483648
  %v3588 = vmul.f32 %v3586, 1.442695
  %v3589 = vpow.pop %v3588
  %v3590 = vmul.f32 %v3587, 1.442695
  %v3591 = vpow.pop %v3590
  %v3592 = vadd.f32 %v3589, 1.0
  %v3593 = vadd.f32 %v3591, 1.0
  %v3594 = vrcp.pop %v3592
  %v3595 = vmul.f32 %v3592, %v3594
  %v3596 = vsub.f32 1.0, %v3595
  %v3597 = vmul.f32 %v3594, %v3596
  %v3598 = vadd.f32 %v3594, %v3597
  %vm3599 = vweird.f32 %v3592
  %vm3600 = vweird.f32 %v3594
  %vm3601 = vmor %vm3599, %vm3600
  %v3602 = vsel %vm3601, %v3594, %v3598
  %v3603 = vand.u32 2147483647, %v3592
  %vm3604 = vcmp.eq.f32.partialorder %v3603, 8.507059e+37
  %v3605 = vand.u32 %v3592, 2147483648
  %v3606 = vor.u32 1.1754944e-38, %v3605
  %v3607 = vsel %vm3604, %v3606, %v3602
  %v3608 = vmul.f32 1.0, %v3607
  %v3609 = vrcp.pop %v3593
  %v3610 = vmul.f32 %v3593, %v3609
  %v3611 = vsub.f32 1.0, %v3610
  %v3612 = vmul.f32 %v3609, %v3611
  %v3613 = vadd.f32 %v3609, %v3612
  %vm3614 = vweird.f32 %v3593
  %vm3615 = vweird.f32 %v3609
  %vm3616 = vmor %vm3614, %vm3615
  %v3617 = vsel %vm3616, %v3609, %v3613
  %v3618 = vand.u32 2147483647, %v3593
  %vm3619 = vcmp.eq.f32.partialorder %v3618, 8.507059e+37
  %v3620 = vand.u32 %v3593, 2147483648
  %v3621 = vor.u32 1.1754944e-38, %v3620
  %v3622 = vsel %vm3619, %v3621, %v3617
  %v3623 = vmul.f32 1.0, %v3622
  %v3624 = vxor.u32 %v3449, 2147483648
  %v3625 = vxor.u32 %v3457, 2147483648
  %v3626 = vmul.f32 %v3624, 1.442695
  %v3627 = vpow.pop %v3626
  %v3628 = vmul.f32 %v3625, 1.442695
  %v3629 = vpow.pop %v3628
  %v3630 = vadd.f32 %v3627, 1.0
  %v3631 = vadd.f32 %v3629, 1.0
  %v3632 = vrcp.pop %v3630
  %v3633 = vmul.f32 %v3630, %v3632
  %v3634 = vsub.f32 1.0, %v3633
  %v3635 = vmul.f32 %v3632, %v3634
  %v3636 = vadd.f32 %v3632, %v3635
  %vm3637 = vweird.f32 %v3630
  %vm3638 = vweird.f32 %v3632
  %vm3639 = vmor %vm3637, %vm3638
  %v3640 = vsel %vm3639, %v3632, %v3636
  %v3641 = vand.u32 2147483647, %v3630
  %vm3642 = vcmp.eq.f32.partialorder %v3641, 8.507059e+37
  %v3643 = vand.u32 %v3630, 2147483648
  %v3644 = vor.u32 1.1754944e-38, %v3643
  %v3645 = vsel %vm3642, %v3644, %v3640
  %v3646 = vmul.f32 1.0, %v3645
  %v3647 = vrcp.pop %v3631
  %v3648 = vmul.f32 %v3631, %v3647
  %v3649 = vsub.f32 1.0, %v3648
  %v3650 = vmul.f32 %v3647, %v3649
  %v3651 = vadd.f32 %v3647, %v3650
  %vm3652 = vweird.f32 %v3631
  %vm3653 = vweird.f32 %v3647
  %vm3654 = vmor %vm3652, %vm3653
  %v3655 = vsel %vm3654, %v3647, %v3651
  %v3656 = vand.u32 2147483647, %v3631
  %vm3657 = vcmp.eq.f32.partialorder %v3656, 8.507059e+37
  %v3658 = vand.u32 %v3631, 2147483648
  %v3659 = vor.u32 1.1754944e-38, %v3658
  %v3660 = vsel %vm3657, %v3659, %v3655
  %v3661 = vmul.f32 1.0, %v3660
  %v3662 = vtanh.pop %v3450
  %v3663 = vtanh.pop %v3458
  %v3664 = vxor.u32 %v3451, 2147483648
  %v3665 = vxor.u32 %v3459, 2147483648
  %v3666 = vmul.f32 %v3664, 1.442695
  %v3667 = vpow.pop %v3666
  %v3668 = vmul.f32 %v3665, 1.442695
  %v3669 = vpow.pop %v3668
  %v3670 = vadd.f32 %v3667, 1.0
  %v3671 = vadd.f32 %v3669, 1.0
  %v3672 = vrcp.pop %v3670
  %v3673 = vmul.f32 %v3670, %v3672
  %v3674 = vsub.f32 1.0, %v3673
  %v3675 = vmul.f32 %v3672, %v3674
  %v3676 = vadd.f32 %v3672, %v3675
  %vm3677 = vweird.f32 %v3670
  %vm3678 = vweird.f32 %v3672
  %vm3679 = vmor %vm3677, %vm3678
  %v3680 = vsel %vm3679, %v3672, %v3676
  %v3681 = vand.u32 2147483647, %v3670
  %vm3682 = vcmp.eq.f32.partialorder %v3681, 8.507059e+37
  %v3683 = vand.u32 %v3670, 2147483648
  %v3684 = vor.u32 1.1754944e-38, %v3683
  %v3685 = vsel %vm3682, %v3684, %v3680
  %v3686 = vmul.f32 1.0, %v3685
  %v3687 = vrcp.pop %v3671
  %v3688 = vmul.f32 %v3671, %v3687
  %v3689 = vsub.f32 1.0, %v3688
  %v3690 = vmul.f32 %v3687, %v3689
  %v3691 = vadd.f32 %v3687, %v3690
  %vm3692 = vweird.f32 %v3671
  %vm3693 = vweird.f32 %v3687
  %vm3694 = vmor %vm3692, %vm3693
  %v3695 = vsel %vm3694, %v3687, %v3691
  %v3696 = vand.u32 2147483647, %v3671
  %vm3697 = vcmp.eq.f32.partialorder %v3696, 8.507059e+37
  %v3698 = vand.u32 %v3671, 2147483648
  %v3699 = vor.u32 1.1754944e-38, %v3698
  %v3700 = vsel %vm3697, %v3699, %v3695
  %v3701 = vmul.f32 1.0, %v3700
  %v3702 = vmul.f32 %v3646, %v3187
  %v3703 = vmul.f32 %v3661, %v3188
  %v3704 = vmul.f32 %v3608, %v3662
  %v3705 = vmul.f32 %v3623, %v3663
  %v3706 = vadd.f32 %v3702, %v3704
  %v3707 = vadd.f32 %v3703, %v3705
  %v3708 = vtanh.pop %v3706
  %v3709 = vtanh.pop %v3707
  %v3710 = vmul.f32 %v3686, %v3708
  %v3711 = vmul.f32 %v3701, %v3709
  %s3712 = scalar_lea.vmem [#allocation2], 192
  %v3713 = vld [vmem:[%s3712] sm:$0xff]
  %v3714 = vld [vmem:[%s3712 + $0x8] sm:$0xff]
  %v3715 = vld [vmem:[%s3712 + $0x10] sm:$0xff]
  %v3716 = vld [vmem:[%s3712 + $0x18] sm:$0xff]
  %v3717 = vld [vmem:[%s3712 + $0x20] sm:$0xff]
  %v3718 = vld [vmem:[%s3712 + $0x28] sm:$0xff]
  %v3719 = vld [vmem:[%s3712 + $0x30] sm:$0xff]
  %v3720 = vld [vmem:[%s3712 + $0x38] sm:$0xff]
  %v3721 = vunpack.c.l.bf16 %v3713
  %v3722 = vunpack.c.h.bf16 %v3713
  %v3723 = vunpack.c.l.bf16 %v3714
  %v3724 = vunpack.c.h.bf16 %v3714
  %v3725 = vunpack.c.l.bf16 %v3715
  %v3726 = vunpack.c.h.bf16 %v3715
  %v3727 = vunpack.c.l.bf16 %v3716
  %v3728 = vunpack.c.h.bf16 %v3716
  %v3729 = vunpack.c.l.bf16 %v3717
  %v3730 = vunpack.c.h.bf16 %v3717
  %v3731 = vunpack.c.l.bf16 %v3718
  %v3732 = vunpack.c.h.bf16 %v3718
  %v3733 = vunpack.c.l.bf16 %v3719
  %v3734 = vunpack.c.h.bf16 %v3719
  %v3735 = vunpack.c.l.bf16 %v3720
  %v3736 = vunpack.c.h.bf16 %v3720
  %v3737 = vpack.c.bf16 %v3585, %v3584
  %v3738 = vpack.c.bf16 %v3711, %v3710
  %3739 = vmatpush.bf16.msra.mxu0 %v1982
  %3740 = vmatpush.bf16.msra.mxu0 %v1974
  %3741 = vmatpush.bf16.msra.mxu0 %v1966
  %3742 = vmatpush.bf16.msra.mxu0 %v1958
  %3743 = vmatpush.bf16.msra.mxu0 %v1950
  %3744 = vmatpush.bf16.msra.mxu0 %v1942
  %3745 = vmatpush.bf16.msra.mxu0 %v1934
  %3746 = vmatpush.bf16.msra.mxu0 %v1926
  %3747 = vmatmul.bf16.gmra.mxu0 %v3737
  %v3748 = vpop.f32.mrf.mxu0
  %v3749 = vadd.f32 0.0, %v3748
  %v3750 = vpop.f32.mrf.mxu0
  %v3751 = vadd.f32 0.0, %v3750
  %3752 = vdwg.mxu0
  %3753 = vmatpush.bf16.msra.mxu0 %v2046
  %3754 = vmatpush.bf16.msra.mxu0 %v2038
  %3755 = vmatpush.bf16.msra.mxu0 %v2030
  %3756 = vmatpush.bf16.msra.mxu0 %v2022
  %3757 = vmatpush.bf16.msra.mxu0 %v2014
  %3758 = vmatpush.bf16.msra.mxu0 %v2006
  %3759 = vmatpush.bf16.msra.mxu0 %v1998
  %3760 = vmatpush.bf16.msra.mxu0 %v1990
  %3761 = vmatmul.bf16.gmra.mxu0 %v3738
  %v3762 = vpop.f32.mrf.mxu0
  %v3763 = vadd.f32 %v3749, %v3762
  %v3764 = vpop.f32.mrf.mxu0
  %v3765 = vadd.f32 %v3751, %v3764
  %3766 = vdwg.mxu0
  %3767 = vmatpush.bf16.msra.mxu0 %v1983
  %3768 = vmatpush.bf16.msra.mxu0 %v1975
  %3769 = vmatpush.bf16.msra.mxu0 %v1967
  %3770 = vmatpush.bf16.msra.mxu0 %v1959
  %3771 = vmatpush.bf16.msra.mxu0 %v1951
  %3772 = vmatpush.bf16.msra.mxu0 %v1943
  %3773 = vmatpush.bf16.msra.mxu0 %v1935
  %3774 = vmatpush.bf16.msra.mxu0 %v1927
  %3775 = vmatmul.bf16.gmra.mxu0 %v3737
  %v3776 = vpop.f32.mrf.mxu0
  %v3777 = vadd.f32 0.0, %v3776
  %v3778 = vpop.f32.mrf.mxu0
  %v3779 = vadd.f32 0.0, %v3778
  %3780 = vdwg.mxu0
  %3781 = vmatpush.bf16.msra.mxu0 %v2047
  %3782 = vmatpush.bf16.msra.mxu0 %v2039
  %3783 = vmatpush.bf16.msra.mxu0 %v2031
  %3784 = vmatpush.bf16.msra.mxu0 %v2023
  %3785 = vmatpush.bf16.msra.mxu0 %v2015
  %3786 = vmatpush.bf16.msra.mxu0 %v2007
  %3787 = vmatpush.bf16.msra.mxu0 %v1999
  %3788 = vmatpush.bf16.msra.mxu0 %v1991
  %3789 = vmatmul.bf16.gmra.mxu0 %v3738
  %v3790 = vpop.f32.mrf.mxu0
  %v3791 = vadd.f32 %v3777, %v3790
  %v3792 = vpop.f32.mrf.mxu0
  %v3793 = vadd.f32 %v3779, %v3792
  %3794 = vdwg.mxu0
  %3795 = vmatpush.bf16.msra.mxu0 %v1984
  %3796 = vmatpush.bf16.msra.mxu0 %v1976
  %3797 = vmatpush.bf16.msra.mxu0 %v1968
  %3798 = vmatpush.bf16.msra.mxu0 %v1960
  %3799 = vmatpush.bf16.msra.mxu0 %v1952
  %3800 = vmatpush.bf16.msra.mxu0 %v1944
  %3801 = vmatpush.bf16.msra.mxu0 %v1936
  %3802 = vmatpush.bf16.msra.mxu0 %v1928
  %3803 = vmatmul.bf16.gmra.mxu0 %v3737
  %v3804 = vpop.f32.mrf.mxu0
  %v3805 = vadd.f32 0.0, %v3804
  %v3806 = vpop.f32.mrf.mxu0
  %v3807 = vadd.f32 0.0, %v3806
  %3808 = vdwg.mxu0
  %3809 = vmatpush.bf16.msra.mxu0 %v2048
  %3810 = vmatpush.bf16.msra.mxu0 %v2040
  %3811 = vmatpush.bf16.msra.mxu0 %v2032
  %3812 = vmatpush.bf16.msra.mxu0 %v2024
  %3813 = vmatpush.bf16.msra.mxu0 %v2016
  %3814 = vmatpush.bf16.msra.mxu0 %v2008
  %3815 = vmatpush.bf16.msra.mxu0 %v2000
  %3816 = vmatpush.bf16.msra.mxu0 %v1992
  %3817 = vmatmul.bf16.gmra.mxu0 %v3738
  %v3818 = vpop.f32.mrf.mxu0
  %v3819 = vadd.f32 %v3805, %v3818
  %v3820 = vpop.f32.mrf.mxu0
  %v3821 = vadd.f32 %v3807, %v3820
  %3822 = vdwg.mxu0
  %3823 = vmatpush.bf16.msra.mxu0 %v1985
  %3824 = vmatpush.bf16.msra.mxu0 %v1977
  %3825 = vmatpush.bf16.msra.mxu0 %v1969
  %3826 = vmatpush.bf16.msra.mxu0 %v1961
  %3827 = vmatpush.bf16.msra.mxu0 %v1953
  %3828 = vmatpush.bf16.msra.mxu0 %v1945
  %3829 = vmatpush.bf16.msra.mxu0 %v1937
  %3830 = vmatpush.bf16.msra.mxu0 %v1929
  %3831 = vmatmul.bf16.gmra.mxu0 %v3737
  %v3832 = vpop.f32.mrf.mxu0
  %v3833 = vadd.f32 0.0, %v3832
  %v3834 = vpop.f32.mrf.mxu0
  %v3835 = vadd.f32 0.0, %v3834
  %3836 = vdwg.mxu0
  %3837 = vmatpush.bf16.msra.mxu0 %v2049
  %3838 = vmatpush.bf16.msra.mxu0 %v2041
  %3839 = vmatpush.bf16.msra.mxu0 %v2033
  %3840 = vmatpush.bf16.msra.mxu0 %v2025
  %3841 = vmatpush.bf16.msra.mxu0 %v2017
  %3842 = vmatpush.bf16.msra.mxu0 %v2009
  %3843 = vmatpush.bf16.msra.mxu0 %v2001
  %3844 = vmatpush.bf16.msra.mxu0 %v1993
  %3845 = vmatmul.bf16.gmra.mxu0 %v3738
  %v3846 = vpop.f32.mrf.mxu0
  %v3847 = vadd.f32 %v3833, %v3846
  %v3848 = vpop.f32.mrf.mxu0
  %v3849 = vadd.f32 %v3835, %v3848
  %3850 = vdwg.mxu0
  %3851 = vmatpush.bf16.msra.mxu0 %v1986
  %3852 = vmatpush.bf16.msra.mxu0 %v1978
  %3853 = vmatpush.bf16.msra.mxu0 %v1970
  %3854 = vmatpush.bf16.msra.mxu0 %v1962
  %3855 = vmatpush.bf16.msra.mxu0 %v1954
  %3856 = vmatpush.bf16.msra.mxu0 %v1946
  %3857 = vmatpush.bf16.msra.mxu0 %v1938
  %3858 = vmatpush.bf16.msra.mxu0 %v1930
  %3859 = vmatmul.bf16.gmra.mxu0 %v3737
  %v3860 = vpop.f32.mrf.mxu0
  %v3861 = vadd.f32 0.0, %v3860
  %v3862 = vpop.f32.mrf.mxu0
  %v3863 = vadd.f32 0.0, %v3862
  %3864 = vdwg.mxu0
  %3865 = vmatpush.bf16.msra.mxu0 %v2050
  %3866 = vmatpush.bf16.msra.mxu0 %v2042
  %3867 = vmatpush.bf16.msra.mxu0 %v2034
  %3868 = vmatpush.bf16.msra.mxu0 %v2026
  %3869 = vmatpush.bf16.msra.mxu0 %v2018
  %3870 = vmatpush.bf16.msra.mxu0 %v2010
  %3871 = vmatpush.bf16.msra.mxu0 %v2002
  %3872 = vmatpush.bf16.msra.mxu0 %v1994
  %3873 = vmatmul.bf16.gmra.mxu0 %v3738
  %v3874 = vpop.f32.mrf.mxu0
  %v3875 = vadd.f32 %v3861, %v3874
  %v3876 = vpop.f32.mrf.mxu0
  %v3877 = vadd.f32 %v3863, %v3876
  %3878 = vdwg.mxu0
  %3879 = vmatpush.bf16.msra.mxu0 %v1987
  %3880 = vmatpush.bf16.msra.mxu0 %v1979
  %3881 = vmatpush.bf16.msra.mxu0 %v1971
  %3882 = vmatpush.bf16.msra.mxu0 %v1963
  %3883 = vmatpush.bf16.msra.mxu0 %v1955
  %3884 = vmatpush.bf16.msra.mxu0 %v1947
  %3885 = vmatpush.bf16.msra.mxu0 %v1939
  %3886 = vmatpush.bf16.msra.mxu0 %v1931
  %3887 = vmatmul.bf16.gmra.mxu0 %v3737
  %v3888 = vpop.f32.mrf.mxu0
  %v3889 = vadd.f32 0.0, %v3888
  %v3890 = vpop.f32.mrf.mxu0
  %v3891 = vadd.f32 0.0, %v3890
  %3892 = vdwg.mxu0
  %3893 = vmatpush.bf16.msra.mxu0 %v2051
  %3894 = vmatpush.bf16.msra.mxu0 %v2043
  %3895 = vmatpush.bf16.msra.mxu0 %v2035
  %3896 = vmatpush.bf16.msra.mxu0 %v2027
  %3897 = vmatpush.bf16.msra.mxu0 %v2019
  %3898 = vmatpush.bf16.msra.mxu0 %v2011
  %3899 = vmatpush.bf16.msra.mxu0 %v2003
  %3900 = vmatpush.bf16.msra.mxu0 %v1995
  %3901 = vmatmul.bf16.gmra.mxu0 %v3738
  %v3902 = vpop.f32.mrf.mxu0
  %v3903 = vadd.f32 %v3889, %v3902
  %v3904 = vpop.f32.mrf.mxu0
  %v3905 = vadd.f32 %v3891, %v3904
  %3906 = vdwg.mxu0
  %3907 = vmatpush.bf16.msra.mxu0 %v1988
  %3908 = vmatpush.bf16.msra.mxu0 %v1980
  %3909 = vmatpush.bf16.msra.mxu0 %v1972
  %3910 = vmatpush.bf16.msra.mxu0 %v1964
  %3911 = vmatpush.bf16.msra.mxu0 %v1956
  %3912 = vmatpush.bf16.msra.mxu0 %v1948
  %3913 = vmatpush.bf16.msra.mxu0 %v1940
  %3914 = vmatpush.bf16.msra.mxu0 %v1932
  %3915 = vmatmul.bf16.gmra.mxu0 %v3737
  %v3916 = vpop.f32.mrf.mxu0
  %v3917 = vadd.f32 0.0, %v3916
  %v3918 = vpop.f32.mrf.mxu0
  %v3919 = vadd.f32 0.0, %v3918
  %3920 = vdwg.mxu0
  %3921 = vmatpush.bf16.msra.mxu0 %v2052
  %3922 = vmatpush.bf16.msra.mxu0 %v2044
  %3923 = vmatpush.bf16.msra.mxu0 %v2036
  %3924 = vmatpush.bf16.msra.mxu0 %v2028
  %3925 = vmatpush.bf16.msra.mxu0 %v2020
  %3926 = vmatpush.bf16.msra.mxu0 %v2012
  %3927 = vmatpush.bf16.msra.mxu0 %v2004
  %3928 = vmatpush.bf16.msra.mxu0 %v1996
  %3929 = vmatmul.bf16.gmra.mxu0 %v3738
  %v3930 = vpop.f32.mrf.mxu0
  %v3931 = vadd.f32 %v3917, %v3930
  %v3932 = vpop.f32.mrf.mxu0
  %v3933 = vadd.f32 %v3919, %v3932
  %3934 = vdwg.mxu0
  %3935 = vmatpush.bf16.msra.mxu0 %v1989
  %3936 = vmatpush.bf16.msra.mxu0 %v1981
  %3937 = vmatpush.bf16.msra.mxu0 %v1973
  %3938 = vmatpush.bf16.msra.mxu0 %v1965
  %3939 = vmatpush.bf16.msra.mxu0 %v1957
  %3940 = vmatpush.bf16.msra.mxu0 %v1949
  %3941 = vmatpush.bf16.msra.mxu0 %v1941
  %3942 = vmatpush.bf16.msra.mxu0 %v1933
  %3943 = vmatmul.bf16.gmra.mxu0 %v3737
  %v3944 = vpop.f32.mrf.mxu0
  %v3945 = vadd.f32 0.0, %v3944
  %v3946 = vpop.f32.mrf.mxu0
  %v3947 = vadd.f32 0.0, %v3946
  %3948 = vdwg.mxu0
  %3949 = vmatpush.bf16.msra.mxu0 %v2053
  %3950 = vmatpush.bf16.msra.mxu0 %v2045
  %3951 = vmatpush.bf16.msra.mxu0 %v2037
  %3952 = vmatpush.bf16.msra.mxu0 %v2029
  %3953 = vmatpush.bf16.msra.mxu0 %v2021
  %3954 = vmatpush.bf16.msra.mxu0 %v2013
  %3955 = vmatpush.bf16.msra.mxu0 %v2005
  %3956 = vmatpush.bf16.msra.mxu0 %v1997
  %3957 = vmatmul.bf16.gmra.mxu0 %v3738
  %v3958 = vpop.f32.mrf.mxu0
  %v3959 = vadd.f32 %v3945, %v3958
  %v3960 = vpop.f32.mrf.mxu0
  %v3961 = vadd.f32 %v3947, %v3960
  %3962 = vdwg.mxu0
  %v3963 = vadd.f32 %v3721, %v3763
  %v3964 = vadd.f32 %v3722, %v3791
  %v3965 = vadd.f32 %v3723, %v3819
  %v3966 = vadd.f32 %v3724, %v3847
  %v3967 = vadd.f32 %v3725, %v3875
  %v3968 = vadd.f32 %v3726, %v3903
  %v3969 = vadd.f32 %v3727, %v3931
  %v3970 = vadd.f32 %v3728, %v3959
  %v3971 = vadd.f32 %v3729, %v3765
  %v3972 = vadd.f32 %v3730, %v3793
  %v3973 = vadd.f32 %v3731, %v3821
  %v3974 = vadd.f32 %v3732, %v3849
  %v3975 = vadd.f32 %v3733, %v3877
  %v3976 = vadd.f32 %v3734, %v3905
  %v3977 = vadd.f32 %v3735, %v3933
  %v3978 = vadd.f32 %v3736, %v3961
  %v3979 = vxor.u32 %v3963, 2147483648
  %v3980 = vxor.u32 %v3971, 2147483648
  %v3981 = vmul.f32 %v3979, 1.442695
  %v3982 = vpow.pop %v3981
  %v3983 = vmul.f32 %v3980, 1.442695
  %v3984 = vpow.pop %v3983
  %v3985 = vadd.f32 %v3982, 1.0
  %v3986 = vadd.f32 %v3984, 1.0
  %v3987 = vrcp.pop %v3985
  %v3988 = vmul.f32 %v3985, %v3987
  %v3989 = vsub.f32 1.0, %v3988
  %v3990 = vmul.f32 %v3987, %v3989
  %v3991 = vadd.f32 %v3987, %v3990
  %vm3992 = vweird.f32 %v3985
  %vm3993 = vweird.f32 %v3987
  %vm3994 = vmor %vm3992, %vm3993
  %v3995 = vsel %vm3994, %v3987, %v3991
  %v3996 = vand.u32 2147483647, %v3985
  %vm3997 = vcmp.eq.f32.partialorder %v3996, 8.507059e+37
  %v3998 = vand.u32 %v3985, 2147483648
  %v3999 = vor.u32 1.1754944e-38, %v3998
  %v4000 = vsel %vm3997, %v3999, %v3995
  %v4001 = vmul.f32 1.0, %v4000
  %v4002 = vrcp.pop %v3986
  %v4003 = vmul.f32 %v3986, %v4002
  %v4004 = vsub.f32 1.0, %v4003
  %v4005 = vmul.f32 %v4002, %v4004
  %v4006 = vadd.f32 %v4002, %v4005
  %vm4007 = vweird.f32 %v3986
  %vm4008 = vweird.f32 %v4002
  %vm4009 = vmor %vm4007, %vm4008
  %v4010 = vsel %vm4009, %v4002, %v4006
  %v4011 = vand.u32 2147483647, %v3986
  %vm4012 = vcmp.eq.f32.partialorder %v4011, 8.507059e+37
  %v4013 = vand.u32 %v3986, 2147483648
  %v4014 = vor.u32 1.1754944e-38, %v4013
  %v4015 = vsel %vm4012, %v4014, %v4010
  %v4016 = vmul.f32 1.0, %v4015
  %v4017 = vxor.u32 %v3964, 2147483648
  %v4018 = vxor.u32 %v3972, 2147483648
  %v4019 = vmul.f32 %v4017, 1.442695
  %v4020 = vpow.pop %v4019
  %v4021 = vmul.f32 %v4018, 1.442695
  %v4022 = vpow.pop %v4021
  %v4023 = vadd.f32 %v4020, 1.0
  %v4024 = vadd.f32 %v4022, 1.0
  %v4025 = vrcp.pop %v4023
  %v4026 = vmul.f32 %v4023, %v4025
  %v4027 = vsub.f32 1.0, %v4026
  %v4028 = vmul.f32 %v4025, %v4027
  %v4029 = vadd.f32 %v4025, %v4028
  %vm4030 = vweird.f32 %v4023
  %vm4031 = vweird.f32 %v4025
  %vm4032 = vmor %vm4030, %vm4031
  %v4033 = vsel %vm4032, %v4025, %v4029
  %v4034 = vand.u32 2147483647, %v4023
  %vm4035 = vcmp.eq.f32.partialorder %v4034, 8.507059e+37
  %v4036 = vand.u32 %v4023, 2147483648
  %v4037 = vor.u32 1.1754944e-38, %v4036
  %v4038 = vsel %vm4035, %v4037, %v4033
  %v4039 = vmul.f32 1.0, %v4038
  %v4040 = vrcp.pop %v4024
  %v4041 = vmul.f32 %v4024, %v4040
  %v4042 = vsub.f32 1.0, %v4041
  %v4043 = vmul.f32 %v4040, %v4042
  %v4044 = vadd.f32 %v4040, %v4043
  %vm4045 = vweird.f32 %v4024
  %vm4046 = vweird.f32 %v4040
  %vm4047 = vmor %vm4045, %vm4046
  %v4048 = vsel %vm4047, %v4040, %v4044
  %v4049 = vand.u32 2147483647, %v4024
  %vm4050 = vcmp.eq.f32.partialorder %v4049, 8.507059e+37
  %v4051 = vand.u32 %v4024, 2147483648
  %v4052 = vor.u32 1.1754944e-38, %v4051
  %v4053 = vsel %vm4050, %v4052, %v4048
  %v4054 = vmul.f32 1.0, %v4053
  %v4055 = vtanh.pop %v3965
  %v4056 = vtanh.pop %v3973
  %v4057 = vxor.u32 %v3966, 2147483648
  %v4058 = vxor.u32 %v3974, 2147483648
  %v4059 = vmul.f32 %v4057, 1.442695
  %v4060 = vpow.pop %v4059
  %v4061 = vmul.f32 %v4058, 1.442695
  %v4062 = vpow.pop %v4061
  %v4063 = vadd.f32 %v4060, 1.0
  %v4064 = vadd.f32 %v4062, 1.0
  %v4065 = vrcp.pop %v4063
  %v4066 = vmul.f32 %v4063, %v4065
  %v4067 = vsub.f32 1.0, %v4066
  %v4068 = vmul.f32 %v4065, %v4067
  %v4069 = vadd.f32 %v4065, %v4068
  %vm4070 = vweird.f32 %v4063
  %vm4071 = vweird.f32 %v4065
  %vm4072 = vmor %vm4070, %vm4071
  %v4073 = vsel %vm4072, %v4065, %v4069
  %v4074 = vand.u32 2147483647, %v4063
  %vm4075 = vcmp.eq.f32.partialorder %v4074, 8.507059e+37
  %v4076 = vand.u32 %v4063, 2147483648
  %v4077 = vor.u32 1.1754944e-38, %v4076
  %v4078 = vsel %vm4075, %v4077, %v4073
  %v4079 = vmul.f32 1.0, %v4078
  %v4080 = vrcp.pop %v4064
  %v4081 = vmul.f32 %v4064, %v4080
  %v4082 = vsub.f32 1.0, %v4081
  %v4083 = vmul.f32 %v4080, %v4082
  %v4084 = vadd.f32 %v4080, %v4083
  %vm4085 = vweird.f32 %v4064
  %vm4086 = vweird.f32 %v4080
  %vm4087 = vmor %vm4085, %vm4086
  %v4088 = vsel %vm4087, %v4080, %v4084
  %v4089 = vand.u32 2147483647, %v4064
  %vm4090 = vcmp.eq.f32.partialorder %v4089, 8.507059e+37
  %v4091 = vand.u32 %v4064, 2147483648
  %v4092 = vor.u32 1.1754944e-38, %v4091
  %v4093 = vsel %vm4090, %v4092, %v4088
  %v4094 = vmul.f32 1.0, %v4093
  %v4095 = vmul.f32 %v4039, %v3580
  %v4096 = vmul.f32 %v4054, %v3581
  %v4097 = vmul.f32 %v4001, %v4055
  %v4098 = vmul.f32 %v4016, %v4056
  %v4099 = vadd.f32 %v4095, %v4097
  %v4100 = vadd.f32 %v4096, %v4098
  %v4101 = vtanh.pop %v4099
  %v4102 = vtanh.pop %v4100
  %v4103 = vmul.f32 %v4079, %v4101
  %v4104 = vmul.f32 %v4094, %v4102
  %v4105 = vxor.u32 %v3967, 2147483648
  %v4106 = vxor.u32 %v3975, 2147483648
  %v4107 = vmul.f32 %v4105, 1.442695
  %v4108 = vpow.pop %v4107
  %v4109 = vmul.f32 %v4106, 1.442695
  %v4110 = vpow.pop %v4109
  %v4111 = vadd.f32 %v4108, 1.0
  %v4112 = vadd.f32 %v4110, 1.0
  %v4113 = vrcp.pop %v4111
  %v4114 = vmul.f32 %v4111, %v4113
  %v4115 = vsub.f32 1.0, %v4114
  %v4116 = vmul.f32 %v4113, %v4115
  %v4117 = vadd.f32 %v4113, %v4116
  %vm4118 = vweird.f32 %v4111
  %vm4119 = vweird.f32 %v4113
  %vm4120 = vmor %vm4118, %vm4119
  %v4121 = vsel %vm4120, %v4113, %v4117
  %v4122 = vand.u32 2147483647, %v4111
  %vm4123 = vcmp.eq.f32.partialorder %v4122, 8.507059e+37
  %v4124 = vand.u32 %v4111, 2147483648
  %v4125 = vor.u32 1.1754944e-38, %v4124
  %v4126 = vsel %vm4123, %v4125, %v4121
  %v4127 = vmul.f32 1.0, %v4126
  %v4128 = vrcp.pop %v4112
  %v4129 = vmul.f32 %v4112, %v4128
  %v4130 = vsub.f32 1.0, %v4129
  %v4131 = vmul.f32 %v4128, %v4130
  %v4132 = vadd.f32 %v4128, %v4131
  %vm4133 = vweird.f32 %v4112
  %vm4134 = vweird.f32 %v4128
  %vm4135 = vmor %vm4133, %vm4134
  %v4136 = vsel %vm4135, %v4128, %v4132
  %v4137 = vand.u32 2147483647, %v4112
  %vm4138 = vcmp.eq.f32.partialorder %v4137, 8.507059e+37
  %v4139 = vand.u32 %v4112, 2147483648
  %v4140 = vor.u32 1.1754944e-38, %v4139
  %v4141 = vsel %vm4138, %v4140, %v4136
  %v4142 = vmul.f32 1.0, %v4141
  %v4143 = vxor.u32 %v3968, 2147483648
  %v4144 = vxor.u32 %v3976, 2147483648
  %v4145 = vmul.f32 %v4143, 1.442695
  %v4146 = vpow.pop %v4145
  %v4147 = vmul.f32 %v4144, 1.442695
  %v4148 = vpow.pop %v4147
  %v4149 = vadd.f32 %v4146, 1.0
  %v4150 = vadd.f32 %v4148, 1.0
  %v4151 = vrcp.pop %v4149
  %v4152 = vmul.f32 %v4149, %v4151
  %v4153 = vsub.f32 1.0, %v4152
  %v4154 = vmul.f32 %v4151, %v4153
  %v4155 = vadd.f32 %v4151, %v4154
  %vm4156 = vweird.f32 %v4149
  %vm4157 = vweird.f32 %v4151
  %vm4158 = vmor %vm4156, %vm4157
  %v4159 = vsel %vm4158, %v4151, %v4155
  %v4160 = vand.u32 2147483647, %v4149
  %vm4161 = vcmp.eq.f32.partialorder %v4160, 8.507059e+37
  %v4162 = vand.u32 %v4149, 2147483648
  %v4163 = vor.u32 1.1754944e-38, %v4162
  %v4164 = vsel %vm4161, %v4163, %v4159
  %v4165 = vmul.f32 1.0, %v4164
  %v4166 = vrcp.pop %v4150
  %v4167 = vmul.f32 %v4150, %v4166
  %v4168 = vsub.f32 1.0, %v4167
  %v4169 = vmul.f32 %v4166, %v4168
  %v4170 = vadd.f32 %v4166, %v4169
  %vm4171 = vweird.f32 %v4150
  %vm4172 = vweird.f32 %v4166
  %vm4173 = vmor %vm4171, %vm4172
  %v4174 = vsel %vm4173, %v4166, %v4170
  %v4175 = vand.u32 2147483647, %v4150
  %vm4176 = vcmp.eq.f32.partialorder %v4175, 8.507059e+37
  %v4177 = vand.u32 %v4150, 2147483648
  %v4178 = vor.u32 1.1754944e-38, %v4177
  %v4179 = vsel %vm4176, %v4178, %v4174
  %v4180 = vmul.f32 1.0, %v4179
  %v4181 = vtanh.pop %v3969
  %v4182 = vtanh.pop %v3977
  %v4183 = vxor.u32 %v3970, 2147483648
  %v4184 = vxor.u32 %v3978, 2147483648
  %v4185 = vmul.f32 %v4183, 1.442695
  %v4186 = vpow.pop %v4185
  %v4187 = vmul.f32 %v4184, 1.442695
  %v4188 = vpow.pop %v4187
  %v4189 = vadd.f32 %v4186, 1.0
  %v4190 = vadd.f32 %v4188, 1.0
  %v4191 = vrcp.pop %v4189
  %v4192 = vmul.f32 %v4189, %v4191
  %v4193 = vsub.f32 1.0, %v4192
  %v4194 = vmul.f32 %v4191, %v4193
  %v4195 = vadd.f32 %v4191, %v4194
  %vm4196 = vweird.f32 %v4189
  %vm4197 = vweird.f32 %v4191
  %vm4198 = vmor %vm4196, %vm4197
  %v4199 = vsel %vm4198, %v4191, %v4195
  %v4200 = vand.u32 2147483647, %v4189
  %vm4201 = vcmp.eq.f32.partialorder %v4200, 8.507059e+37
  %v4202 = vand.u32 %v4189, 2147483648
  %v4203 = vor.u32 1.1754944e-38, %v4202
  %v4204 = vsel %vm4201, %v4203, %v4199
  %v4205 = vmul.f32 1.0, %v4204
  %v4206 = vrcp.pop %v4190
  %v4207 = vmul.f32 %v4190, %v4206
  %v4208 = vsub.f32 1.0, %v4207
  %v4209 = vmul.f32 %v4206, %v4208
  %v4210 = vadd.f32 %v4206, %v4209
  %vm4211 = vweird.f32 %v4190
  %vm4212 = vweird.f32 %v4206
  %vm4213 = vmor %vm4211, %vm4212
  %v4214 = vsel %vm4213, %v4206, %v4210
  %v4215 = vand.u32 2147483647, %v4190
  %vm4216 = vcmp.eq.f32.partialorder %v4215, 8.507059e+37
  %v4217 = vand.u32 %v4190, 2147483648
  %v4218 = vor.u32 1.1754944e-38, %v4217
  %v4219 = vsel %vm4216, %v4218, %v4214
  %v4220 = vmul.f32 1.0, %v4219
  %v4221 = vmul.f32 %v4165, %v3706
  %v4222 = vmul.f32 %v4180, %v3707
  %v4223 = vmul.f32 %v4127, %v4181
  %v4224 = vmul.f32 %v4142, %v4182
  %v4225 = vadd.f32 %v4221, %v4223
  %v4226 = vadd.f32 %v4222, %v4224
  %v4227 = vtanh.pop %v4225
  %v4228 = vtanh.pop %v4226
  %v4229 = vmul.f32 %v4205, %v4227
  %v4230 = vmul.f32 %v4220, %v4228
  %s4231 = scalar_lea.vmem [#allocation2], 256
  %v4232 = vld [vmem:[%s4231] sm:$0xff]
  %v4233 = vld [vmem:[%s4231 + $0x8] sm:$0xff]
  %v4234 = vld [vmem:[%s4231 + $0x10] sm:$0xff]
  %v4235 = vld [vmem:[%s4231 + $0x18] sm:$0xff]
  %v4236 = vld [vmem:[%s4231 + $0x20] sm:$0xff]
  %v4237 = vld [vmem:[%s4231 + $0x28] sm:$0xff]
  %v4238 = vld [vmem:[%s4231 + $0x30] sm:$0xff]
  %v4239 = vld [vmem:[%s4231 + $0x38] sm:$0xff]
  %v4240 = vunpack.c.l.bf16 %v4232
  %v4241 = vunpack.c.h.bf16 %v4232
  %v4242 = vunpack.c.l.bf16 %v4233
  %v4243 = vunpack.c.h.bf16 %v4233
  %v4244 = vunpack.c.l.bf16 %v4234
  %v4245 = vunpack.c.h.bf16 %v4234
  %v4246 = vunpack.c.l.bf16 %v4235
  %v4247 = vunpack.c.h.bf16 %v4235
  %v4248 = vunpack.c.l.bf16 %v4236
  %v4249 = vunpack.c.h.bf16 %v4236
  %v4250 = vunpack.c.l.bf16 %v4237
  %v4251 = vunpack.c.h.bf16 %v4237
  %v4252 = vunpack.c.l.bf16 %v4238
  %v4253 = vunpack.c.h.bf16 %v4238
  %v4254 = vunpack.c.l.bf16 %v4239
  %v4255 = vunpack.c.h.bf16 %v4239
  %v4256 = vpack.c.bf16 %v4104, %v4103
  %v4257 = vpack.c.bf16 %v4230, %v4229
  %4258 = vmatpush.bf16.msra.mxu0 %v1982
  %4259 = vmatpush.bf16.msra.mxu0 %v1974
  %4260 = vmatpush.bf16.msra.mxu0 %v1966
  %4261 = vmatpush.bf16.msra.mxu0 %v1958
  %4262 = vmatpush.bf16.msra.mxu0 %v1950
  %4263 = vmatpush.bf16.msra.mxu0 %v1942
  %4264 = vmatpush.bf16.msra.mxu0 %v1934
  %4265 = vmatpush.bf16.msra.mxu0 %v1926
  %4266 = vmatmul.bf16.gmra.mxu0 %v4256
  %v4267 = vpop.f32.mrf.mxu0
  %v4268 = vadd.f32 0.0, %v4267
  %v4269 = vpop.f32.mrf.mxu0
  %v4270 = vadd.f32 0.0, %v4269
  %4271 = vdwg.mxu0
  %4272 = vmatpush.bf16.msra.mxu0 %v2046
  %4273 = vmatpush.bf16.msra.mxu0 %v2038
  %4274 = vmatpush.bf16.msra.mxu0 %v2030
  %4275 = vmatpush.bf16.msra.mxu0 %v2022
  %4276 = vmatpush.bf16.msra.mxu0 %v2014
  %4277 = vmatpush.bf16.msra.mxu0 %v2006
  %4278 = vmatpush.bf16.msra.mxu0 %v1998
  %4279 = vmatpush.bf16.msra.mxu0 %v1990
  %4280 = vmatmul.bf16.gmra.mxu0 %v4257
  %v4281 = vpop.f32.mrf.mxu0
  %v4282 = vadd.f32 %v4268, %v4281
  %v4283 = vpop.f32.mrf.mxu0
  %v4284 = vadd.f32 %v4270, %v4283
  %4285 = vdwg.mxu0
  %4286 = vmatpush.bf16.msra.mxu0 %v1983
  %4287 = vmatpush.bf16.msra.mxu0 %v1975
  %4288 = vmatpush.bf16.msra.mxu0 %v1967
  %4289 = vmatpush.bf16.msra.mxu0 %v1959
  %4290 = vmatpush.bf16.msra.mxu0 %v1951
  %4291 = vmatpush.bf16.msra.mxu0 %v1943
  %4292 = vmatpush.bf16.msra.mxu0 %v1935
  %4293 = vmatpush.bf16.msra.mxu0 %v1927
  %4294 = vmatmul.bf16.gmra.mxu0 %v4256
  %v4295 = vpop.f32.mrf.mxu0
  %v4296 = vadd.f32 0.0, %v4295
  %v4297 = vpop.f32.mrf.mxu0
  %v4298 = vadd.f32 0.0, %v4297
  %4299 = vdwg.mxu0
  %4300 = vmatpush.bf16.msra.mxu0 %v2047
  %4301 = vmatpush.bf16.msra.mxu0 %v2039
  %4302 = vmatpush.bf16.msra.mxu0 %v2031
  %4303 = vmatpush.bf16.msra.mxu0 %v2023
  %4304 = vmatpush.bf16.msra.mxu0 %v2015
  %4305 = vmatpush.bf16.msra.mxu0 %v2007
  %4306 = vmatpush.bf16.msra.mxu0 %v1999
  %4307 = vmatpush.bf16.msra.mxu0 %v1991
  %4308 = vmatmul.bf16.gmra.mxu0 %v4257
  %v4309 = vpop.f32.mrf.mxu0
  %v4310 = vadd.f32 %v4296, %v4309
  %v4311 = vpop.f32.mrf.mxu0
  %v4312 = vadd.f32 %v4298, %v4311
  %4313 = vdwg.mxu0
  %4314 = vmatpush.bf16.msra.mxu0 %v1984
  %4315 = vmatpush.bf16.msra.mxu0 %v1976
  %4316 = vmatpush.bf16.msra.mxu0 %v1968
  %4317 = vmatpush.bf16.msra.mxu0 %v1960
  %4318 = vmatpush.bf16.msra.mxu0 %v1952
  %4319 = vmatpush.bf16.msra.mxu0 %v1944
  %4320 = vmatpush.bf16.msra.mxu0 %v1936
  %4321 = vmatpush.bf16.msra.mxu0 %v1928
  %4322 = vmatmul.bf16.gmra.mxu0 %v4256
  %v4323 = vpop.f32.mrf.mxu0
  %v4324 = vadd.f32 0.0, %v4323
  %v4325 = vpop.f32.mrf.mxu0
  %v4326 = vadd.f32 0.0, %v4325
  %4327 = vdwg.mxu0
  %4328 = vmatpush.bf16.msra.mxu0 %v2048
  %4329 = vmatpush.bf16.msra.mxu0 %v2040
  %4330 = vmatpush.bf16.msra.mxu0 %v2032
  %4331 = vmatpush.bf16.msra.mxu0 %v2024
  %4332 = vmatpush.bf16.msra.mxu0 %v2016
  %4333 = vmatpush.bf16.msra.mxu0 %v2008
  %4334 = vmatpush.bf16.msra.mxu0 %v2000
  %4335 = vmatpush.bf16.msra.mxu0 %v1992
  %4336 = vmatmul.bf16.gmra.mxu0 %v4257
  %v4337 = vpop.f32.mrf.mxu0
  %v4338 = vadd.f32 %v4324, %v4337
  %v4339 = vpop.f32.mrf.mxu0
  %v4340 = vadd.f32 %v4326, %v4339
  %4341 = vdwg.mxu0
  %4342 = vmatpush.bf16.msra.mxu0 %v1985
  %4343 = vmatpush.bf16.msra.mxu0 %v1977
  %4344 = vmatpush.bf16.msra.mxu0 %v1969
  %4345 = vmatpush.bf16.msra.mxu0 %v1961
  %4346 = vmatpush.bf16.msra.mxu0 %v1953
  %4347 = vmatpush.bf16.msra.mxu0 %v1945
  %4348 = vmatpush.bf16.msra.mxu0 %v1937
  %4349 = vmatpush.bf16.msra.mxu0 %v1929
  %4350 = vmatmul.bf16.gmra.mxu0 %v4256
  %v4351 = vpop.f32.mrf.mxu0
  %v4352 = vadd.f32 0.0, %v4351
  %v4353 = vpop.f32.mrf.mxu0
  %v4354 = vadd.f32 0.0, %v4353
  %4355 = vdwg.mxu0
  %4356 = vmatpush.bf16.msra.mxu0 %v2049
  %4357 = vmatpush.bf16.msra.mxu0 %v2041
  %4358 = vmatpush.bf16.msra.mxu0 %v2033
  %4359 = vmatpush.bf16.msra.mxu0 %v2025
  %4360 = vmatpush.bf16.msra.mxu0 %v2017
  %4361 = vmatpush.bf16.msra.mxu0 %v2009
  %4362 = vmatpush.bf16.msra.mxu0 %v2001
  %4363 = vmatpush.bf16.msra.mxu0 %v1993
  %4364 = vmatmul.bf16.gmra.mxu0 %v4257
  %v4365 = vpop.f32.mrf.mxu0
  %v4366 = vadd.f32 %v4352, %v4365
  %v4367 = vpop.f32.mrf.mxu0
  %v4368 = vadd.f32 %v4354, %v4367
  %4369 = vdwg.mxu0
  %4370 = vmatpush.bf16.msra.mxu0 %v1986
  %4371 = vmatpush.bf16.msra.mxu0 %v1978
  %4372 = vmatpush.bf16.msra.mxu0 %v1970
  %4373 = vmatpush.bf16.msra.mxu0 %v1962
  %4374 = vmatpush.bf16.msra.mxu0 %v1954
  %4375 = vmatpush.bf16.msra.mxu0 %v1946
  %4376 = vmatpush.bf16.msra.mxu0 %v1938
  %4377 = vmatpush.bf16.msra.mxu0 %v1930
  %4378 = vmatmul.bf16.gmra.mxu0 %v4256
  %v4379 = vpop.f32.mrf.mxu0
  %v4380 = vadd.f32 0.0, %v4379
  %v4381 = vpop.f32.mrf.mxu0
  %v4382 = vadd.f32 0.0, %v4381
  %4383 = vdwg.mxu0
  %4384 = vmatpush.bf16.msra.mxu0 %v2050
  %4385 = vmatpush.bf16.msra.mxu0 %v2042
  %4386 = vmatpush.bf16.msra.mxu0 %v2034
  %4387 = vmatpush.bf16.msra.mxu0 %v2026
  %4388 = vmatpush.bf16.msra.mxu0 %v2018
  %4389 = vmatpush.bf16.msra.mxu0 %v2010
  %4390 = vmatpush.bf16.msra.mxu0 %v2002
  %4391 = vmatpush.bf16.msra.mxu0 %v1994
  %4392 = vmatmul.bf16.gmra.mxu0 %v4257
  %v4393 = vpop.f32.mrf.mxu0
  %v4394 = vadd.f32 %v4380, %v4393
  %v4395 = vpop.f32.mrf.mxu0
  %v4396 = vadd.f32 %v4382, %v4395
  %4397 = vdwg.mxu0
  %4398 = vmatpush.bf16.msra.mxu0 %v1987
  %4399 = vmatpush.bf16.msra.mxu0 %v1979
  %4400 = vmatpush.bf16.msra.mxu0 %v1971
  %4401 = vmatpush.bf16.msra.mxu0 %v1963
  %4402 = vmatpush.bf16.msra.mxu0 %v1955
  %4403 = vmatpush.bf16.msra.mxu0 %v1947
  %4404 = vmatpush.bf16.msra.mxu0 %v1939
  %4405 = vmatpush.bf16.msra.mxu0 %v1931
  %4406 = vmatmul.bf16.gmra.mxu0 %v4256
  %v4407 = vpop.f32.mrf.mxu0
  %v4408 = vadd.f32 0.0, %v4407
  %v4409 = vpop.f32.mrf.mxu0
  %v4410 = vadd.f32 0.0, %v4409
  %4411 = vdwg.mxu0
  %4412 = vmatpush.bf16.msra.mxu0 %v2051
  %4413 = vmatpush.bf16.msra.mxu0 %v2043
  %4414 = vmatpush.bf16.msra.mxu0 %v2035
  %4415 = vmatpush.bf16.msra.mxu0 %v2027
  %4416 = vmatpush.bf16.msra.mxu0 %v2019
  %4417 = vmatpush.bf16.msra.mxu0 %v2011
  %4418 = vmatpush.bf16.msra.mxu0 %v2003
  %4419 = vmatpush.bf16.msra.mxu0 %v1995
  %4420 = vmatmul.bf16.gmra.mxu0 %v4257
  %v4421 = vpop.f32.mrf.mxu0
  %v4422 = vadd.f32 %v4408, %v4421
  %v4423 = vpop.f32.mrf.mxu0
  %v4424 = vadd.f32 %v4410, %v4423
  %4425 = vdwg.mxu0
  %4426 = vmatpush.bf16.msra.mxu0 %v1988
  %4427 = vmatpush.bf16.msra.mxu0 %v1980
  %4428 = vmatpush.bf16.msra.mxu0 %v1972
  %4429 = vmatpush.bf16.msra.mxu0 %v1964
  %4430 = vmatpush.bf16.msra.mxu0 %v1956
  %4431 = vmatpush.bf16.msra.mxu0 %v1948
  %4432 = vmatpush.bf16.msra.mxu0 %v1940
  %4433 = vmatpush.bf16.msra.mxu0 %v1932
  %4434 = vmatmul.bf16.gmra.mxu0 %v4256
  %v4435 = vpop.f32.mrf.mxu0
  %v4436 = vadd.f32 0.0, %v4435
  %v4437 = vpop.f32.mrf.mxu0
  %v4438 = vadd.f32 0.0, %v4437
  %4439 = vdwg.mxu0
  %4440 = vmatpush.bf16.msra.mxu0 %v2052
  %4441 = vmatpush.bf16.msra.mxu0 %v2044
  %4442 = vmatpush.bf16.msra.mxu0 %v2036
  %4443 = vmatpush.bf16.msra.mxu0 %v2028
  %4444 = vmatpush.bf16.msra.mxu0 %v2020
  %4445 = vmatpush.bf16.msra.mxu0 %v2012
  %4446 = vmatpush.bf16.msra.mxu0 %v2004
  %4447 = vmatpush.bf16.msra.mxu0 %v1996
  %4448 = vmatmul.bf16.gmra.mxu0 %v4257
  %v4449 = vpop.f32.mrf.mxu0
  %v4450 = vadd.f32 %v4436, %v4449
  %v4451 = vpop.f32.mrf.mxu0
  %v4452 = vadd.f32 %v4438, %v4451
  %4453 = vdwg.mxu0
  %4454 = vmatpush.bf16.msra.mxu0 %v1989
  %4455 = vmatpush.bf16.msra.mxu0 %v1981
  %4456 = vmatpush.bf16.msra.mxu0 %v1973
  %4457 = vmatpush.bf16.msra.mxu0 %v1965
  %4458 = vmatpush.bf16.msra.mxu0 %v1957
  %4459 = vmatpush.bf16.msra.mxu0 %v1949
  %4460 = vmatpush.bf16.msra.mxu0 %v1941
  %4461 = vmatpush.bf16.msra.mxu0 %v1933
  %4462 = vmatmul.bf16.gmra.mxu0 %v4256
  %v4463 = vpop.f32.mrf.mxu0
  %v4464 = vadd.f32 0.0, %v4463
  %v4465 = vpop.f32.mrf.mxu0
  %v4466 = vadd.f32 0.0, %v4465
  %4467 = vdwg.mxu0
  %4468 = vmatpush.bf16.msra.mxu0 %v2053
  %4469 = vmatpush.bf16.msra.mxu0 %v2045
  %4470 = vmatpush.bf16.msra.mxu0 %v2037
  %4471 = vmatpush.bf16.msra.mxu0 %v2029
  %4472 = vmatpush.bf16.msra.mxu0 %v2021
  %4473 = vmatpush.bf16.msra.mxu0 %v2013
  %4474 = vmatpush.bf16.msra.mxu0 %v2005
  %4475 = vmatpush.bf16.msra.mxu0 %v1997
  %4476 = vmatmul.bf16.gmra.mxu0 %v4257
  %v4477 = vpop.f32.mrf.mxu0
  %v4478 = vadd.f32 %v4464, %v4477
  %v4479 = vpop.f32.mrf.mxu0
  %v4480 = vadd.f32 %v4466, %v4479
  %4481 = vdwg.mxu0
  %v4482 = vadd.f32 %v4240, %v4282
  %v4483 = vadd.f32 %v4241, %v4310
  %v4484 = vadd.f32 %v4242, %v4338
  %v4485 = vadd.f32 %v4243, %v4366
  %v4486 = vadd.f32 %v4244, %v4394
  %v4487 = vadd.f32 %v4245, %v4422
  %v4488 = vadd.f32 %v4246, %v4450
  %v4489 = vadd.f32 %v4247, %v4478
  %v4490 = vadd.f32 %v4248, %v4284
  %v4491 = vadd.f32 %v4249, %v4312
  %v4492 = vadd.f32 %v4250, %v4340
  %v4493 = vadd.f32 %v4251, %v4368
  %v4494 = vadd.f32 %v4252, %v4396
  %v4495 = vadd.f32 %v4253, %v4424
  %v4496 = vadd.f32 %v4254, %v4452
  %v4497 = vadd.f32 %v4255, %v4480
  %v4498 = vxor.u32 %v4482, 2147483648
  %v4499 = vxor.u32 %v4490, 2147483648
  %v4500 = vmul.f32 %v4498, 1.442695
  %v4501 = vpow.pop %v4500
  %v4502 = vmul.f32 %v4499, 1.442695
  %v4503 = vpow.pop %v4502
  %v4504 = vadd.f32 %v4501, 1.0
  %v4505 = vadd.f32 %v4503, 1.0
  %v4506 = vrcp.pop %v4504
  %v4507 = vmul.f32 %v4504, %v4506
  %v4508 = vsub.f32 1.0, %v4507
  %v4509 = vmul.f32 %v4506, %v4508
  %v4510 = vadd.f32 %v4506, %v4509
  %vm4511 = vweird.f32 %v4504
  %vm4512 = vweird.f32 %v4506
  %vm4513 = vmor %vm4511, %vm4512
  %v4514 = vsel %vm4513, %v4506, %v4510
  %v4515 = vand.u32 2147483647, %v4504
  %vm4516 = vcmp.eq.f32.partialorder %v4515, 8.507059e+37
  %v4517 = vand.u32 %v4504, 2147483648
  %v4518 = vor.u32 1.1754944e-38, %v4517
  %v4519 = vsel %vm4516, %v4518, %v4514
  %v4520 = vmul.f32 1.0, %v4519
  %v4521 = vrcp.pop %v4505
  %v4522 = vmul.f32 %v4505, %v4521
  %v4523 = vsub.f32 1.0, %v4522
  %v4524 = vmul.f32 %v4521, %v4523
  %v4525 = vadd.f32 %v4521, %v4524
  %vm4526 = vweird.f32 %v4505
  %vm4527 = vweird.f32 %v4521
  %vm4528 = vmor %vm4526, %vm4527
  %v4529 = vsel %vm4528, %v4521, %v4525
  %v4530 = vand.u32 2147483647, %v4505
  %vm4531 = vcmp.eq.f32.partialorder %v4530, 8.507059e+37
  %v4532 = vand.u32 %v4505, 2147483648
  %v4533 = vor.u32 1.1754944e-38, %v4532
  %v4534 = vsel %vm4531, %v4533, %v4529
  %v4535 = vmul.f32 1.0, %v4534
  %v4536 = vxor.u32 %v4483, 2147483648
  %v4537 = vxor.u32 %v4491, 2147483648
  %v4538 = vmul.f32 %v4536, 1.442695
  %v4539 = vpow.pop %v4538
  %v4540 = vmul.f32 %v4537, 1.442695
  %v4541 = vpow.pop %v4540
  %v4542 = vadd.f32 %v4539, 1.0
  %v4543 = vadd.f32 %v4541, 1.0
  %v4544 = vrcp.pop %v4542
  %v4545 = vmul.f32 %v4542, %v4544
  %v4546 = vsub.f32 1.0, %v4545
  %v4547 = vmul.f32 %v4544, %v4546
  %v4548 = vadd.f32 %v4544, %v4547
  %vm4549 = vweird.f32 %v4542
  %vm4550 = vweird.f32 %v4544
  %vm4551 = vmor %vm4549, %vm4550
  %v4552 = vsel %vm4551, %v4544, %v4548
  %v4553 = vand.u32 2147483647, %v4542
  %vm4554 = vcmp.eq.f32.partialorder %v4553, 8.507059e+37
  %v4555 = vand.u32 %v4542, 2147483648
  %v4556 = vor.u32 1.1754944e-38, %v4555
  %v4557 = vsel %vm4554, %v4556, %v4552
  %v4558 = vmul.f32 1.0, %v4557
  %v4559 = vrcp.pop %v4543
  %v4560 = vmul.f32 %v4543, %v4559
  %v4561 = vsub.f32 1.0, %v4560
  %v4562 = vmul.f32 %v4559, %v4561
  %v4563 = vadd.f32 %v4559, %v4562
  %vm4564 = vweird.f32 %v4543
  %vm4565 = vweird.f32 %v4559
  %vm4566 = vmor %vm4564, %vm4565
  %v4567 = vsel %vm4566, %v4559, %v4563
  %v4568 = vand.u32 2147483647, %v4543
  %vm4569 = vcmp.eq.f32.partialorder %v4568, 8.507059e+37
  %v4570 = vand.u32 %v4543, 2147483648
  %v4571 = vor.u32 1.1754944e-38, %v4570
  %v4572 = vsel %vm4569, %v4571, %v4567
  %v4573 = vmul.f32 1.0, %v4572
  %v4574 = vtanh.pop %v4484
  %v4575 = vtanh.pop %v4492
  %v4576 = vxor.u32 %v4485, 2147483648
  %v4577 = vxor.u32 %v4493, 2147483648
  %v4578 = vmul.f32 %v4576, 1.442695
  %v4579 = vpow.pop %v4578
  %v4580 = vmul.f32 %v4577, 1.442695
  %v4581 = vpow.pop %v4580
  %v4582 = vadd.f32 %v4579, 1.0
  %v4583 = vadd.f32 %v4581, 1.0
  %v4584 = vrcp.pop %v4582
  %v4585 = vmul.f32 %v4582, %v4584
  %v4586 = vsub.f32 1.0, %v4585
  %v4587 = vmul.f32 %v4584, %v4586
  %v4588 = vadd.f32 %v4584, %v4587
  %vm4589 = vweird.f32 %v4582
  %vm4590 = vweird.f32 %v4584
  %vm4591 = vmor %vm4589, %vm4590
  %v4592 = vsel %vm4591, %v4584, %v4588
  %v4593 = vand.u32 2147483647, %v4582
  %vm4594 = vcmp.eq.f32.partialorder %v4593, 8.507059e+37
  %v4595 = vand.u32 %v4582, 2147483648
  %v4596 = vor.u32 1.1754944e-38, %v4595
  %v4597 = vsel %vm4594, %v4596, %v4592
  %v4598 = vmul.f32 1.0, %v4597
  %v4599 = vrcp.pop %v4583
  %v4600 = vmul.f32 %v4583, %v4599
  %v4601 = vsub.f32 1.0, %v4600
  %v4602 = vmul.f32 %v4599, %v4601
  %v4603 = vadd.f32 %v4599, %v4602
  %vm4604 = vweird.f32 %v4583
  %vm4605 = vweird.f32 %v4599
  %vm4606 = vmor %vm4604, %vm4605
  %v4607 = vsel %vm4606, %v4599, %v4603
  %v4608 = vand.u32 2147483647, %v4583
  %vm4609 = vcmp.eq.f32.partialorder %v4608, 8.507059e+37
  %v4610 = vand.u32 %v4583, 2147483648
  %v4611 = vor.u32 1.1754944e-38, %v4610
  %v4612 = vsel %vm4609, %v4611, %v4607
  %v4613 = vmul.f32 1.0, %v4612
  %v4614 = vmul.f32 %v4558, %v4099
  %v4615 = vmul.f32 %v4573, %v4100
  %v4616 = vmul.f32 %v4520, %v4574
  %v4617 = vmul.f32 %v4535, %v4575
  %v4618 = vadd.f32 %v4614, %v4616
  %v4619 = vadd.f32 %v4615, %v4617
  %v4620 = vtanh.pop %v4618
  %v4621 = vtanh.pop %v4619
  %v4622 = vmul.f32 %v4598, %v4620
  %v4623 = vmul.f32 %v4613, %v4621
  %v4624 = vxor.u32 %v4486, 2147483648
  %v4625 = vxor.u32 %v4494, 2147483648
  %v4626 = vmul.f32 %v4624, 1.442695
  %v4627 = vpow.pop %v4626
  %v4628 = vmul.f32 %v4625, 1.442695
  %v4629 = vpow.pop %v4628
  %v4630 = vadd.f32 %v4627, 1.0
  %v4631 = vadd.f32 %v4629, 1.0
  %v4632 = vrcp.pop %v4630
  %v4633 = vmul.f32 %v4630, %v4632
  %v4634 = vsub.f32 1.0, %v4633
  %v4635 = vmul.f32 %v4632, %v4634
  %v4636 = vadd.f32 %v4632, %v4635
  %vm4637 = vweird.f32 %v4630
  %vm4638 = vweird.f32 %v4632
  %vm4639 = vmor %vm4637, %vm4638
  %v4640 = vsel %vm4639, %v4632, %v4636
  %v4641 = vand.u32 2147483647, %v4630
  %vm4642 = vcmp.eq.f32.partialorder %v4641, 8.507059e+37
  %v4643 = vand.u32 %v4630, 2147483648
  %v4644 = vor.u32 1.1754944e-38, %v4643
  %v4645 = vsel %vm4642, %v4644, %v4640
  %v4646 = vmul.f32 1.0, %v4645
  %v4647 = vrcp.pop %v4631
  %v4648 = vmul.f32 %v4631, %v4647
  %v4649 = vsub.f32 1.0, %v4648
  %v4650 = vmul.f32 %v4647, %v4649
  %v4651 = vadd.f32 %v4647, %v4650
  %vm4652 = vweird.f32 %v4631
  %vm4653 = vweird.f32 %v4647
  %vm4654 = vmor %vm4652, %vm4653
  %v4655 = vsel %vm4654, %v4647, %v4651
  %v4656 = vand.u32 2147483647, %v4631
  %vm4657 = vcmp.eq.f32.partialorder %v4656, 8.507059e+37
  %v4658 = vand.u32 %v4631, 2147483648
  %v4659 = vor.u32 1.1754944e-38, %v4658
  %v4660 = vsel %vm4657, %v4659, %v4655
  %v4661 = vmul.f32 1.0, %v4660
  %v4662 = vxor.u32 %v4487, 2147483648
  %v4663 = vxor.u32 %v4495, 2147483648
  %v4664 = vmul.f32 %v4662, 1.442695
  %v4665 = vpow.pop %v4664
  %v4666 = vmul.f32 %v4663, 1.442695
  %v4667 = vpow.pop %v4666
  %v4668 = vadd.f32 %v4665, 1.0
  %v4669 = vadd.f32 %v4667, 1.0
  %v4670 = vrcp.pop %v4668
  %v4671 = vmul.f32 %v4668, %v4670
  %v4672 = vsub.f32 1.0, %v4671
  %v4673 = vmul.f32 %v4670, %v4672
  %v4674 = vadd.f32 %v4670, %v4673
  %vm4675 = vweird.f32 %v4668
  %vm4676 = vweird.f32 %v4670
  %vm4677 = vmor %vm4675, %vm4676
  %v4678 = vsel %vm4677, %v4670, %v4674
  %v4679 = vand.u32 2147483647, %v4668
  %vm4680 = vcmp.eq.f32.partialorder %v4679, 8.507059e+37
  %v4681 = vand.u32 %v4668, 2147483648
  %v4682 = vor.u32 1.1754944e-38, %v4681
  %v4683 = vsel %vm4680, %v4682, %v4678
  %v4684 = vmul.f32 1.0, %v4683
  %v4685 = vrcp.pop %v4669
  %v4686 = vmul.f32 %v4669, %v4685
  %v4687 = vsub.f32 1.0, %v4686
  %v4688 = vmul.f32 %v4685, %v4687
  %v4689 = vadd.f32 %v4685, %v4688
  %vm4690 = vweird.f32 %v4669
  %vm4691 = vweird.f32 %v4685
  %vm4692 = vmor %vm4690, %vm4691
  %v4693 = vsel %vm4692, %v4685, %v4689
  %v4694 = vand.u32 2147483647, %v4669
  %vm4695 = vcmp.eq.f32.partialorder %v4694, 8.507059e+37
  %v4696 = vand.u32 %v4669, 2147483648
  %v4697 = vor.u32 1.1754944e-38, %v4696
  %v4698 = vsel %vm4695, %v4697, %v4693
  %v4699 = vmul.f32 1.0, %v4698
  %v4700 = vtanh.pop %v4488
  %v4701 = vtanh.pop %v4496
  %v4702 = vxor.u32 %v4489, 2147483648
  %v4703 = vxor.u32 %v4497, 2147483648
  %v4704 = vmul.f32 %v4702, 1.442695
  %v4705 = vpow.pop %v4704
  %v4706 = vmul.f32 %v4703, 1.442695
  %v4707 = vpow.pop %v4706
  %v4708 = vadd.f32 %v4705, 1.0
  %v4709 = vadd.f32 %v4707, 1.0
  %v4710 = vrcp.pop %v4708
  %v4711 = vmul.f32 %v4708, %v4710
  %v4712 = vsub.f32 1.0, %v4711
  %v4713 = vmul.f32 %v4710, %v4712
  %v4714 = vadd.f32 %v4710, %v4713
  %vm4715 = vweird.f32 %v4708
  %vm4716 = vweird.f32 %v4710
  %vm4717 = vmor %vm4715, %vm4716
  %v4718 = vsel %vm4717, %v4710, %v4714
  %v4719 = vand.u32 2147483647, %v4708
  %vm4720 = vcmp.eq.f32.partialorder %v4719, 8.507059e+37
  %v4721 = vand.u32 %v4708, 2147483648
  %v4722 = vor.u32 1.1754944e-38, %v4721
  %v4723 = vsel %vm4720, %v4722, %v4718
  %v4724 = vmul.f32 1.0, %v4723
  %v4725 = vrcp.pop %v4709
  %v4726 = vmul.f32 %v4709, %v4725
  %v4727 = vsub.f32 1.0, %v4726
  %v4728 = vmul.f32 %v4725, %v4727
  %v4729 = vadd.f32 %v4725, %v4728
  %vm4730 = vweird.f32 %v4709
  %vm4731 = vweird.f32 %v4725
  %vm4732 = vmor %vm4730, %vm4731
  %v4733 = vsel %vm4732, %v4725, %v4729
  %v4734 = vand.u32 2147483647, %v4709
  %vm4735 = vcmp.eq.f32.partialorder %v4734, 8.507059e+37
  %v4736 = vand.u32 %v4709, 2147483648
  %v4737 = vor.u32 1.1754944e-38, %v4736
  %v4738 = vsel %vm4735, %v4737, %v4733
  %v4739 = vmul.f32 1.0, %v4738
  %v4740 = vmul.f32 %v4684, %v4225
  %v4741 = vmul.f32 %v4699, %v4226
  %v4742 = vmul.f32 %v4646, %v4700
  %v4743 = vmul.f32 %v4661, %v4701
  %v4744 = vadd.f32 %v4740, %v4742
  %v4745 = vadd.f32 %v4741, %v4743
  %v4746 = vtanh.pop %v4744
  %v4747 = vtanh.pop %v4745
  %v4748 = vmul.f32 %v4724, %v4746
  %v4749 = vmul.f32 %v4739, %v4747
  %s4750 = scalar_lea.vmem [#allocation2], 320
  %v4751 = vld [vmem:[%s4750] sm:$0xff]
  %v4752 = vld [vmem:[%s4750 + $0x8] sm:$0xff]
  %v4753 = vld [vmem:[%s4750 + $0x10] sm:$0xff]
  %v4754 = vld [vmem:[%s4750 + $0x18] sm:$0xff]
  %v4755 = vld [vmem:[%s4750 + $0x20] sm:$0xff]
  %v4756 = vld [vmem:[%s4750 + $0x28] sm:$0xff]
  %v4757 = vld [vmem:[%s4750 + $0x30] sm:$0xff]
  %v4758 = vld [vmem:[%s4750 + $0x38] sm:$0xff]
  %v4759 = vunpack.c.l.bf16 %v4751
  %v4760 = vunpack.c.h.bf16 %v4751
  %v4761 = vunpack.c.l.bf16 %v4752
  %v4762 = vunpack.c.h.bf16 %v4752
  %v4763 = vunpack.c.l.bf16 %v4753
  %v4764 = vunpack.c.h.bf16 %v4753
  %v4765 = vunpack.c.l.bf16 %v4754
  %v4766 = vunpack.c.h.bf16 %v4754
  %v4767 = vunpack.c.l.bf16 %v4755
  %v4768 = vunpack.c.h.bf16 %v4755
  %v4769 = vunpack.c.l.bf16 %v4756
  %v4770 = vunpack.c.h.bf16 %v4756
  %v4771 = vunpack.c.l.bf16 %v4757
  %v4772 = vunpack.c.h.bf16 %v4757
  %v4773 = vunpack.c.l.bf16 %v4758
  %v4774 = vunpack.c.h.bf16 %v4758
  %v4775 = vpack.c.bf16 %v4623, %v4622
  %v4776 = vpack.c.bf16 %v4749, %v4748
  %4777 = vmatpush.bf16.msra.mxu0 %v1982
  %4778 = vmatpush.bf16.msra.mxu0 %v1974
  %4779 = vmatpush.bf16.msra.mxu0 %v1966
  %4780 = vmatpush.bf16.msra.mxu0 %v1958
  %4781 = vmatpush.bf16.msra.mxu0 %v1950
  %4782 = vmatpush.bf16.msra.mxu0 %v1942
  %4783 = vmatpush.bf16.msra.mxu0 %v1934
  %4784 = vmatpush.bf16.msra.mxu0 %v1926
  %4785 = vmatmul.bf16.gmra.mxu0 %v4775
  %v4786 = vpop.f32.mrf.mxu0
  %v4787 = vadd.f32 0.0, %v4786
  %v4788 = vpop.f32.mrf.mxu0
  %v4789 = vadd.f32 0.0, %v4788
  %4790 = vdwg.mxu0
  %4791 = vmatpush.bf16.msra.mxu0 %v2046
  %4792 = vmatpush.bf16.msra.mxu0 %v2038
  %4793 = vmatpush.bf16.msra.mxu0 %v2030
  %4794 = vmatpush.bf16.msra.mxu0 %v2022
  %4795 = vmatpush.bf16.msra.mxu0 %v2014
  %4796 = vmatpush.bf16.msra.mxu0 %v2006
  %4797 = vmatpush.bf16.msra.mxu0 %v1998
  %4798 = vmatpush.bf16.msra.mxu0 %v1990
  %4799 = vmatmul.bf16.gmra.mxu0 %v4776
  %v4800 = vpop.f32.mrf.mxu0
  %v4801 = vadd.f32 %v4787, %v4800
  %v4802 = vpop.f32.mrf.mxu0
  %v4803 = vadd.f32 %v4789, %v4802
  %4804 = vdwg.mxu0
  %4805 = vmatpush.bf16.msra.mxu0 %v1983
  %4806 = vmatpush.bf16.msra.mxu0 %v1975
  %4807 = vmatpush.bf16.msra.mxu0 %v1967
  %4808 = vmatpush.bf16.msra.mxu0 %v1959
  %4809 = vmatpush.bf16.msra.mxu0 %v1951
  %4810 = vmatpush.bf16.msra.mxu0 %v1943
  %4811 = vmatpush.bf16.msra.mxu0 %v1935
  %4812 = vmatpush.bf16.msra.mxu0 %v1927
  %4813 = vmatmul.bf16.gmra.mxu0 %v4775
  %v4814 = vpop.f32.mrf.mxu0
  %v4815 = vadd.f32 0.0, %v4814
  %v4816 = vpop.f32.mrf.mxu0
  %v4817 = vadd.f32 0.0, %v4816
  %4818 = vdwg.mxu0
  %4819 = vmatpush.bf16.msra.mxu0 %v2047
  %4820 = vmatpush.bf16.msra.mxu0 %v2039
  %4821 = vmatpush.bf16.msra.mxu0 %v2031
  %4822 = vmatpush.bf16.msra.mxu0 %v2023
  %4823 = vmatpush.bf16.msra.mxu0 %v2015
  %4824 = vmatpush.bf16.msra.mxu0 %v2007
  %4825 = vmatpush.bf16.msra.mxu0 %v1999
  %4826 = vmatpush.bf16.msra.mxu0 %v1991
  %4827 = vmatmul.bf16.gmra.mxu0 %v4776
  %v4828 = vpop.f32.mrf.mxu0
  %v4829 = vadd.f32 %v4815, %v4828
  %v4830 = vpop.f32.mrf.mxu0
  %v4831 = vadd.f32 %v4817, %v4830
  %4832 = vdwg.mxu0
  %4833 = vmatpush.bf16.msra.mxu0 %v1984
  %4834 = vmatpush.bf16.msra.mxu0 %v1976
  %4835 = vmatpush.bf16.msra.mxu0 %v1968
  %4836 = vmatpush.bf16.msra.mxu0 %v1960
  %4837 = vmatpush.bf16.msra.mxu0 %v1952
  %4838 = vmatpush.bf16.msra.mxu0 %v1944
  %4839 = vmatpush.bf16.msra.mxu0 %v1936
  %4840 = vmatpush.bf16.msra.mxu0 %v1928
  %4841 = vmatmul.bf16.gmra.mxu0 %v4775
  %v4842 = vpop.f32.mrf.mxu0
  %v4843 = vadd.f32 0.0, %v4842
  %v4844 = vpop.f32.mrf.mxu0
  %v4845 = vadd.f32 0.0, %v4844
  %4846 = vdwg.mxu0
  %4847 = vmatpush.bf16.msra.mxu0 %v2048
  %4848 = vmatpush.bf16.msra.mxu0 %v2040
  %4849 = vmatpush.bf16.msra.mxu0 %v2032
  %4850 = vmatpush.bf16.msra.mxu0 %v2024
  %4851 = vmatpush.bf16.msra.mxu0 %v2016
  %4852 = vmatpush.bf16.msra.mxu0 %v2008
  %4853 = vmatpush.bf16.msra.mxu0 %v2000
  %4854 = vmatpush.bf16.msra.mxu0 %v1992
  %4855 = vmatmul.bf16.gmra.mxu0 %v4776
  %v4856 = vpop.f32.mrf.mxu0
  %v4857 = vadd.f32 %v4843, %v4856
  %v4858 = vpop.f32.mrf.mxu0
  %v4859 = vadd.f32 %v4845, %v4858
  %4860 = vdwg.mxu0
  %4861 = vmatpush.bf16.msra.mxu0 %v1985
  %4862 = vmatpush.bf16.msra.mxu0 %v1977
  %4863 = vmatpush.bf16.msra.mxu0 %v1969
  %4864 = vmatpush.bf16.msra.mxu0 %v1961
  %4865 = vmatpush.bf16.msra.mxu0 %v1953
  %4866 = vmatpush.bf16.msra.mxu0 %v1945
  %4867 = vmatpush.bf16.msra.mxu0 %v1937
  %4868 = vmatpush.bf16.msra.mxu0 %v1929
  %4869 = vmatmul.bf16.gmra.mxu0 %v4775
  %v4870 = vpop.f32.mrf.mxu0
  %v4871 = vadd.f32 0.0, %v4870
  %v4872 = vpop.f32.mrf.mxu0
  %v4873 = vadd.f32 0.0, %v4872
  %4874 = vdwg.mxu0
  %4875 = vmatpush.bf16.msra.mxu0 %v2049
  %4876 = vmatpush.bf16.msra.mxu0 %v2041
  %4877 = vmatpush.bf16.msra.mxu0 %v2033
  %4878 = vmatpush.bf16.msra.mxu0 %v2025
  %4879 = vmatpush.bf16.msra.mxu0 %v2017
  %4880 = vmatpush.bf16.msra.mxu0 %v2009
  %4881 = vmatpush.bf16.msra.mxu0 %v2001
  %4882 = vmatpush.bf16.msra.mxu0 %v1993
  %4883 = vmatmul.bf16.gmra.mxu0 %v4776
  %v4884 = vpop.f32.mrf.mxu0
  %v4885 = vadd.f32 %v4871, %v4884
  %v4886 = vpop.f32.mrf.mxu0
  %v4887 = vadd.f32 %v4873, %v4886
  %4888 = vdwg.mxu0
  %4889 = vmatpush.bf16.msra.mxu0 %v1986
  %4890 = vmatpush.bf16.msra.mxu0 %v1978
  %4891 = vmatpush.bf16.msra.mxu0 %v1970
  %4892 = vmatpush.bf16.msra.mxu0 %v1962
  %4893 = vmatpush.bf16.msra.mxu0 %v1954
  %4894 = vmatpush.bf16.msra.mxu0 %v1946
  %4895 = vmatpush.bf16.msra.mxu0 %v1938
  %4896 = vmatpush.bf16.msra.mxu0 %v1930
  %4897 = vmatmul.bf16.gmra.mxu0 %v4775
  %v4898 = vpop.f32.mrf.mxu0
  %v4899 = vadd.f32 0.0, %v4898
  %v4900 = vpop.f32.mrf.mxu0
  %v4901 = vadd.f32 0.0, %v4900
  %4902 = vdwg.mxu0
  %4903 = vmatpush.bf16.msra.mxu0 %v2050
  %4904 = vmatpush.bf16.msra.mxu0 %v2042
  %4905 = vmatpush.bf16.msra.mxu0 %v2034
  %4906 = vmatpush.bf16.msra.mxu0 %v2026
  %4907 = vmatpush.bf16.msra.mxu0 %v2018
  %4908 = vmatpush.bf16.msra.mxu0 %v2010
  %4909 = vmatpush.bf16.msra.mxu0 %v2002
  %4910 = vmatpush.bf16.msra.mxu0 %v1994
  %4911 = vmatmul.bf16.gmra.mxu0 %v4776
  %v4912 = vpop.f32.mrf.mxu0
  %v4913 = vadd.f32 %v4899, %v4912
  %v4914 = vpop.f32.mrf.mxu0
  %v4915 = vadd.f32 %v4901, %v4914
  %4916 = vdwg.mxu0
  %4917 = vmatpush.bf16.msra.mxu0 %v1987
  %4918 = vmatpush.bf16.msra.mxu0 %v1979
  %4919 = vmatpush.bf16.msra.mxu0 %v1971
  %4920 = vmatpush.bf16.msra.mxu0 %v1963
  %4921 = vmatpush.bf16.msra.mxu0 %v1955
  %4922 = vmatpush.bf16.msra.mxu0 %v1947
  %4923 = vmatpush.bf16.msra.mxu0 %v1939
  %4924 = vmatpush.bf16.msra.mxu0 %v1931
  %4925 = vmatmul.bf16.gmra.mxu0 %v4775
  %v4926 = vpop.f32.mrf.mxu0
  %v4927 = vadd.f32 0.0, %v4926
  %v4928 = vpop.f32.mrf.mxu0
  %v4929 = vadd.f32 0.0, %v4928
  %4930 = vdwg.mxu0
  %4931 = vmatpush.bf16.msra.mxu0 %v2051
  %4932 = vmatpush.bf16.msra.mxu0 %v2043
  %4933 = vmatpush.bf16.msra.mxu0 %v2035
  %4934 = vmatpush.bf16.msra.mxu0 %v2027
  %4935 = vmatpush.bf16.msra.mxu0 %v2019
  %4936 = vmatpush.bf16.msra.mxu0 %v2011
  %4937 = vmatpush.bf16.msra.mxu0 %v2003
  %4938 = vmatpush.bf16.msra.mxu0 %v1995
  %4939 = vmatmul.bf16.gmra.mxu0 %v4776
  %v4940 = vpop.f32.mrf.mxu0
  %v4941 = vadd.f32 %v4927, %v4940
  %v4942 = vpop.f32.mrf.mxu0
  %v4943 = vadd.f32 %v4929, %v4942
  %4944 = vdwg.mxu0
  %4945 = vmatpush.bf16.msra.mxu0 %v1988
  %4946 = vmatpush.bf16.msra.mxu0 %v1980
  %4947 = vmatpush.bf16.msra.mxu0 %v1972
  %4948 = vmatpush.bf16.msra.mxu0 %v1964
  %4949 = vmatpush.bf16.msra.mxu0 %v1956
  %4950 = vmatpush.bf16.msra.mxu0 %v1948
  %4951 = vmatpush.bf16.msra.mxu0 %v1940
  %4952 = vmatpush.bf16.msra.mxu0 %v1932
  %4953 = vmatmul.bf16.gmra.mxu0 %v4775
  %v4954 = vpop.f32.mrf.mxu0
  %v4955 = vadd.f32 0.0, %v4954
  %v4956 = vpop.f32.mrf.mxu0
  %v4957 = vadd.f32 0.0, %v4956
  %4958 = vdwg.mxu0
  %4959 = vmatpush.bf16.msra.mxu0 %v2052
  %4960 = vmatpush.bf16.msra.mxu0 %v2044
  %4961 = vmatpush.bf16.msra.mxu0 %v2036
  %4962 = vmatpush.bf16.msra.mxu0 %v2028
  %4963 = vmatpush.bf16.msra.mxu0 %v2020
  %4964 = vmatpush.bf16.msra.mxu0 %v2012
  %4965 = vmatpush.bf16.msra.mxu0 %v2004
  %4966 = vmatpush.bf16.msra.mxu0 %v1996
  %4967 = vmatmul.bf16.gmra.mxu0 %v4776
  %v4968 = vpop.f32.mrf.mxu0
  %v4969 = vadd.f32 %v4955, %v4968
  %v4970 = vpop.f32.mrf.mxu0
  %v4971 = vadd.f32 %v4957, %v4970
  %4972 = vdwg.mxu0
  %4973 = vmatpush.bf16.msra.mxu0 %v1989
  %4974 = vmatpush.bf16.msra.mxu0 %v1981
  %4975 = vmatpush.bf16.msra.mxu0 %v1973
  %4976 = vmatpush.bf16.msra.mxu0 %v1965
  %4977 = vmatpush.bf16.msra.mxu0 %v1957
  %4978 = vmatpush.bf16.msra.mxu0 %v1949
  %4979 = vmatpush.bf16.msra.mxu0 %v1941
  %4980 = vmatpush.bf16.msra.mxu0 %v1933
  %4981 = vmatmul.bf16.gmra.mxu0 %v4775
  %v4982 = vpop.f32.mrf.mxu0
  %v4983 = vadd.f32 0.0, %v4982
  %v4984 = vpop.f32.mrf.mxu0
  %v4985 = vadd.f32 0.0, %v4984
  %4986 = vdwg.mxu0
  %4987 = vmatpush.bf16.msra.mxu0 %v2053
  %4988 = vmatpush.bf16.msra.mxu0 %v2045
  %4989 = vmatpush.bf16.msra.mxu0 %v2037
  %4990 = vmatpush.bf16.msra.mxu0 %v2029
  %4991 = vmatpush.bf16.msra.mxu0 %v2021
  %4992 = vmatpush.bf16.msra.mxu0 %v2013
  %4993 = vmatpush.bf16.msra.mxu0 %v2005
  %4994 = vmatpush.bf16.msra.mxu0 %v1997
  %4995 = vmatmul.bf16.gmra.mxu0 %v4776
  %v4996 = vpop.f32.mrf.mxu0
  %v4997 = vadd.f32 %v4983, %v4996
  %v4998 = vpop.f32.mrf.mxu0
  %v4999 = vadd.f32 %v4985, %v4998
  %5000 = vdwg.mxu0
  %v5001 = vadd.f32 %v4759, %v4801
  %v5002 = vadd.f32 %v4760, %v4829
  %v5003 = vadd.f32 %v4761, %v4857
  %v5004 = vadd.f32 %v4762, %v4885
  %v5005 = vadd.f32 %v4763, %v4913
  %v5006 = vadd.f32 %v4764, %v4941
  %v5007 = vadd.f32 %v4765, %v4969
  %v5008 = vadd.f32 %v4766, %v4997
  %v5009 = vadd.f32 %v4767, %v4803
  %v5010 = vadd.f32 %v4768, %v4831
  %v5011 = vadd.f32 %v4769, %v4859
  %v5012 = vadd.f32 %v4770, %v4887
  %v5013 = vadd.f32 %v4771, %v4915
  %v5014 = vadd.f32 %v4772, %v4943
  %v5015 = vadd.f32 %v4773, %v4971
  %v5016 = vadd.f32 %v4774, %v4999
  %v5017 = vxor.u32 %v5001, 2147483648
  %v5018 = vxor.u32 %v5009, 2147483648
  %v5019 = vmul.f32 %v5017, 1.442695
  %v5020 = vpow.pop %v5019
  %v5021 = vmul.f32 %v5018, 1.442695
  %v5022 = vpow.pop %v5021
  %v5023 = vadd.f32 %v5020, 1.0
  %v5024 = vadd.f32 %v5022, 1.0
  %v5025 = vrcp.pop %v5023
  %v5026 = vmul.f32 %v5023, %v5025
  %v5027 = vsub.f32 1.0, %v5026
  %v5028 = vmul.f32 %v5025, %v5027
  %v5029 = vadd.f32 %v5025, %v5028
  %vm5030 = vweird.f32 %v5023
  %vm5031 = vweird.f32 %v5025
  %vm5032 = vmor %vm5030, %vm5031
  %v5033 = vsel %vm5032, %v5025, %v5029
  %v5034 = vand.u32 2147483647, %v5023
  %vm5035 = vcmp.eq.f32.partialorder %v5034, 8.507059e+37
  %v5036 = vand.u32 %v5023, 2147483648
  %v5037 = vor.u32 1.1754944e-38, %v5036
  %v5038 = vsel %vm5035, %v5037, %v5033
  %v5039 = vmul.f32 1.0, %v5038
  %v5040 = vrcp.pop %v5024
  %v5041 = vmul.f32 %v5024, %v5040
  %v5042 = vsub.f32 1.0, %v5041
  %v5043 = vmul.f32 %v5040, %v5042
  %v5044 = vadd.f32 %v5040, %v5043
  %vm5045 = vweird.f32 %v5024
  %vm5046 = vweird.f32 %v5040
  %vm5047 = vmor %vm5045, %vm5046
  %v5048 = vsel %vm5047, %v5040, %v5044
  %v5049 = vand.u32 2147483647, %v5024
  %vm5050 = vcmp.eq.f32.partialorder %v5049, 8.507059e+37
  %v5051 = vand.u32 %v5024, 2147483648
  %v5052 = vor.u32 1.1754944e-38, %v5051
  %v5053 = vsel %vm5050, %v5052, %v5048
  %v5054 = vmul.f32 1.0, %v5053
  %v5055 = vxor.u32 %v5002, 2147483648
  %v5056 = vxor.u32 %v5010, 2147483648
  %v5057 = vmul.f32 %v5055, 1.442695
  %v5058 = vpow.pop %v5057
  %v5059 = vmul.f32 %v5056, 1.442695
  %v5060 = vpow.pop %v5059
  %v5061 = vadd.f32 %v5058, 1.0
  %v5062 = vadd.f32 %v5060, 1.0
  %v5063 = vrcp.pop %v5061
  %v5064 = vmul.f32 %v5061, %v5063
  %v5065 = vsub.f32 1.0, %v5064
  %v5066 = vmul.f32 %v5063, %v5065
  %v5067 = vadd.f32 %v5063, %v5066
  %vm5068 = vweird.f32 %v5061
  %vm5069 = vweird.f32 %v5063
  %vm5070 = vmor %vm5068, %vm5069
  %v5071 = vsel %vm5070, %v5063, %v5067
  %v5072 = vand.u32 2147483647, %v5061
  %vm5073 = vcmp.eq.f32.partialorder %v5072, 8.507059e+37
  %v5074 = vand.u32 %v5061, 2147483648
  %v5075 = vor.u32 1.1754944e-38, %v5074
  %v5076 = vsel %vm5073, %v5075, %v5071
  %v5077 = vmul.f32 1.0, %v5076
  %v5078 = vrcp.pop %v5062
  %v5079 = vmul.f32 %v5062, %v5078
  %v5080 = vsub.f32 1.0, %v5079
  %v5081 = vmul.f32 %v5078, %v5080
  %v5082 = vadd.f32 %v5078, %v5081
  %vm5083 = vweird.f32 %v5062
  %vm5084 = vweird.f32 %v5078
  %vm5085 = vmor %vm5083, %vm5084
  %v5086 = vsel %vm5085, %v5078, %v5082
  %v5087 = vand.u32 2147483647, %v5062
  %vm5088 = vcmp.eq.f32.partialorder %v5087, 8.507059e+37
  %v5089 = vand.u32 %v5062, 2147483648
  %v5090 = vor.u32 1.1754944e-38, %v5089
  %v5091 = vsel %vm5088, %v5090, %v5086
  %v5092 = vmul.f32 1.0, %v5091
  %v5093 = vtanh.pop %v5003
  %v5094 = vtanh.pop %v5011
  %v5095 = vxor.u32 %v5004, 2147483648
  %v5096 = vxor.u32 %v5012, 2147483648
  %v5097 = vmul.f32 %v5095, 1.442695
  %v5098 = vpow.pop %v5097
  %v5099 = vmul.f32 %v5096, 1.442695
  %v5100 = vpow.pop %v5099
  %v5101 = vadd.f32 %v5098, 1.0
  %v5102 = vadd.f32 %v5100, 1.0
  %v5103 = vrcp.pop %v5101
  %v5104 = vmul.f32 %v5101, %v5103
  %v5105 = vsub.f32 1.0, %v5104
  %v5106 = vmul.f32 %v5103, %v5105
  %v5107 = vadd.f32 %v5103, %v5106
  %vm5108 = vweird.f32 %v5101
  %vm5109 = vweird.f32 %v5103
  %vm5110 = vmor %vm5108, %vm5109
  %v5111 = vsel %vm5110, %v5103, %v5107
  %v5112 = vand.u32 2147483647, %v5101
  %vm5113 = vcmp.eq.f32.partialorder %v5112, 8.507059e+37
  %v5114 = vand.u32 %v5101, 2147483648
  %v5115 = vor.u32 1.1754944e-38, %v5114
  %v5116 = vsel %vm5113, %v5115, %v5111
  %v5117 = vmul.f32 1.0, %v5116
  %v5118 = vrcp.pop %v5102
  %v5119 = vmul.f32 %v5102, %v5118
  %v5120 = vsub.f32 1.0, %v5119
  %v5121 = vmul.f32 %v5118, %v5120
  %v5122 = vadd.f32 %v5118, %v5121
  %vm5123 = vweird.f32 %v5102
  %vm5124 = vweird.f32 %v5118
  %vm5125 = vmor %vm5123, %vm5124
  %v5126 = vsel %vm5125, %v5118, %v5122
  %v5127 = vand.u32 2147483647, %v5102
  %vm5128 = vcmp.eq.f32.partialorder %v5127, 8.507059e+37
  %v5129 = vand.u32 %v5102, 2147483648
  %v5130 = vor.u32 1.1754944e-38, %v5129
  %v5131 = vsel %vm5128, %v5130, %v5126
  %v5132 = vmul.f32 1.0, %v5131
  %v5133 = vmul.f32 %v5077, %v4618
  %v5134 = vmul.f32 %v5092, %v4619
  %v5135 = vmul.f32 %v5039, %v5093
  %v5136 = vmul.f32 %v5054, %v5094
  %v5137 = vadd.f32 %v5133, %v5135
  %v5138 = vadd.f32 %v5134, %v5136
  %v5139 = vtanh.pop %v5137
  %v5140 = vtanh.pop %v5138
  %v5141 = vmul.f32 %v5117, %v5139
  %v5142 = vmul.f32 %v5132, %v5140
  %v5143 = vxor.u32 %v5005, 2147483648
  %v5144 = vxor.u32 %v5013, 2147483648
  %v5145 = vmul.f32 %v5143, 1.442695
  %v5146 = vpow.pop %v5145
  %v5147 = vmul.f32 %v5144, 1.442695
  %v5148 = vpow.pop %v5147
  %v5149 = vadd.f32 %v5146, 1.0
  %v5150 = vadd.f32 %v5148, 1.0
  %v5151 = vrcp.pop %v5149
  %v5152 = vmul.f32 %v5149, %v5151
  %v5153 = vsub.f32 1.0, %v5152
  %v5154 = vmul.f32 %v5151, %v5153
  %v5155 = vadd.f32 %v5151, %v5154
  %vm5156 = vweird.f32 %v5149
  %vm5157 = vweird.f32 %v5151
  %vm5158 = vmor %vm5156, %vm5157
  %v5159 = vsel %vm5158, %v5151, %v5155
  %v5160 = vand.u32 2147483647, %v5149
  %vm5161 = vcmp.eq.f32.partialorder %v5160, 8.507059e+37
  %v5162 = vand.u32 %v5149, 2147483648
  %v5163 = vor.u32 1.1754944e-38, %v5162
  %v5164 = vsel %vm5161, %v5163, %v5159
  %v5165 = vmul.f32 1.0, %v5164
  %v5166 = vrcp.pop %v5150
  %v5167 = vmul.f32 %v5150, %v5166
  %v5168 = vsub.f32 1.0, %v5167
  %v5169 = vmul.f32 %v5166, %v5168
  %v5170 = vadd.f32 %v5166, %v5169
  %vm5171 = vweird.f32 %v5150
  %vm5172 = vweird.f32 %v5166
  %vm5173 = vmor %vm5171, %vm5172
  %v5174 = vsel %vm5173, %v5166, %v5170
  %v5175 = vand.u32 2147483647, %v5150
  %vm5176 = vcmp.eq.f32.partialorder %v5175, 8.507059e+37
  %v5177 = vand.u32 %v5150, 2147483648
  %v5178 = vor.u32 1.1754944e-38, %v5177
  %v5179 = vsel %vm5176, %v5178, %v5174
  %v5180 = vmul.f32 1.0, %v5179
  %v5181 = vxor.u32 %v5006, 2147483648
  %v5182 = vxor.u32 %v5014, 2147483648
  %v5183 = vmul.f32 %v5181, 1.442695
  %v5184 = vpow.pop %v5183
  %v5185 = vmul.f32 %v5182, 1.442695
  %v5186 = vpow.pop %v5185
  %v5187 = vadd.f32 %v5184, 1.0
  %v5188 = vadd.f32 %v5186, 1.0
  %v5189 = vrcp.pop %v5187
  %v5190 = vmul.f32 %v5187, %v5189
  %v5191 = vsub.f32 1.0, %v5190
  %v5192 = vmul.f32 %v5189, %v5191
  %v5193 = vadd.f32 %v5189, %v5192
  %vm5194 = vweird.f32 %v5187
  %vm5195 = vweird.f32 %v5189
  %vm5196 = vmor %vm5194, %vm5195
  %v5197 = vsel %vm5196, %v5189, %v5193
  %v5198 = vand.u32 2147483647, %v5187
  %vm5199 = vcmp.eq.f32.partialorder %v5198, 8.507059e+37
  %v5200 = vand.u32 %v5187, 2147483648
  %v5201 = vor.u32 1.1754944e-38, %v5200
  %v5202 = vsel %vm5199, %v5201, %v5197
  %v5203 = vmul.f32 1.0, %v5202
  %v5204 = vrcp.pop %v5188
  %v5205 = vmul.f32 %v5188, %v5204
  %v5206 = vsub.f32 1.0, %v5205
  %v5207 = vmul.f32 %v5204, %v5206
  %v5208 = vadd.f32 %v5204, %v5207
  %vm5209 = vweird.f32 %v5188
  %vm5210 = vweird.f32 %v5204
  %vm5211 = vmor %vm5209, %vm5210
  %v5212 = vsel %vm5211, %v5204, %v5208
  %v5213 = vand.u32 2147483647, %v5188
  %vm5214 = vcmp.eq.f32.partialorder %v5213, 8.507059e+37
  %v5215 = vand.u32 %v5188, 2147483648
  %v5216 = vor.u32 1.1754944e-38, %v5215
  %v5217 = vsel %vm5214, %v5216, %v5212
  %v5218 = vmul.f32 1.0, %v5217
  %v5219 = vtanh.pop %v5007
  %v5220 = vtanh.pop %v5015
  %v5221 = vxor.u32 %v5008, 2147483648
  %v5222 = vxor.u32 %v5016, 2147483648
  %v5223 = vmul.f32 %v5221, 1.442695
  %v5224 = vpow.pop %v5223
  %v5225 = vmul.f32 %v5222, 1.442695
  %v5226 = vpow.pop %v5225
  %v5227 = vadd.f32 %v5224, 1.0
  %v5228 = vadd.f32 %v5226, 1.0
  %v5229 = vrcp.pop %v5227
  %v5230 = vmul.f32 %v5227, %v5229
  %v5231 = vsub.f32 1.0, %v5230
  %v5232 = vmul.f32 %v5229, %v5231
  %v5233 = vadd.f32 %v5229, %v5232
  %vm5234 = vweird.f32 %v5227
  %vm5235 = vweird.f32 %v5229
  %vm5236 = vmor %vm5234, %vm5235
  %v5237 = vsel %vm5236, %v5229, %v5233
  %v5238 = vand.u32 2147483647, %v5227
  %vm5239 = vcmp.eq.f32.partialorder %v5238, 8.507059e+37
  %v5240 = vand.u32 %v5227, 2147483648
  %v5241 = vor.u32 1.1754944e-38, %v5240
  %v5242 = vsel %vm5239, %v5241, %v5237
  %v5243 = vmul.f32 1.0, %v5242
  %v5244 = vrcp.pop %v5228
  %v5245 = vmul.f32 %v5228, %v5244
  %v5246 = vsub.f32 1.0, %v5245
  %v5247 = vmul.f32 %v5244, %v5246
  %v5248 = vadd.f32 %v5244, %v5247
  %vm5249 = vweird.f32 %v5228
  %vm5250 = vweird.f32 %v5244
  %vm5251 = vmor %vm5249, %vm5250
  %v5252 = vsel %vm5251, %v5244, %v5248
  %v5253 = vand.u32 2147483647, %v5228
  %vm5254 = vcmp.eq.f32.partialorder %v5253, 8.507059e+37
  %v5255 = vand.u32 %v5228, 2147483648
  %v5256 = vor.u32 1.1754944e-38, %v5255
  %v5257 = vsel %vm5254, %v5256, %v5252
  %v5258 = vmul.f32 1.0, %v5257
  %v5259 = vmul.f32 %v5203, %v4744
  %v5260 = vmul.f32 %v5218, %v4745
  %v5261 = vmul.f32 %v5165, %v5219
  %v5262 = vmul.f32 %v5180, %v5220
  %v5263 = vadd.f32 %v5259, %v5261
  %v5264 = vadd.f32 %v5260, %v5262
  %v5265 = vtanh.pop %v5263
  %v5266 = vtanh.pop %v5264
  %v5267 = vmul.f32 %v5243, %v5265
  %v5268 = vmul.f32 %v5258, %v5266
  %s5269 = scalar_lea.vmem [#allocation2], 384
  %v5270 = vld [vmem:[%s5269] sm:$0xff]
  %v5271 = vld [vmem:[%s5269 + $0x8] sm:$0xff]
  %v5272 = vld [vmem:[%s5269 + $0x10] sm:$0xff]
  %v5273 = vld [vmem:[%s5269 + $0x18] sm:$0xff]
  %v5274 = vld [vmem:[%s5269 + $0x20] sm:$0xff]
  %v5275 = vld [vmem:[%s5269 + $0x28] sm:$0xff]
  %v5276 = vld [vmem:[%s5269 + $0x30] sm:$0xff]
  %v5277 = vld [vmem:[%s5269 + $0x38] sm:$0xff]
  %v5278 = vunpack.c.l.bf16 %v5270
  %v5279 = vunpack.c.h.bf16 %v5270
  %v5280 = vunpack.c.l.bf16 %v5271
  %v5281 = vunpack.c.h.bf16 %v5271
  %v5282 = vunpack.c.l.bf16 %v5272
  %v5283 = vunpack.c.h.bf16 %v5272
  %v5284 = vunpack.c.l.bf16 %v5273
  %v5285 = vunpack.c.h.bf16 %v5273
  %v5286 = vunpack.c.l.bf16 %v5274
  %v5287 = vunpack.c.h.bf16 %v5274
  %v5288 = vunpack.c.l.bf16 %v5275
  %v5289 = vunpack.c.h.bf16 %v5275
  %v5290 = vunpack.c.l.bf16 %v5276
  %v5291 = vunpack.c.h.bf16 %v5276
  %v5292 = vunpack.c.l.bf16 %v5277
  %v5293 = vunpack.c.h.bf16 %v5277
  %v5294 = vpack.c.bf16 %v5142, %v5141
  %v5295 = vpack.c.bf16 %v5268, %v5267
  %5296 = vmatpush.bf16.msra.mxu0 %v1982
  %5297 = vmatpush.bf16.msra.mxu0 %v1974
  %5298 = vmatpush.bf16.msra.mxu0 %v1966
  %5299 = vmatpush.bf16.msra.mxu0 %v1958
  %5300 = vmatpush.bf16.msra.mxu0 %v1950
  %5301 = vmatpush.bf16.msra.mxu0 %v1942
  %5302 = vmatpush.bf16.msra.mxu0 %v1934
  %5303 = vmatpush.bf16.msra.mxu0 %v1926
  %5304 = vmatmul.bf16.gmra.mxu0 %v5294
  %v5305 = vpop.f32.mrf.mxu0
  %v5306 = vadd.f32 0.0, %v5305
  %v5307 = vpop.f32.mrf.mxu0
  %v5308 = vadd.f32 0.0, %v5307
  %5309 = vdwg.mxu0
  %5310 = vmatpush.bf16.msra.mxu0 %v2046
  %5311 = vmatpush.bf16.msra.mxu0 %v2038
  %5312 = vmatpush.bf16.msra.mxu0 %v2030
  %5313 = vmatpush.bf16.msra.mxu0 %v2022
  %5314 = vmatpush.bf16.msra.mxu0 %v2014
  %5315 = vmatpush.bf16.msra.mxu0 %v2006
  %5316 = vmatpush.bf16.msra.mxu0 %v1998
  %5317 = vmatpush.bf16.msra.mxu0 %v1990
  %5318 = vmatmul.bf16.gmra.mxu0 %v5295
  %v5319 = vpop.f32.mrf.mxu0
  %v5320 = vadd.f32 %v5306, %v5319
  %v5321 = vpop.f32.mrf.mxu0
  %v5322 = vadd.f32 %v5308, %v5321
  %5323 = vdwg.mxu0
  %5324 = vmatpush.bf16.msra.mxu0 %v1983
  %5325 = vmatpush.bf16.msra.mxu0 %v1975
  %5326 = vmatpush.bf16.msra.mxu0 %v1967
  %5327 = vmatpush.bf16.msra.mxu0 %v1959
  %5328 = vmatpush.bf16.msra.mxu0 %v1951
  %5329 = vmatpush.bf16.msra.mxu0 %v1943
  %5330 = vmatpush.bf16.msra.mxu0 %v1935
  %5331 = vmatpush.bf16.msra.mxu0 %v1927
  %5332 = vmatmul.bf16.gmra.mxu0 %v5294
  %v5333 = vpop.f32.mrf.mxu0
  %v5334 = vadd.f32 0.0, %v5333
  %v5335 = vpop.f32.mrf.mxu0
  %v5336 = vadd.f32 0.0, %v5335
  %5337 = vdwg.mxu0
  %5338 = vmatpush.bf16.msra.mxu0 %v2047
  %5339 = vmatpush.bf16.msra.mxu0 %v2039
  %5340 = vmatpush.bf16.msra.mxu0 %v2031
  %5341 = vmatpush.bf16.msra.mxu0 %v2023
  %5342 = vmatpush.bf16.msra.mxu0 %v2015
  %5343 = vmatpush.bf16.msra.mxu0 %v2007
  %5344 = vmatpush.bf16.msra.mxu0 %v1999
  %5345 = vmatpush.bf16.msra.mxu0 %v1991
  %5346 = vmatmul.bf16.gmra.mxu0 %v5295
  %v5347 = vpop.f32.mrf.mxu0
  %v5348 = vadd.f32 %v5334, %v5347
  %v5349 = vpop.f32.mrf.mxu0
  %v5350 = vadd.f32 %v5336, %v5349
  %5351 = vdwg.mxu0
  %5352 = vmatpush.bf16.msra.mxu0 %v1984
  %5353 = vmatpush.bf16.msra.mxu0 %v1976
  %5354 = vmatpush.bf16.msra.mxu0 %v1968
  %5355 = vmatpush.bf16.msra.mxu0 %v1960
  %5356 = vmatpush.bf16.msra.mxu0 %v1952
  %5357 = vmatpush.bf16.msra.mxu0 %v1944
  %5358 = vmatpush.bf16.msra.mxu0 %v1936
  %5359 = vmatpush.bf16.msra.mxu0 %v1928
  %5360 = vmatmul.bf16.gmra.mxu0 %v5294
  %v5361 = vpop.f32.mrf.mxu0
  %v5362 = vadd.f32 0.0, %v5361
  %v5363 = vpop.f32.mrf.mxu0
  %v5364 = vadd.f32 0.0, %v5363
  %5365 = vdwg.mxu0
  %5366 = vmatpush.bf16.msra.mxu0 %v2048
  %5367 = vmatpush.bf16.msra.mxu0 %v2040
  %5368 = vmatpush.bf16.msra.mxu0 %v2032
  %5369 = vmatpush.bf16.msra.mxu0 %v2024
  %5370 = vmatpush.bf16.msra.mxu0 %v2016
  %5371 = vmatpush.bf16.msra.mxu0 %v2008
  %5372 = vmatpush.bf16.msra.mxu0 %v2000
  %5373 = vmatpush.bf16.msra.mxu0 %v1992
  %5374 = vmatmul.bf16.gmra.mxu0 %v5295
  %v5375 = vpop.f32.mrf.mxu0
  %v5376 = vadd.f32 %v5362, %v5375
  %v5377 = vpop.f32.mrf.mxu0
  %v5378 = vadd.f32 %v5364, %v5377
  %5379 = vdwg.mxu0
  %5380 = vmatpush.bf16.msra.mxu0 %v1985
  %5381 = vmatpush.bf16.msra.mxu0 %v1977
  %5382 = vmatpush.bf16.msra.mxu0 %v1969
  %5383 = vmatpush.bf16.msra.mxu0 %v1961
  %5384 = vmatpush.bf16.msra.mxu0 %v1953
  %5385 = vmatpush.bf16.msra.mxu0 %v1945
  %5386 = vmatpush.bf16.msra.mxu0 %v1937
  %5387 = vmatpush.bf16.msra.mxu0 %v1929
  %5388 = vmatmul.bf16.gmra.mxu0 %v5294
  %v5389 = vpop.f32.mrf.mxu0
  %v5390 = vadd.f32 0.0, %v5389
  %v5391 = vpop.f32.mrf.mxu0
  %v5392 = vadd.f32 0.0, %v5391
  %5393 = vdwg.mxu0
  %5394 = vmatpush.bf16.msra.mxu0 %v2049
  %5395 = vmatpush.bf16.msra.mxu0 %v2041
  %5396 = vmatpush.bf16.msra.mxu0 %v2033
  %5397 = vmatpush.bf16.msra.mxu0 %v2025
  %5398 = vmatpush.bf16.msra.mxu0 %v2017
  %5399 = vmatpush.bf16.msra.mxu0 %v2009
  %5400 = vmatpush.bf16.msra.mxu0 %v2001
  %5401 = vmatpush.bf16.msra.mxu0 %v1993
  %5402 = vmatmul.bf16.gmra.mxu0 %v5295
  %v5403 = vpop.f32.mrf.mxu0
  %v5404 = vadd.f32 %v5390, %v5403
  %v5405 = vpop.f32.mrf.mxu0
  %v5406 = vadd.f32 %v5392, %v5405
  %5407 = vdwg.mxu0
  %5408 = vmatpush.bf16.msra.mxu0 %v1986
  %5409 = vmatpush.bf16.msra.mxu0 %v1978
  %5410 = vmatpush.bf16.msra.mxu0 %v1970
  %5411 = vmatpush.bf16.msra.mxu0 %v1962
  %5412 = vmatpush.bf16.msra.mxu0 %v1954
  %5413 = vmatpush.bf16.msra.mxu0 %v1946
  %5414 = vmatpush.bf16.msra.mxu0 %v1938
  %5415 = vmatpush.bf16.msra.mxu0 %v1930
  %5416 = vmatmul.bf16.gmra.mxu0 %v5294
  %v5417 = vpop.f32.mrf.mxu0
  %v5418 = vadd.f32 0.0, %v5417
  %v5419 = vpop.f32.mrf.mxu0
  %v5420 = vadd.f32 0.0, %v5419
  %5421 = vdwg.mxu0
  %5422 = vmatpush.bf16.msra.mxu0 %v2050
  %5423 = vmatpush.bf16.msra.mxu0 %v2042
  %5424 = vmatpush.bf16.msra.mxu0 %v2034
  %5425 = vmatpush.bf16.msra.mxu0 %v2026
  %5426 = vmatpush.bf16.msra.mxu0 %v2018
  %5427 = vmatpush.bf16.msra.mxu0 %v2010
  %5428 = vmatpush.bf16.msra.mxu0 %v2002
  %5429 = vmatpush.bf16.msra.mxu0 %v1994
  %5430 = vmatmul.bf16.gmra.mxu0 %v5295
  %v5431 = vpop.f32.mrf.mxu0
  %v5432 = vadd.f32 %v5418, %v5431
  %v5433 = vpop.f32.mrf.mxu0
  %v5434 = vadd.f32 %v5420, %v5433
  %5435 = vdwg.mxu0
  %5436 = vmatpush.bf16.msra.mxu0 %v1987
  %5437 = vmatpush.bf16.msra.mxu0 %v1979
  %5438 = vmatpush.bf16.msra.mxu0 %v1971
  %5439 = vmatpush.bf16.msra.mxu0 %v1963
  %5440 = vmatpush.bf16.msra.mxu0 %v1955
  %5441 = vmatpush.bf16.msra.mxu0 %v1947
  %5442 = vmatpush.bf16.msra.mxu0 %v1939
  %5443 = vmatpush.bf16.msra.mxu0 %v1931
  %5444 = vmatmul.bf16.gmra.mxu0 %v5294
  %v5445 = vpop.f32.mrf.mxu0
  %v5446 = vadd.f32 0.0, %v5445
  %v5447 = vpop.f32.mrf.mxu0
  %v5448 = vadd.f32 0.0, %v5447
  %5449 = vdwg.mxu0
  %5450 = vmatpush.bf16.msra.mxu0 %v2051
  %5451 = vmatpush.bf16.msra.mxu0 %v2043
  %5452 = vmatpush.bf16.msra.mxu0 %v2035
  %5453 = vmatpush.bf16.msra.mxu0 %v2027
  %5454 = vmatpush.bf16.msra.mxu0 %v2019
  %5455 = vmatpush.bf16.msra.mxu0 %v2011
  %5456 = vmatpush.bf16.msra.mxu0 %v2003
  %5457 = vmatpush.bf16.msra.mxu0 %v1995
  %5458 = vmatmul.bf16.gmra.mxu0 %v5295
  %v5459 = vpop.f32.mrf.mxu0
  %v5460 = vadd.f32 %v5446, %v5459
  %v5461 = vpop.f32.mrf.mxu0
  %v5462 = vadd.f32 %v5448, %v5461
  %5463 = vdwg.mxu0
  %5464 = vmatpush.bf16.msra.mxu0 %v1988
  %5465 = vmatpush.bf16.msra.mxu0 %v1980
  %5466 = vmatpush.bf16.msra.mxu0 %v1972
  %5467 = vmatpush.bf16.msra.mxu0 %v1964
  %5468 = vmatpush.bf16.msra.mxu0 %v1956
  %5469 = vmatpush.bf16.msra.mxu0 %v1948
  %5470 = vmatpush.bf16.msra.mxu0 %v1940
  %5471 = vmatpush.bf16.msra.mxu0 %v1932
  %5472 = vmatmul.bf16.gmra.mxu0 %v5294
  %v5473 = vpop.f32.mrf.mxu0
  %v5474 = vadd.f32 0.0, %v5473
  %v5475 = vpop.f32.mrf.mxu0
  %v5476 = vadd.f32 0.0, %v5475
  %5477 = vdwg.mxu0
  %5478 = vmatpush.bf16.msra.mxu0 %v2052
  %5479 = vmatpush.bf16.msra.mxu0 %v2044
  %5480 = vmatpush.bf16.msra.mxu0 %v2036
  %5481 = vmatpush.bf16.msra.mxu0 %v2028
  %5482 = vmatpush.bf16.msra.mxu0 %v2020
  %5483 = vmatpush.bf16.msra.mxu0 %v2012
  %5484 = vmatpush.bf16.msra.mxu0 %v2004
  %5485 = vmatpush.bf16.msra.mxu0 %v1996
  %5486 = vmatmul.bf16.gmra.mxu0 %v5295
  %v5487 = vpop.f32.mrf.mxu0
  %v5488 = vadd.f32 %v5474, %v5487
  %v5489 = vpop.f32.mrf.mxu0
  %v5490 = vadd.f32 %v5476, %v5489
  %5491 = vdwg.mxu0
  %5492 = vmatpush.bf16.msra.mxu0 %v1989
  %5493 = vmatpush.bf16.msra.mxu0 %v1981
  %5494 = vmatpush.bf16.msra.mxu0 %v1973
  %5495 = vmatpush.bf16.msra.mxu0 %v1965
  %5496 = vmatpush.bf16.msra.mxu0 %v1957
  %5497 = vmatpush.bf16.msra.mxu0 %v1949
  %5498 = vmatpush.bf16.msra.mxu0 %v1941
  %5499 = vmatpush.bf16.msra.mxu0 %v1933
  %5500 = vmatmul.bf16.gmra.mxu0 %v5294
  %v5501 = vpop.f32.mrf.mxu0
  %v5502 = vadd.f32 0.0, %v5501
  %v5503 = vpop.f32.mrf.mxu0
  %v5504 = vadd.f32 0.0, %v5503
  %5505 = vdwg.mxu0
  %5506 = vmatpush.bf16.msra.mxu0 %v2053
  %5507 = vmatpush.bf16.msra.mxu0 %v2045
  %5508 = vmatpush.bf16.msra.mxu0 %v2037
  %5509 = vmatpush.bf16.msra.mxu0 %v2029
  %5510 = vmatpush.bf16.msra.mxu0 %v2021
  %5511 = vmatpush.bf16.msra.mxu0 %v2013
  %5512 = vmatpush.bf16.msra.mxu0 %v2005
  %5513 = vmatpush.bf16.msra.mxu0 %v1997
  %5514 = vmatmul.bf16.gmra.mxu0 %v5295
  %v5515 = vpop.f32.mrf.mxu0
  %v5516 = vadd.f32 %v5502, %v5515
  %v5517 = vpop.f32.mrf.mxu0
  %v5518 = vadd.f32 %v5504, %v5517
  %5519 = vdwg.mxu0
  %v5520 = vadd.f32 %v5278, %v5320
  %v5521 = vadd.f32 %v5279, %v5348
  %v5522 = vadd.f32 %v5280, %v5376
  %v5523 = vadd.f32 %v5281, %v5404
  %v5524 = vadd.f32 %v5282, %v5432
  %v5525 = vadd.f32 %v5283, %v5460
  %v5526 = vadd.f32 %v5284, %v5488
  %v5527 = vadd.f32 %v5285, %v5516
  %v5528 = vadd.f32 %v5286, %v5322
  %v5529 = vadd.f32 %v5287, %v5350
  %v5530 = vadd.f32 %v5288, %v5378
  %v5531 = vadd.f32 %v5289, %v5406
  %v5532 = vadd.f32 %v5290, %v5434
  %v5533 = vadd.f32 %v5291, %v5462
  %v5534 = vadd.f32 %v5292, %v5490
  %v5535 = vadd.f32 %v5293, %v5518
  %v5536 = vxor.u32 %v5520, 2147483648
  %v5537 = vxor.u32 %v5528, 2147483648
  %v5538 = vmul.f32 %v5536, 1.442695
  %v5539 = vpow.pop %v5538
  %v5540 = vmul.f32 %v5537, 1.442695
  %v5541 = vpow.pop %v5540
  %v5542 = vadd.f32 %v5539, 1.0
  %v5543 = vadd.f32 %v5541, 1.0
  %v5544 = vrcp.pop %v5542
  %v5545 = vmul.f32 %v5542, %v5544
  %v5546 = vsub.f32 1.0, %v5545
  %v5547 = vmul.f32 %v5544, %v5546
  %v5548 = vadd.f32 %v5544, %v5547
  %vm5549 = vweird.f32 %v5542
  %vm5550 = vweird.f32 %v5544
  %vm5551 = vmor %vm5549, %vm5550
  %v5552 = vsel %vm5551, %v5544, %v5548
  %v5553 = vand.u32 2147483647, %v5542
  %vm5554 = vcmp.eq.f32.partialorder %v5553, 8.507059e+37
  %v5555 = vand.u32 %v5542, 2147483648
  %v5556 = vor.u32 1.1754944e-38, %v5555
  %v5557 = vsel %vm5554, %v5556, %v5552
  %v5558 = vmul.f32 1.0, %v5557
  %v5559 = vrcp.pop %v5543
  %v5560 = vmul.f32 %v5543, %v5559
  %v5561 = vsub.f32 1.0, %v5560
  %v5562 = vmul.f32 %v5559, %v5561
  %v5563 = vadd.f32 %v5559, %v5562
  %vm5564 = vweird.f32 %v5543
  %vm5565 = vweird.f32 %v5559
  %vm5566 = vmor %vm5564, %vm5565
  %v5567 = vsel %vm5566, %v5559, %v5563
  %v5568 = vand.u32 2147483647, %v5543
  %vm5569 = vcmp.eq.f32.partialorder %v5568, 8.507059e+37
  %v5570 = vand.u32 %v5543, 2147483648
  %v5571 = vor.u32 1.1754944e-38, %v5570
  %v5572 = vsel %vm5569, %v5571, %v5567
  %v5573 = vmul.f32 1.0, %v5572
  %v5574 = vxor.u32 %v5521, 2147483648
  %v5575 = vxor.u32 %v5529, 2147483648
  %v5576 = vmul.f32 %v5574, 1.442695
  %v5577 = vpow.pop %v5576
  %v5578 = vmul.f32 %v5575, 1.442695
  %v5579 = vpow.pop %v5578
  %v5580 = vadd.f32 %v5577, 1.0
  %v5581 = vadd.f32 %v5579, 1.0
  %v5582 = vrcp.pop %v5580
  %v5583 = vmul.f32 %v5580, %v5582
  %v5584 = vsub.f32 1.0, %v5583
  %v5585 = vmul.f32 %v5582, %v5584
  %v5586 = vadd.f32 %v5582, %v5585
  %vm5587 = vweird.f32 %v5580
  %vm5588 = vweird.f32 %v5582
  %vm5589 = vmor %vm5587, %vm5588
  %v5590 = vsel %vm5589, %v5582, %v5586
  %v5591 = vand.u32 2147483647, %v5580
  %vm5592 = vcmp.eq.f32.partialorder %v5591, 8.507059e+37
  %v5593 = vand.u32 %v5580, 2147483648
  %v5594 = vor.u32 1.1754944e-38, %v5593
  %v5595 = vsel %vm5592, %v5594, %v5590
  %v5596 = vmul.f32 1.0, %v5595
  %v5597 = vrcp.pop %v5581
  %v5598 = vmul.f32 %v5581, %v5597
  %v5599 = vsub.f32 1.0, %v5598
  %v5600 = vmul.f32 %v5597, %v5599
  %v5601 = vadd.f32 %v5597, %v5600
  %vm5602 = vweird.f32 %v5581
  %vm5603 = vweird.f32 %v5597
  %vm5604 = vmor %vm5602, %vm5603
  %v5605 = vsel %vm5604, %v5597, %v5601
  %v5606 = vand.u32 2147483647, %v5581
  %vm5607 = vcmp.eq.f32.partialorder %v5606, 8.507059e+37
  %v5608 = vand.u32 %v5581, 2147483648
  %v5609 = vor.u32 1.1754944e-38, %v5608
  %v5610 = vsel %vm5607, %v5609, %v5605
  %v5611 = vmul.f32 1.0, %v5610
  %v5612 = vtanh.pop %v5522
  %v5613 = vtanh.pop %v5530
  %v5614 = vxor.u32 %v5523, 2147483648
  %v5615 = vxor.u32 %v5531, 2147483648
  %v5616 = vmul.f32 %v5614, 1.442695
  %v5617 = vpow.pop %v5616
  %v5618 = vmul.f32 %v5615, 1.442695
  %v5619 = vpow.pop %v5618
  %v5620 = vadd.f32 %v5617, 1.0
  %v5621 = vadd.f32 %v5619, 1.0
  %v5622 = vrcp.pop %v5620
  %v5623 = vmul.f32 %v5620, %v5622
  %v5624 = vsub.f32 1.0, %v5623
  %v5625 = vmul.f32 %v5622, %v5624
  %v5626 = vadd.f32 %v5622, %v5625
  %vm5627 = vweird.f32 %v5620
  %vm5628 = vweird.f32 %v5622
  %vm5629 = vmor %vm5627, %vm5628
  %v5630 = vsel %vm5629, %v5622, %v5626
  %v5631 = vand.u32 2147483647, %v5620
  %vm5632 = vcmp.eq.f32.partialorder %v5631, 8.507059e+37
  %v5633 = vand.u32 %v5620, 2147483648
  %v5634 = vor.u32 1.1754944e-38, %v5633
  %v5635 = vsel %vm5632, %v5634, %v5630
  %v5636 = vmul.f32 1.0, %v5635
  %v5637 = vrcp.pop %v5621
  %v5638 = vmul.f32 %v5621, %v5637
  %v5639 = vsub.f32 1.0, %v5638
  %v5640 = vmul.f32 %v5637, %v5639
  %v5641 = vadd.f32 %v5637, %v5640
  %vm5642 = vweird.f32 %v5621
  %vm5643 = vweird.f32 %v5637
  %vm5644 = vmor %vm5642, %vm5643
  %v5645 = vsel %vm5644, %v5637, %v5641
  %v5646 = vand.u32 2147483647, %v5621
  %vm5647 = vcmp.eq.f32.partialorder %v5646, 8.507059e+37
  %v5648 = vand.u32 %v5621, 2147483648
  %v5649 = vor.u32 1.1754944e-38, %v5648
  %v5650 = vsel %vm5647, %v5649, %v5645
  %v5651 = vmul.f32 1.0, %v5650
  %v5652 = vmul.f32 %v5596, %v5137
  %v5653 = vmul.f32 %v5611, %v5138
  %v5654 = vmul.f32 %v5558, %v5612
  %v5655 = vmul.f32 %v5573, %v5613
  %v5656 = vadd.f32 %v5652, %v5654
  %v5657 = vadd.f32 %v5653, %v5655
  %v5658 = vtanh.pop %v5656
  %v5659 = vtanh.pop %v5657
  %v5660 = vmul.f32 %v5636, %v5658
  %v5661 = vmul.f32 %v5651, %v5659
  %v5662 = vxor.u32 %v5524, 2147483648
  %v5663 = vxor.u32 %v5532, 2147483648
  %v5664 = vmul.f32 %v5662, 1.442695
  %v5665 = vpow.pop %v5664
  %v5666 = vmul.f32 %v5663, 1.442695
  %v5667 = vpow.pop %v5666
  %v5668 = vadd.f32 %v5665, 1.0
  %v5669 = vadd.f32 %v5667, 1.0
  %v5670 = vrcp.pop %v5668
  %v5671 = vmul.f32 %v5668, %v5670
  %v5672 = vsub.f32 1.0, %v5671
  %v5673 = vmul.f32 %v5670, %v5672
  %v5674 = vadd.f32 %v5670, %v5673
  %vm5675 = vweird.f32 %v5668
  %vm5676 = vweird.f32 %v5670
  %vm5677 = vmor %vm5675, %vm5676
  %v5678 = vsel %vm5677, %v5670, %v5674
  %v5679 = vand.u32 2147483647, %v5668
  %vm5680 = vcmp.eq.f32.partialorder %v5679, 8.507059e+37
  %v5681 = vand.u32 %v5668, 2147483648
  %v5682 = vor.u32 1.1754944e-38, %v5681
  %v5683 = vsel %vm5680, %v5682, %v5678
  %v5684 = vmul.f32 1.0, %v5683
  %v5685 = vrcp.pop %v5669
  %v5686 = vmul.f32 %v5669, %v5685
  %v5687 = vsub.f32 1.0, %v5686
  %v5688 = vmul.f32 %v5685, %v5687
  %v5689 = vadd.f32 %v5685, %v5688
  %vm5690 = vweird.f32 %v5669
  %vm5691 = vweird.f32 %v5685
  %vm5692 = vmor %vm5690, %vm5691
  %v5693 = vsel %vm5692, %v5685, %v5689
  %v5694 = vand.u32 2147483647, %v5669
  %vm5695 = vcmp.eq.f32.partialorder %v5694, 8.507059e+37
  %v5696 = vand.u32 %v5669, 2147483648
  %v5697 = vor.u32 1.1754944e-38, %v5696
  %v5698 = vsel %vm5695, %v5697, %v5693
  %v5699 = vmul.f32 1.0, %v5698
  %v5700 = vxor.u32 %v5525, 2147483648
  %v5701 = vxor.u32 %v5533, 2147483648
  %v5702 = vmul.f32 %v5700, 1.442695
  %v5703 = vpow.pop %v5702
  %v5704 = vmul.f32 %v5701, 1.442695
  %v5705 = vpow.pop %v5704
  %v5706 = vadd.f32 %v5703, 1.0
  %v5707 = vadd.f32 %v5705, 1.0
  %v5708 = vrcp.pop %v5706
  %v5709 = vmul.f32 %v5706, %v5708
  %v5710 = vsub.f32 1.0, %v5709
  %v5711 = vmul.f32 %v5708, %v5710
  %v5712 = vadd.f32 %v5708, %v5711
  %vm5713 = vweird.f32 %v5706
  %vm5714 = vweird.f32 %v5708
  %vm5715 = vmor %vm5713, %vm5714
  %v5716 = vsel %vm5715, %v5708, %v5712
  %v5717 = vand.u32 2147483647, %v5706
  %vm5718 = vcmp.eq.f32.partialorder %v5717, 8.507059e+37
  %v5719 = vand.u32 %v5706, 2147483648
  %v5720 = vor.u32 1.1754944e-38, %v5719
  %v5721 = vsel %vm5718, %v5720, %v5716
  %v5722 = vmul.f32 1.0, %v5721
  %v5723 = vrcp.pop %v5707
  %v5724 = vmul.f32 %v5707, %v5723
  %v5725 = vsub.f32 1.0, %v5724
  %v5726 = vmul.f32 %v5723, %v5725
  %v5727 = vadd.f32 %v5723, %v5726
  %vm5728 = vweird.f32 %v5707
  %vm5729 = vweird.f32 %v5723
  %vm5730 = vmor %vm5728, %vm5729
  %v5731 = vsel %vm5730, %v5723, %v5727
  %v5732 = vand.u32 2147483647, %v5707
  %vm5733 = vcmp.eq.f32.partialorder %v5732, 8.507059e+37
  %v5734 = vand.u32 %v5707, 2147483648
  %v5735 = vor.u32 1.1754944e-38, %v5734
  %v5736 = vsel %vm5733, %v5735, %v5731
  %v5737 = vmul.f32 1.0, %v5736
  %v5738 = vtanh.pop %v5526
  %v5739 = vtanh.pop %v5534
  %v5740 = vxor.u32 %v5527, 2147483648
  %v5741 = vxor.u32 %v5535, 2147483648
  %v5742 = vmul.f32 %v5740, 1.442695
  %v5743 = vpow.pop %v5742
  %v5744 = vmul.f32 %v5741, 1.442695
  %v5745 = vpow.pop %v5744
  %v5746 = vadd.f32 %v5743, 1.0
  %v5747 = vadd.f32 %v5745, 1.0
  %v5748 = vrcp.pop %v5746
  %v5749 = vmul.f32 %v5746, %v5748
  %v5750 = vsub.f32 1.0, %v5749
  %v5751 = vmul.f32 %v5748, %v5750
  %v5752 = vadd.f32 %v5748, %v5751
  %vm5753 = vweird.f32 %v5746
  %vm5754 = vweird.f32 %v5748
  %vm5755 = vmor %vm5753, %vm5754
  %v5756 = vsel %vm5755, %v5748, %v5752
  %v5757 = vand.u32 2147483647, %v5746
  %vm5758 = vcmp.eq.f32.partialorder %v5757, 8.507059e+37
  %v5759 = vand.u32 %v5746, 2147483648
  %v5760 = vor.u32 1.1754944e-38, %v5759
  %v5761 = vsel %vm5758, %v5760, %v5756
  %v5762 = vmul.f32 1.0, %v5761
  %v5763 = vrcp.pop %v5747
  %v5764 = vmul.f32 %v5747, %v5763
  %v5765 = vsub.f32 1.0, %v5764
  %v5766 = vmul.f32 %v5763, %v5765
  %v5767 = vadd.f32 %v5763, %v5766
  %vm5768 = vweird.f32 %v5747
  %vm5769 = vweird.f32 %v5763
  %vm5770 = vmor %vm5768, %vm5769
  %v5771 = vsel %vm5770, %v5763, %v5767
  %v5772 = vand.u32 2147483647, %v5747
  %vm5773 = vcmp.eq.f32.partialorder %v5772, 8.507059e+37
  %v5774 = vand.u32 %v5747, 2147483648
  %v5775 = vor.u32 1.1754944e-38, %v5774
  %v5776 = vsel %vm5773, %v5775, %v5771
  %v5777 = vmul.f32 1.0, %v5776
  %v5778 = vmul.f32 %v5722, %v5263
  %v5779 = vmul.f32 %v5737, %v5264
  %v5780 = vmul.f32 %v5684, %v5738
  %v5781 = vmul.f32 %v5699, %v5739
  %v5782 = vadd.f32 %v5778, %v5780
  %v5783 = vadd.f32 %v5779, %v5781
  %v5784 = vtanh.pop %v5782
  %v5785 = vtanh.pop %v5783
  %v5786 = vmul.f32 %v5762, %v5784
  %v5787 = vmul.f32 %v5777, %v5785
  %s5788 = scalar_lea.vmem [#allocation2], 448
  %v5789 = vld [vmem:[%s5788] sm:$0xff]
  %v5790 = vld [vmem:[%s5788 + $0x8] sm:$0xff]
  %v5791 = vld [vmem:[%s5788 + $0x10] sm:$0xff]
  %v5792 = vld [vmem:[%s5788 + $0x18] sm:$0xff]
  %v5793 = vld [vmem:[%s5788 + $0x20] sm:$0xff]
  %v5794 = vld [vmem:[%s5788 + $0x28] sm:$0xff]
  %v5795 = vld [vmem:[%s5788 + $0x30] sm:$0xff]
  %v5796 = vld [vmem:[%s5788 + $0x38] sm:$0xff]
  %v5797 = vunpack.c.l.bf16 %v5789
  %v5798 = vunpack.c.h.bf16 %v5789
  %v5799 = vunpack.c.l.bf16 %v5790
  %v5800 = vunpack.c.h.bf16 %v5790
  %v5801 = vunpack.c.l.bf16 %v5791
  %v5802 = vunpack.c.h.bf16 %v5791
  %v5803 = vunpack.c.l.bf16 %v5792
  %v5804 = vunpack.c.h.bf16 %v5792
  %v5805 = vunpack.c.l.bf16 %v5793
  %v5806 = vunpack.c.h.bf16 %v5793
  %v5807 = vunpack.c.l.bf16 %v5794
  %v5808 = vunpack.c.h.bf16 %v5794
  %v5809 = vunpack.c.l.bf16 %v5795
  %v5810 = vunpack.c.h.bf16 %v5795
  %v5811 = vunpack.c.l.bf16 %v5796
  %v5812 = vunpack.c.h.bf16 %v5796
  %v5813 = vpack.c.bf16 %v5661, %v5660
  %v5814 = vpack.c.bf16 %v5787, %v5786
  %5815 = vmatpush.bf16.msra.mxu0 %v1982
  %5816 = vmatpush.bf16.msra.mxu0 %v1974
  %5817 = vmatpush.bf16.msra.mxu0 %v1966
  %5818 = vmatpush.bf16.msra.mxu0 %v1958
  %5819 = vmatpush.bf16.msra.mxu0 %v1950
  %5820 = vmatpush.bf16.msra.mxu0 %v1942
  %5821 = vmatpush.bf16.msra.mxu0 %v1934
  %5822 = vmatpush.bf16.msra.mxu0 %v1926
  %5823 = vmatmul.bf16.gmra.mxu0 %v5813
  %v5824 = vpop.f32.mrf.mxu0
  %v5825 = vadd.f32 0.0, %v5824
  %v5826 = vpop.f32.mrf.mxu0
  %v5827 = vadd.f32 0.0, %v5826
  %5828 = vdwg.mxu0
  %5829 = vmatpush.bf16.msra.mxu0 %v2046
  %5830 = vmatpush.bf16.msra.mxu0 %v2038
  %5831 = vmatpush.bf16.msra.mxu0 %v2030
  %5832 = vmatpush.bf16.msra.mxu0 %v2022
  %5833 = vmatpush.bf16.msra.mxu0 %v2014
  %5834 = vmatpush.bf16.msra.mxu0 %v2006
  %5835 = vmatpush.bf16.msra.mxu0 %v1998
  %5836 = vmatpush.bf16.msra.mxu0 %v1990
  %5837 = vmatmul.bf16.gmra.mxu0 %v5814
  %v5838 = vpop.f32.mrf.mxu0
  %v5839 = vadd.f32 %v5825, %v5838
  %v5840 = vpop.f32.mrf.mxu0
  %v5841 = vadd.f32 %v5827, %v5840
  %5842 = vdwg.mxu0
  %5843 = vmatpush.bf16.msra.mxu0 %v1983
  %5844 = vmatpush.bf16.msra.mxu0 %v1975
  %5845 = vmatpush.bf16.msra.mxu0 %v1967
  %5846 = vmatpush.bf16.msra.mxu0 %v1959
  %5847 = vmatpush.bf16.msra.mxu0 %v1951
  %5848 = vmatpush.bf16.msra.mxu0 %v1943
  %5849 = vmatpush.bf16.msra.mxu0 %v1935
  %5850 = vmatpush.bf16.msra.mxu0 %v1927
  %5851 = vmatmul.bf16.gmra.mxu0 %v5813
  %v5852 = vpop.f32.mrf.mxu0
  %v5853 = vadd.f32 0.0, %v5852
  %v5854 = vpop.f32.mrf.mxu0
  %v5855 = vadd.f32 0.0, %v5854
  %5856 = vdwg.mxu0
  %5857 = vmatpush.bf16.msra.mxu0 %v2047
  %5858 = vmatpush.bf16.msra.mxu0 %v2039
  %5859 = vmatpush.bf16.msra.mxu0 %v2031
  %5860 = vmatpush.bf16.msra.mxu0 %v2023
  %5861 = vmatpush.bf16.msra.mxu0 %v2015
  %5862 = vmatpush.bf16.msra.mxu0 %v2007
  %5863 = vmatpush.bf16.msra.mxu0 %v1999
  %5864 = vmatpush.bf16.msra.mxu0 %v1991
  %5865 = vmatmul.bf16.gmra.mxu0 %v5814
  %v5866 = vpop.f32.mrf.mxu0
  %v5867 = vadd.f32 %v5853, %v5866
  %v5868 = vpop.f32.mrf.mxu0
  %v5869 = vadd.f32 %v5855, %v5868
  %5870 = vdwg.mxu0
  %5871 = vmatpush.bf16.msra.mxu0 %v1984
  %5872 = vmatpush.bf16.msra.mxu0 %v1976
  %5873 = vmatpush.bf16.msra.mxu0 %v1968
  %5874 = vmatpush.bf16.msra.mxu0 %v1960
  %5875 = vmatpush.bf16.msra.mxu0 %v1952
  %5876 = vmatpush.bf16.msra.mxu0 %v1944
  %5877 = vmatpush.bf16.msra.mxu0 %v1936
  %5878 = vmatpush.bf16.msra.mxu0 %v1928
  %5879 = vmatmul.bf16.gmra.mxu0 %v5813
  %v5880 = vpop.f32.mrf.mxu0
  %v5881 = vadd.f32 0.0, %v5880
  %v5882 = vpop.f32.mrf.mxu0
  %v5883 = vadd.f32 0.0, %v5882
  %5884 = vdwg.mxu0
  %5885 = vmatpush.bf16.msra.mxu0 %v2048
  %5886 = vmatpush.bf16.msra.mxu0 %v2040
  %5887 = vmatpush.bf16.msra.mxu0 %v2032
  %5888 = vmatpush.bf16.msra.mxu0 %v2024
  %5889 = vmatpush.bf16.msra.mxu0 %v2016
  %5890 = vmatpush.bf16.msra.mxu0 %v2008
  %5891 = vmatpush.bf16.msra.mxu0 %v2000
  %5892 = vmatpush.bf16.msra.mxu0 %v1992
  %5893 = vmatmul.bf16.gmra.mxu0 %v5814
  %v5894 = vpop.f32.mrf.mxu0
  %v5895 = vadd.f32 %v5881, %v5894
  %v5896 = vpop.f32.mrf.mxu0
  %v5897 = vadd.f32 %v5883, %v5896
  %5898 = vdwg.mxu0
  %5899 = vmatpush.bf16.msra.mxu0 %v1985
  %5900 = vmatpush.bf16.msra.mxu0 %v1977
  %5901 = vmatpush.bf16.msra.mxu0 %v1969
  %5902 = vmatpush.bf16.msra.mxu0 %v1961
  %5903 = vmatpush.bf16.msra.mxu0 %v1953
  %5904 = vmatpush.bf16.msra.mxu0 %v1945
  %5905 = vmatpush.bf16.msra.mxu0 %v1937
  %5906 = vmatpush.bf16.msra.mxu0 %v1929
  %5907 = vmatmul.bf16.gmra.mxu0 %v5813
  %v5908 = vpop.f32.mrf.mxu0
  %v5909 = vadd.f32 0.0, %v5908
  %v5910 = vpop.f32.mrf.mxu0
  %v5911 = vadd.f32 0.0, %v5910
  %5912 = vdwg.mxu0
  %5913 = vmatpush.bf16.msra.mxu0 %v2049
  %5914 = vmatpush.bf16.msra.mxu0 %v2041
  %5915 = vmatpush.bf16.msra.mxu0 %v2033
  %5916 = vmatpush.bf16.msra.mxu0 %v2025
  %5917 = vmatpush.bf16.msra.mxu0 %v2017
  %5918 = vmatpush.bf16.msra.mxu0 %v2009
  %5919 = vmatpush.bf16.msra.mxu0 %v2001
  %5920 = vmatpush.bf16.msra.mxu0 %v1993
  %5921 = vmatmul.bf16.gmra.mxu0 %v5814
  %v5922 = vpop.f32.mrf.mxu0
  %v5923 = vadd.f32 %v5909, %v5922
  %v5924 = vpop.f32.mrf.mxu0
  %v5925 = vadd.f32 %v5911, %v5924
  %5926 = vdwg.mxu0
  %5927 = vmatpush.bf16.msra.mxu0 %v1986
  %5928 = vmatpush.bf16.msra.mxu0 %v1978
  %5929 = vmatpush.bf16.msra.mxu0 %v1970
  %5930 = vmatpush.bf16.msra.mxu0 %v1962
  %5931 = vmatpush.bf16.msra.mxu0 %v1954
  %5932 = vmatpush.bf16.msra.mxu0 %v1946
  %5933 = vmatpush.bf16.msra.mxu0 %v1938
  %5934 = vmatpush.bf16.msra.mxu0 %v1930
  %5935 = vmatmul.bf16.gmra.mxu0 %v5813
  %v5936 = vpop.f32.mrf.mxu0
  %v5937 = vadd.f32 0.0, %v5936
  %v5938 = vpop.f32.mrf.mxu0
  %v5939 = vadd.f32 0.0, %v5938
  %5940 = vdwg.mxu0
  %5941 = vmatpush.bf16.msra.mxu0 %v2050
  %5942 = vmatpush.bf16.msra.mxu0 %v2042
  %5943 = vmatpush.bf16.msra.mxu0 %v2034
  %5944 = vmatpush.bf16.msra.mxu0 %v2026
  %5945 = vmatpush.bf16.msra.mxu0 %v2018
  %5946 = vmatpush.bf16.msra.mxu0 %v2010
  %5947 = vmatpush.bf16.msra.mxu0 %v2002
  %5948 = vmatpush.bf16.msra.mxu0 %v1994
  %5949 = vmatmul.bf16.gmra.mxu0 %v5814
  %v5950 = vpop.f32.mrf.mxu0
  %v5951 = vadd.f32 %v5937, %v5950
  %v5952 = vpop.f32.mrf.mxu0
  %v5953 = vadd.f32 %v5939, %v5952
  %5954 = vdwg.mxu0
  %5955 = vmatpush.bf16.msra.mxu0 %v1987
  %5956 = vmatpush.bf16.msra.mxu0 %v1979
  %5957 = vmatpush.bf16.msra.mxu0 %v1971
  %5958 = vmatpush.bf16.msra.mxu0 %v1963
  %5959 = vmatpush.bf16.msra.mxu0 %v1955
  %5960 = vmatpush.bf16.msra.mxu0 %v1947
  %5961 = vmatpush.bf16.msra.mxu0 %v1939
  %5962 = vmatpush.bf16.msra.mxu0 %v1931
  %5963 = vmatmul.bf16.gmra.mxu0 %v5813
  %v5964 = vpop.f32.mrf.mxu0
  %v5965 = vadd.f32 0.0, %v5964
  %v5966 = vpop.f32.mrf.mxu0
  %v5967 = vadd.f32 0.0, %v5966
  %5968 = vdwg.mxu0
  %5969 = vmatpush.bf16.msra.mxu0 %v2051
  %5970 = vmatpush.bf16.msra.mxu0 %v2043
  %5971 = vmatpush.bf16.msra.mxu0 %v2035
  %5972 = vmatpush.bf16.msra.mxu0 %v2027
  %5973 = vmatpush.bf16.msra.mxu0 %v2019
  %5974 = vmatpush.bf16.msra.mxu0 %v2011
  %5975 = vmatpush.bf16.msra.mxu0 %v2003
  %5976 = vmatpush.bf16.msra.mxu0 %v1995
  %5977 = vmatmul.bf16.gmra.mxu0 %v5814
  %v5978 = vpop.f32.mrf.mxu0
  %v5979 = vadd.f32 %v5965, %v5978
  %v5980 = vpop.f32.mrf.mxu0
  %v5981 = vadd.f32 %v5967, %v5980
  %5982 = vdwg.mxu0
  %5983 = vmatpush.bf16.msra.mxu0 %v1988
  %5984 = vmatpush.bf16.msra.mxu0 %v1980
  %5985 = vmatpush.bf16.msra.mxu0 %v1972
  %5986 = vmatpush.bf16.msra.mxu0 %v1964
  %5987 = vmatpush.bf16.msra.mxu0 %v1956
  %5988 = vmatpush.bf16.msra.mxu0 %v1948
  %5989 = vmatpush.bf16.msra.mxu0 %v1940
  %5990 = vmatpush.bf16.msra.mxu0 %v1932
  %5991 = vmatmul.bf16.gmra.mxu0 %v5813
  %v5992 = vpop.f32.mrf.mxu0
  %v5993 = vadd.f32 0.0, %v5992
  %v5994 = vpop.f32.mrf.mxu0
  %v5995 = vadd.f32 0.0, %v5994
  %5996 = vdwg.mxu0
  %5997 = vmatpush.bf16.msra.mxu0 %v2052
  %5998 = vmatpush.bf16.msra.mxu0 %v2044
  %5999 = vmatpush.bf16.msra.mxu0 %v2036
  %6000 = vmatpush.bf16.msra.mxu0 %v2028
  %6001 = vmatpush.bf16.msra.mxu0 %v2020
  %6002 = vmatpush.bf16.msra.mxu0 %v2012
  %6003 = vmatpush.bf16.msra.mxu0 %v2004
  %6004 = vmatpush.bf16.msra.mxu0 %v1996
  %6005 = vmatmul.bf16.gmra.mxu0 %v5814
  %v6006 = vpop.f32.mrf.mxu0
  %v6007 = vadd.f32 %v5993, %v6006
  %v6008 = vpop.f32.mrf.mxu0
  %v6009 = vadd.f32 %v5995, %v6008
  %6010 = vdwg.mxu0
  %6011 = vmatpush.bf16.msra.mxu0 %v1989
  %6012 = vmatpush.bf16.msra.mxu0 %v1981
  %6013 = vmatpush.bf16.msra.mxu0 %v1973
  %6014 = vmatpush.bf16.msra.mxu0 %v1965
  %6015 = vmatpush.bf16.msra.mxu0 %v1957
  %6016 = vmatpush.bf16.msra.mxu0 %v1949
  %6017 = vmatpush.bf16.msra.mxu0 %v1941
  %6018 = vmatpush.bf16.msra.mxu0 %v1933
  %6019 = vmatmul.bf16.gmra.mxu0 %v5813
  %v6020 = vpop.f32.mrf.mxu0
  %v6021 = vadd.f32 0.0, %v6020
  %v6022 = vpop.f32.mrf.mxu0
  %v6023 = vadd.f32 0.0, %v6022
  %6024 = vdwg.mxu0
  %6025 = vmatpush.bf16.msra.mxu0 %v2053
  %6026 = vmatpush.bf16.msra.mxu0 %v2045
  %6027 = vmatpush.bf16.msra.mxu0 %v2037
  %6028 = vmatpush.bf16.msra.mxu0 %v2029
  %6029 = vmatpush.bf16.msra.mxu0 %v2021
  %6030 = vmatpush.bf16.msra.mxu0 %v2013
  %6031 = vmatpush.bf16.msra.mxu0 %v2005
  %6032 = vmatpush.bf16.msra.mxu0 %v1997
  %6033 = vmatmul.bf16.gmra.mxu0 %v5814
  %v6034 = vpop.f32.mrf.mxu0
  %v6035 = vadd.f32 %v6021, %v6034
  %v6036 = vpop.f32.mrf.mxu0
  %v6037 = vadd.f32 %v6023, %v6036
  %6038 = vdwg.mxu0
  %v6039 = vadd.f32 %v5797, %v5839
  %v6040 = vadd.f32 %v5798, %v5867
  %v6041 = vadd.f32 %v5799, %v5895
  %v6042 = vadd.f32 %v5800, %v5923
  %v6043 = vadd.f32 %v5801, %v5951
  %v6044 = vadd.f32 %v5802, %v5979
  %v6045 = vadd.f32 %v5803, %v6007
  %v6046 = vadd.f32 %v5804, %v6035
  %v6047 = vadd.f32 %v5805, %v5841
  %v6048 = vadd.f32 %v5806, %v5869
  %v6049 = vadd.f32 %v5807, %v5897
  %v6050 = vadd.f32 %v5808, %v5925
  %v6051 = vadd.f32 %v5809, %v5953
  %v6052 = vadd.f32 %v5810, %v5981
  %v6053 = vadd.f32 %v5811, %v6009
  %v6054 = vadd.f32 %v5812, %v6037
  %v6055 = vxor.u32 %v6039, 2147483648
  %v6056 = vxor.u32 %v6047, 2147483648
  %v6057 = vmul.f32 %v6055, 1.442695
  %v6058 = vpow.pop %v6057
  %v6059 = vmul.f32 %v6056, 1.442695
  %v6060 = vpow.pop %v6059
  %v6061 = vadd.f32 %v6058, 1.0
  %v6062 = vadd.f32 %v6060, 1.0
  %v6063 = vrcp.pop %v6061
  %v6064 = vmul.f32 %v6061, %v6063
  %v6065 = vsub.f32 1.0, %v6064
  %v6066 = vmul.f32 %v6063, %v6065
  %v6067 = vadd.f32 %v6063, %v6066
  %vm6068 = vweird.f32 %v6061
  %vm6069 = vweird.f32 %v6063
  %vm6070 = vmor %vm6068, %vm6069
  %v6071 = vsel %vm6070, %v6063, %v6067
  %v6072 = vand.u32 2147483647, %v6061
  %vm6073 = vcmp.eq.f32.partialorder %v6072, 8.507059e+37
  %v6074 = vand.u32 %v6061, 2147483648
  %v6075 = vor.u32 1.1754944e-38, %v6074
  %v6076 = vsel %vm6073, %v6075, %v6071
  %v6077 = vmul.f32 1.0, %v6076
  %v6078 = vrcp.pop %v6062
  %v6079 = vmul.f32 %v6062, %v6078
  %v6080 = vsub.f32 1.0, %v6079
  %v6081 = vmul.f32 %v6078, %v6080
  %v6082 = vadd.f32 %v6078, %v6081
  %vm6083 = vweird.f32 %v6062
  %vm6084 = vweird.f32 %v6078
  %vm6085 = vmor %vm6083, %vm6084
  %v6086 = vsel %vm6085, %v6078, %v6082
  %v6087 = vand.u32 2147483647, %v6062
  %vm6088 = vcmp.eq.f32.partialorder %v6087, 8.507059e+37
  %v6089 = vand.u32 %v6062, 2147483648
  %v6090 = vor.u32 1.1754944e-38, %v6089
  %v6091 = vsel %vm6088, %v6090, %v6086
  %v6092 = vmul.f32 1.0, %v6091
  %v6093 = vxor.u32 %v6040, 2147483648
  %v6094 = vxor.u32 %v6048, 2147483648
  %v6095 = vmul.f32 %v6093, 1.442695
  %v6096 = vpow.pop %v6095
  %v6097 = vmul.f32 %v6094, 1.442695
  %v6098 = vpow.pop %v6097
  %v6099 = vadd.f32 %v6096, 1.0
  %v6100 = vadd.f32 %v6098, 1.0
  %v6101 = vrcp.pop %v6099
  %v6102 = vmul.f32 %v6099, %v6101
  %v6103 = vsub.f32 1.0, %v6102
  %v6104 = vmul.f32 %v6101, %v6103
  %v6105 = vadd.f32 %v6101, %v6104
  %vm6106 = vweird.f32 %v6099
  %vm6107 = vweird.f32 %v6101
  %vm6108 = vmor %vm6106, %vm6107
  %v6109 = vsel %vm6108, %v6101, %v6105
  %v6110 = vand.u32 2147483647, %v6099
  %vm6111 = vcmp.eq.f32.partialorder %v6110, 8.507059e+37
  %v6112 = vand.u32 %v6099, 2147483648
  %v6113 = vor.u32 1.1754944e-38, %v6112
  %v6114 = vsel %vm6111, %v6113, %v6109
  %v6115 = vmul.f32 1.0, %v6114
  %v6116 = vrcp.pop %v6100
  %v6117 = vmul.f32 %v6100, %v6116
  %v6118 = vsub.f32 1.0, %v6117
  %v6119 = vmul.f32 %v6116, %v6118
  %v6120 = vadd.f32 %v6116, %v6119
  %vm6121 = vweird.f32 %v6100
  %vm6122 = vweird.f32 %v6116
  %vm6123 = vmor %vm6121, %vm6122
  %v6124 = vsel %vm6123, %v6116, %v6120
  %v6125 = vand.u32 2147483647, %v6100
  %vm6126 = vcmp.eq.f32.partialorder %v6125, 8.507059e+37
  %v6127 = vand.u32 %v6100, 2147483648
  %v6128 = vor.u32 1.1754944e-38, %v6127
  %v6129 = vsel %vm6126, %v6128, %v6124
  %v6130 = vmul.f32 1.0, %v6129
  %v6131 = vtanh.pop %v6041
  %v6132 = vtanh.pop %v6049
  %v6133 = vxor.u32 %v6042, 2147483648
  %v6134 = vxor.u32 %v6050, 2147483648
  %v6135 = vmul.f32 %v6133, 1.442695
  %v6136 = vpow.pop %v6135
  %v6137 = vmul.f32 %v6134, 1.442695
  %v6138 = vpow.pop %v6137
  %v6139 = vadd.f32 %v6136, 1.0
  %v6140 = vadd.f32 %v6138, 1.0
  %v6141 = vrcp.pop %v6139
  %v6142 = vmul.f32 %v6139, %v6141
  %v6143 = vsub.f32 1.0, %v6142
  %v6144 = vmul.f32 %v6141, %v6143
  %v6145 = vadd.f32 %v6141, %v6144
  %vm6146 = vweird.f32 %v6139
  %vm6147 = vweird.f32 %v6141
  %vm6148 = vmor %vm6146, %vm6147
  %v6149 = vsel %vm6148, %v6141, %v6145
  %v6150 = vand.u32 2147483647, %v6139
  %vm6151 = vcmp.eq.f32.partialorder %v6150, 8.507059e+37
  %v6152 = vand.u32 %v6139, 2147483648
  %v6153 = vor.u32 1.1754944e-38, %v6152
  %v6154 = vsel %vm6151, %v6153, %v6149
  %v6155 = vmul.f32 1.0, %v6154
  %v6156 = vrcp.pop %v6140
  %v6157 = vmul.f32 %v6140, %v6156
  %v6158 = vsub.f32 1.0, %v6157
  %v6159 = vmul.f32 %v6156, %v6158
  %v6160 = vadd.f32 %v6156, %v6159
  %vm6161 = vweird.f32 %v6140
  %vm6162 = vweird.f32 %v6156
  %vm6163 = vmor %vm6161, %vm6162
  %v6164 = vsel %vm6163, %v6156, %v6160
  %v6165 = vand.u32 2147483647, %v6140
  %vm6166 = vcmp.eq.f32.partialorder %v6165, 8.507059e+37
  %v6167 = vand.u32 %v6140, 2147483648
  %v6168 = vor.u32 1.1754944e-38, %v6167
  %v6169 = vsel %vm6166, %v6168, %v6164
  %v6170 = vmul.f32 1.0, %v6169
  %v6171 = vmul.f32 %v6115, %v5656
  %v6172 = vmul.f32 %v6130, %v5657
  %v6173 = vmul.f32 %v6077, %v6131
  %v6174 = vmul.f32 %v6092, %v6132
  %v6175 = vadd.f32 %v6171, %v6173
  %v6176 = vadd.f32 %v6172, %v6174
  %v6177 = vtanh.pop %v6175
  %v6178 = vtanh.pop %v6176
  %v6179 = vmul.f32 %v6155, %v6177
  %v6180 = vmul.f32 %v6170, %v6178
  %v6181 = vxor.u32 %v6043, 2147483648
  %v6182 = vxor.u32 %v6051, 2147483648
  %v6183 = vmul.f32 %v6181, 1.442695
  %v6184 = vpow.pop %v6183
  %v6185 = vmul.f32 %v6182, 1.442695
  %v6186 = vpow.pop %v6185
  %v6187 = vadd.f32 %v6184, 1.0
  %v6188 = vadd.f32 %v6186, 1.0
  %v6189 = vrcp.pop %v6187
  %v6190 = vmul.f32 %v6187, %v6189
  %v6191 = vsub.f32 1.0, %v6190
  %v6192 = vmul.f32 %v6189, %v6191
  %v6193 = vadd.f32 %v6189, %v6192
  %vm6194 = vweird.f32 %v6187
  %vm6195 = vweird.f32 %v6189
  %vm6196 = vmor %vm6194, %vm6195
  %v6197 = vsel %vm6196, %v6189, %v6193
  %v6198 = vand.u32 2147483647, %v6187
  %vm6199 = vcmp.eq.f32.partialorder %v6198, 8.507059e+37
  %v6200 = vand.u32 %v6187, 2147483648
  %v6201 = vor.u32 1.1754944e-38, %v6200
  %v6202 = vsel %vm6199, %v6201, %v6197
  %v6203 = vmul.f32 1.0, %v6202
  %v6204 = vrcp.pop %v6188
  %v6205 = vmul.f32 %v6188, %v6204
  %v6206 = vsub.f32 1.0, %v6205
  %v6207 = vmul.f32 %v6204, %v6206
  %v6208 = vadd.f32 %v6204, %v6207
  %vm6209 = vweird.f32 %v6188
  %vm6210 = vweird.f32 %v6204
  %vm6211 = vmor %vm6209, %vm6210
  %v6212 = vsel %vm6211, %v6204, %v6208
  %v6213 = vand.u32 2147483647, %v6188
  %vm6214 = vcmp.eq.f32.partialorder %v6213, 8.507059e+37
  %v6215 = vand.u32 %v6188, 2147483648
  %v6216 = vor.u32 1.1754944e-38, %v6215
  %v6217 = vsel %vm6214, %v6216, %v6212
  %v6218 = vmul.f32 1.0, %v6217
  %v6219 = vxor.u32 %v6044, 2147483648
  %v6220 = vxor.u32 %v6052, 2147483648
  %v6221 = vmul.f32 %v6219, 1.442695
  %v6222 = vpow.pop %v6221
  %v6223 = vmul.f32 %v6220, 1.442695
  %v6224 = vpow.pop %v6223
  %v6225 = vadd.f32 %v6222, 1.0
  %v6226 = vadd.f32 %v6224, 1.0
  %v6227 = vrcp.pop %v6225
  %v6228 = vmul.f32 %v6225, %v6227
  %v6229 = vsub.f32 1.0, %v6228
  %v6230 = vmul.f32 %v6227, %v6229
  %v6231 = vadd.f32 %v6227, %v6230
  %vm6232 = vweird.f32 %v6225
  %vm6233 = vweird.f32 %v6227
  %vm6234 = vmor %vm6232, %vm6233
  %v6235 = vsel %vm6234, %v6227, %v6231
  %v6236 = vand.u32 2147483647, %v6225
  %vm6237 = vcmp.eq.f32.partialorder %v6236, 8.507059e+37
  %v6238 = vand.u32 %v6225, 2147483648
  %v6239 = vor.u32 1.1754944e-38, %v6238
  %v6240 = vsel %vm6237, %v6239, %v6235
  %v6241 = vmul.f32 1.0, %v6240
  %v6242 = vrcp.pop %v6226
  %v6243 = vmul.f32 %v6226, %v6242
  %v6244 = vsub.f32 1.0, %v6243
  %v6245 = vmul.f32 %v6242, %v6244
  %v6246 = vadd.f32 %v6242, %v6245
  %vm6247 = vweird.f32 %v6226
  %vm6248 = vweird.f32 %v6242
  %vm6249 = vmor %vm6247, %vm6248
  %v6250 = vsel %vm6249, %v6242, %v6246
  %v6251 = vand.u32 2147483647, %v6226
  %vm6252 = vcmp.eq.f32.partialorder %v6251, 8.507059e+37
  %v6253 = vand.u32 %v6226, 2147483648
  %v6254 = vor.u32 1.1754944e-38, %v6253
  %v6255 = vsel %vm6252, %v6254, %v6250
  %v6256 = vmul.f32 1.0, %v6255
  %v6257 = vtanh.pop %v6045
  %v6258 = vtanh.pop %v6053
  %v6259 = vxor.u32 %v6046, 2147483648
  %v6260 = vxor.u32 %v6054, 2147483648
  %v6261 = vmul.f32 %v6259, 1.442695
  %v6262 = vpow.pop %v6261
  %v6263 = vmul.f32 %v6260, 1.442695
  %v6264 = vpow.pop %v6263
  %v6265 = vadd.f32 %v6262, 1.0
  %v6266 = vadd.f32 %v6264, 1.0
  %v6267 = vrcp.pop %v6265
  %v6268 = vmul.f32 %v6265, %v6267
  %v6269 = vsub.f32 1.0, %v6268
  %v6270 = vmul.f32 %v6267, %v6269
  %v6271 = vadd.f32 %v6267, %v6270
  %vm6272 = vweird.f32 %v6265
  %vm6273 = vweird.f32 %v6267
  %vm6274 = vmor %vm6272, %vm6273
  %v6275 = vsel %vm6274, %v6267, %v6271
  %v6276 = vand.u32 2147483647, %v6265
  %vm6277 = vcmp.eq.f32.partialorder %v6276, 8.507059e+37
  %v6278 = vand.u32 %v6265, 2147483648
  %v6279 = vor.u32 1.1754944e-38, %v6278
  %v6280 = vsel %vm6277, %v6279, %v6275
  %v6281 = vmul.f32 1.0, %v6280
  %v6282 = vrcp.pop %v6266
  %v6283 = vmul.f32 %v6266, %v6282
  %v6284 = vsub.f32 1.0, %v6283
  %v6285 = vmul.f32 %v6282, %v6284
  %v6286 = vadd.f32 %v6282, %v6285
  %vm6287 = vweird.f32 %v6266
  %vm6288 = vweird.f32 %v6282
  %vm6289 = vmor %vm6287, %vm6288
  %v6290 = vsel %vm6289, %v6282, %v6286
  %v6291 = vand.u32 2147483647, %v6266
  %vm6292 = vcmp.eq.f32.partialorder %v6291, 8.507059e+37
  %v6293 = vand.u32 %v6266, 2147483648
  %v6294 = vor.u32 1.1754944e-38, %v6293
  %v6295 = vsel %vm6292, %v6294, %v6290
  %v6296 = vmul.f32 1.0, %v6295
  %v6297 = vmul.f32 %v6241, %v5782
  %v6298 = vmul.f32 %v6256, %v5783
  %v6299 = vmul.f32 %v6203, %v6257
  %v6300 = vmul.f32 %v6218, %v6258
  %v6301 = vadd.f32 %v6297, %v6299
  %v6302 = vadd.f32 %v6298, %v6300
  %v6303 = vtanh.pop %v6301
  %v6304 = vtanh.pop %v6302
  %v6305 = vmul.f32 %v6281, %v6303
  %v6306 = vmul.f32 %v6296, %v6304
  %v6307 = vpack.c.bf16 %v6305, %v6179
  %v6308 = vpack.c.bf16 %v6306, %v6180
  %v6309 = vld [vmem:[%s11] sm:$0xf]
  %v6310 = vld [vmem:[%s11 + $0x4] sm:$0xf]
  %v6311 = vld [vmem:[%s11 + $0x8] sm:$0xf]
  %v6312 = vld [vmem:[%s11 + $0xc] sm:$0xf]
  %v6313 = vld [vmem:[%s11 + $0x10] sm:$0xf]
  %v6314 = vld [vmem:[%s11 + $0x14] sm:$0xf]
  %v6315 = vld [vmem:[%s11 + $0x18] sm:$0xf]
  %v6316 = vld [vmem:[%s11 + $0x1c] sm:$0xf]
  %v6317 = vld [vmem:[%s11 + $0x20] sm:$0xf]
  %v6318 = vld [vmem:[%s11 + $0x24] sm:$0xf]
  %v6319 = vld [vmem:[%s11 + $0x28] sm:$0xf]
  %v6320 = vld [vmem:[%s11 + $0x2c] sm:$0xf]
  %v6321 = vld [vmem:[%s11 + $0x30] sm:$0xf]
  %v6322 = vld [vmem:[%s11 + $0x34] sm:$0xf]
  %v6323 = vld [vmem:[%s11 + $0x38] sm:$0xf]
  %v6324 = vld [vmem:[%s11 + $0x3c] sm:$0xf]
  %v6325 = vld [vmem:[%s11 + $0x40] sm:$0xf]
  %v6326 = vld [vmem:[%s11 + $0x44] sm:$0xf]
  %v6327 = vld [vmem:[%s11 + $0x48] sm:$0xf]
  %v6328 = vld [vmem:[%s11 + $0x4c] sm:$0xf]
  %v6329 = vld [vmem:[%s11 + $0x50] sm:$0xf]
  %v6330 = vld [vmem:[%s11 + $0x54] sm:$0xf]
  %v6331 = vld [vmem:[%s11 + $0x58] sm:$0xf]
  %v6332 = vld [vmem:[%s11 + $0x5c] sm:$0xf]
  %v6333 = vld [vmem:[%s11 + $0x60] sm:$0xf]
  %v6334 = vld [vmem:[%s11 + $0x64] sm:$0xf]
  %v6335 = vld [vmem:[%s11 + $0x68] sm:$0xf]
  %v6336 = vld [vmem:[%s11 + $0x6c] sm:$0xf]
  %v6337 = vld [vmem:[%s11 + $0x70] sm:$0xf]
  %v6338 = vld [vmem:[%s11 + $0x74] sm:$0xf]
  %v6339 = vld [vmem:[%s11 + $0x78] sm:$0xf]
  %v6340 = vld [vmem:[%s11 + $0x7c] sm:$0xf]
  %v6341 = vld [vmem:[%s12] sm:$0x1]
  %v6343 = vperm.slane %v6341, 0
  %v6347 = vunpack.c.l.b16 %v6307
  %v6348 = vunpack.c.h.b16 %v6307
  %v6349 = vunpack.c.l.b16 %v6308
  %v6350 = vunpack.c.h.b16 %v6308
  %v6351 = vpack.c.b16 %v6349, %v6347
  %v6352 = vpack.c.b16 %v6350, %v6348
  %v6387 = vunpack.c.l.b16 %v6309
  %v6388 = vunpack.c.l.b16 %v6310
  %v6389 = vunpack.c.l.b16 %v6311
  %v6390 = vunpack.c.l.b16 %v6312
  %v6391 = vunpack.c.l.b16 %v6313
  %v6392 = vunpack.c.l.b16 %v6314
  %v6393 = vunpack.c.l.b16 %v6315
  %v6394 = vunpack.c.l.b16 %v6316
  %v6395 = vunpack.c.l.b16 %v6317
  %v6396 = vunpack.c.l.b16 %v6318
  %v6397 = vunpack.c.l.b16 %v6319
  %v6398 = vunpack.c.l.b16 %v6320
  %v6399 = vunpack.c.l.b16 %v6321
  %v6400 = vunpack.c.l.b16 %v6322
  %v6401 = vunpack.c.l.b16 %v6323
  %v6402 = vunpack.c.l.b16 %v6324
  %v6403 = vunpack.c.l.b16 %v6325
  %v6404 = vunpack.c.l.b16 %v6326
  %v6405 = vunpack.c.l.b16 %v6327
  %v6406 = vunpack.c.l.b16 %v6328
  %v6407 = vunpack.c.l.b16 %v6329
  %v6408 = vunpack.c.l.b16 %v6330
  %v6409 = vunpack.c.l.b16 %v6331
  %v6410 = vunpack.c.l.b16 %v6332
  %v6411 = vunpack.c.l.b16 %v6333
  %v6412 = vunpack.c.l.b16 %v6334
  %v6413 = vunpack.c.l.b16 %v6335
  %v6414 = vunpack.c.l.b16 %v6336
  %v6415 = vunpack.c.l.b16 %v6337
  %v6416 = vunpack.c.l.b16 %v6338
  %v6417 = vunpack.c.l.b16 %v6339
  %v6418 = vunpack.c.l.b16 %v6340
  %v6419 = vpack.c.b16 %v6388, %v6387
  %v6420 = vpack.c.b16 %v6390, %v6389
  %v6421 = vpack.c.b16 %v6392, %v6391
  %v6422 = vpack.c.b16 %v6394, %v6393
  %v6423 = vpack.c.b16 %v6396, %v6395
  %v6424 = vpack.c.b16 %v6398, %v6397
  %v6425 = vpack.c.b16 %v6400, %v6399
  %v6426 = vpack.c.b16 %v6402, %v6401
  %v6427 = vpack.c.b16 %v6404, %v6403
  %v6428 = vpack.c.b16 %v6406, %v6405
  %v6429 = vpack.c.b16 %v6408, %v6407
  %v6430 = vpack.c.b16 %v6410, %v6409
  %v6431 = vpack.c.b16 %v6412, %v6411
  %v6432 = vpack.c.b16 %v6414, %v6413
  %v6433 = vpack.c.b16 %v6416, %v6415
  %v6434 = vpack.c.b16 %v6418, %v6417
  %6451 = vmatpush.bf16.msra.mxu0 %v6426
  %6452 = vmatpush.bf16.msra.mxu0 %v6425
  %6453 = vmatpush.bf16.msra.mxu0 %v6424
  %6454 = vmatpush.bf16.msra.mxu0 %v6423
  %6455 = vmatpush.bf16.msra.mxu0 %v6422
  %6456 = vmatpush.bf16.msra.mxu0 %v6421
  %6457 = vmatpush.bf16.msra.mxu0 %v6420
  %6458 = vmatpush.bf16.msra.mxu0 %v6419
  %6459 = vmatmul.bf16.gmra.mxu0 %v6351
  %v6460 = vpop.f32.mrf.mxu0
  %v6461 = vadd.f32 %v6343, %v6460
  %v6462 = vpop.f32.mrf.mxu0
  %v6463 = vadd.f32 %v6343, %v6462
  %6464 = vdwg.mxu0
  %6465 = vmatpush.bf16.msra.mxu0 %v6434
  %6466 = vmatpush.bf16.msra.mxu0 %v6433
  %6467 = vmatpush.bf16.msra.mxu0 %v6432
  %6468 = vmatpush.bf16.msra.mxu0 %v6431
  %6469 = vmatpush.bf16.msra.mxu0 %v6430
  %6470 = vmatpush.bf16.msra.mxu0 %v6429
  %6471 = vmatpush.bf16.msra.mxu0 %v6428
  %6472 = vmatpush.bf16.msra.mxu0 %v6427
  %6473 = vmatmul.bf16.gmra.mxu0 %v6352
  %v6474 = vpop.f32.mrf.mxu0
  %v6475 = vadd.f32 %v6461, %v6474
  %v6476 = vpop.f32.mrf.mxu0
  %v6477 = vadd.f32 %v6463, %v6476
  %6478 = vdwg.mxu0
  %v6479 = vld [vmem:[%s10] sm:$0xf]
  %v6480 = vld [vmem:[%s14] sm:$0xf]
  %v6481 = vld [vmem:[%s14 + $0x4] sm:$0xf]
  %v6482 = vld [vmem:[%s14 + $0x8] sm:$0xf]
  %v6483 = vld [vmem:[%s14 + $0xc] sm:$0xf]
  %v6484 = vld [vmem:[%s14 + $0x10] sm:$0xf]
  %v6485 = vld [vmem:[%s14 + $0x14] sm:$0xf]
  %v6486 = vld [vmem:[%s14 + $0x18] sm:$0xf]
  %v6487 = vld [vmem:[%s14 + $0x1c] sm:$0xf]
  %v6488 = vld [vmem:[%s14 + $0x20] sm:$0xf]
  %v6489 = vld [vmem:[%s14 + $0x24] sm:$0xf]
  %v6490 = vld [vmem:[%s14 + $0x28] sm:$0xf]
  %v6491 = vld [vmem:[%s14 + $0x2c] sm:$0xf]
  %v6492 = vld [vmem:[%s14 + $0x30] sm:$0xf]
  %v6493 = vld [vmem:[%s14 + $0x34] sm:$0xf]
  %v6494 = vld [vmem:[%s14 + $0x38] sm:$0xf]
  %v6495 = vld [vmem:[%s14 + $0x3c] sm:$0xf]
  %v6512 = vunpack.c.l.b16 %v6480
  %v6513 = vunpack.c.l.b16 %v6481
  %v6514 = vunpack.c.l.b16 %v6482
  %v6515 = vunpack.c.l.b16 %v6483
  %v6516 = vunpack.c.l.b16 %v6484
  %v6517 = vunpack.c.l.b16 %v6485
  %v6518 = vunpack.c.l.b16 %v6486
  %v6519 = vunpack.c.l.b16 %v6487
  %v6520 = vunpack.c.l.b16 %v6488
  %v6521 = vunpack.c.l.b16 %v6489
  %v6522 = vunpack.c.l.b16 %v6490
  %v6523 = vunpack.c.l.b16 %v6491
  %v6524 = vunpack.c.l.b16 %v6492
  %v6525 = vunpack.c.l.b16 %v6493
  %v6526 = vunpack.c.l.b16 %v6494
  %v6527 = vunpack.c.l.b16 %v6495
  %v6528 = vpack.c.b16 %v6513, %v6512
  %v6529 = vpack.c.b16 %v6515, %v6514
  %v6530 = vpack.c.b16 %v6517, %v6516
  %v6531 = vpack.c.b16 %v6519, %v6518
  %v6532 = vpack.c.b16 %v6521, %v6520
  %v6533 = vpack.c.b16 %v6523, %v6522
  %v6534 = vpack.c.b16 %v6525, %v6524
  %v6535 = vpack.c.b16 %v6527, %v6526
  %6544 = vmatpush.bf16.msra.mxu0 %v6535
  %6545 = vmatpush.bf16.msra.mxu0 %v6534
  %6546 = vmatpush.bf16.msra.mxu0 %v6533
  %6547 = vmatpush.bf16.msra.mxu0 %v6532
  %6548 = vmatpush.bf16.msra.mxu0 %v6531
  %6549 = vmatpush.bf16.msra.mxu0 %v6530
  %6550 = vmatpush.bf16.msra.mxu0 %v6529
  %6551 = vmatpush.bf16.msra.mxu0 %v6528
  %6552 = vmatmul.bf16.gmra.mxu0 %v6479
  %v6553 = vpop.f32.mrf.mxu0
  %v6554 = vadd.f32 0.0, %v6553
  %v6555 = vpop.f32.mrf.mxu0
  %6556 = vdwg.mxu0
  %v6557 = vpack.c.bf16 %v6475, %v6475
  %v6558 = vpack.c.bf16 %v6477, %v6477
  %v6561 = vunpack.c.l.b16 %v6557
  %v6562 = vunpack.c.l.b16 %v6558
  %v6563 = vpack.c.b16 %v6562, %v6561
  %v6565 = vld [vmem:[%s13] sm:$0xf]
  %v6566 = vld [vmem:[%s13 + $0x4] sm:$0xf]
  %v6567 = vld [vmem:[%s13 + $0x8] sm:$0xf]
  %v6568 = vld [vmem:[%s13 + $0xc] sm:$0xf]
  %v6569 = vld [vmem:[%s13 + $0x10] sm:$0xf]
  %v6570 = vld [vmem:[%s13 + $0x14] sm:$0xf]
  %v6571 = vld [vmem:[%s13 + $0x18] sm:$0xf]
  %v6572 = vld [vmem:[%s13 + $0x1c] sm:$0xf]
  %v6573 = vld [vmem:[%s13 + $0x20] sm:$0xf]
  %v6574 = vld [vmem:[%s13 + $0x24] sm:$0xf]
  %v6575 = vld [vmem:[%s13 + $0x28] sm:$0xf]
  %v6576 = vld [vmem:[%s13 + $0x2c] sm:$0xf]
  %v6577 = vld [vmem:[%s13 + $0x30] sm:$0xf]
  %v6578 = vld [vmem:[%s13 + $0x34] sm:$0xf]
  %v6579 = vld [vmem:[%s13 + $0x38] sm:$0xf]
  %v6580 = vld [vmem:[%s13 + $0x3c] sm:$0xf]
  %v6581 = vld [vmem:[%s13 + $0x40] sm:$0xf]
  %v6582 = vld [vmem:[%s13 + $0x44] sm:$0xf]
  %v6583 = vld [vmem:[%s13 + $0x48] sm:$0xf]
  %v6584 = vld [vmem:[%s13 + $0x4c] sm:$0xf]
  %v6585 = vld [vmem:[%s13 + $0x50] sm:$0xf]
  %v6586 = vld [vmem:[%s13 + $0x54] sm:$0xf]
  %v6587 = vld [vmem:[%s13 + $0x58] sm:$0xf]
  %v6588 = vld [vmem:[%s13 + $0x5c] sm:$0xf]
  %v6589 = vld [vmem:[%s13 + $0x60] sm:$0xf]
  %v6590 = vld [vmem:[%s13 + $0x64] sm:$0xf]
  %v6591 = vld [vmem:[%s13 + $0x68] sm:$0xf]
  %v6592 = vld [vmem:[%s13 + $0x6c] sm:$0xf]
  %v6593 = vld [vmem:[%s13 + $0x70] sm:$0xf]
  %v6594 = vld [vmem:[%s13 + $0x74] sm:$0xf]
  %v6595 = vld [vmem:[%s13 + $0x78] sm:$0xf]
  %v6596 = vld [vmem:[%s13 + $0x7c] sm:$0xf]
  %v6629 = vunpack.c.l.b16 %v6565
  %v6630 = vunpack.c.l.b16 %v6566
  %v6631 = vunpack.c.l.b16 %v6567
  %v6632 = vunpack.c.l.b16 %v6568
  %v6633 = vunpack.c.l.b16 %v6569
  %v6634 = vunpack.c.l.b16 %v6570
  %v6635 = vunpack.c.l.b16 %v6571
  %v6636 = vunpack.c.l.b16 %v6572
  %v6637 = vunpack.c.l.b16 %v6573
  %v6638 = vunpack.c.l.b16 %v6574
  %v6639 = vunpack.c.l.b16 %v6575
  %v6640 = vunpack.c.l.b16 %v6576
  %v6641 = vunpack.c.l.b16 %v6577
  %v6642 = vunpack.c.l.b16 %v6578
  %v6643 = vunpack.c.l.b16 %v6579
  %v6644 = vunpack.c.l.b16 %v6580
  %v6645 = vunpack.c.l.b16 %v6581
  %v6646 = vunpack.c.l.b16 %v6582
  %v6647 = vunpack.c.l.b16 %v6583
  %v6648 = vunpack.c.l.b16 %v6584
  %v6649 = vunpack.c.l.b16 %v6585
  %v6650 = vunpack.c.l.b16 %v6586
  %v6651 = vunpack.c.l.b16 %v6587
  %v6652 = vunpack.c.l.b16 %v6588
  %v6653 = vunpack.c.l.b16 %v6589
  %v6654 = vunpack.c.l.b16 %v6590
  %v6655 = vunpack.c.l.b16 %v6591
  %v6656 = vunpack.c.l.b16 %v6592
  %v6657 = vunpack.c.l.b16 %v6593
  %v6658 = vunpack.c.l.b16 %v6594
  %v6659 = vunpack.c.l.b16 %v6595
  %v6660 = vunpack.c.l.b16 %v6596
  %v6661 = vpack.c.b16 %v6630, %v6629
  %v6662 = vpack.c.b16 %v6632, %v6631
  %v6663 = vpack.c.b16 %v6634, %v6633
  %v6664 = vpack.c.b16 %v6636, %v6635
  %v6665 = vpack.c.b16 %v6638, %v6637
  %v6666 = vpack.c.b16 %v6640, %v6639
  %v6667 = vpack.c.b16 %v6642, %v6641
  %v6668 = vpack.c.b16 %v6644, %v6643
  %v6669 = vpack.c.b16 %v6646, %v6645
  %v6670 = vpack.c.b16 %v6648, %v6647
  %v6671 = vpack.c.b16 %v6650, %v6649
  %v6672 = vpack.c.b16 %v6652, %v6651
  %v6673 = vpack.c.b16 %v6654, %v6653
  %v6674 = vpack.c.b16 %v6656, %v6655
  %v6675 = vpack.c.b16 %v6658, %v6657
  %v6676 = vpack.c.b16 %v6660, %v6659
  %6693 = vmatpush.bf16.msra.mxu0 %v6668
  %6694 = vmatpush.bf16.msra.mxu0 %v6667
  %6695 = vmatpush.bf16.msra.mxu0 %v6666
  %6696 = vmatpush.bf16.msra.mxu0 %v6665
  %6697 = vmatpush.bf16.msra.mxu0 %v6664
  %6698 = vmatpush.bf16.msra.mxu0 %v6663
  %6699 = vmatpush.bf16.msra.mxu0 %v6662
  %6700 = vmatpush.bf16.msra.mxu0 %v6661
  %6701 = vmatmul.bf16.gmra.mxu0 %v6351
  %v6702 = vpop.f32.mrf.mxu0
  %v6703 = vadd.f32 %v6554, %v6702
  %v6704 = vpop.f32.mrf.mxu0
  %v6705 = vadd.f32 %v6554, %v6704
  %6706 = vdwg.mxu0
  %6707 = vmatpush.bf16.msra.mxu0 %v6676
  %6708 = vmatpush.bf16.msra.mxu0 %v6675
  %6709 = vmatpush.bf16.msra.mxu0 %v6674
  %6710 = vmatpush.bf16.msra.mxu0 %v6673
  %6711 = vmatpush.bf16.msra.mxu0 %v6672
  %6712 = vmatpush.bf16.msra.mxu0 %v6671
  %6713 = vmatpush.bf16.msra.mxu0 %v6670
  %6714 = vmatpush.bf16.msra.mxu0 %v6669
  %6715 = vmatmul.bf16.gmra.mxu0 %v6563
  %v6716 = vpop.f32.mrf.mxu0
  %v6717 = vadd.f32 %v6703, %v6716
  %v6718 = vpop.f32.mrf.mxu0
  %v6719 = vadd.f32 %v6705, %v6718
  %6720 = vdwg.mxu0
  %v6721 = vld [vmem:[%s15] sm:$0x1]
  %v6723 = vperm.slane %v6721, 0
  %v6725 = vadd.f32 %v6717, %v6723
  %v6726 = vadd.f32 %v6719, %v6723
  %v6727 = vmax.f32 %v6725, 0.0
  %v6728 = vmax.f32 %v6726, 0.0
  %v6729 = vpack.c.bf16 %v6728, %v6727
  %v6730 = vld [vmem:[%s16] sm:$0xf]
  %v6731 = vld [vmem:[%s16 + $0x4] sm:$0xf]
  %v6732 = vld [vmem:[%s16 + $0x8] sm:$0xf]
  %v6733 = vld [vmem:[%s16 + $0xc] sm:$0xf]
  %v6734 = vld [vmem:[%s16 + $0x10] sm:$0xf]
  %v6735 = vld [vmem:[%s16 + $0x14] sm:$0xf]
  %v6736 = vld [vmem:[%s16 + $0x18] sm:$0xf]
  %v6737 = vld [vmem:[%s16 + $0x1c] sm:$0xf]
  %v6738 = vld [vmem:[%s16 + $0x20] sm:$0xf]
  %v6739 = vld [vmem:[%s16 + $0x24] sm:$0xf]
  %v6740 = vld [vmem:[%s16 + $0x28] sm:$0xf]
  %v6741 = vld [vmem:[%s16 + $0x2c] sm:$0xf]
  %v6742 = vld [vmem:[%s16 + $0x30] sm:$0xf]
  %v6743 = vld [vmem:[%s16 + $0x34] sm:$0xf]
  %v6744 = vld [vmem:[%s16 + $0x38] sm:$0xf]
  %v6745 = vld [vmem:[%s16 + $0x3c] sm:$0xf]
  %v6746 = vld [vmem:[%s17] sm:$0x1]
  %v6748 = vperm.slane %v6746, 0
  %v6766 = vunpack.c.l.b16 %v6730
  %v6767 = vunpack.c.l.b16 %v6731
  %v6768 = vunpack.c.l.b16 %v6732
  %v6769 = vunpack.c.l.b16 %v6733
  %v6770 = vunpack.c.l.b16 %v6734
  %v6771 = vunpack.c.l.b16 %v6735
  %v6772 = vunpack.c.l.b16 %v6736
  %v6773 = vunpack.c.l.b16 %v6737
  %v6774 = vunpack.c.l.b16 %v6738
  %v6775 = vunpack.c.l.b16 %v6739
  %v6776 = vunpack.c.l.b16 %v6740
  %v6777 = vunpack.c.l.b16 %v6741
  %v6778 = vunpack.c.l.b16 %v6742
  %v6779 = vunpack.c.l.b16 %v6743
  %v6780 = vunpack.c.l.b16 %v6744
  %v6781 = vunpack.c.l.b16 %v6745
  %v6782 = vpack.c.b16 %v6767, %v6766
  %v6783 = vpack.c.b16 %v6769, %v6768
  %v6784 = vpack.c.b16 %v6771, %v6770
  %v6785 = vpack.c.b16 %v6773, %v6772
  %v6786 = vpack.c.b16 %v6775, %v6774
  %v6787 = vpack.c.b16 %v6777, %v6776
  %v6788 = vpack.c.b16 %v6779, %v6778
  %v6789 = vpack.c.b16 %v6781, %v6780
  %6798 = vmatpush.bf16.msra.mxu0 %v6789
  %6799 = vmatpush.bf16.msra.mxu0 %v6788
  %6800 = vmatpush.bf16.msra.mxu0 %v6787
  %6801 = vmatpush.bf16.msra.mxu0 %v6786
  %6802 = vmatpush.bf16.msra.mxu0 %v6785
  %6803 = vmatpush.bf16.msra.mxu0 %v6784
  %6804 = vmatpush.bf16.msra.mxu0 %v6783
  %6805 = vmatpush.bf16.msra.mxu0 %v6782
  %6806 = vmatmul.bf16.gmra.mxu0 %v6729
  %v6807 = vpop.f32.mrf.mxu0
  %v6808 = vadd.f32 %v6748, %v6807
  %v6809 = vpop.f32.mrf.mxu0
  %v6810 = vadd.f32 %v6748, %v6809
  %6811 = vdwg.mxu0
  %v6812 = vmax.f32 %v6808, 0.0
  %v6813 = vmax.f32 %v6810, 0.0
  %v6814 = vpack.c.bf16 %v6813, %v6812
  %v6815 = vld [vmem:[%s18] sm:$0xf]
  %v6816 = vld [vmem:[%s18 + $0x4] sm:$0xf]
  %v6817 = vld [vmem:[%s18 + $0x8] sm:$0xf]
  %v6818 = vld [vmem:[%s18 + $0xc] sm:$0xf]
  %v6819 = vld [vmem:[%s18 + $0x10] sm:$0xf]
  %v6820 = vld [vmem:[%s18 + $0x14] sm:$0xf]
  %v6821 = vld [vmem:[%s18 + $0x18] sm:$0xf]
  %v6822 = vld [vmem:[%s18 + $0x1c] sm:$0xf]
  %v6823 = vld [vmem:[%s18 + $0x20] sm:$0xf]
  %v6824 = vld [vmem:[%s18 + $0x24] sm:$0xf]
  %v6825 = vld [vmem:[%s18 + $0x28] sm:$0xf]
  %v6826 = vld [vmem:[%s18 + $0x2c] sm:$0xf]
  %v6827 = vld [vmem:[%s18 + $0x30] sm:$0xf]
  %v6828 = vld [vmem:[%s18 + $0x34] sm:$0xf]
  %v6829 = vld [vmem:[%s18 + $0x38] sm:$0xf]
  %v6830 = vld [vmem:[%s18 + $0x3c] sm:$0xf]
  %v6831 = vld [vmem:[%s19] sm:$0x1]
  %v6833 = vperm.slane %v6831, 0
  %v6851 = vunpack.c.l.b16 %v6815
  %v6852 = vunpack.c.l.b16 %v6816
  %v6853 = vunpack.c.l.b16 %v6817
  %v6854 = vunpack.c.l.b16 %v6818
  %v6855 = vunpack.c.l.b16 %v6819
  %v6856 = vunpack.c.l.b16 %v6820
  %v6857 = vunpack.c.l.b16 %v6821
  %v6858 = vunpack.c.l.b16 %v6822
  %v6859 = vunpack.c.l.b16 %v6823
  %v6860 = vunpack.c.l.b16 %v6824
  %v6861 = vunpack.c.l.b16 %v6825
  %v6862 = vunpack.c.l.b16 %v6826
  %v6863 = vunpack.c.l.b16 %v6827
  %v6864 = vunpack.c.l.b16 %v6828
  %v6865 = vunpack.c.l.b16 %v6829
  %v6866 = vunpack.c.l.b16 %v6830
  %v6867 = vpack.c.b16 %v6852, %v6851
  %v6868 = vpack.c.b16 %v6854, %v6853
  %v6869 = vpack.c.b16 %v6856, %v6855
  %v6870 = vpack.c.b16 %v6858, %v6857
  %v6871 = vpack.c.b16 %v6860, %v6859
  %v6872 = vpack.c.b16 %v6862, %v6861
  %v6873 = vpack.c.b16 %v6864, %v6863
  %v6874 = vpack.c.b16 %v6866, %v6865
  %6883 = vmatpush.bf16.msra.mxu0 %v6874
  %6884 = vmatpush.bf16.msra.mxu0 %v6873
  %6885 = vmatpush.bf16.msra.mxu0 %v6872
  %6886 = vmatpush.bf16.msra.mxu0 %v6871
  %6887 = vmatpush.bf16.msra.mxu0 %v6870
  %6888 = vmatpush.bf16.msra.mxu0 %v6869
  %6889 = vmatpush.bf16.msra.mxu0 %v6868
  %6890 = vmatpush.bf16.msra.mxu0 %v6867
  %6891 = vmatmul.bf16.gmra.mxu0 %v6814
  %v6892 = vpop.f32.mrf.mxu0
  %v6893 = vadd.f32 %v6833, %v6892
  %v6894 = vpop.f32.mrf.mxu0
  %v6895 = vadd.f32 %v6833, %v6894
  %6896 = vdwg.mxu0
  %6897 = vmax.xlane.f32.xlu0 %v6893
  %v6898 = vpop.xlane.xlu0 %6897
  %6899 = vmax.xlane.f32.xlu0 %v6895
  %v6900 = vpop.xlane.xlu0 %6899
  %v6901 = vsub.f32 %v6893, %v6898
  %v6902 = vsub.f32 %v6895, %v6900
  %v6903 = vmul.f32 %v6901, 1.442695
  %v6904 = vpow.pop %v6903
  %v6905 = vmul.f32 %v6902, 1.442695
  %v6906 = vpow.pop %v6905
  %6907 = vadd.xlane.f32.xlu0 %v6904
  %v6908 = vpop.xlane.xlu0 %6907
  %6909 = vadd.xlane.f32.xlu0 %v6906
  %v6910 = vpop.xlane.xlu0 %6909
  %v6911 = vlog2.pop %v6908
  %v6912 = vmul.f32 %v6911, 0.6931472
  %v6913 = vlog2.pop %v6910
  %v6914 = vmul.f32 %v6913, 0.6931472
  %v6915 = vsub.f32 %v6901, %v6912
  %v6916 = vsub.f32 %v6902, %v6914
  %vm6917 = vcmp.ge.f32.partialorder %v6915, 0.0
  %vm6918 = vcmp.ge.f32.partialorder %v6916, 0.0
  %v6919 = vmul.f32 %v6915, 0.01
  %v6920 = vmul.f32 %v6916, 0.01
  %v6921 = vsel %vm6917, %v6915, %v6919
  %v6922 = vsel %vm6918, %v6916, %v6920
  %6923 = vst [vmem:[%s20] sm:$0xff] %v6921
  %6924 = vst [vmem:[%s20 + $0x8] sm:$0xff] %v6922
  // Predicated region
  $region82: #{chgh_forward.1} parent=0 // pred_check
    _
  $region83: #{chgh_forward.1} parent=0 // pred_check_branch
    %6926 = sbr.rel (0) target = $region85
  $region84: #{chgh_forward.1} parent=0 // pred_region
    _
  $region85: #{chgh_forward.1} parent=0 // pred_fallthru
    _
  // Predicated region
  $region86: #{chgh_forward.1} parent=0 // pred_check
    _
  $region87: #{chgh_forward.1} parent=0 // pred_check_branch
    %6928 = sbr.rel (0) target = $region89
  $region88: #{chgh_forward.1} parent=0 // pred_region
    _
  $region89: #{chgh_forward.1} parent=0 // pred_fallthru
    _

</llo_original>
